<compile_context>
chip_gen: v7x
topology: tpu7x:2x2x1
jax: 0.10.0
libtpu: 0.0.40
codegen_flags: <defaults>
</compile_context>

<pallas_src>
import functools
import numpy as np
import jax
import jax.numpy as jnp
from jax.experimental import pallas as pl
from jax.experimental.pallas import tpu as pltpu

# ---------------- configuration (synthetic, deterministic) ----------------
IMG_H = IMG_W = 64          # padded input image (pad_shape / max_size)
STRIDE = 4                  # backbone downsample
MH = IMG_H // STRIDE        # mask feature height
MW = IMG_W // STRIDE        # mask feature width
HW = MH * MW                # 256 -> lane-dense mask output
CIN = 3                     # RGB
CIN_PAD = 8                 # pad input channels for layout (sublane dim)
BIAS_ROW = CIN              # x row that carries constant 1.0 (drives bias rows of w_enc)
DIM = 32                    # feature / kernel dim
DIM_EXT = DIM + 1           # feature dim + constant-one column (IAM normalizer / bias feed)
N_INST = 8                  # number of instance queries
NUM_CLASSES = 16
PREV_INTRODUCED_CLS = 5
CUR_INTRODUCED_CLS = 5
INVALID_CLS = list(range(PREV_INTRODUCED_CLS + CUR_INTRODUCED_CLS, NUM_CLASSES - 1))
TEMPERATURE = 1.3
CLS_THRESHOLD = 0.005
MASK_THRESHOLD = 0.45       # cfg.MODEL.SPARSE_INST.MASK_THRESHOLD (final binarization)
RESCORE_THRESHOLD = 0.45    # hard-coded 0.45 in the reference rescoring_mask call
RESIZED_SIZE = (60, 60)     # img_shape (h1, w1)
ORI_SIZE = (50, 50)         # ori_shape (h3, w3);  h3*w3 < h1*w1 < h2*w2
SLAB_LANES = 128            # lane-dense packed scalar output width

MI_W = DIM + N_INST                 # fused mask_feat | iam output width
HEADS_W = NUM_CLASSES + 1 + DIM     # fused logits | obj | kernel output width

VMEM_SPEC = pl.BlockSpec(memory_space=pltpu.MemorySpace.VMEM)


# ---------------- fused Pallas kernel ----------------
def sparseinst_fused_kernel(x_ref, w_enc_ref, w_mi_ref, w_heads_ref,
                            slab_ref, sigmask_ref):
    x = x_ref[...]                                                       # [CIN_PAD, HW]

    # ---- encoder: 1x1 conv (matmul) + ReLU, contracting the channel (sublane) dim of both
    # operands; column DIM of the output is the constant-one column (bias feed + IAM denom).
    feat = jnp.maximum(
        jax.lax.dot_general(x, w_enc_ref[...], (((0,), (0,)), ((), ())),
                            preferred_element_type=jnp.float32), 0.0)    # [HW, DIM_EXT]

    # ---- decoder: mask branch + IAM branch in ONE matmul (biases folded into row DIM) ----
    mi = jnp.dot(feat, w_mi_ref[...], preferred_element_type=jnp.float32)  # [HW, DIM+N]
    mask_feat = jnp.maximum(mi[:, :DIM], 0.0)                               # [HW, DIM]
    iam = jax.nn.sigmoid(mi[:, DIM:])                                       # [HW, N]

    # ---- normalized IAM pooling, denominator folded into the same MXU pass:
    # contracting HW (dim 0 of both) against feat's constant-one column yields denom.
    inst_den = jax.lax.dot_general(iam, feat, (((0,), (0,)), ((), ())),
                                   preferred_element_type=jnp.float32)      # [N, DIM_EXT]
    denom = inst_den[:, DIM:DIM_EXT]                                         # [N, 1]
    inv = 1.0 / (denom + 1e-6)                       # exact divide (8 scalars) for parity
    lane = jax.lax.broadcasted_iota(jnp.int32, inst_den.shape, 1)
    # normalized instance features, with the trailing column forced to exactly 1.0 so that
    # the head biases (row DIM of w_heads) are added exactly.
    inst_ext = jnp.where(lane == DIM, 1.0, inst_den * inv)                   # [N, DIM_EXT]

    # ---- decoder heads: cls | obj | kernel fused into ONE matmul ----
    # invalid-class masking is pre-folded into the cls bias row (-1e11 on invalid classes).
    heads = jnp.dot(inst_ext, w_heads_ref[...],
                    preferred_element_type=jnp.float32)                      # [N, HEADS_W]
    logits = heads[:, :NUM_CLASSES]                                          # [N, C]
    obj = jax.nn.sigmoid(heads[:, NUM_CLASSES:NUM_CLASSES + 1])              # [N, 1]
    ker = heads[:, NUM_CLASSES + 1:]                                         # [N, DIM]

    # masks = ker @ mask_feat^T, expressed as a dot_general contracting dim 1 of both.
    masks = jax.lax.dot_general(ker, mask_feat, (((1,), (1,)), ((), ())),
                                preferred_element_type=jnp.float32)          # [N, HW]

    # ---- inference_single + rescoring_mask (exact reference semantics, per-instance) ----
    sig_masks = jax.nn.sigmoid(masks)                       # pred_masks.sigmoid()
    # TODO(synk): the reference decoder (build_sparse_inst_decoder) is undefined; we assume
    # pred_scores = sigmoid(objectness logit) before exp(-T * pred_scores), as before.
    obj_prob = jnp.exp(-TEMPERATURE * obj)                   # exp(-T * pred_scores)
    prob = obj_prob * jax.nn.sigmoid(logits)                 # [N, C]

    max_p = jnp.max(prob, axis=-1, keepdims=True)            # scores
    ccol = jax.lax.broadcasted_iota(jnp.int32, prob.shape, 1)
    labels = jnp.min(jnp.where(prob == max_p, ccol, prob.shape[1]),
                     axis=-1, keepdims=True)                  # argmax (first max)
    keep = (max_p > CLS_THRESHOLD).astype(jnp.float32)

    base = jnp.sqrt(max_p * obj)                              # sqrt(scores * pred_scores)
    mask_bin = (sig_masks > RESCORE_THRESHOLD).astype(jnp.float32)
    num = jnp.sum(sig_masks * mask_bin, axis=-1, keepdims=True)
    den = jnp.sum(mask_bin, axis=-1, keepdims=True) + 1e-6
    score = base * num / den                                  # exact divide (rescoring_mask)

    # ---- lane-dense packed scalar outputs: col 0 = score, col 1 = label, col 2 = keep ----
    lane_s = jax.lax.broadcasted_iota(jnp.int32, (N_INST, SLAB_LANES), 1)
    slab = jnp.where(lane_s == 0, score,
           jnp.where(lane_s == 1, labels.astype(jnp.float32),
           jnp.where(lane_s == 2, keep, 0.0)))
    slab_ref[...] = slab
    sigmask_ref[...] = sig_masks


def _fused_call(x, w_enc, w_mi, w_heads):
    flops = 2 * (HW * CIN_PAD * DIM_EXT        # encoder
                 + HW * DIM_EXT * MI_W         # fused mask + iam
                 + N_INST * HW * DIM_EXT       # IAM pooling (+ denom column)
                 + N_INST * DIM_EXT * HEADS_W  # fused heads
                 + N_INST * DIM * HW)          # masks
    transcendentals = HW * N_INST + N_INST * HW + N_INST * (NUM_CLASSES + 2)
    bytes_accessed = 4 * (CIN_PAD * HW + CIN_PAD * DIM_EXT + DIM_EXT * MI_W
                          + DIM_EXT * HEADS_W + N_INST * SLAB_LANES + N_INST * HW)
    return pl.pallas_call(
        sparseinst_fused_kernel,
        out_shape=(jax.ShapeDtypeStruct((N_INST, SLAB_LANES), jnp.float32),
                   jax.ShapeDtypeStruct((N_INST, HW), jnp.float32)),
        in_specs=[VMEM_SPEC] * 4,
        out_specs=(VMEM_SPEC, VMEM_SPEC),
        compiler_params=pltpu.CompilerParams(vmem_limit_bytes=32 * 1024 * 1024),
        cost_estimate=pl.CostEstimate(flops=flops,
                                      transcendentals=transcendentals,
                                      bytes_accessed=bytes_accessed),
    )(x, w_enc, w_mi, w_heads)


# ---------------- parameters (packed: biases folded, heads / mask+iam concatenated) -------
def init_params(key):
    ks = jax.random.split(key, 6)

    def lin(k, fan_in, fan_out):
        return np.asarray(jax.random.normal(k, (fan_in, fan_out), jnp.float32)
                          / np.sqrt(fan_in))

    w_enc = lin(ks[0], CIN, DIM)
    w_mask = lin(ks[1], DIM, DIM)
    w_iam = lin(ks[2], DIM, N_INST)
    w_cls = lin(ks[3], DIM, NUM_CLASSES)
    w_obj = lin(ks[4], DIM, 1)
    w_ker = lin(ks[5], DIM, DIM)

    b_enc = np.zeros((DIM,), np.float32)
    b_mask = np.zeros((DIM,), np.float32)
    b_iam = np.zeros((N_INST,), np.float32)
    # Fold invalid-class masking (logits[:, invalid] = -1e11) into the cls bias row. The
    # matmul contribution is O(1), so sigmoid(logits) == 0.0 exactly for these classes either
    # way; output-equivalent to the reference (only prob/argmax are consumed downstream).
    b_cls = np.zeros((NUM_CLASSES,), np.float32)
    b_cls[INVALID_CLS] = -100000000000.0
    b_obj = np.zeros((1,), np.float32)
    b_ker = np.zeros((DIM,), np.float32)

    # encoder: [CIN_PAD, DIM_EXT]; row BIAS_ROW carries b_enc and generates the constant-one
    # feature column (ReLU(1) == 1) used for the IAM denominator and downstream bias rows.
    w_enc_ext = np.zeros((CIN_PAD, DIM_EXT), np.float32)
    w_enc_ext[:CIN, :DIM] = w_enc
    w_enc_ext[BIAS_ROW, :DIM] = b_enc
    w_enc_ext[BIAS_ROW, DIM] = 1.0

    # fused mask + iam: [DIM_EXT, DIM + N_INST]; row DIM = biases.
    w_mi_ext = np.zeros((DIM_EXT, MI_W), np.float32)
    w_mi_ext[:DIM, :DIM] = w_mask
    w_mi_ext[:DIM, DIM:] = w_iam
    w_mi_ext[DIM, :DIM] = b_mask
    w_mi_ext[DIM, DIM:] = b_iam

    # fused heads: [DIM_EXT, NUM_CLASSES + 1 + DIM]; row DIM = biases (incl. -1e11 fold).
    w_heads_ext = np.zeros((DIM_EXT, HEADS_W), np.float32)
    w_heads_ext[:DIM, :NUM_CLASSES] = w_cls
    w_heads_ext[:DIM, NUM_CLASSES:NUM_CLASSES + 1] = w_obj
    w_heads_ext[:DIM, NUM_CLASSES + 1:] = w_ker
    w_heads_ext[DIM, :NUM_CLASSES] = b_cls
    w_heads_ext[DIM, NUM_CLASSES] = b_obj[0]
    w_heads_ext[DIM, NUM_CLASSES + 1:] = b_ker

    return dict(w_enc=jnp.asarray(w_enc_ext),
                w_mi=jnp.asarray(w_mi_ext),
                w_heads=jnp.asarray(w_heads_ext))


# ---------------- single-jit device path (one sync per forward) ----------------
@functools.partial(jax.jit, static_argnames=("resized_size", "ori_size"))
def _sparse_inst_device(image_nchw, params, resized_size, ori_size):
    pad_h, pad_w = image_nchw.shape[2], image_nchw.shape[3]          # max_size / pad_shape
    img = image_nchw[0]                                              # [3, H, W]

    # "backbone": average-pool by STRIDE; channels-first flattening is ALREADY the desired
    # lane-dense [CIN_PAD, HW] kernel layout (channels on sublanes, HW on lanes) -> no
    # transpose needed.  Row BIAS_ROW = 1.0 feeds the folded encoder bias / ones column.
    pooled = img.reshape(CIN, MH, STRIDE, MW, STRIDE).mean(axis=(2, 4))   # [3, MH, MW]
    x = pooled.reshape(CIN, HW)                                           # [3, HW]
    x = jnp.concatenate(
        [x,
         jnp.ones((1, HW), jnp.float32),
         jnp.zeros((CIN_PAD - CIN - 1, HW), jnp.float32)], axis=0)        # [8, HW]

    slab, sig_masks = _fused_call(x, params["w_enc"], params["w_mi"], params["w_heads"])

    scores = slab[:, 0]
    labels = slab[:, 1].astype(jnp.int32)
    keep = slab[:, 2] > 0.5

    # TODO(synk): F.interpolate(bilinear, align_corners=False) has no clean Pallas equivalent;
    # implemented with jax.image.resize inside the same jit (stays on device, no extra sync).
    m = sig_masks.reshape(N_INST, MH, MW)
    m = jax.image.resize(m, (N_INST, pad_h, pad_w), method="bilinear", antialias=False)
    h, w = resized_size
    m = m[:, :h, :w]
    m = jax.image.resize(m, (N_INST, ori_size[0], ori_size[1]),
                         method="bilinear", antialias=False)
    mask_bool = m > MASK_THRESHOLD
    return scores, labels, keep, mask_bool


def sparse_inst_forward(image_nchw, params, resized_size, ori_size):
    """image_nchw: [1, 3, H, W] float32 (NCHW like the PyTorch module)."""
    scores, labels, keep, mask_bool = _sparse_inst_device(
        image_nchw, params, tuple(resized_size), tuple(ori_size))
    jax.block_until_ready((scores, labels, keep, mask_bool))

    # TODO(synk): data-dependent boolean `keep` filtering produces dynamic shapes; done on host
    # after a single device->host transfer of the fixed-size (N_INST) results.
    keep_np = np.asarray(keep).astype(bool)
    if not keep_np.any():
        return None
    return {"scores": np.asarray(scores)[keep_np],
            "pred_classes": np.asarray(labels)[keep_np],
            "pred_masks": np.asarray(mask_bool)[keep_np],
            "image_size": tuple(ori_size)}


if __name__ == "__main__":
    key = jax.random.PRNGKey(0)
    k_img, k_par = jax.random.split(key)
    image = jax.random.normal(k_img, (1, CIN, IMG_H, IMG_W), jnp.float32)   # NCHW, like PyTorch
    params = init_params(k_par)

    result = sparse_inst_forward(image, params, RESIZED_SIZE, ORI_SIZE)
    if result is not None:
        jax.block_until_ready(jnp.asarray(result["scores"]))
    print("KERNEL_OK")
</pallas_src>

<mosaic_0001>
module attributes {stable_mosaic.version = 11 : i64} {
  func.func @sparseinst_fused_kernel(%arg0: memref<8x256xf32, #tpu.memory_space<vmem>>, %arg1: memref<8x33xf32, #tpu.memory_space<vmem>>, %arg2: memref<33x40xf32, #tpu.memory_space<vmem>>, %arg3: memref<33x49xf32, #tpu.memory_space<vmem>>, %arg4: memref<8x128xf32, #tpu.memory_space<vmem>>, %arg5: memref<8x256xf32, #tpu.memory_space<vmem>>) attributes {dimension_semantics = [], scalar_prefetch = 0 : i64, scratch_operands = 0 : i64, tpu.core_type = #tpu.core_type<tc>} {
    %c0 = arith.constant 0 : index
    %c0_0 = arith.constant 0 : index
    %0 = vector.load %arg0[%c0, %c0_0] : memref<8x256xf32, #tpu.memory_space<vmem>>, vector<8x256xf32>
    %c0_1 = arith.constant 0 : index
    %c0_2 = arith.constant 0 : index
    %1 = vector.load %arg1[%c0_1, %c0_2] : memref<8x33xf32, #tpu.memory_space<vmem>>, vector<8x33xf32>
    %cst = arith.constant dense<0.000000e+00> : vector<256x33xf32>
    %2 = tpu.matmul %0, %1, %cst {dimension_numbers = #tpu.dot_dimension_numbers<[0], [0], [1], [1], [0, 1, 1, 1], [], []>} : vector<8x256xf32>, vector<8x33xf32>, vector<256x33xf32> -> vector<256x33xf32>
    %cst_3 = arith.constant 0.000000e+00 : f32
    %3 = vector.broadcast %cst_3 : f32 to vector<256x33xf32>
    %4 = arith.maximumf %2, %3 : vector<256x33xf32>
    %c0_4 = arith.constant 0 : index
    %c0_5 = arith.constant 0 : index
    %5 = vector.load %arg2[%c0_4, %c0_5] : memref<33x40xf32, #tpu.memory_space<vmem>>, vector<33x40xf32>
    %cst_6 = arith.constant dense<0.000000e+00> : vector<256x40xf32>
    %6 = tpu.matmul %4, %5, %cst_6 {dimension_numbers = #tpu.dot_dimension_numbers<[1], [0], [0], [1], [0, 0, 1, 1], [], []>} : vector<256x33xf32>, vector<33x40xf32>, vector<256x40xf32> -> vector<256x40xf32>
    %7 = vector.extract_strided_slice %6 {offsets = [0, 0], sizes = [256, 32], strides = [1, 1]} : vector<256x40xf32> to vector<256x32xf32>
    %cst_7 = arith.constant 0.000000e+00 : f32
    %8 = vector.broadcast %cst_7 : f32 to vector<256x32xf32>
    %9 = arith.maximumf %7, %8 : vector<256x32xf32>
    %10 = vector.extract_strided_slice %6 {offsets = [0, 32], sizes = [256, 8], strides = [1, 1]} : vector<256x40xf32> to vector<256x8xf32>
    %11 = arith.negf %10 : vector<256x8xf32>
    %12 = math.exp %11 : vector<256x8xf32>
    %cst_8 = arith.constant 1.000000e+00 : f32
    %13 = vector.broadcast %cst_8 : f32 to vector<256x8xf32>
    %14 = arith.addf %13, %12 : vector<256x8xf32>
    %15 = arith.divf %13, %14 : vector<256x8xf32>
    %cst_9 = arith.constant dense<0.000000e+00> : vector<8x33xf32>
    %16 = tpu.matmul %15, %4, %cst_9 {dimension_numbers = #tpu.dot_dimension_numbers<[0], [0], [1], [1], [0, 1, 1, 1], [], []>} : vector<256x8xf32>, vector<256x33xf32>, vector<8x33xf32> -> vector<8x33xf32>
    %17 = vector.extract_strided_slice %16 {offsets = [0, 32], sizes = [8, 1], strides = [1, 1]} : vector<8x33xf32> to vector<8x1xf32>
    %cst_10 = arith.constant 9.99999997E-7 : f32
    %18 = vector.broadcast %cst_10 : f32 to vector<8x1xf32>
    %19 = arith.addf %17, %18 : vector<8x1xf32>
    %cst_11 = arith.constant 1.000000e+00 : f32
    %20 = vector.broadcast %cst_11 : f32 to vector<8x1xf32>
    %21 = arith.divf %20, %19 : vector<8x1xf32>
    %22 = tpu.iota {dimensions = array<i32: 1>} : vector<8x33xi32>
    %c32_i32 = arith.constant 32 : i32
    %23 = vector.broadcast %c32_i32 : i32 to vector<8x33xi32>
    %24 = arith.cmpi eq, %22, %23 : vector<8x33xi32>
    %25 = vector.broadcast %21 : vector<8x1xf32> to vector<8x33xf32>
    %26 = arith.mulf %16, %25 : vector<8x33xf32>
    %cst_12 = arith.constant 1.000000e+00 : f32
    %27 = vector.broadcast %cst_12 : f32 to vector<8x33xf32>
    %28 = arith.select %24, %27, %26 : vector<8x33xi1>, vector<8x33xf32>
    %c0_13 = arith.constant 0 : index
    %c0_14 = arith.constant 0 : index
    %29 = vector.load %arg3[%c0_13, %c0_14] : memref<33x49xf32, #tpu.memory_space<vmem>>, vector<33x49xf32>
    %cst_15 = arith.constant dense<0.000000e+00> : vector<8x49xf32>
    %30 = tpu.matmul %28, %29, %cst_15 {dimension_numbers = #tpu.dot_dimension_numbers<[1], [0], [0], [1], [0, 0, 1, 1], [], []>} : vector<8x33xf32>, vector<33x49xf32>, vector<8x49xf32> -> vector<8x49xf32>
    %31 = vector.extract_strided_slice %30 {offsets = [0, 0], sizes = [8, 16], strides = [1, 1]} : vector<8x49xf32> to vector<8x16xf32>
    %32 = vector.extract_strided_slice %30 {offsets = [0, 16], sizes = [8, 1], strides = [1, 1]} : vector<8x49xf32> to vector<8x1xf32>
    %33 = arith.negf %32 : vector<8x1xf32>
    %34 = math.exp %33 : vector<8x1xf32>
    %cst_16 = arith.constant 1.000000e+00 : f32
    %35 = vector.broadcast %cst_16 : f32 to vector<8x1xf32>
    %36 = arith.addf %35, %34 : vector<8x1xf32>
    %37 = arith.divf %35, %36 : vector<8x1xf32>
    %38 = vector.extract_strided_slice %30 {offsets = [0, 17], sizes = [8, 32], strides = [1, 1]} : vector<8x49xf32> to vector<8x32xf32>
    %cst_17 = arith.constant dense<0.000000e+00> : vector<8x256xf32>
    %39 = tpu.matmul %38, %9, %cst_17 {dimension_numbers = #tpu.dot_dimension_numbers<[1], [1], [0], [0], [0, 0, 1, 0], [], []>} : vector<8x32xf32>, vector<256x32xf32>, vector<8x256xf32> -> vector<8x256xf32>
    %40 = arith.negf %39 : vector<8x256xf32>
    %41 = math.exp %40 : vector<8x256xf32>
    %cst_18 = arith.constant 1.000000e+00 : f32
    %42 = vector.broadcast %cst_18 : f32 to vector<8x256xf32>
    %43 = arith.addf %42, %41 : vector<8x256xf32>
    %44 = arith.divf %42, %43 : vector<8x256xf32>
    %cst_19 = arith.constant -1.300000e+00 : f32
    %45 = vector.broadcast %cst_19 : f32 to vector<8x1xf32>
    %46 = arith.mulf %45, %37 : vector<8x1xf32>
    %47 = math.exp %46 : vector<8x1xf32>
    %48 = arith.negf %31 : vector<8x16xf32>
    %49 = math.exp %48 : vector<8x16xf32>
    %cst_20 = arith.constant 1.000000e+00 : f32
    %50 = vector.broadcast %cst_20 : f32 to vector<8x16xf32>
    %51 = arith.addf %50, %49 : vector<8x16xf32>
    %52 = arith.divf %50, %51 : vector<8x16xf32>
    %53 = vector.broadcast %47 : vector<8x1xf32> to vector<8x16xf32>
    %54 = arith.mulf %53, %52 : vector<8x16xf32>
    %cst_21 = arith.constant dense<0xFF800000> : vector<8xf32>
    %55 = vector.multi_reduction <maximumf>, %54, %cst_21 [1] : vector<8x16xf32> to vector<8xf32>
    %56 = vector.shape_cast %55 : vector<8xf32> to vector<8x1xf32>
    %57 = tpu.iota {dimensions = array<i32: 1>} : vector<8x16xi32>
    %58 = vector.broadcast %56 : vector<8x1xf32> to vector<8x16xf32>
    %59 = arith.cmpf oeq, %54, %58 : vector<8x16xf32>
    %c16_i32 = arith.constant 16 : i32
    %60 = vector.broadcast %c16_i32 : i32 to vector<8x16xi32>
    %61 = arith.select %59, %57, %60 : vector<8x16xi1>, vector<8x16xi32>
    %cst_22 = arith.constant dense<2147483647> : vector<8xi32>
    %62 = vector.multi_reduction <minsi>, %61, %cst_22 [1] : vector<8x16xi32> to vector<8xi32>
    %63 = vector.shape_cast %62 : vector<8xi32> to vector<8x1xi32>
    %cst_23 = arith.constant 5.000000e-03 : f32
    %64 = vector.broadcast %cst_23 : f32 to vector<8x1xf32>
    %65 = arith.cmpf ogt, %56, %64 : vector<8x1xf32>
    %66 = arith.extui %65 : vector<8x1xi1> to vector<8x1xi32>
    %67 = arith.sitofp %66 : vector<8x1xi32> to vector<8x1xf32>
    %68 = arith.mulf %56, %37 : vector<8x1xf32>
    %69 = math.sqrt %68 : vector<8x1xf32>
    %cst_24 = arith.constant 4.500000e-01 : f32
    %70 = vector.broadcast %cst_24 : f32 to vector<8x256xf32>
    %71 = arith.cmpf ogt, %44, %70 : vector<8x256xf32>
    %72 = arith.extui %71 : vector<8x256xi1> to vector<8x256xi32>
    %73 = arith.sitofp %72 : vector<8x256xi32> to vector<8x256xf32>
    %74 = arith.mulf %44, %73 : vector<8x256xf32>
    %cst_25 = arith.constant dense<0.000000e+00> : vector<8xf32>
    %75 = vector.multi_reduction <add>, %74, %cst_25 [1] : vector<8x256xf32> to vector<8xf32>
    %76 = vector.shape_cast %75 : vector<8xf32> to vector<8x1xf32>
    %cst_26 = arith.constant dense<0.000000e+00> : vector<8xf32>
    %77 = vector.multi_reduction <add>, %73, %cst_26 [1] : vector<8x256xf32> to vector<8xf32>
    %78 = vector.shape_cast %77 : vector<8xf32> to vector<8x1xf32>
    %cst_27 = arith.constant 9.99999997E-7 : f32
    %79 = vector.broadcast %cst_27 : f32 to vector<8x1xf32>
    %80 = arith.addf %78, %79 : vector<8x1xf32>
    %81 = arith.mulf %69, %76 : vector<8x1xf32>
    %82 = arith.divf %81, %80 : vector<8x1xf32>
    %83 = tpu.iota {dimensions = array<i32: 1>} : vector<8x128xi32>
    %c0_i32 = arith.constant 0 : i32
    %84 = vector.broadcast %c0_i32 : i32 to vector<8x128xi32>
    %85 = arith.cmpi eq, %83, %84 : vector<8x128xi32>
    %c1_i32 = arith.constant 1 : i32
    %86 = vector.broadcast %c1_i32 : i32 to vector<8x128xi32>
    %87 = arith.cmpi eq, %83, %86 : vector<8x128xi32>
    %88 = arith.sitofp %63 : vector<8x1xi32> to vector<8x1xf32>
    %c2_i32 = arith.constant 2 : i32
    %89 = vector.broadcast %c2_i32 : i32 to vector<8x128xi32>
    %90 = arith.cmpi eq, %83, %89 : vector<8x128xi32>
    %cst_28 = arith.constant 0.000000e+00 : f32
    %91 = vector.shape_cast %67 : vector<8x1xf32> to vector<8x1xf32>
    %92 = vector.broadcast %91 : vector<8x1xf32> to vector<8x128xf32>
    %93 = vector.broadcast %cst_28 : f32 to vector<8x128xf32>
    %94 = arith.select %90, %92, %93 : vector<8x128xi1>, vector<8x128xf32>
    %95 = vector.shape_cast %88 : vector<8x1xf32> to vector<8x1xf32>
    %96 = vector.broadcast %95 : vector<8x1xf32> to vector<8x128xf32>
    %97 = arith.select %87, %96, %94 : vector<8x128xi1>, vector<8x128xf32>
    %98 = vector.shape_cast %82 : vector<8x1xf32> to vector<8x1xf32>
    %99 = vector.broadcast %98 : vector<8x1xf32> to vector<8x128xf32>
    %100 = arith.select %85, %99, %97 : vector<8x128xi1>, vector<8x128xf32>
    %c0_29 = arith.constant 0 : index
    %c0_30 = arith.constant 0 : index
    %101 = vector.load %arg4[%c0_29, %c0_30] : memref<8x128xf32, #tpu.memory_space<vmem>>, vector<8x128xf32>
    tpu.vector_store %arg4[%c0_29, %c0_30], %100 {strides = array<i32>} : memref<8x128xf32, #tpu.memory_space<vmem>>, vector<8x128xf32>,
    %c0_31 = arith.constant 0 : index
    %c0_32 = arith.constant 0 : index
    %102 = vector.load %arg5[%c0_31, %c0_32] : memref<8x256xf32, #tpu.memory_space<vmem>>, vector<8x256xf32>
    tpu.vector_store %arg5[%c0_31, %c0_32], %44 {strides = array<i32>} : memref<8x256xf32, #tpu.memory_space<vmem>>, vector<8x256xf32>,
    return
  }
}

</mosaic_0001>

<llo_original>
// kernel: squeeze.4
$region0: #{squeeze.4}
  %s0 = inlined_call_operand.hbm [shape: f32[1,3,64,64], index: 0, kind: input, shape index: {}]
  %s1 = inlined_call_operand.vmem [shape: f32[3,16,4,16,4], index: 1, kind: output, shape index: {}]
  $region1: #{squeeze.4} parent=0
    #allocation0 [shape = 'u8[98304]{0}', space=vmem, size = 0x18000, scoped, tag = 'operand span for operand 0']
    #allocation1 [shape = 's32[1]{0}', space=sflag, size = 0x4, scoped, tag = 'scoped memory for squeeze.4']
    %2 = vsyncpa [#allocation1], 0
    %s4 = ssub.s32 3072, 3072
    %5 = vsyncadd [#allocation1], %s4
    %s7 = sshll.u32 [#allocation0], 4
    %s8 = int_to_ptr.vmem [resolvable:$true] %s7
    %10 = dma.hbm_to_vmem [thread:$0]  %s0, 3072, %s8, [#allocation1]
    %11 = dma.done [#allocation1], 3072
    %v12 = vld [vmem:[#allocation0] sm:$0xff]
    %vm13 = vcmask 31744
    %14 = vst.msk [vmem:[%s1] ss:$16 sm:$0x3] %vm13, %v12
    %15 = vst.msk [vmem:[%s1] ss:$16 sm:$0xc] %vm13, %v12
    %16 = vst.msk [vmem:[%s1] ss:$16 sm:$0x30] %vm13, %v12
    %17 = vst.msk [vmem:[%s1] ss:$16 sm:$0xc0] %vm13, %v12
    %s18 = scalar_lea.vmem [#allocation0], 8
    %v19 = vld [vmem:[%s18] sm:$0xff]
    %vm20 = vcmask 31744
    %s21 = scalar_lea.vmem %s1, 128
    %22 = vst.msk [vmem:[%s21] ss:$16 sm:$0x3] %vm20, %v19
    %s23 = scalar_lea.vmem %s1, 128
    %24 = vst.msk [vmem:[%s23] ss:$16 sm:$0xc] %vm20, %v19
    %s25 = scalar_lea.vmem %s1, 128
    %26 = vst.msk [vmem:[%s25] ss:$16 sm:$0x30] %vm20, %v19
    %s27 = scalar_lea.vmem %s1, 128
    %28 = vst.msk [vmem:[%s27] ss:$16 sm:$0xc0] %vm20, %v19
    %s29 = scalar_lea.vmem [#allocation0], 16
    %v30 = vld [vmem:[%s29] sm:$0xff]
    %vm31 = vcmask 31744
    %s32 = scalar_lea.vmem %s1, 256
    %33 = vst.msk [vmem:[%s32] ss:$16 sm:$0x3] %vm31, %v30
    %s34 = scalar_lea.vmem %s1, 256
    %35 = vst.msk [vmem:[%s34] ss:$16 sm:$0xc] %vm31, %v30
    %s36 = scalar_lea.vmem %s1, 256
    %37 = vst.msk [vmem:[%s36] ss:$16 sm:$0x30] %vm31, %v30
    %s38 = scalar_lea.vmem %s1, 256
    %39 = vst.msk [vmem:[%s38] ss:$16 sm:$0xc0] %vm31, %v30
    %s40 = scalar_lea.vmem [#allocation0], 24
    %v41 = vld [vmem:[%s40] sm:$0xff]
    %vm42 = vcmask 31744
    %s43 = scalar_lea.vmem %s1, 384
    %44 = vst.msk [vmem:[%s43] ss:$16 sm:$0x3] %vm42, %v41
    %s45 = scalar_lea.vmem %s1, 384
    %46 = vst.msk [vmem:[%s45] ss:$16 sm:$0xc] %vm42, %v41
    %s47 = scalar_lea.vmem %s1, 384
    %48 = vst.msk [vmem:[%s47] ss:$16 sm:$0x30] %vm42, %v41
    %s49 = scalar_lea.vmem %s1, 384
    %50 = vst.msk [vmem:[%s49] ss:$16 sm:$0xc0] %vm42, %v41
    %s51 = scalar_lea.vmem [#allocation0], 32
    %v52 = vld [vmem:[%s51] sm:$0xff]
    %vm53 = vcmask 31744
    %s54 = scalar_lea.vmem %s1, 512
    %55 = vst.msk [vmem:[%s54] ss:$16 sm:$0x3] %vm53, %v52
    %s56 = scalar_lea.vmem %s1, 512
    %57 = vst.msk [vmem:[%s56] ss:$16 sm:$0xc] %vm53, %v52
    %s58 = scalar_lea.vmem %s1, 512
    %59 = vst.msk [vmem:[%s58] ss:$16 sm:$0x30] %vm53, %v52
    %s60 = scalar_lea.vmem %s1, 512
    %61 = vst.msk [vmem:[%s60] ss:$16 sm:$0xc0] %vm53, %v52
    %s62 = scalar_lea.vmem [#allocation0], 40
    %v63 = vld [vmem:[%s62] sm:$0xff]
    %vm64 = vcmask 31744
    %s65 = scalar_lea.vmem %s1, 640
    %66 = vst.msk [vmem:[%s65] ss:$16 sm:$0x3] %vm64, %v63
    %s67 = scalar_lea.vmem %s1, 640
    %68 = vst.msk [vmem:[%s67] ss:$16 sm:$0xc] %vm64, %v63
    %s69 = scalar_lea.vmem %s1, 640
    %70 = vst.msk [vmem:[%s69] ss:$16 sm:$0x30] %vm64, %v63
    %s71 = scalar_lea.vmem %s1, 640
    %72 = vst.msk [vmem:[%s71] ss:$16 sm:$0xc0] %vm64, %v63
    %s73 = scalar_lea.vmem [#allocation0], 48
    %v74 = vld [vmem:[%s73] sm:$0xff]
    %vm75 = vcmask 31744
    %s76 = scalar_lea.vmem %s1, 768
    %77 = vst.msk [vmem:[%s76] ss:$16 sm:$0x3] %vm75, %v74
    %s78 = scalar_lea.vmem %s1, 768
    %79 = vst.msk [vmem:[%s78] ss:$16 sm:$0xc] %vm75, %v74
    %s80 = scalar_lea.vmem %s1, 768
    %81 = vst.msk [vmem:[%s80] ss:$16 sm:$0x30] %vm75, %v74
    %s82 = scalar_lea.vmem %s1, 768
    %83 = vst.msk [vmem:[%s82] ss:$16 sm:$0xc0] %vm75, %v74
    %s84 = scalar_lea.vmem [#allocation0], 56
    %v85 = vld [vmem:[%s84] sm:$0xff]
    %vm86 = vcmask 31744
    %s87 = scalar_lea.vmem %s1, 896
    %88 = vst.msk [vmem:[%s87] ss:$16 sm:$0x3] %vm86, %v85
    %s89 = scalar_lea.vmem %s1, 896
    %90 = vst.msk [vmem:[%s89] ss:$16 sm:$0xc] %vm86, %v85
    %s91 = scalar_lea.vmem %s1, 896
    %92 = vst.msk [vmem:[%s91] ss:$16 sm:$0x30] %vm86, %v85
    %s93 = scalar_lea.vmem %s1, 896
    %94 = vst.msk [vmem:[%s93] ss:$16 sm:$0xc0] %vm86, %v85
    %s95 = scalar_lea.vmem [#allocation0], 64
    %v96 = vld [vmem:[%s95] sm:$0xff]
    %vm97 = vcmask 31744
    %s98 = scalar_lea.vmem %s1, 1024
    %99 = vst.msk [vmem:[%s98] ss:$16 sm:$0x3] %vm97, %v96
    %s100 = scalar_lea.vmem %s1, 1024
    %101 = vst.msk [vmem:[%s100] ss:$16 sm:$0xc] %vm97, %v96
    %s102 = scalar_lea.vmem %s1, 1024
    %103 = vst.msk [vmem:[%s102] ss:$16 sm:$0x30] %vm97, %v96
    %s104 = scalar_lea.vmem %s1, 1024
    %105 = vst.msk [vmem:[%s104] ss:$16 sm:$0xc0] %vm97, %v96
    %s106 = scalar_lea.vmem [#allocation0], 72
    %v107 = vld [vmem:[%s106] sm:$0xff]
    %vm108 = vcmask 31744
    %s109 = scalar_lea.vmem %s1, 1152
    %110 = vst.msk [vmem:[%s109] ss:$16 sm:$0x3] %vm108, %v107
    %s111 = scalar_lea.vmem %s1, 1152
    %112 = vst.msk [vmem:[%s111] ss:$16 sm:$0xc] %vm108, %v107
    %s113 = scalar_lea.vmem %s1, 1152
    %114 = vst.msk [vmem:[%s113] ss:$16 sm:$0x30] %vm108, %v107
    %s115 = scalar_lea.vmem %s1, 1152
    %116 = vst.msk [vmem:[%s115] ss:$16 sm:$0xc0] %vm108, %v107
    %s117 = scalar_lea.vmem [#allocation0], 80
    %v118 = vld [vmem:[%s117] sm:$0xff]
    %vm119 = vcmask 31744
    %s120 = scalar_lea.vmem %s1, 1280
    %121 = vst.msk [vmem:[%s120] ss:$16 sm:$0x3] %vm119, %v118
    %s122 = scalar_lea.vmem %s1, 1280
    %123 = vst.msk [vmem:[%s122] ss:$16 sm:$0xc] %vm119, %v118
    %s124 = scalar_lea.vmem %s1, 1280
    %125 = vst.msk [vmem:[%s124] ss:$16 sm:$0x30] %vm119, %v118
    %s126 = scalar_lea.vmem %s1, 1280
    %127 = vst.msk [vmem:[%s126] ss:$16 sm:$0xc0] %vm119, %v118
    %s128 = scalar_lea.vmem [#allocation0], 88
    %v129 = vld [vmem:[%s128] sm:$0xff]
    %vm130 = vcmask 31744
    %s131 = scalar_lea.vmem %s1, 1408
    %132 = vst.msk [vmem:[%s131] ss:$16 sm:$0x3] %vm130, %v129
    %s133 = scalar_lea.vmem %s1, 1408
    %134 = vst.msk [vmem:[%s133] ss:$16 sm:$0xc] %vm130, %v129
    %s135 = scalar_lea.vmem %s1, 1408
    %136 = vst.msk [vmem:[%s135] ss:$16 sm:$0x30] %vm130, %v129
    %s137 = scalar_lea.vmem %s1, 1408
    %138 = vst.msk [vmem:[%s137] ss:$16 sm:$0xc0] %vm130, %v129
    %s139 = scalar_lea.vmem [#allocation0], 96
    %v140 = vld [vmem:[%s139] sm:$0xff]
    %vm141 = vcmask 31744
    %s142 = scalar_lea.vmem %s1, 1536
    %143 = vst.msk [vmem:[%s142] ss:$16 sm:$0x3] %vm141, %v140
    %s144 = scalar_lea.vmem %s1, 1536
    %145 = vst.msk [vmem:[%s144] ss:$16 sm:$0xc] %vm141, %v140
    %s146 = scalar_lea.vmem %s1, 1536
    %147 = vst.msk [vmem:[%s146] ss:$16 sm:$0x30] %vm141, %v140
    %s148 = scalar_lea.vmem %s1, 1536
    %149 = vst.msk [vmem:[%s148] ss:$16 sm:$0xc0] %vm141, %v140
    %s150 = scalar_lea.vmem [#allocation0], 104
    %v151 = vld [vmem:[%s150] sm:$0xff]
    %vm152 = vcmask 31744
    %s153 = scalar_lea.vmem %s1, 1664
    %154 = vst.msk [vmem:[%s153] ss:$16 sm:$0x3] %vm152, %v151
    %s155 = scalar_lea.vmem %s1, 1664
    %156 = vst.msk [vmem:[%s155] ss:$16 sm:$0xc] %vm152, %v151
    %s157 = scalar_lea.vmem %s1, 1664
    %158 = vst.msk [vmem:[%s157] ss:$16 sm:$0x30] %vm152, %v151
    %s159 = scalar_lea.vmem %s1, 1664
    %160 = vst.msk [vmem:[%s159] ss:$16 sm:$0xc0] %vm152, %v151
    %s161 = scalar_lea.vmem [#allocation0], 112
    %v162 = vld [vmem:[%s161] sm:$0xff]
    %vm163 = vcmask 31744
    %s164 = scalar_lea.vmem %s1, 1792
    %165 = vst.msk [vmem:[%s164] ss:$16 sm:$0x3] %vm163, %v162
    %s166 = scalar_lea.vmem %s1, 1792
    %167 = vst.msk [vmem:[%s166] ss:$16 sm:$0xc] %vm163, %v162
    %s168 = scalar_lea.vmem %s1, 1792
    %169 = vst.msk [vmem:[%s168] ss:$16 sm:$0x30] %vm163, %v162
    %s170 = scalar_lea.vmem %s1, 1792
    %171 = vst.msk [vmem:[%s170] ss:$16 sm:$0xc0] %vm163, %v162
    %s172 = scalar_lea.vmem [#allocation0], 120
    %v173 = vld [vmem:[%s172] sm:$0xff]
    %vm174 = vcmask 31744
    %s175 = scalar_lea.vmem %s1, 1920
    %176 = vst.msk [vmem:[%s175] ss:$16 sm:$0x3] %vm174, %v173
    %s177 = scalar_lea.vmem %s1, 1920
    %178 = vst.msk [vmem:[%s177] ss:$16 sm:$0xc] %vm174, %v173
    %s179 = scalar_lea.vmem %s1, 1920
    %180 = vst.msk [vmem:[%s179] ss:$16 sm:$0x30] %vm174, %v173
    %s181 = scalar_lea.vmem %s1, 1920
    %182 = vst.msk [vmem:[%s181] ss:$16 sm:$0xc0] %vm174, %v173
    %s183 = scalar_lea.vmem [#allocation0], 128
    %v184 = vld [vmem:[%s183] sm:$0xff]
    %vm185 = vcmask 31744
    %s186 = scalar_lea.vmem %s1, 2048
    %187 = vst.msk [vmem:[%s186] ss:$16 sm:$0x3] %vm185, %v184
    %s188 = scalar_lea.vmem %s1, 2048
    %189 = vst.msk [vmem:[%s188] ss:$16 sm:$0xc] %vm185, %v184
    %s190 = scalar_lea.vmem %s1, 2048
    %191 = vst.msk [vmem:[%s190] ss:$16 sm:$0x30] %vm185, %v184
    %s192 = scalar_lea.vmem %s1, 2048
    %193 = vst.msk [vmem:[%s192] ss:$16 sm:$0xc0] %vm185, %v184
    %s194 = scalar_lea.vmem [#allocation0], 136
    %v195 = vld [vmem:[%s194] sm:$0xff]
    %vm196 = vcmask 31744
    %s197 = scalar_lea.vmem %s1, 2176
    %198 = vst.msk [vmem:[%s197] ss:$16 sm:$0x3] %vm196, %v195
    %s199 = scalar_lea.vmem %s1, 2176
    %200 = vst.msk [vmem:[%s199] ss:$16 sm:$0xc] %vm196, %v195
    %s201 = scalar_lea.vmem %s1, 2176
    %202 = vst.msk [vmem:[%s201] ss:$16 sm:$0x30] %vm196, %v195
    %s203 = scalar_lea.vmem %s1, 2176
    %204 = vst.msk [vmem:[%s203] ss:$16 sm:$0xc0] %vm196, %v195
    %s205 = scalar_lea.vmem [#allocation0], 144
    %v206 = vld [vmem:[%s205] sm:$0xff]
    %vm207 = vcmask 31744
    %s208 = scalar_lea.vmem %s1, 2304
    %209 = vst.msk [vmem:[%s208] ss:$16 sm:$0x3] %vm207, %v206
    %s210 = scalar_lea.vmem %s1, 2304
    %211 = vst.msk [vmem:[%s210] ss:$16 sm:$0xc] %vm207, %v206
    %s212 = scalar_lea.vmem %s1, 2304
    %213 = vst.msk [vmem:[%s212] ss:$16 sm:$0x30] %vm207, %v206
    %s214 = scalar_lea.vmem %s1, 2304
    %215 = vst.msk [vmem:[%s214] ss:$16 sm:$0xc0] %vm207, %v206
    %s216 = scalar_lea.vmem [#allocation0], 152
    %v217 = vld [vmem:[%s216] sm:$0xff]
    %vm218 = vcmask 31744
    %s219 = scalar_lea.vmem %s1, 2432
    %220 = vst.msk [vmem:[%s219] ss:$16 sm:$0x3] %vm218, %v217
    %s221 = scalar_lea.vmem %s1, 2432
    %222 = vst.msk [vmem:[%s221] ss:$16 sm:$0xc] %vm218, %v217
    %s223 = scalar_lea.vmem %s1, 2432
    %224 = vst.msk [vmem:[%s223] ss:$16 sm:$0x30] %vm218, %v217
    %s225 = scalar_lea.vmem %s1, 2432
    %226 = vst.msk [vmem:[%s225] ss:$16 sm:$0xc0] %vm218, %v217
    %s227 = scalar_lea.vmem [#allocation0], 160
    %v228 = vld [vmem:[%s227] sm:$0xff]
    %vm229 = vcmask 31744
    %s230 = scalar_lea.vmem %s1, 2560
    %231 = vst.msk [vmem:[%s230] ss:$16 sm:$0x3] %vm229, %v228
    %s232 = scalar_lea.vmem %s1, 2560
    %233 = vst.msk [vmem:[%s232] ss:$16 sm:$0xc] %vm229, %v228
    %s234 = scalar_lea.vmem %s1, 2560
    %235 = vst.msk [vmem:[%s234] ss:$16 sm:$0x30] %vm229, %v228
    %s236 = scalar_lea.vmem %s1, 2560
    %237 = vst.msk [vmem:[%s236] ss:$16 sm:$0xc0] %vm229, %v228
    %s238 = scalar_lea.vmem [#allocation0], 168
    %v239 = vld [vmem:[%s238] sm:$0xff]
    %vm240 = vcmask 31744
    %s241 = scalar_lea.vmem %s1, 2688
    %242 = vst.msk [vmem:[%s241] ss:$16 sm:$0x3] %vm240, %v239
    %s243 = scalar_lea.vmem %s1, 2688
    %244 = vst.msk [vmem:[%s243] ss:$16 sm:$0xc] %vm240, %v239
    %s245 = scalar_lea.vmem %s1, 2688
    %246 = vst.msk [vmem:[%s245] ss:$16 sm:$0x30] %vm240, %v239
    %s247 = scalar_lea.vmem %s1, 2688
    %248 = vst.msk [vmem:[%s247] ss:$16 sm:$0xc0] %vm240, %v239
    %s249 = scalar_lea.vmem [#allocation0], 176
    %v250 = vld [vmem:[%s249] sm:$0xff]
    %vm251 = vcmask 31744
    %s252 = scalar_lea.vmem %s1, 2816
    %253 = vst.msk [vmem:[%s252] ss:$16 sm:$0x3] %vm251, %v250
    %s254 = scalar_lea.vmem %s1, 2816
    %255 = vst.msk [vmem:[%s254] ss:$16 sm:$0xc] %vm251, %v250
    %s256 = scalar_lea.vmem %s1, 2816
    %257 = vst.msk [vmem:[%s256] ss:$16 sm:$0x30] %vm251, %v250
    %s258 = scalar_lea.vmem %s1, 2816
    %259 = vst.msk [vmem:[%s258] ss:$16 sm:$0xc0] %vm251, %v250
    %s260 = scalar_lea.vmem [#allocation0], 184
    %v261 = vld [vmem:[%s260] sm:$0xff]
    %vm262 = vcmask 31744
    %s263 = scalar_lea.vmem %s1, 2944
    %264 = vst.msk [vmem:[%s263] ss:$16 sm:$0x3] %vm262, %v261
    %s265 = scalar_lea.vmem %s1, 2944
    %266 = vst.msk [vmem:[%s265] ss:$16 sm:$0xc] %vm262, %v261
    %s267 = scalar_lea.vmem %s1, 2944
    %268 = vst.msk [vmem:[%s267] ss:$16 sm:$0x30] %vm262, %v261
    %s269 = scalar_lea.vmem %s1, 2944
    %270 = vst.msk [vmem:[%s269] ss:$16 sm:$0xc0] %vm262, %v261
    %v271 = vld [vmem:[#allocation0] sm:$0xff]
    %272 = vrot.lane.b32.xlu0 %v271, 124
    %v273 = vpop.permute.xlu0 %272
    %vm274 = vcmask 31744
    %s275 = scalar_lea.vmem %s1, 1
    %276 = vst.msk [vmem:[%s275] ss:$16 sm:$0x3] %vm274, %v273
    %s277 = scalar_lea.vmem %s1, 1
    %278 = vst.msk [vmem:[%s277] ss:$16 sm:$0xc] %vm274, %v273
    %s279 = scalar_lea.vmem %s1, 1
    %280 = vst.msk [vmem:[%s279] ss:$16 sm:$0x30] %vm274, %v273
    %s281 = scalar_lea.vmem %s1, 1
    %282 = vst.msk [vmem:[%s281] ss:$16 sm:$0xc0] %vm274, %v273
    %s283 = scalar_lea.vmem [#allocation0], 8
    %v284 = vld [vmem:[%s283] sm:$0xff]
    %285 = vrot.lane.b32.xlu0 %v284, 124
    %v286 = vpop.permute.xlu0 %285
    %vm287 = vcmask 31744
    %s288 = scalar_lea.vmem %s1, 129
    %289 = vst.msk [vmem:[%s288] ss:$16 sm:$0x3] %vm287, %v286
    %s290 = scalar_lea.vmem %s1, 129
    %291 = vst.msk [vmem:[%s290] ss:$16 sm:$0xc] %vm287, %v286
    %s292 = scalar_lea.vmem %s1, 129
    %293 = vst.msk [vmem:[%s292] ss:$16 sm:$0x30] %vm287, %v286
    %s294 = scalar_lea.vmem %s1, 129
    %295 = vst.msk [vmem:[%s294] ss:$16 sm:$0xc0] %vm287, %v286
    %s296 = scalar_lea.vmem [#allocation0], 16
    %v297 = vld [vmem:[%s296] sm:$0xff]
    %298 = vrot.lane.b32.xlu0 %v297, 124
    %v299 = vpop.permute.xlu0 %298
    %vm300 = vcmask 31744
    %s301 = scalar_lea.vmem %s1, 257
    %302 = vst.msk [vmem:[%s301] ss:$16 sm:$0x3] %vm300, %v299
    %s303 = scalar_lea.vmem %s1, 257
    %304 = vst.msk [vmem:[%s303] ss:$16 sm:$0xc] %vm300, %v299
    %s305 = scalar_lea.vmem %s1, 257
    %306 = vst.msk [vmem:[%s305] ss:$16 sm:$0x30] %vm300, %v299
    %s307 = scalar_lea.vmem %s1, 257
    %308 = vst.msk [vmem:[%s307] ss:$16 sm:$0xc0] %vm300, %v299
    %s309 = scalar_lea.vmem [#allocation0], 24
    %v310 = vld [vmem:[%s309] sm:$0xff]
    %311 = vrot.lane.b32.xlu0 %v310, 124
    %v312 = vpop.permute.xlu0 %311
    %vm313 = vcmask 31744
    %s314 = scalar_lea.vmem %s1, 385
    %315 = vst.msk [vmem:[%s314] ss:$16 sm:$0x3] %vm313, %v312
    %s316 = scalar_lea.vmem %s1, 385
    %317 = vst.msk [vmem:[%s316] ss:$16 sm:$0xc] %vm313, %v312
    %s318 = scalar_lea.vmem %s1, 385
    %319 = vst.msk [vmem:[%s318] ss:$16 sm:$0x30] %vm313, %v312
    %s320 = scalar_lea.vmem %s1, 385
    %321 = vst.msk [vmem:[%s320] ss:$16 sm:$0xc0] %vm313, %v312
    %s322 = scalar_lea.vmem [#allocation0], 32
    %v323 = vld [vmem:[%s322] sm:$0xff]
    %324 = vrot.lane.b32.xlu0 %v323, 124
    %v325 = vpop.permute.xlu0 %324
    %vm326 = vcmask 31744
    %s327 = scalar_lea.vmem %s1, 513
    %328 = vst.msk [vmem:[%s327] ss:$16 sm:$0x3] %vm326, %v325
    %s329 = scalar_lea.vmem %s1, 513
    %330 = vst.msk [vmem:[%s329] ss:$16 sm:$0xc] %vm326, %v325
    %s331 = scalar_lea.vmem %s1, 513
    %332 = vst.msk [vmem:[%s331] ss:$16 sm:$0x30] %vm326, %v325
    %s333 = scalar_lea.vmem %s1, 513
    %334 = vst.msk [vmem:[%s333] ss:$16 sm:$0xc0] %vm326, %v325
    %s335 = scalar_lea.vmem [#allocation0], 40
    %v336 = vld [vmem:[%s335] sm:$0xff]
    %337 = vrot.lane.b32.xlu0 %v336, 124
    %v338 = vpop.permute.xlu0 %337
    %vm339 = vcmask 31744
    %s340 = scalar_lea.vmem %s1, 641
    %341 = vst.msk [vmem:[%s340] ss:$16 sm:$0x3] %vm339, %v338
    %s342 = scalar_lea.vmem %s1, 641
    %343 = vst.msk [vmem:[%s342] ss:$16 sm:$0xc] %vm339, %v338
    %s344 = scalar_lea.vmem %s1, 641
    %345 = vst.msk [vmem:[%s344] ss:$16 sm:$0x30] %vm339, %v338
    %s346 = scalar_lea.vmem %s1, 641
    %347 = vst.msk [vmem:[%s346] ss:$16 sm:$0xc0] %vm339, %v338
    %s348 = scalar_lea.vmem [#allocation0], 48
    %v349 = vld [vmem:[%s348] sm:$0xff]
    %350 = vrot.lane.b32.xlu0 %v349, 124
    %v351 = vpop.permute.xlu0 %350
    %vm352 = vcmask 31744
    %s353 = scalar_lea.vmem %s1, 769
    %354 = vst.msk [vmem:[%s353] ss:$16 sm:$0x3] %vm352, %v351
    %s355 = scalar_lea.vmem %s1, 769
    %356 = vst.msk [vmem:[%s355] ss:$16 sm:$0xc] %vm352, %v351
    %s357 = scalar_lea.vmem %s1, 769
    %358 = vst.msk [vmem:[%s357] ss:$16 sm:$0x30] %vm352, %v351
    %s359 = scalar_lea.vmem %s1, 769
    %360 = vst.msk [vmem:[%s359] ss:$16 sm:$0xc0] %vm352, %v351
    %s361 = scalar_lea.vmem [#allocation0], 56
    %v362 = vld [vmem:[%s361] sm:$0xff]
    %363 = vrot.lane.b32.xlu0 %v362, 124
    %v364 = vpop.permute.xlu0 %363
    %vm365 = vcmask 31744
    %s366 = scalar_lea.vmem %s1, 897
    %367 = vst.msk [vmem:[%s366] ss:$16 sm:$0x3] %vm365, %v364
    %s368 = scalar_lea.vmem %s1, 897
    %369 = vst.msk [vmem:[%s368] ss:$16 sm:$0xc] %vm365, %v364
    %s370 = scalar_lea.vmem %s1, 897
    %371 = vst.msk [vmem:[%s370] ss:$16 sm:$0x30] %vm365, %v364
    %s372 = scalar_lea.vmem %s1, 897
    %373 = vst.msk [vmem:[%s372] ss:$16 sm:$0xc0] %vm365, %v364
    %s374 = scalar_lea.vmem [#allocation0], 64
    %v375 = vld [vmem:[%s374] sm:$0xff]
    %376 = vrot.lane.b32.xlu0 %v375, 124
    %v377 = vpop.permute.xlu0 %376
    %vm378 = vcmask 31744
    %s379 = scalar_lea.vmem %s1, 1025
    %380 = vst.msk [vmem:[%s379] ss:$16 sm:$0x3] %vm378, %v377
    %s381 = scalar_lea.vmem %s1, 1025
    %382 = vst.msk [vmem:[%s381] ss:$16 sm:$0xc] %vm378, %v377
    %s383 = scalar_lea.vmem %s1, 1025
    %384 = vst.msk [vmem:[%s383] ss:$16 sm:$0x30] %vm378, %v377
    %s385 = scalar_lea.vmem %s1, 1025
    %386 = vst.msk [vmem:[%s385] ss:$16 sm:$0xc0] %vm378, %v377
    %s387 = scalar_lea.vmem [#allocation0], 72
    %v388 = vld [vmem:[%s387] sm:$0xff]
    %389 = vrot.lane.b32.xlu0 %v388, 124
    %v390 = vpop.permute.xlu0 %389
    %vm391 = vcmask 31744
    %s392 = scalar_lea.vmem %s1, 1153
    %393 = vst.msk [vmem:[%s392] ss:$16 sm:$0x3] %vm391, %v390
    %s394 = scalar_lea.vmem %s1, 1153
    %395 = vst.msk [vmem:[%s394] ss:$16 sm:$0xc] %vm391, %v390
    %s396 = scalar_lea.vmem %s1, 1153
    %397 = vst.msk [vmem:[%s396] ss:$16 sm:$0x30] %vm391, %v390
    %s398 = scalar_lea.vmem %s1, 1153
    %399 = vst.msk [vmem:[%s398] ss:$16 sm:$0xc0] %vm391, %v390
    %s400 = scalar_lea.vmem [#allocation0], 80
    %v401 = vld [vmem:[%s400] sm:$0xff]
    %402 = vrot.lane.b32.xlu0 %v401, 124
    %v403 = vpop.permute.xlu0 %402
    %vm404 = vcmask 31744
    %s405 = scalar_lea.vmem %s1, 1281
    %406 = vst.msk [vmem:[%s405] ss:$16 sm:$0x3] %vm404, %v403
    %s407 = scalar_lea.vmem %s1, 1281
    %408 = vst.msk [vmem:[%s407] ss:$16 sm:$0xc] %vm404, %v403
    %s409 = scalar_lea.vmem %s1, 1281
    %410 = vst.msk [vmem:[%s409] ss:$16 sm:$0x30] %vm404, %v403
    %s411 = scalar_lea.vmem %s1, 1281
    %412 = vst.msk [vmem:[%s411] ss:$16 sm:$0xc0] %vm404, %v403
    %s413 = scalar_lea.vmem [#allocation0], 88
    %v414 = vld [vmem:[%s413] sm:$0xff]
    %415 = vrot.lane.b32.xlu0 %v414, 124
    %v416 = vpop.permute.xlu0 %415
    %vm417 = vcmask 31744
    %s418 = scalar_lea.vmem %s1, 1409
    %419 = vst.msk [vmem:[%s418] ss:$16 sm:$0x3] %vm417, %v416
    %s420 = scalar_lea.vmem %s1, 1409
    %421 = vst.msk [vmem:[%s420] ss:$16 sm:$0xc] %vm417, %v416
    %s422 = scalar_lea.vmem %s1, 1409
    %423 = vst.msk [vmem:[%s422] ss:$16 sm:$0x30] %vm417, %v416
    %s424 = scalar_lea.vmem %s1, 1409
    %425 = vst.msk [vmem:[%s424] ss:$16 sm:$0xc0] %vm417, %v416
    %s426 = scalar_lea.vmem [#allocation0], 96
    %v427 = vld [vmem:[%s426] sm:$0xff]
    %428 = vrot.lane.b32.xlu0 %v427, 124
    %v429 = vpop.permute.xlu0 %428
    %vm430 = vcmask 31744
    %s431 = scalar_lea.vmem %s1, 1537
    %432 = vst.msk [vmem:[%s431] ss:$16 sm:$0x3] %vm430, %v429
    %s433 = scalar_lea.vmem %s1, 1537
    %434 = vst.msk [vmem:[%s433] ss:$16 sm:$0xc] %vm430, %v429
    %s435 = scalar_lea.vmem %s1, 1537
    %436 = vst.msk [vmem:[%s435] ss:$16 sm:$0x30] %vm430, %v429
    %s437 = scalar_lea.vmem %s1, 1537
    %438 = vst.msk [vmem:[%s437] ss:$16 sm:$0xc0] %vm430, %v429
    %s439 = scalar_lea.vmem [#allocation0], 104
    %v440 = vld [vmem:[%s439] sm:$0xff]
    %441 = vrot.lane.b32.xlu0 %v440, 124
    %v442 = vpop.permute.xlu0 %441
    %vm443 = vcmask 31744
    %s444 = scalar_lea.vmem %s1, 1665
    %445 = vst.msk [vmem:[%s444] ss:$16 sm:$0x3] %vm443, %v442
    %s446 = scalar_lea.vmem %s1, 1665
    %447 = vst.msk [vmem:[%s446] ss:$16 sm:$0xc] %vm443, %v442
    %s448 = scalar_lea.vmem %s1, 1665
    %449 = vst.msk [vmem:[%s448] ss:$16 sm:$0x30] %vm443, %v442
    %s450 = scalar_lea.vmem %s1, 1665
    %451 = vst.msk [vmem:[%s450] ss:$16 sm:$0xc0] %vm443, %v442
    %s452 = scalar_lea.vmem [#allocation0], 112
    %v453 = vld [vmem:[%s452] sm:$0xff]
    %454 = vrot.lane.b32.xlu0 %v453, 124
    %v455 = vpop.permute.xlu0 %454
    %vm456 = vcmask 31744
    %s457 = scalar_lea.vmem %s1, 1793
    %458 = vst.msk [vmem:[%s457] ss:$16 sm:$0x3] %vm456, %v455
    %s459 = scalar_lea.vmem %s1, 1793
    %460 = vst.msk [vmem:[%s459] ss:$16 sm:$0xc] %vm456, %v455
    %s461 = scalar_lea.vmem %s1, 1793
    %462 = vst.msk [vmem:[%s461] ss:$16 sm:$0x30] %vm456, %v455
    %s463 = scalar_lea.vmem %s1, 1793
    %464 = vst.msk [vmem:[%s463] ss:$16 sm:$0xc0] %vm456, %v455
    %s465 = scalar_lea.vmem [#allocation0], 120
    %v466 = vld [vmem:[%s465] sm:$0xff]
    %467 = vrot.lane.b32.xlu0 %v466, 124
    %v468 = vpop.permute.xlu0 %467
    %vm469 = vcmask 31744
    %s470 = scalar_lea.vmem %s1, 1921
    %471 = vst.msk [vmem:[%s470] ss:$16 sm:$0x3] %vm469, %v468
    %s472 = scalar_lea.vmem %s1, 1921
    %473 = vst.msk [vmem:[%s472] ss:$16 sm:$0xc] %vm469, %v468
    %s474 = scalar_lea.vmem %s1, 1921
    %475 = vst.msk [vmem:[%s474] ss:$16 sm:$0x30] %vm469, %v468
    %s476 = scalar_lea.vmem %s1, 1921
    %477 = vst.msk [vmem:[%s476] ss:$16 sm:$0xc0] %vm469, %v468
    %s478 = scalar_lea.vmem [#allocation0], 128
    %v479 = vld [vmem:[%s478] sm:$0xff]
    %480 = vrot.lane.b32.xlu0 %v479, 124
    %v481 = vpop.permute.xlu0 %480
    %vm482 = vcmask 31744
    %s483 = scalar_lea.vmem %s1, 2049
    %484 = vst.msk [vmem:[%s483] ss:$16 sm:$0x3] %vm482, %v481
    %s485 = scalar_lea.vmem %s1, 2049
    %486 = vst.msk [vmem:[%s485] ss:$16 sm:$0xc] %vm482, %v481
    %s487 = scalar_lea.vmem %s1, 2049
    %488 = vst.msk [vmem:[%s487] ss:$16 sm:$0x30] %vm482, %v481
    %s489 = scalar_lea.vmem %s1, 2049
    %490 = vst.msk [vmem:[%s489] ss:$16 sm:$0xc0] %vm482, %v481
    %s491 = scalar_lea.vmem [#allocation0], 136
    %v492 = vld [vmem:[%s491] sm:$0xff]
    %493 = vrot.lane.b32.xlu0 %v492, 124
    %v494 = vpop.permute.xlu0 %493
    %vm495 = vcmask 31744
    %s496 = scalar_lea.vmem %s1, 2177
    %497 = vst.msk [vmem:[%s496] ss:$16 sm:$0x3] %vm495, %v494
    %s498 = scalar_lea.vmem %s1, 2177
    %499 = vst.msk [vmem:[%s498] ss:$16 sm:$0xc] %vm495, %v494
    %s500 = scalar_lea.vmem %s1, 2177
    %501 = vst.msk [vmem:[%s500] ss:$16 sm:$0x30] %vm495, %v494
    %s502 = scalar_lea.vmem %s1, 2177
    %503 = vst.msk [vmem:[%s502] ss:$16 sm:$0xc0] %vm495, %v494
    %s504 = scalar_lea.vmem [#allocation0], 144
    %v505 = vld [vmem:[%s504] sm:$0xff]
    %506 = vrot.lane.b32.xlu0 %v505, 124
    %v507 = vpop.permute.xlu0 %506
    %vm508 = vcmask 31744
    %s509 = scalar_lea.vmem %s1, 2305
    %510 = vst.msk [vmem:[%s509] ss:$16 sm:$0x3] %vm508, %v507
    %s511 = scalar_lea.vmem %s1, 2305
    %512 = vst.msk [vmem:[%s511] ss:$16 sm:$0xc] %vm508, %v507
    %s513 = scalar_lea.vmem %s1, 2305
    %514 = vst.msk [vmem:[%s513] ss:$16 sm:$0x30] %vm508, %v507
    %s515 = scalar_lea.vmem %s1, 2305
    %516 = vst.msk [vmem:[%s515] ss:$16 sm:$0xc0] %vm508, %v507
    %s517 = scalar_lea.vmem [#allocation0], 152
    %v518 = vld [vmem:[%s517] sm:$0xff]
    %519 = vrot.lane.b32.xlu0 %v518, 124
    %v520 = vpop.permute.xlu0 %519
    %vm521 = vcmask 31744
    %s522 = scalar_lea.vmem %s1, 2433
    %523 = vst.msk [vmem:[%s522] ss:$16 sm:$0x3] %vm521, %v520
    %s524 = scalar_lea.vmem %s1, 2433
    %525 = vst.msk [vmem:[%s524] ss:$16 sm:$0xc] %vm521, %v520
    %s526 = scalar_lea.vmem %s1, 2433
    %527 = vst.msk [vmem:[%s526] ss:$16 sm:$0x30] %vm521, %v520
    %s528 = scalar_lea.vmem %s1, 2433
    %529 = vst.msk [vmem:[%s528] ss:$16 sm:$0xc0] %vm521, %v520
    %s530 = scalar_lea.vmem [#allocation0], 160
    %v531 = vld [vmem:[%s530] sm:$0xff]
    %532 = vrot.lane.b32.xlu0 %v531, 124
    %v533 = vpop.permute.xlu0 %532
    %vm534 = vcmask 31744
    %s535 = scalar_lea.vmem %s1, 2561
    %536 = vst.msk [vmem:[%s535] ss:$16 sm:$0x3] %vm534, %v533
    %s537 = scalar_lea.vmem %s1, 2561
    %538 = vst.msk [vmem:[%s537] ss:$16 sm:$0xc] %vm534, %v533
    %s539 = scalar_lea.vmem %s1, 2561
    %540 = vst.msk [vmem:[%s539] ss:$16 sm:$0x30] %vm534, %v533
    %s541 = scalar_lea.vmem %s1, 2561
    %542 = vst.msk [vmem:[%s541] ss:$16 sm:$0xc0] %vm534, %v533
    %s543 = scalar_lea.vmem [#allocation0], 168
    %v544 = vld [vmem:[%s543] sm:$0xff]
    %545 = vrot.lane.b32.xlu0 %v544, 124
    %v546 = vpop.permute.xlu0 %545
    %vm547 = vcmask 31744
    %s548 = scalar_lea.vmem %s1, 2689
    %549 = vst.msk [vmem:[%s548] ss:$16 sm:$0x3] %vm547, %v546
    %s550 = scalar_lea.vmem %s1, 2689
    %551 = vst.msk [vmem:[%s550] ss:$16 sm:$0xc] %vm547, %v546
    %s552 = scalar_lea.vmem %s1, 2689
    %553 = vst.msk [vmem:[%s552] ss:$16 sm:$0x30] %vm547, %v546
    %s554 = scalar_lea.vmem %s1, 2689
    %555 = vst.msk [vmem:[%s554] ss:$16 sm:$0xc0] %vm547, %v546
    %s556 = scalar_lea.vmem [#allocation0], 176
    %v557 = vld [vmem:[%s556] sm:$0xff]
    %558 = vrot.lane.b32.xlu0 %v557, 124
    %v559 = vpop.permute.xlu0 %558
    %vm560 = vcmask 31744
    %s561 = scalar_lea.vmem %s1, 2817
    %562 = vst.msk [vmem:[%s561] ss:$16 sm:$0x3] %vm560, %v559
    %s563 = scalar_lea.vmem %s1, 2817
    %564 = vst.msk [vmem:[%s563] ss:$16 sm:$0xc] %vm560, %v559
    %s565 = scalar_lea.vmem %s1, 2817
    %566 = vst.msk [vmem:[%s565] ss:$16 sm:$0x30] %vm560, %v559
    %s567 = scalar_lea.vmem %s1, 2817
    %568 = vst.msk [vmem:[%s567] ss:$16 sm:$0xc0] %vm560, %v559
    %s569 = scalar_lea.vmem [#allocation0], 184
    %v570 = vld [vmem:[%s569] sm:$0xff]
    %571 = vrot.lane.b32.xlu0 %v570, 124
    %v572 = vpop.permute.xlu0 %571
    %vm573 = vcmask 31744
    %s574 = scalar_lea.vmem %s1, 2945
    %575 = vst.msk [vmem:[%s574] ss:$16 sm:$0x3] %vm573, %v572
    %s576 = scalar_lea.vmem %s1, 2945
    %577 = vst.msk [vmem:[%s576] ss:$16 sm:$0xc] %vm573, %v572
    %s578 = scalar_lea.vmem %s1, 2945
    %579 = vst.msk [vmem:[%s578] ss:$16 sm:$0x30] %vm573, %v572
    %s580 = scalar_lea.vmem %s1, 2945
    %581 = vst.msk [vmem:[%s580] ss:$16 sm:$0xc0] %vm573, %v572
    %v582 = vld [vmem:[#allocation0] sm:$0xff]
    %583 = vrot.lane.b32.xlu0 %v582, 120
    %v584 = vpop.permute.xlu0 %583
    %vm585 = vcmask 31744
    %s586 = scalar_lea.vmem %s1, 2
    %587 = vst.msk [vmem:[%s586] ss:$16 sm:$0x3] %vm585, %v584
    %s588 = scalar_lea.vmem %s1, 2
    %589 = vst.msk [vmem:[%s588] ss:$16 sm:$0xc] %vm585, %v584
    %s590 = scalar_lea.vmem %s1, 2
    %591 = vst.msk [vmem:[%s590] ss:$16 sm:$0x30] %vm585, %v584
    %s592 = scalar_lea.vmem %s1, 2
    %593 = vst.msk [vmem:[%s592] ss:$16 sm:$0xc0] %vm585, %v584
    %s594 = scalar_lea.vmem [#allocation0], 8
    %v595 = vld [vmem:[%s594] sm:$0xff]
    %596 = vrot.lane.b32.xlu0 %v595, 120
    %v597 = vpop.permute.xlu0 %596
    %vm598 = vcmask 31744
    %s599 = scalar_lea.vmem %s1, 130
    %600 = vst.msk [vmem:[%s599] ss:$16 sm:$0x3] %vm598, %v597
    %s601 = scalar_lea.vmem %s1, 130
    %602 = vst.msk [vmem:[%s601] ss:$16 sm:$0xc] %vm598, %v597
    %s603 = scalar_lea.vmem %s1, 130
    %604 = vst.msk [vmem:[%s603] ss:$16 sm:$0x30] %vm598, %v597
    %s605 = scalar_lea.vmem %s1, 130
    %606 = vst.msk [vmem:[%s605] ss:$16 sm:$0xc0] %vm598, %v597
    %s607 = scalar_lea.vmem [#allocation0], 16
    %v608 = vld [vmem:[%s607] sm:$0xff]
    %609 = vrot.lane.b32.xlu0 %v608, 120
    %v610 = vpop.permute.xlu0 %609
    %vm611 = vcmask 31744
    %s612 = scalar_lea.vmem %s1, 258
    %613 = vst.msk [vmem:[%s612] ss:$16 sm:$0x3] %vm611, %v610
    %s614 = scalar_lea.vmem %s1, 258
    %615 = vst.msk [vmem:[%s614] ss:$16 sm:$0xc] %vm611, %v610
    %s616 = scalar_lea.vmem %s1, 258
    %617 = vst.msk [vmem:[%s616] ss:$16 sm:$0x30] %vm611, %v610
    %s618 = scalar_lea.vmem %s1, 258
    %619 = vst.msk [vmem:[%s618] ss:$16 sm:$0xc0] %vm611, %v610
    %s620 = scalar_lea.vmem [#allocation0], 24
    %v621 = vld [vmem:[%s620] sm:$0xff]
    %622 = vrot.lane.b32.xlu0 %v621, 120
    %v623 = vpop.permute.xlu0 %622
    %vm624 = vcmask 31744
    %s625 = scalar_lea.vmem %s1, 386
    %626 = vst.msk [vmem:[%s625] ss:$16 sm:$0x3] %vm624, %v623
    %s627 = scalar_lea.vmem %s1, 386
    %628 = vst.msk [vmem:[%s627] ss:$16 sm:$0xc] %vm624, %v623
    %s629 = scalar_lea.vmem %s1, 386
    %630 = vst.msk [vmem:[%s629] ss:$16 sm:$0x30] %vm624, %v623
    %s631 = scalar_lea.vmem %s1, 386
    %632 = vst.msk [vmem:[%s631] ss:$16 sm:$0xc0] %vm624, %v623
    %s633 = scalar_lea.vmem [#allocation0], 32
    %v634 = vld [vmem:[%s633] sm:$0xff]
    %635 = vrot.lane.b32.xlu0 %v634, 120
    %v636 = vpop.permute.xlu0 %635
    %vm637 = vcmask 31744
    %s638 = scalar_lea.vmem %s1, 514
    %639 = vst.msk [vmem:[%s638] ss:$16 sm:$0x3] %vm637, %v636
    %s640 = scalar_lea.vmem %s1, 514
    %641 = vst.msk [vmem:[%s640] ss:$16 sm:$0xc] %vm637, %v636
    %s642 = scalar_lea.vmem %s1, 514
    %643 = vst.msk [vmem:[%s642] ss:$16 sm:$0x30] %vm637, %v636
    %s644 = scalar_lea.vmem %s1, 514
    %645 = vst.msk [vmem:[%s644] ss:$16 sm:$0xc0] %vm637, %v636
    %s646 = scalar_lea.vmem [#allocation0], 40
    %v647 = vld [vmem:[%s646] sm:$0xff]
    %648 = vrot.lane.b32.xlu0 %v647, 120
    %v649 = vpop.permute.xlu0 %648
    %vm650 = vcmask 31744
    %s651 = scalar_lea.vmem %s1, 642
    %652 = vst.msk [vmem:[%s651] ss:$16 sm:$0x3] %vm650, %v649
    %s653 = scalar_lea.vmem %s1, 642
    %654 = vst.msk [vmem:[%s653] ss:$16 sm:$0xc] %vm650, %v649
    %s655 = scalar_lea.vmem %s1, 642
    %656 = vst.msk [vmem:[%s655] ss:$16 sm:$0x30] %vm650, %v649
    %s657 = scalar_lea.vmem %s1, 642
    %658 = vst.msk [vmem:[%s657] ss:$16 sm:$0xc0] %vm650, %v649
    %s659 = scalar_lea.vmem [#allocation0], 48
    %v660 = vld [vmem:[%s659] sm:$0xff]
    %661 = vrot.lane.b32.xlu0 %v660, 120
    %v662 = vpop.permute.xlu0 %661
    %vm663 = vcmask 31744
    %s664 = scalar_lea.vmem %s1, 770
    %665 = vst.msk [vmem:[%s664] ss:$16 sm:$0x3] %vm663, %v662
    %s666 = scalar_lea.vmem %s1, 770
    %667 = vst.msk [vmem:[%s666] ss:$16 sm:$0xc] %vm663, %v662
    %s668 = scalar_lea.vmem %s1, 770
    %669 = vst.msk [vmem:[%s668] ss:$16 sm:$0x30] %vm663, %v662
    %s670 = scalar_lea.vmem %s1, 770
    %671 = vst.msk [vmem:[%s670] ss:$16 sm:$0xc0] %vm663, %v662
    %s672 = scalar_lea.vmem [#allocation0], 56
    %v673 = vld [vmem:[%s672] sm:$0xff]
    %674 = vrot.lane.b32.xlu0 %v673, 120
    %v675 = vpop.permute.xlu0 %674
    %vm676 = vcmask 31744
    %s677 = scalar_lea.vmem %s1, 898
    %678 = vst.msk [vmem:[%s677] ss:$16 sm:$0x3] %vm676, %v675
    %s679 = scalar_lea.vmem %s1, 898
    %680 = vst.msk [vmem:[%s679] ss:$16 sm:$0xc] %vm676, %v675
    %s681 = scalar_lea.vmem %s1, 898
    %682 = vst.msk [vmem:[%s681] ss:$16 sm:$0x30] %vm676, %v675
    %s683 = scalar_lea.vmem %s1, 898
    %684 = vst.msk [vmem:[%s683] ss:$16 sm:$0xc0] %vm676, %v675
    %s685 = scalar_lea.vmem [#allocation0], 64
    %v686 = vld [vmem:[%s685] sm:$0xff]
    %687 = vrot.lane.b32.xlu0 %v686, 120
    %v688 = vpop.permute.xlu0 %687
    %vm689 = vcmask 31744
    %s690 = scalar_lea.vmem %s1, 1026
    %691 = vst.msk [vmem:[%s690] ss:$16 sm:$0x3] %vm689, %v688
    %s692 = scalar_lea.vmem %s1, 1026
    %693 = vst.msk [vmem:[%s692] ss:$16 sm:$0xc] %vm689, %v688
    %s694 = scalar_lea.vmem %s1, 1026
    %695 = vst.msk [vmem:[%s694] ss:$16 sm:$0x30] %vm689, %v688
    %s696 = scalar_lea.vmem %s1, 1026
    %697 = vst.msk [vmem:[%s696] ss:$16 sm:$0xc0] %vm689, %v688
    %s698 = scalar_lea.vmem [#allocation0], 72
    %v699 = vld [vmem:[%s698] sm:$0xff]
    %700 = vrot.lane.b32.xlu0 %v699, 120
    %v701 = vpop.permute.xlu0 %700
    %vm702 = vcmask 31744
    %s703 = scalar_lea.vmem %s1, 1154
    %704 = vst.msk [vmem:[%s703] ss:$16 sm:$0x3] %vm702, %v701
    %s705 = scalar_lea.vmem %s1, 1154
    %706 = vst.msk [vmem:[%s705] ss:$16 sm:$0xc] %vm702, %v701
    %s707 = scalar_lea.vmem %s1, 1154
    %708 = vst.msk [vmem:[%s707] ss:$16 sm:$0x30] %vm702, %v701
    %s709 = scalar_lea.vmem %s1, 1154
    %710 = vst.msk [vmem:[%s709] ss:$16 sm:$0xc0] %vm702, %v701
    %s711 = scalar_lea.vmem [#allocation0], 80
    %v712 = vld [vmem:[%s711] sm:$0xff]
    %713 = vrot.lane.b32.xlu0 %v712, 120
    %v714 = vpop.permute.xlu0 %713
    %vm715 = vcmask 31744
    %s716 = scalar_lea.vmem %s1, 1282
    %717 = vst.msk [vmem:[%s716] ss:$16 sm:$0x3] %vm715, %v714
    %s718 = scalar_lea.vmem %s1, 1282
    %719 = vst.msk [vmem:[%s718] ss:$16 sm:$0xc] %vm715, %v714
    %s720 = scalar_lea.vmem %s1, 1282
    %721 = vst.msk [vmem:[%s720] ss:$16 sm:$0x30] %vm715, %v714
    %s722 = scalar_lea.vmem %s1, 1282
    %723 = vst.msk [vmem:[%s722] ss:$16 sm:$0xc0] %vm715, %v714
    %s724 = scalar_lea.vmem [#allocation0], 88
    %v725 = vld [vmem:[%s724] sm:$0xff]
    %726 = vrot.lane.b32.xlu0 %v725, 120
    %v727 = vpop.permute.xlu0 %726
    %vm728 = vcmask 31744
    %s729 = scalar_lea.vmem %s1, 1410
    %730 = vst.msk [vmem:[%s729] ss:$16 sm:$0x3] %vm728, %v727
    %s731 = scalar_lea.vmem %s1, 1410
    %732 = vst.msk [vmem:[%s731] ss:$16 sm:$0xc] %vm728, %v727
    %s733 = scalar_lea.vmem %s1, 1410
    %734 = vst.msk [vmem:[%s733] ss:$16 sm:$0x30] %vm728, %v727
    %s735 = scalar_lea.vmem %s1, 1410
    %736 = vst.msk [vmem:[%s735] ss:$16 sm:$0xc0] %vm728, %v727
    %s737 = scalar_lea.vmem [#allocation0], 96
    %v738 = vld [vmem:[%s737] sm:$0xff]
    %739 = vrot.lane.b32.xlu0 %v738, 120
    %v740 = vpop.permute.xlu0 %739
    %vm741 = vcmask 31744
    %s742 = scalar_lea.vmem %s1, 1538
    %743 = vst.msk [vmem:[%s742] ss:$16 sm:$0x3] %vm741, %v740
    %s744 = scalar_lea.vmem %s1, 1538
    %745 = vst.msk [vmem:[%s744] ss:$16 sm:$0xc] %vm741, %v740
    %s746 = scalar_lea.vmem %s1, 1538
    %747 = vst.msk [vmem:[%s746] ss:$16 sm:$0x30] %vm741, %v740
    %s748 = scalar_lea.vmem %s1, 1538
    %749 = vst.msk [vmem:[%s748] ss:$16 sm:$0xc0] %vm741, %v740
    %s750 = scalar_lea.vmem [#allocation0], 104
    %v751 = vld [vmem:[%s750] sm:$0xff]
    %752 = vrot.lane.b32.xlu0 %v751, 120
    %v753 = vpop.permute.xlu0 %752
    %vm754 = vcmask 31744
    %s755 = scalar_lea.vmem %s1, 1666
    %756 = vst.msk [vmem:[%s755] ss:$16 sm:$0x3] %vm754, %v753
    %s757 = scalar_lea.vmem %s1, 1666
    %758 = vst.msk [vmem:[%s757] ss:$16 sm:$0xc] %vm754, %v753
    %s759 = scalar_lea.vmem %s1, 1666
    %760 = vst.msk [vmem:[%s759] ss:$16 sm:$0x30] %vm754, %v753
    %s761 = scalar_lea.vmem %s1, 1666
    %762 = vst.msk [vmem:[%s761] ss:$16 sm:$0xc0] %vm754, %v753
    %s763 = scalar_lea.vmem [#allocation0], 112
    %v764 = vld [vmem:[%s763] sm:$0xff]
    %765 = vrot.lane.b32.xlu0 %v764, 120
    %v766 = vpop.permute.xlu0 %765
    %vm767 = vcmask 31744
    %s768 = scalar_lea.vmem %s1, 1794
    %769 = vst.msk [vmem:[%s768] ss:$16 sm:$0x3] %vm767, %v766
    %s770 = scalar_lea.vmem %s1, 1794
    %771 = vst.msk [vmem:[%s770] ss:$16 sm:$0xc] %vm767, %v766
    %s772 = scalar_lea.vmem %s1, 1794
    %773 = vst.msk [vmem:[%s772] ss:$16 sm:$0x30] %vm767, %v766
    %s774 = scalar_lea.vmem %s1, 1794
    %775 = vst.msk [vmem:[%s774] ss:$16 sm:$0xc0] %vm767, %v766
    %s776 = scalar_lea.vmem [#allocation0], 120
    %v777 = vld [vmem:[%s776] sm:$0xff]
    %778 = vrot.lane.b32.xlu0 %v777, 120
    %v779 = vpop.permute.xlu0 %778
    %vm780 = vcmask 31744
    %s781 = scalar_lea.vmem %s1, 1922
    %782 = vst.msk [vmem:[%s781] ss:$16 sm:$0x3] %vm780, %v779
    %s783 = scalar_lea.vmem %s1, 1922
    %784 = vst.msk [vmem:[%s783] ss:$16 sm:$0xc] %vm780, %v779
    %s785 = scalar_lea.vmem %s1, 1922
    %786 = vst.msk [vmem:[%s785] ss:$16 sm:$0x30] %vm780, %v779
    %s787 = scalar_lea.vmem %s1, 1922
    %788 = vst.msk [vmem:[%s787] ss:$16 sm:$0xc0] %vm780, %v779
    %s789 = scalar_lea.vmem [#allocation0], 128
    %v790 = vld [vmem:[%s789] sm:$0xff]
    %791 = vrot.lane.b32.xlu0 %v790, 120
    %v792 = vpop.permute.xlu0 %791
    %vm793 = vcmask 31744
    %s794 = scalar_lea.vmem %s1, 2050
    %795 = vst.msk [vmem:[%s794] ss:$16 sm:$0x3] %vm793, %v792
    %s796 = scalar_lea.vmem %s1, 2050
    %797 = vst.msk [vmem:[%s796] ss:$16 sm:$0xc] %vm793, %v792
    %s798 = scalar_lea.vmem %s1, 2050
    %799 = vst.msk [vmem:[%s798] ss:$16 sm:$0x30] %vm793, %v792
    %s800 = scalar_lea.vmem %s1, 2050
    %801 = vst.msk [vmem:[%s800] ss:$16 sm:$0xc0] %vm793, %v792
    %s802 = scalar_lea.vmem [#allocation0], 136
    %v803 = vld [vmem:[%s802] sm:$0xff]
    %804 = vrot.lane.b32.xlu0 %v803, 120
    %v805 = vpop.permute.xlu0 %804
    %vm806 = vcmask 31744
    %s807 = scalar_lea.vmem %s1, 2178
    %808 = vst.msk [vmem:[%s807] ss:$16 sm:$0x3] %vm806, %v805
    %s809 = scalar_lea.vmem %s1, 2178
    %810 = vst.msk [vmem:[%s809] ss:$16 sm:$0xc] %vm806, %v805
    %s811 = scalar_lea.vmem %s1, 2178
    %812 = vst.msk [vmem:[%s811] ss:$16 sm:$0x30] %vm806, %v805
    %s813 = scalar_lea.vmem %s1, 2178
    %814 = vst.msk [vmem:[%s813] ss:$16 sm:$0xc0] %vm806, %v805
    %s815 = scalar_lea.vmem [#allocation0], 144
    %v816 = vld [vmem:[%s815] sm:$0xff]
    %817 = vrot.lane.b32.xlu0 %v816, 120
    %v818 = vpop.permute.xlu0 %817
    %vm819 = vcmask 31744
    %s820 = scalar_lea.vmem %s1, 2306
    %821 = vst.msk [vmem:[%s820] ss:$16 sm:$0x3] %vm819, %v818
    %s822 = scalar_lea.vmem %s1, 2306
    %823 = vst.msk [vmem:[%s822] ss:$16 sm:$0xc] %vm819, %v818
    %s824 = scalar_lea.vmem %s1, 2306
    %825 = vst.msk [vmem:[%s824] ss:$16 sm:$0x30] %vm819, %v818
    %s826 = scalar_lea.vmem %s1, 2306
    %827 = vst.msk [vmem:[%s826] ss:$16 sm:$0xc0] %vm819, %v818
    %s828 = scalar_lea.vmem [#allocation0], 152
    %v829 = vld [vmem:[%s828] sm:$0xff]
    %830 = vrot.lane.b32.xlu0 %v829, 120
    %v831 = vpop.permute.xlu0 %830
    %vm832 = vcmask 31744
    %s833 = scalar_lea.vmem %s1, 2434
    %834 = vst.msk [vmem:[%s833] ss:$16 sm:$0x3] %vm832, %v831
    %s835 = scalar_lea.vmem %s1, 2434
    %836 = vst.msk [vmem:[%s835] ss:$16 sm:$0xc] %vm832, %v831
    %s837 = scalar_lea.vmem %s1, 2434
    %838 = vst.msk [vmem:[%s837] ss:$16 sm:$0x30] %vm832, %v831
    %s839 = scalar_lea.vmem %s1, 2434
    %840 = vst.msk [vmem:[%s839] ss:$16 sm:$0xc0] %vm832, %v831
    %s841 = scalar_lea.vmem [#allocation0], 160
    %v842 = vld [vmem:[%s841] sm:$0xff]
    %843 = vrot.lane.b32.xlu0 %v842, 120
    %v844 = vpop.permute.xlu0 %843
    %vm845 = vcmask 31744
    %s846 = scalar_lea.vmem %s1, 2562
    %847 = vst.msk [vmem:[%s846] ss:$16 sm:$0x3] %vm845, %v844
    %s848 = scalar_lea.vmem %s1, 2562
    %849 = vst.msk [vmem:[%s848] ss:$16 sm:$0xc] %vm845, %v844
    %s850 = scalar_lea.vmem %s1, 2562
    %851 = vst.msk [vmem:[%s850] ss:$16 sm:$0x30] %vm845, %v844
    %s852 = scalar_lea.vmem %s1, 2562
    %853 = vst.msk [vmem:[%s852] ss:$16 sm:$0xc0] %vm845, %v844
    %s854 = scalar_lea.vmem [#allocation0], 168
    %v855 = vld [vmem:[%s854] sm:$0xff]
    %856 = vrot.lane.b32.xlu0 %v855, 120
    %v857 = vpop.permute.xlu0 %856
    %vm858 = vcmask 31744
    %s859 = scalar_lea.vmem %s1, 2690
    %860 = vst.msk [vmem:[%s859] ss:$16 sm:$0x3] %vm858, %v857
    %s861 = scalar_lea.vmem %s1, 2690
    %862 = vst.msk [vmem:[%s861] ss:$16 sm:$0xc] %vm858, %v857
    %s863 = scalar_lea.vmem %s1, 2690
    %864 = vst.msk [vmem:[%s863] ss:$16 sm:$0x30] %vm858, %v857
    %s865 = scalar_lea.vmem %s1, 2690
    %866 = vst.msk [vmem:[%s865] ss:$16 sm:$0xc0] %vm858, %v857
    %s867 = scalar_lea.vmem [#allocation0], 176
    %v868 = vld [vmem:[%s867] sm:$0xff]
    %869 = vrot.lane.b32.xlu0 %v868, 120
    %v870 = vpop.permute.xlu0 %869
    %vm871 = vcmask 31744
    %s872 = scalar_lea.vmem %s1, 2818
    %873 = vst.msk [vmem:[%s872] ss:$16 sm:$0x3] %vm871, %v870
    %s874 = scalar_lea.vmem %s1, 2818
    %875 = vst.msk [vmem:[%s874] ss:$16 sm:$0xc] %vm871, %v870
    %s876 = scalar_lea.vmem %s1, 2818
    %877 = vst.msk [vmem:[%s876] ss:$16 sm:$0x30] %vm871, %v870
    %s878 = scalar_lea.vmem %s1, 2818
    %879 = vst.msk [vmem:[%s878] ss:$16 sm:$0xc0] %vm871, %v870
    %s880 = scalar_lea.vmem [#allocation0], 184
    %v881 = vld [vmem:[%s880] sm:$0xff]
    %882 = vrot.lane.b32.xlu0 %v881, 120
    %v883 = vpop.permute.xlu0 %882
    %vm884 = vcmask 31744
    %s885 = scalar_lea.vmem %s1, 2946
    %886 = vst.msk [vmem:[%s885] ss:$16 sm:$0x3] %vm884, %v883
    %s887 = scalar_lea.vmem %s1, 2946
    %888 = vst.msk [vmem:[%s887] ss:$16 sm:$0xc] %vm884, %v883
    %s889 = scalar_lea.vmem %s1, 2946
    %890 = vst.msk [vmem:[%s889] ss:$16 sm:$0x30] %vm884, %v883
    %s891 = scalar_lea.vmem %s1, 2946
    %892 = vst.msk [vmem:[%s891] ss:$16 sm:$0xc0] %vm884, %v883
    %v893 = vld [vmem:[#allocation0] sm:$0xff]
    %894 = vrot.lane.b32.xlu0 %v893, 116
    %v895 = vpop.permute.xlu0 %894
    %vm896 = vcmask 31744
    %s897 = scalar_lea.vmem %s1, 3
    %898 = vst.msk [vmem:[%s897] ss:$16 sm:$0x3] %vm896, %v895
    %s899 = scalar_lea.vmem %s1, 3
    %900 = vst.msk [vmem:[%s899] ss:$16 sm:$0xc] %vm896, %v895
    %s901 = scalar_lea.vmem %s1, 3
    %902 = vst.msk [vmem:[%s901] ss:$16 sm:$0x30] %vm896, %v895
    %s903 = scalar_lea.vmem %s1, 3
    %904 = vst.msk [vmem:[%s903] ss:$16 sm:$0xc0] %vm896, %v895
    %s905 = scalar_lea.vmem [#allocation0], 8
    %v906 = vld [vmem:[%s905] sm:$0xff]
    %907 = vrot.lane.b32.xlu0 %v906, 116
    %v908 = vpop.permute.xlu0 %907
    %vm909 = vcmask 31744
    %s910 = scalar_lea.vmem %s1, 131
    %911 = vst.msk [vmem:[%s910] ss:$16 sm:$0x3] %vm909, %v908
    %s912 = scalar_lea.vmem %s1, 131
    %913 = vst.msk [vmem:[%s912] ss:$16 sm:$0xc] %vm909, %v908
    %s914 = scalar_lea.vmem %s1, 131
    %915 = vst.msk [vmem:[%s914] ss:$16 sm:$0x30] %vm909, %v908
    %s916 = scalar_lea.vmem %s1, 131
    %917 = vst.msk [vmem:[%s916] ss:$16 sm:$0xc0] %vm909, %v908
    %s918 = scalar_lea.vmem [#allocation0], 16
    %v919 = vld [vmem:[%s918] sm:$0xff]
    %920 = vrot.lane.b32.xlu0 %v919, 116
    %v921 = vpop.permute.xlu0 %920
    %vm922 = vcmask 31744
    %s923 = scalar_lea.vmem %s1, 259
    %924 = vst.msk [vmem:[%s923] ss:$16 sm:$0x3] %vm922, %v921
    %s925 = scalar_lea.vmem %s1, 259
    %926 = vst.msk [vmem:[%s925] ss:$16 sm:$0xc] %vm922, %v921
    %s927 = scalar_lea.vmem %s1, 259
    %928 = vst.msk [vmem:[%s927] ss:$16 sm:$0x30] %vm922, %v921
    %s929 = scalar_lea.vmem %s1, 259
    %930 = vst.msk [vmem:[%s929] ss:$16 sm:$0xc0] %vm922, %v921
    %s931 = scalar_lea.vmem [#allocation0], 24
    %v932 = vld [vmem:[%s931] sm:$0xff]
    %933 = vrot.lane.b32.xlu0 %v932, 116
    %v934 = vpop.permute.xlu0 %933
    %vm935 = vcmask 31744
    %s936 = scalar_lea.vmem %s1, 387
    %937 = vst.msk [vmem:[%s936] ss:$16 sm:$0x3] %vm935, %v934
    %s938 = scalar_lea.vmem %s1, 387
    %939 = vst.msk [vmem:[%s938] ss:$16 sm:$0xc] %vm935, %v934
    %s940 = scalar_lea.vmem %s1, 387
    %941 = vst.msk [vmem:[%s940] ss:$16 sm:$0x30] %vm935, %v934
    %s942 = scalar_lea.vmem %s1, 387
    %943 = vst.msk [vmem:[%s942] ss:$16 sm:$0xc0] %vm935, %v934
    %s944 = scalar_lea.vmem [#allocation0], 32
    %v945 = vld [vmem:[%s944] sm:$0xff]
    %946 = vrot.lane.b32.xlu0 %v945, 116
    %v947 = vpop.permute.xlu0 %946
    %vm948 = vcmask 31744
    %s949 = scalar_lea.vmem %s1, 515
    %950 = vst.msk [vmem:[%s949] ss:$16 sm:$0x3] %vm948, %v947
    %s951 = scalar_lea.vmem %s1, 515
    %952 = vst.msk [vmem:[%s951] ss:$16 sm:$0xc] %vm948, %v947
    %s953 = scalar_lea.vmem %s1, 515
    %954 = vst.msk [vmem:[%s953] ss:$16 sm:$0x30] %vm948, %v947
    %s955 = scalar_lea.vmem %s1, 515
    %956 = vst.msk [vmem:[%s955] ss:$16 sm:$0xc0] %vm948, %v947
    %s957 = scalar_lea.vmem [#allocation0], 40
    %v958 = vld [vmem:[%s957] sm:$0xff]
    %959 = vrot.lane.b32.xlu0 %v958, 116
    %v960 = vpop.permute.xlu0 %959
    %vm961 = vcmask 31744
    %s962 = scalar_lea.vmem %s1, 643
    %963 = vst.msk [vmem:[%s962] ss:$16 sm:$0x3] %vm961, %v960
    %s964 = scalar_lea.vmem %s1, 643
    %965 = vst.msk [vmem:[%s964] ss:$16 sm:$0xc] %vm961, %v960
    %s966 = scalar_lea.vmem %s1, 643
    %967 = vst.msk [vmem:[%s966] ss:$16 sm:$0x30] %vm961, %v960
    %s968 = scalar_lea.vmem %s1, 643
    %969 = vst.msk [vmem:[%s968] ss:$16 sm:$0xc0] %vm961, %v960
    %s970 = scalar_lea.vmem [#allocation0], 48
    %v971 = vld [vmem:[%s970] sm:$0xff]
    %972 = vrot.lane.b32.xlu0 %v971, 116
    %v973 = vpop.permute.xlu0 %972
    %vm974 = vcmask 31744
    %s975 = scalar_lea.vmem %s1, 771
    %976 = vst.msk [vmem:[%s975] ss:$16 sm:$0x3] %vm974, %v973
    %s977 = scalar_lea.vmem %s1, 771
    %978 = vst.msk [vmem:[%s977] ss:$16 sm:$0xc] %vm974, %v973
    %s979 = scalar_lea.vmem %s1, 771
    %980 = vst.msk [vmem:[%s979] ss:$16 sm:$0x30] %vm974, %v973
    %s981 = scalar_lea.vmem %s1, 771
    %982 = vst.msk [vmem:[%s981] ss:$16 sm:$0xc0] %vm974, %v973
    %s983 = scalar_lea.vmem [#allocation0], 56
    %v984 = vld [vmem:[%s983] sm:$0xff]
    %985 = vrot.lane.b32.xlu0 %v984, 116
    %v986 = vpop.permute.xlu0 %985
    %vm987 = vcmask 31744
    %s988 = scalar_lea.vmem %s1, 899
    %989 = vst.msk [vmem:[%s988] ss:$16 sm:$0x3] %vm987, %v986
    %s990 = scalar_lea.vmem %s1, 899
    %991 = vst.msk [vmem:[%s990] ss:$16 sm:$0xc] %vm987, %v986
    %s992 = scalar_lea.vmem %s1, 899
    %993 = vst.msk [vmem:[%s992] ss:$16 sm:$0x30] %vm987, %v986
    %s994 = scalar_lea.vmem %s1, 899
    %995 = vst.msk [vmem:[%s994] ss:$16 sm:$0xc0] %vm987, %v986
    %s996 = scalar_lea.vmem [#allocation0], 64
    %v997 = vld [vmem:[%s996] sm:$0xff]
    %998 = vrot.lane.b32.xlu0 %v997, 116
    %v999 = vpop.permute.xlu0 %998
    %vm1000 = vcmask 31744
    %s1001 = scalar_lea.vmem %s1, 1027
    %1002 = vst.msk [vmem:[%s1001] ss:$16 sm:$0x3] %vm1000, %v999
    %s1003 = scalar_lea.vmem %s1, 1027
    %1004 = vst.msk [vmem:[%s1003] ss:$16 sm:$0xc] %vm1000, %v999
    %s1005 = scalar_lea.vmem %s1, 1027
    %1006 = vst.msk [vmem:[%s1005] ss:$16 sm:$0x30] %vm1000, %v999
    %s1007 = scalar_lea.vmem %s1, 1027
    %1008 = vst.msk [vmem:[%s1007] ss:$16 sm:$0xc0] %vm1000, %v999
    %s1009 = scalar_lea.vmem [#allocation0], 72
    %v1010 = vld [vmem:[%s1009] sm:$0xff]
    %1011 = vrot.lane.b32.xlu0 %v1010, 116
    %v1012 = vpop.permute.xlu0 %1011
    %vm1013 = vcmask 31744
    %s1014 = scalar_lea.vmem %s1, 1155
    %1015 = vst.msk [vmem:[%s1014] ss:$16 sm:$0x3] %vm1013, %v1012
    %s1016 = scalar_lea.vmem %s1, 1155
    %1017 = vst.msk [vmem:[%s1016] ss:$16 sm:$0xc] %vm1013, %v1012
    %s1018 = scalar_lea.vmem %s1, 1155
    %1019 = vst.msk [vmem:[%s1018] ss:$16 sm:$0x30] %vm1013, %v1012
    %s1020 = scalar_lea.vmem %s1, 1155
    %1021 = vst.msk [vmem:[%s1020] ss:$16 sm:$0xc0] %vm1013, %v1012
    %s1022 = scalar_lea.vmem [#allocation0], 80
    %v1023 = vld [vmem:[%s1022] sm:$0xff]
    %1024 = vrot.lane.b32.xlu0 %v1023, 116
    %v1025 = vpop.permute.xlu0 %1024
    %vm1026 = vcmask 31744
    %s1027 = scalar_lea.vmem %s1, 1283
    %1028 = vst.msk [vmem:[%s1027] ss:$16 sm:$0x3] %vm1026, %v1025
    %s1029 = scalar_lea.vmem %s1, 1283
    %1030 = vst.msk [vmem:[%s1029] ss:$16 sm:$0xc] %vm1026, %v1025
    %s1031 = scalar_lea.vmem %s1, 1283
    %1032 = vst.msk [vmem:[%s1031] ss:$16 sm:$0x30] %vm1026, %v1025
    %s1033 = scalar_lea.vmem %s1, 1283
    %1034 = vst.msk [vmem:[%s1033] ss:$16 sm:$0xc0] %vm1026, %v1025
    %s1035 = scalar_lea.vmem [#allocation0], 88
    %v1036 = vld [vmem:[%s1035] sm:$0xff]
    %1037 = vrot.lane.b32.xlu0 %v1036, 116
    %v1038 = vpop.permute.xlu0 %1037
    %vm1039 = vcmask 31744
    %s1040 = scalar_lea.vmem %s1, 1411
    %1041 = vst.msk [vmem:[%s1040] ss:$16 sm:$0x3] %vm1039, %v1038
    %s1042 = scalar_lea.vmem %s1, 1411
    %1043 = vst.msk [vmem:[%s1042] ss:$16 sm:$0xc] %vm1039, %v1038
    %s1044 = scalar_lea.vmem %s1, 1411
    %1045 = vst.msk [vmem:[%s1044] ss:$16 sm:$0x30] %vm1039, %v1038
    %s1046 = scalar_lea.vmem %s1, 1411
    %1047 = vst.msk [vmem:[%s1046] ss:$16 sm:$0xc0] %vm1039, %v1038
    %s1048 = scalar_lea.vmem [#allocation0], 96
    %v1049 = vld [vmem:[%s1048] sm:$0xff]
    %1050 = vrot.lane.b32.xlu0 %v1049, 116
    %v1051 = vpop.permute.xlu0 %1050
    %vm1052 = vcmask 31744
    %s1053 = scalar_lea.vmem %s1, 1539
    %1054 = vst.msk [vmem:[%s1053] ss:$16 sm:$0x3] %vm1052, %v1051
    %s1055 = scalar_lea.vmem %s1, 1539
    %1056 = vst.msk [vmem:[%s1055] ss:$16 sm:$0xc] %vm1052, %v1051
    %s1057 = scalar_lea.vmem %s1, 1539
    %1058 = vst.msk [vmem:[%s1057] ss:$16 sm:$0x30] %vm1052, %v1051
    %s1059 = scalar_lea.vmem %s1, 1539
    %1060 = vst.msk [vmem:[%s1059] ss:$16 sm:$0xc0] %vm1052, %v1051
    %s1061 = scalar_lea.vmem [#allocation0], 104
    %v1062 = vld [vmem:[%s1061] sm:$0xff]
    %1063 = vrot.lane.b32.xlu0 %v1062, 116
    %v1064 = vpop.permute.xlu0 %1063
    %vm1065 = vcmask 31744
    %s1066 = scalar_lea.vmem %s1, 1667
    %1067 = vst.msk [vmem:[%s1066] ss:$16 sm:$0x3] %vm1065, %v1064
    %s1068 = scalar_lea.vmem %s1, 1667
    %1069 = vst.msk [vmem:[%s1068] ss:$16 sm:$0xc] %vm1065, %v1064
    %s1070 = scalar_lea.vmem %s1, 1667
    %1071 = vst.msk [vmem:[%s1070] ss:$16 sm:$0x30] %vm1065, %v1064
    %s1072 = scalar_lea.vmem %s1, 1667
    %1073 = vst.msk [vmem:[%s1072] ss:$16 sm:$0xc0] %vm1065, %v1064
    %s1074 = scalar_lea.vmem [#allocation0], 112
    %v1075 = vld [vmem:[%s1074] sm:$0xff]
    %1076 = vrot.lane.b32.xlu0 %v1075, 116
    %v1077 = vpop.permute.xlu0 %1076
    %vm1078 = vcmask 31744
    %s1079 = scalar_lea.vmem %s1, 1795
    %1080 = vst.msk [vmem:[%s1079] ss:$16 sm:$0x3] %vm1078, %v1077
    %s1081 = scalar_lea.vmem %s1, 1795
    %1082 = vst.msk [vmem:[%s1081] ss:$16 sm:$0xc] %vm1078, %v1077
    %s1083 = scalar_lea.vmem %s1, 1795
    %1084 = vst.msk [vmem:[%s1083] ss:$16 sm:$0x30] %vm1078, %v1077
    %s1085 = scalar_lea.vmem %s1, 1795
    %1086 = vst.msk [vmem:[%s1085] ss:$16 sm:$0xc0] %vm1078, %v1077
    %s1087 = scalar_lea.vmem [#allocation0], 120
    %v1088 = vld [vmem:[%s1087] sm:$0xff]
    %1089 = vrot.lane.b32.xlu0 %v1088, 116
    %v1090 = vpop.permute.xlu0 %1089
    %vm1091 = vcmask 31744
    %s1092 = scalar_lea.vmem %s1, 1923
    %1093 = vst.msk [vmem:[%s1092] ss:$16 sm:$0x3] %vm1091, %v1090
    %s1094 = scalar_lea.vmem %s1, 1923
    %1095 = vst.msk [vmem:[%s1094] ss:$16 sm:$0xc] %vm1091, %v1090
    %s1096 = scalar_lea.vmem %s1, 1923
    %1097 = vst.msk [vmem:[%s1096] ss:$16 sm:$0x30] %vm1091, %v1090
    %s1098 = scalar_lea.vmem %s1, 1923
    %1099 = vst.msk [vmem:[%s1098] ss:$16 sm:$0xc0] %vm1091, %v1090
    %s1100 = scalar_lea.vmem [#allocation0], 128
    %v1101 = vld [vmem:[%s1100] sm:$0xff]
    %1102 = vrot.lane.b32.xlu0 %v1101, 116
    %v1103 = vpop.permute.xlu0 %1102
    %vm1104 = vcmask 31744
    %s1105 = scalar_lea.vmem %s1, 2051
    %1106 = vst.msk [vmem:[%s1105] ss:$16 sm:$0x3] %vm1104, %v1103
    %s1107 = scalar_lea.vmem %s1, 2051
    %1108 = vst.msk [vmem:[%s1107] ss:$16 sm:$0xc] %vm1104, %v1103
    %s1109 = scalar_lea.vmem %s1, 2051
    %1110 = vst.msk [vmem:[%s1109] ss:$16 sm:$0x30] %vm1104, %v1103
    %s1111 = scalar_lea.vmem %s1, 2051
    %1112 = vst.msk [vmem:[%s1111] ss:$16 sm:$0xc0] %vm1104, %v1103
    %s1113 = scalar_lea.vmem [#allocation0], 136
    %v1114 = vld [vmem:[%s1113] sm:$0xff]
    %1115 = vrot.lane.b32.xlu0 %v1114, 116
    %v1116 = vpop.permute.xlu0 %1115
    %vm1117 = vcmask 31744
    %s1118 = scalar_lea.vmem %s1, 2179
    %1119 = vst.msk [vmem:[%s1118] ss:$16 sm:$0x3] %vm1117, %v1116
    %s1120 = scalar_lea.vmem %s1, 2179
    %1121 = vst.msk [vmem:[%s1120] ss:$16 sm:$0xc] %vm1117, %v1116
    %s1122 = scalar_lea.vmem %s1, 2179
    %1123 = vst.msk [vmem:[%s1122] ss:$16 sm:$0x30] %vm1117, %v1116
    %s1124 = scalar_lea.vmem %s1, 2179
    %1125 = vst.msk [vmem:[%s1124] ss:$16 sm:$0xc0] %vm1117, %v1116
    %s1126 = scalar_lea.vmem [#allocation0], 144
    %v1127 = vld [vmem:[%s1126] sm:$0xff]
    %1128 = vrot.lane.b32.xlu0 %v1127, 116
    %v1129 = vpop.permute.xlu0 %1128
    %vm1130 = vcmask 31744
    %s1131 = scalar_lea.vmem %s1, 2307
    %1132 = vst.msk [vmem:[%s1131] ss:$16 sm:$0x3] %vm1130, %v1129
    %s1133 = scalar_lea.vmem %s1, 2307
    %1134 = vst.msk [vmem:[%s1133] ss:$16 sm:$0xc] %vm1130, %v1129
    %s1135 = scalar_lea.vmem %s1, 2307
    %1136 = vst.msk [vmem:[%s1135] ss:$16 sm:$0x30] %vm1130, %v1129
    %s1137 = scalar_lea.vmem %s1, 2307
    %1138 = vst.msk [vmem:[%s1137] ss:$16 sm:$0xc0] %vm1130, %v1129
    %s1139 = scalar_lea.vmem [#allocation0], 152
    %v1140 = vld [vmem:[%s1139] sm:$0xff]
    %1141 = vrot.lane.b32.xlu0 %v1140, 116
    %v1142 = vpop.permute.xlu0 %1141
    %vm1143 = vcmask 31744
    %s1144 = scalar_lea.vmem %s1, 2435
    %1145 = vst.msk [vmem:[%s1144] ss:$16 sm:$0x3] %vm1143, %v1142
    %s1146 = scalar_lea.vmem %s1, 2435
    %1147 = vst.msk [vmem:[%s1146] ss:$16 sm:$0xc] %vm1143, %v1142
    %s1148 = scalar_lea.vmem %s1, 2435
    %1149 = vst.msk [vmem:[%s1148] ss:$16 sm:$0x30] %vm1143, %v1142
    %s1150 = scalar_lea.vmem %s1, 2435
    %1151 = vst.msk [vmem:[%s1150] ss:$16 sm:$0xc0] %vm1143, %v1142
    %s1152 = scalar_lea.vmem [#allocation0], 160
    %v1153 = vld [vmem:[%s1152] sm:$0xff]
    %1154 = vrot.lane.b32.xlu0 %v1153, 116
    %v1155 = vpop.permute.xlu0 %1154
    %vm1156 = vcmask 31744
    %s1157 = scalar_lea.vmem %s1, 2563
    %1158 = vst.msk [vmem:[%s1157] ss:$16 sm:$0x3] %vm1156, %v1155
    %s1159 = scalar_lea.vmem %s1, 2563
    %1160 = vst.msk [vmem:[%s1159] ss:$16 sm:$0xc] %vm1156, %v1155
    %s1161 = scalar_lea.vmem %s1, 2563
    %1162 = vst.msk [vmem:[%s1161] ss:$16 sm:$0x30] %vm1156, %v1155
    %s1163 = scalar_lea.vmem %s1, 2563
    %1164 = vst.msk [vmem:[%s1163] ss:$16 sm:$0xc0] %vm1156, %v1155
    %s1165 = scalar_lea.vmem [#allocation0], 168
    %v1166 = vld [vmem:[%s1165] sm:$0xff]
    %1167 = vrot.lane.b32.xlu0 %v1166, 116
    %v1168 = vpop.permute.xlu0 %1167
    %vm1169 = vcmask 31744
    %s1170 = scalar_lea.vmem %s1, 2691
    %1171 = vst.msk [vmem:[%s1170] ss:$16 sm:$0x3] %vm1169, %v1168
    %s1172 = scalar_lea.vmem %s1, 2691
    %1173 = vst.msk [vmem:[%s1172] ss:$16 sm:$0xc] %vm1169, %v1168
    %s1174 = scalar_lea.vmem %s1, 2691
    %1175 = vst.msk [vmem:[%s1174] ss:$16 sm:$0x30] %vm1169, %v1168
    %s1176 = scalar_lea.vmem %s1, 2691
    %1177 = vst.msk [vmem:[%s1176] ss:$16 sm:$0xc0] %vm1169, %v1168
    %s1178 = scalar_lea.vmem [#allocation0], 176
    %v1179 = vld [vmem:[%s1178] sm:$0xff]
    %1180 = vrot.lane.b32.xlu0 %v1179, 116
    %v1181 = vpop.permute.xlu0 %1180
    %vm1182 = vcmask 31744
    %s1183 = scalar_lea.vmem %s1, 2819
    %1184 = vst.msk [vmem:[%s1183] ss:$16 sm:$0x3] %vm1182, %v1181
    %s1185 = scalar_lea.vmem %s1, 2819
    %1186 = vst.msk [vmem:[%s1185] ss:$16 sm:$0xc] %vm1182, %v1181
    %s1187 = scalar_lea.vmem %s1, 2819
    %1188 = vst.msk [vmem:[%s1187] ss:$16 sm:$0x30] %vm1182, %v1181
    %s1189 = scalar_lea.vmem %s1, 2819
    %1190 = vst.msk [vmem:[%s1189] ss:$16 sm:$0xc0] %vm1182, %v1181
    %s1191 = scalar_lea.vmem [#allocation0], 184
    %v1192 = vld [vmem:[%s1191] sm:$0xff]
    %1193 = vrot.lane.b32.xlu0 %v1192, 116
    %v1194 = vpop.permute.xlu0 %1193
    %vm1195 = vcmask 31744
    %s1196 = scalar_lea.vmem %s1, 2947
    %1197 = vst.msk [vmem:[%s1196] ss:$16 sm:$0x3] %vm1195, %v1194
    %s1198 = scalar_lea.vmem %s1, 2947
    %1199 = vst.msk [vmem:[%s1198] ss:$16 sm:$0xc] %vm1195, %v1194
    %s1200 = scalar_lea.vmem %s1, 2947
    %1201 = vst.msk [vmem:[%s1200] ss:$16 sm:$0x30] %vm1195, %v1194
    %s1202 = scalar_lea.vmem %s1, 2947
    %1203 = vst.msk [vmem:[%s1202] ss:$16 sm:$0xc0] %vm1195, %v1194
    %v1204 = vld [vmem:[#allocation0] sm:$0xff]
    %1205 = vrot.lane.b32.xlu0 %v1204, 112
    %v1206 = vpop.permute.xlu0 %1205
    %vm1207 = vcmask 31744
    %s1208 = scalar_lea.vmem %s1, 4
    %1209 = vst.msk [vmem:[%s1208] ss:$16 sm:$0x3] %vm1207, %v1206
    %s1210 = scalar_lea.vmem %s1, 4
    %1211 = vst.msk [vmem:[%s1210] ss:$16 sm:$0xc] %vm1207, %v1206
    %s1212 = scalar_lea.vmem %s1, 4
    %1213 = vst.msk [vmem:[%s1212] ss:$16 sm:$0x30] %vm1207, %v1206
    %s1214 = scalar_lea.vmem %s1, 4
    %1215 = vst.msk [vmem:[%s1214] ss:$16 sm:$0xc0] %vm1207, %v1206
    %s1216 = scalar_lea.vmem [#allocation0], 8
    %v1217 = vld [vmem:[%s1216] sm:$0xff]
    %1218 = vrot.lane.b32.xlu0 %v1217, 112
    %v1219 = vpop.permute.xlu0 %1218
    %vm1220 = vcmask 31744
    %s1221 = scalar_lea.vmem %s1, 132
    %1222 = vst.msk [vmem:[%s1221] ss:$16 sm:$0x3] %vm1220, %v1219
    %s1223 = scalar_lea.vmem %s1, 132
    %1224 = vst.msk [vmem:[%s1223] ss:$16 sm:$0xc] %vm1220, %v1219
    %s1225 = scalar_lea.vmem %s1, 132
    %1226 = vst.msk [vmem:[%s1225] ss:$16 sm:$0x30] %vm1220, %v1219
    %s1227 = scalar_lea.vmem %s1, 132
    %1228 = vst.msk [vmem:[%s1227] ss:$16 sm:$0xc0] %vm1220, %v1219
    %s1229 = scalar_lea.vmem [#allocation0], 16
    %v1230 = vld [vmem:[%s1229] sm:$0xff]
    %1231 = vrot.lane.b32.xlu0 %v1230, 112
    %v1232 = vpop.permute.xlu0 %1231
    %vm1233 = vcmask 31744
    %s1234 = scalar_lea.vmem %s1, 260
    %1235 = vst.msk [vmem:[%s1234] ss:$16 sm:$0x3] %vm1233, %v1232
    %s1236 = scalar_lea.vmem %s1, 260
    %1237 = vst.msk [vmem:[%s1236] ss:$16 sm:$0xc] %vm1233, %v1232
    %s1238 = scalar_lea.vmem %s1, 260
    %1239 = vst.msk [vmem:[%s1238] ss:$16 sm:$0x30] %vm1233, %v1232
    %s1240 = scalar_lea.vmem %s1, 260
    %1241 = vst.msk [vmem:[%s1240] ss:$16 sm:$0xc0] %vm1233, %v1232
    %s1242 = scalar_lea.vmem [#allocation0], 24
    %v1243 = vld [vmem:[%s1242] sm:$0xff]
    %1244 = vrot.lane.b32.xlu0 %v1243, 112
    %v1245 = vpop.permute.xlu0 %1244
    %vm1246 = vcmask 31744
    %s1247 = scalar_lea.vmem %s1, 388
    %1248 = vst.msk [vmem:[%s1247] ss:$16 sm:$0x3] %vm1246, %v1245
    %s1249 = scalar_lea.vmem %s1, 388
    %1250 = vst.msk [vmem:[%s1249] ss:$16 sm:$0xc] %vm1246, %v1245
    %s1251 = scalar_lea.vmem %s1, 388
    %1252 = vst.msk [vmem:[%s1251] ss:$16 sm:$0x30] %vm1246, %v1245
    %s1253 = scalar_lea.vmem %s1, 388
    %1254 = vst.msk [vmem:[%s1253] ss:$16 sm:$0xc0] %vm1246, %v1245
    %s1255 = scalar_lea.vmem [#allocation0], 32
    %v1256 = vld [vmem:[%s1255] sm:$0xff]
    %1257 = vrot.lane.b32.xlu0 %v1256, 112
    %v1258 = vpop.permute.xlu0 %1257
    %vm1259 = vcmask 31744
    %s1260 = scalar_lea.vmem %s1, 516
    %1261 = vst.msk [vmem:[%s1260] ss:$16 sm:$0x3] %vm1259, %v1258
    %s1262 = scalar_lea.vmem %s1, 516
    %1263 = vst.msk [vmem:[%s1262] ss:$16 sm:$0xc] %vm1259, %v1258
    %s1264 = scalar_lea.vmem %s1, 516
    %1265 = vst.msk [vmem:[%s1264] ss:$16 sm:$0x30] %vm1259, %v1258
    %s1266 = scalar_lea.vmem %s1, 516
    %1267 = vst.msk [vmem:[%s1266] ss:$16 sm:$0xc0] %vm1259, %v1258
    %s1268 = scalar_lea.vmem [#allocation0], 40
    %v1269 = vld [vmem:[%s1268] sm:$0xff]
    %1270 = vrot.lane.b32.xlu0 %v1269, 112
    %v1271 = vpop.permute.xlu0 %1270
    %vm1272 = vcmask 31744
    %s1273 = scalar_lea.vmem %s1, 644
    %1274 = vst.msk [vmem:[%s1273] ss:$16 sm:$0x3] %vm1272, %v1271
    %s1275 = scalar_lea.vmem %s1, 644
    %1276 = vst.msk [vmem:[%s1275] ss:$16 sm:$0xc] %vm1272, %v1271
    %s1277 = scalar_lea.vmem %s1, 644
    %1278 = vst.msk [vmem:[%s1277] ss:$16 sm:$0x30] %vm1272, %v1271
    %s1279 = scalar_lea.vmem %s1, 644
    %1280 = vst.msk [vmem:[%s1279] ss:$16 sm:$0xc0] %vm1272, %v1271
    %s1281 = scalar_lea.vmem [#allocation0], 48
    %v1282 = vld [vmem:[%s1281] sm:$0xff]
    %1283 = vrot.lane.b32.xlu0 %v1282, 112
    %v1284 = vpop.permute.xlu0 %1283
    %vm1285 = vcmask 31744
    %s1286 = scalar_lea.vmem %s1, 772
    %1287 = vst.msk [vmem:[%s1286] ss:$16 sm:$0x3] %vm1285, %v1284
    %s1288 = scalar_lea.vmem %s1, 772
    %1289 = vst.msk [vmem:[%s1288] ss:$16 sm:$0xc] %vm1285, %v1284
    %s1290 = scalar_lea.vmem %s1, 772
    %1291 = vst.msk [vmem:[%s1290] ss:$16 sm:$0x30] %vm1285, %v1284
    %s1292 = scalar_lea.vmem %s1, 772
    %1293 = vst.msk [vmem:[%s1292] ss:$16 sm:$0xc0] %vm1285, %v1284
    %s1294 = scalar_lea.vmem [#allocation0], 56
    %v1295 = vld [vmem:[%s1294] sm:$0xff]
    %1296 = vrot.lane.b32.xlu0 %v1295, 112
    %v1297 = vpop.permute.xlu0 %1296
    %vm1298 = vcmask 31744
    %s1299 = scalar_lea.vmem %s1, 900
    %1300 = vst.msk [vmem:[%s1299] ss:$16 sm:$0x3] %vm1298, %v1297
    %s1301 = scalar_lea.vmem %s1, 900
    %1302 = vst.msk [vmem:[%s1301] ss:$16 sm:$0xc] %vm1298, %v1297
    %s1303 = scalar_lea.vmem %s1, 900
    %1304 = vst.msk [vmem:[%s1303] ss:$16 sm:$0x30] %vm1298, %v1297
    %s1305 = scalar_lea.vmem %s1, 900
    %1306 = vst.msk [vmem:[%s1305] ss:$16 sm:$0xc0] %vm1298, %v1297
    %s1307 = scalar_lea.vmem [#allocation0], 64
    %v1308 = vld [vmem:[%s1307] sm:$0xff]
    %1309 = vrot.lane.b32.xlu0 %v1308, 112
    %v1310 = vpop.permute.xlu0 %1309
    %vm1311 = vcmask 31744
    %s1312 = scalar_lea.vmem %s1, 1028
    %1313 = vst.msk [vmem:[%s1312] ss:$16 sm:$0x3] %vm1311, %v1310
    %s1314 = scalar_lea.vmem %s1, 1028
    %1315 = vst.msk [vmem:[%s1314] ss:$16 sm:$0xc] %vm1311, %v1310
    %s1316 = scalar_lea.vmem %s1, 1028
    %1317 = vst.msk [vmem:[%s1316] ss:$16 sm:$0x30] %vm1311, %v1310
    %s1318 = scalar_lea.vmem %s1, 1028
    %1319 = vst.msk [vmem:[%s1318] ss:$16 sm:$0xc0] %vm1311, %v1310
    %s1320 = scalar_lea.vmem [#allocation0], 72
    %v1321 = vld [vmem:[%s1320] sm:$0xff]
    %1322 = vrot.lane.b32.xlu0 %v1321, 112
    %v1323 = vpop.permute.xlu0 %1322
    %vm1324 = vcmask 31744
    %s1325 = scalar_lea.vmem %s1, 1156
    %1326 = vst.msk [vmem:[%s1325] ss:$16 sm:$0x3] %vm1324, %v1323
    %s1327 = scalar_lea.vmem %s1, 1156
    %1328 = vst.msk [vmem:[%s1327] ss:$16 sm:$0xc] %vm1324, %v1323
    %s1329 = scalar_lea.vmem %s1, 1156
    %1330 = vst.msk [vmem:[%s1329] ss:$16 sm:$0x30] %vm1324, %v1323
    %s1331 = scalar_lea.vmem %s1, 1156
    %1332 = vst.msk [vmem:[%s1331] ss:$16 sm:$0xc0] %vm1324, %v1323
    %s1333 = scalar_lea.vmem [#allocation0], 80
    %v1334 = vld [vmem:[%s1333] sm:$0xff]
    %1335 = vrot.lane.b32.xlu0 %v1334, 112
    %v1336 = vpop.permute.xlu0 %1335
    %vm1337 = vcmask 31744
    %s1338 = scalar_lea.vmem %s1, 1284
    %1339 = vst.msk [vmem:[%s1338] ss:$16 sm:$0x3] %vm1337, %v1336
    %s1340 = scalar_lea.vmem %s1, 1284
    %1341 = vst.msk [vmem:[%s1340] ss:$16 sm:$0xc] %vm1337, %v1336
    %s1342 = scalar_lea.vmem %s1, 1284
    %1343 = vst.msk [vmem:[%s1342] ss:$16 sm:$0x30] %vm1337, %v1336
    %s1344 = scalar_lea.vmem %s1, 1284
    %1345 = vst.msk [vmem:[%s1344] ss:$16 sm:$0xc0] %vm1337, %v1336
    %s1346 = scalar_lea.vmem [#allocation0], 88
    %v1347 = vld [vmem:[%s1346] sm:$0xff]
    %1348 = vrot.lane.b32.xlu0 %v1347, 112
    %v1349 = vpop.permute.xlu0 %1348
    %vm1350 = vcmask 31744
    %s1351 = scalar_lea.vmem %s1, 1412
    %1352 = vst.msk [vmem:[%s1351] ss:$16 sm:$0x3] %vm1350, %v1349
    %s1353 = scalar_lea.vmem %s1, 1412
    %1354 = vst.msk [vmem:[%s1353] ss:$16 sm:$0xc] %vm1350, %v1349
    %s1355 = scalar_lea.vmem %s1, 1412
    %1356 = vst.msk [vmem:[%s1355] ss:$16 sm:$0x30] %vm1350, %v1349
    %s1357 = scalar_lea.vmem %s1, 1412
    %1358 = vst.msk [vmem:[%s1357] ss:$16 sm:$0xc0] %vm1350, %v1349
    %s1359 = scalar_lea.vmem [#allocation0], 96
    %v1360 = vld [vmem:[%s1359] sm:$0xff]
    %1361 = vrot.lane.b32.xlu0 %v1360, 112
    %v1362 = vpop.permute.xlu0 %1361
    %vm1363 = vcmask 31744
    %s1364 = scalar_lea.vmem %s1, 1540
    %1365 = vst.msk [vmem:[%s1364] ss:$16 sm:$0x3] %vm1363, %v1362
    %s1366 = scalar_lea.vmem %s1, 1540
    %1367 = vst.msk [vmem:[%s1366] ss:$16 sm:$0xc] %vm1363, %v1362
    %s1368 = scalar_lea.vmem %s1, 1540
    %1369 = vst.msk [vmem:[%s1368] ss:$16 sm:$0x30] %vm1363, %v1362
    %s1370 = scalar_lea.vmem %s1, 1540
    %1371 = vst.msk [vmem:[%s1370] ss:$16 sm:$0xc0] %vm1363, %v1362
    %s1372 = scalar_lea.vmem [#allocation0], 104
    %v1373 = vld [vmem:[%s1372] sm:$0xff]
    %1374 = vrot.lane.b32.xlu0 %v1373, 112
    %v1375 = vpop.permute.xlu0 %1374
    %vm1376 = vcmask 31744
    %s1377 = scalar_lea.vmem %s1, 1668
    %1378 = vst.msk [vmem:[%s1377] ss:$16 sm:$0x3] %vm1376, %v1375
    %s1379 = scalar_lea.vmem %s1, 1668
    %1380 = vst.msk [vmem:[%s1379] ss:$16 sm:$0xc] %vm1376, %v1375
    %s1381 = scalar_lea.vmem %s1, 1668
    %1382 = vst.msk [vmem:[%s1381] ss:$16 sm:$0x30] %vm1376, %v1375
    %s1383 = scalar_lea.vmem %s1, 1668
    %1384 = vst.msk [vmem:[%s1383] ss:$16 sm:$0xc0] %vm1376, %v1375
    %s1385 = scalar_lea.vmem [#allocation0], 112
    %v1386 = vld [vmem:[%s1385] sm:$0xff]
    %1387 = vrot.lane.b32.xlu0 %v1386, 112
    %v1388 = vpop.permute.xlu0 %1387
    %vm1389 = vcmask 31744
    %s1390 = scalar_lea.vmem %s1, 1796
    %1391 = vst.msk [vmem:[%s1390] ss:$16 sm:$0x3] %vm1389, %v1388
    %s1392 = scalar_lea.vmem %s1, 1796
    %1393 = vst.msk [vmem:[%s1392] ss:$16 sm:$0xc] %vm1389, %v1388
    %s1394 = scalar_lea.vmem %s1, 1796
    %1395 = vst.msk [vmem:[%s1394] ss:$16 sm:$0x30] %vm1389, %v1388
    %s1396 = scalar_lea.vmem %s1, 1796
    %1397 = vst.msk [vmem:[%s1396] ss:$16 sm:$0xc0] %vm1389, %v1388
    %s1398 = scalar_lea.vmem [#allocation0], 120
    %v1399 = vld [vmem:[%s1398] sm:$0xff]
    %1400 = vrot.lane.b32.xlu0 %v1399, 112
    %v1401 = vpop.permute.xlu0 %1400
    %vm1402 = vcmask 31744
    %s1403 = scalar_lea.vmem %s1, 1924
    %1404 = vst.msk [vmem:[%s1403] ss:$16 sm:$0x3] %vm1402, %v1401
    %s1405 = scalar_lea.vmem %s1, 1924
    %1406 = vst.msk [vmem:[%s1405] ss:$16 sm:$0xc] %vm1402, %v1401
    %s1407 = scalar_lea.vmem %s1, 1924
    %1408 = vst.msk [vmem:[%s1407] ss:$16 sm:$0x30] %vm1402, %v1401
    %s1409 = scalar_lea.vmem %s1, 1924
    %1410 = vst.msk [vmem:[%s1409] ss:$16 sm:$0xc0] %vm1402, %v1401
    %s1411 = scalar_lea.vmem [#allocation0], 128
    %v1412 = vld [vmem:[%s1411] sm:$0xff]
    %1413 = vrot.lane.b32.xlu0 %v1412, 112
    %v1414 = vpop.permute.xlu0 %1413
    %vm1415 = vcmask 31744
    %s1416 = scalar_lea.vmem %s1, 2052
    %1417 = vst.msk [vmem:[%s1416] ss:$16 sm:$0x3] %vm1415, %v1414
    %s1418 = scalar_lea.vmem %s1, 2052
    %1419 = vst.msk [vmem:[%s1418] ss:$16 sm:$0xc] %vm1415, %v1414
    %s1420 = scalar_lea.vmem %s1, 2052
    %1421 = vst.msk [vmem:[%s1420] ss:$16 sm:$0x30] %vm1415, %v1414
    %s1422 = scalar_lea.vmem %s1, 2052
    %1423 = vst.msk [vmem:[%s1422] ss:$16 sm:$0xc0] %vm1415, %v1414
    %s1424 = scalar_lea.vmem [#allocation0], 136
    %v1425 = vld [vmem:[%s1424] sm:$0xff]
    %1426 = vrot.lane.b32.xlu0 %v1425, 112
    %v1427 = vpop.permute.xlu0 %1426
    %vm1428 = vcmask 31744
    %s1429 = scalar_lea.vmem %s1, 2180
    %1430 = vst.msk [vmem:[%s1429] ss:$16 sm:$0x3] %vm1428, %v1427
    %s1431 = scalar_lea.vmem %s1, 2180
    %1432 = vst.msk [vmem:[%s1431] ss:$16 sm:$0xc] %vm1428, %v1427
    %s1433 = scalar_lea.vmem %s1, 2180
    %1434 = vst.msk [vmem:[%s1433] ss:$16 sm:$0x30] %vm1428, %v1427
    %s1435 = scalar_lea.vmem %s1, 2180
    %1436 = vst.msk [vmem:[%s1435] ss:$16 sm:$0xc0] %vm1428, %v1427
    %s1437 = scalar_lea.vmem [#allocation0], 144
    %v1438 = vld [vmem:[%s1437] sm:$0xff]
    %1439 = vrot.lane.b32.xlu0 %v1438, 112
    %v1440 = vpop.permute.xlu0 %1439
    %vm1441 = vcmask 31744
    %s1442 = scalar_lea.vmem %s1, 2308
    %1443 = vst.msk [vmem:[%s1442] ss:$16 sm:$0x3] %vm1441, %v1440
    %s1444 = scalar_lea.vmem %s1, 2308
    %1445 = vst.msk [vmem:[%s1444] ss:$16 sm:$0xc] %vm1441, %v1440
    %s1446 = scalar_lea.vmem %s1, 2308
    %1447 = vst.msk [vmem:[%s1446] ss:$16 sm:$0x30] %vm1441, %v1440
    %s1448 = scalar_lea.vmem %s1, 2308
    %1449 = vst.msk [vmem:[%s1448] ss:$16 sm:$0xc0] %vm1441, %v1440
    %s1450 = scalar_lea.vmem [#allocation0], 152
    %v1451 = vld [vmem:[%s1450] sm:$0xff]
    %1452 = vrot.lane.b32.xlu0 %v1451, 112
    %v1453 = vpop.permute.xlu0 %1452
    %vm1454 = vcmask 31744
    %s1455 = scalar_lea.vmem %s1, 2436
    %1456 = vst.msk [vmem:[%s1455] ss:$16 sm:$0x3] %vm1454, %v1453
    %s1457 = scalar_lea.vmem %s1, 2436
    %1458 = vst.msk [vmem:[%s1457] ss:$16 sm:$0xc] %vm1454, %v1453
    %s1459 = scalar_lea.vmem %s1, 2436
    %1460 = vst.msk [vmem:[%s1459] ss:$16 sm:$0x30] %vm1454, %v1453
    %s1461 = scalar_lea.vmem %s1, 2436
    %1462 = vst.msk [vmem:[%s1461] ss:$16 sm:$0xc0] %vm1454, %v1453
    %s1463 = scalar_lea.vmem [#allocation0], 160
    %v1464 = vld [vmem:[%s1463] sm:$0xff]
    %1465 = vrot.lane.b32.xlu0 %v1464, 112
    %v1466 = vpop.permute.xlu0 %1465
    %vm1467 = vcmask 31744
    %s1468 = scalar_lea.vmem %s1, 2564
    %1469 = vst.msk [vmem:[%s1468] ss:$16 sm:$0x3] %vm1467, %v1466
    %s1470 = scalar_lea.vmem %s1, 2564
    %1471 = vst.msk [vmem:[%s1470] ss:$16 sm:$0xc] %vm1467, %v1466
    %s1472 = scalar_lea.vmem %s1, 2564
    %1473 = vst.msk [vmem:[%s1472] ss:$16 sm:$0x30] %vm1467, %v1466
    %s1474 = scalar_lea.vmem %s1, 2564
    %1475 = vst.msk [vmem:[%s1474] ss:$16 sm:$0xc0] %vm1467, %v1466
    %s1476 = scalar_lea.vmem [#allocation0], 168
    %v1477 = vld [vmem:[%s1476] sm:$0xff]
    %1478 = vrot.lane.b32.xlu0 %v1477, 112
    %v1479 = vpop.permute.xlu0 %1478
    %vm1480 = vcmask 31744
    %s1481 = scalar_lea.vmem %s1, 2692
    %1482 = vst.msk [vmem:[%s1481] ss:$16 sm:$0x3] %vm1480, %v1479
    %s1483 = scalar_lea.vmem %s1, 2692
    %1484 = vst.msk [vmem:[%s1483] ss:$16 sm:$0xc] %vm1480, %v1479
    %s1485 = scalar_lea.vmem %s1, 2692
    %1486 = vst.msk [vmem:[%s1485] ss:$16 sm:$0x30] %vm1480, %v1479
    %s1487 = scalar_lea.vmem %s1, 2692
    %1488 = vst.msk [vmem:[%s1487] ss:$16 sm:$0xc0] %vm1480, %v1479
    %s1489 = scalar_lea.vmem [#allocation0], 176
    %v1490 = vld [vmem:[%s1489] sm:$0xff]
    %1491 = vrot.lane.b32.xlu0 %v1490, 112
    %v1492 = vpop.permute.xlu0 %1491
    %vm1493 = vcmask 31744
    %s1494 = scalar_lea.vmem %s1, 2820
    %1495 = vst.msk [vmem:[%s1494] ss:$16 sm:$0x3] %vm1493, %v1492
    %s1496 = scalar_lea.vmem %s1, 2820
    %1497 = vst.msk [vmem:[%s1496] ss:$16 sm:$0xc] %vm1493, %v1492
    %s1498 = scalar_lea.vmem %s1, 2820
    %1499 = vst.msk [vmem:[%s1498] ss:$16 sm:$0x30] %vm1493, %v1492
    %s1500 = scalar_lea.vmem %s1, 2820
    %1501 = vst.msk [vmem:[%s1500] ss:$16 sm:$0xc0] %vm1493, %v1492
    %s1502 = scalar_lea.vmem [#allocation0], 184
    %v1503 = vld [vmem:[%s1502] sm:$0xff]
    %1504 = vrot.lane.b32.xlu0 %v1503, 112
    %v1505 = vpop.permute.xlu0 %1504
    %vm1506 = vcmask 31744
    %s1507 = scalar_lea.vmem %s1, 2948
    %1508 = vst.msk [vmem:[%s1507] ss:$16 sm:$0x3] %vm1506, %v1505
    %s1509 = scalar_lea.vmem %s1, 2948
    %1510 = vst.msk [vmem:[%s1509] ss:$16 sm:$0xc] %vm1506, %v1505
    %s1511 = scalar_lea.vmem %s1, 2948
    %1512 = vst.msk [vmem:[%s1511] ss:$16 sm:$0x30] %vm1506, %v1505
    %s1513 = scalar_lea.vmem %s1, 2948
    %1514 = vst.msk [vmem:[%s1513] ss:$16 sm:$0xc0] %vm1506, %v1505
    %v1515 = vld [vmem:[#allocation0] sm:$0xff]
    %1516 = vrot.lane.b32.xlu0 %v1515, 108
    %v1517 = vpop.permute.xlu0 %1516
    %vm1518 = vcmask 31744
    %s1519 = scalar_lea.vmem %s1, 5
    %1520 = vst.msk [vmem:[%s1519] ss:$16 sm:$0x3] %vm1518, %v1517
    %s1521 = scalar_lea.vmem %s1, 5
    %1522 = vst.msk [vmem:[%s1521] ss:$16 sm:$0xc] %vm1518, %v1517
    %s1523 = scalar_lea.vmem %s1, 5
    %1524 = vst.msk [vmem:[%s1523] ss:$16 sm:$0x30] %vm1518, %v1517
    %s1525 = scalar_lea.vmem %s1, 5
    %1526 = vst.msk [vmem:[%s1525] ss:$16 sm:$0xc0] %vm1518, %v1517
    %s1527 = scalar_lea.vmem [#allocation0], 8
    %v1528 = vld [vmem:[%s1527] sm:$0xff]
    %1529 = vrot.lane.b32.xlu0 %v1528, 108
    %v1530 = vpop.permute.xlu0 %1529
    %vm1531 = vcmask 31744
    %s1532 = scalar_lea.vmem %s1, 133
    %1533 = vst.msk [vmem:[%s1532] ss:$16 sm:$0x3] %vm1531, %v1530
    %s1534 = scalar_lea.vmem %s1, 133
    %1535 = vst.msk [vmem:[%s1534] ss:$16 sm:$0xc] %vm1531, %v1530
    %s1536 = scalar_lea.vmem %s1, 133
    %1537 = vst.msk [vmem:[%s1536] ss:$16 sm:$0x30] %vm1531, %v1530
    %s1538 = scalar_lea.vmem %s1, 133
    %1539 = vst.msk [vmem:[%s1538] ss:$16 sm:$0xc0] %vm1531, %v1530
    %s1540 = scalar_lea.vmem [#allocation0], 16
    %v1541 = vld [vmem:[%s1540] sm:$0xff]
    %1542 = vrot.lane.b32.xlu0 %v1541, 108
    %v1543 = vpop.permute.xlu0 %1542
    %vm1544 = vcmask 31744
    %s1545 = scalar_lea.vmem %s1, 261
    %1546 = vst.msk [vmem:[%s1545] ss:$16 sm:$0x3] %vm1544, %v1543
    %s1547 = scalar_lea.vmem %s1, 261
    %1548 = vst.msk [vmem:[%s1547] ss:$16 sm:$0xc] %vm1544, %v1543
    %s1549 = scalar_lea.vmem %s1, 261
    %1550 = vst.msk [vmem:[%s1549] ss:$16 sm:$0x30] %vm1544, %v1543
    %s1551 = scalar_lea.vmem %s1, 261
    %1552 = vst.msk [vmem:[%s1551] ss:$16 sm:$0xc0] %vm1544, %v1543
    %s1553 = scalar_lea.vmem [#allocation0], 24
    %v1554 = vld [vmem:[%s1553] sm:$0xff]
    %1555 = vrot.lane.b32.xlu0 %v1554, 108
    %v1556 = vpop.permute.xlu0 %1555
    %vm1557 = vcmask 31744
    %s1558 = scalar_lea.vmem %s1, 389
    %1559 = vst.msk [vmem:[%s1558] ss:$16 sm:$0x3] %vm1557, %v1556
    %s1560 = scalar_lea.vmem %s1, 389
    %1561 = vst.msk [vmem:[%s1560] ss:$16 sm:$0xc] %vm1557, %v1556
    %s1562 = scalar_lea.vmem %s1, 389
    %1563 = vst.msk [vmem:[%s1562] ss:$16 sm:$0x30] %vm1557, %v1556
    %s1564 = scalar_lea.vmem %s1, 389
    %1565 = vst.msk [vmem:[%s1564] ss:$16 sm:$0xc0] %vm1557, %v1556
    %s1566 = scalar_lea.vmem [#allocation0], 32
    %v1567 = vld [vmem:[%s1566] sm:$0xff]
    %1568 = vrot.lane.b32.xlu0 %v1567, 108
    %v1569 = vpop.permute.xlu0 %1568
    %vm1570 = vcmask 31744
    %s1571 = scalar_lea.vmem %s1, 517
    %1572 = vst.msk [vmem:[%s1571] ss:$16 sm:$0x3] %vm1570, %v1569
    %s1573 = scalar_lea.vmem %s1, 517
    %1574 = vst.msk [vmem:[%s1573] ss:$16 sm:$0xc] %vm1570, %v1569
    %s1575 = scalar_lea.vmem %s1, 517
    %1576 = vst.msk [vmem:[%s1575] ss:$16 sm:$0x30] %vm1570, %v1569
    %s1577 = scalar_lea.vmem %s1, 517
    %1578 = vst.msk [vmem:[%s1577] ss:$16 sm:$0xc0] %vm1570, %v1569
    %s1579 = scalar_lea.vmem [#allocation0], 40
    %v1580 = vld [vmem:[%s1579] sm:$0xff]
    %1581 = vrot.lane.b32.xlu0 %v1580, 108
    %v1582 = vpop.permute.xlu0 %1581
    %vm1583 = vcmask 31744
    %s1584 = scalar_lea.vmem %s1, 645
    %1585 = vst.msk [vmem:[%s1584] ss:$16 sm:$0x3] %vm1583, %v1582
    %s1586 = scalar_lea.vmem %s1, 645
    %1587 = vst.msk [vmem:[%s1586] ss:$16 sm:$0xc] %vm1583, %v1582
    %s1588 = scalar_lea.vmem %s1, 645
    %1589 = vst.msk [vmem:[%s1588] ss:$16 sm:$0x30] %vm1583, %v1582
    %s1590 = scalar_lea.vmem %s1, 645
    %1591 = vst.msk [vmem:[%s1590] ss:$16 sm:$0xc0] %vm1583, %v1582
    %s1592 = scalar_lea.vmem [#allocation0], 48
    %v1593 = vld [vmem:[%s1592] sm:$0xff]
    %1594 = vrot.lane.b32.xlu0 %v1593, 108
    %v1595 = vpop.permute.xlu0 %1594
    %vm1596 = vcmask 31744
    %s1597 = scalar_lea.vmem %s1, 773
    %1598 = vst.msk [vmem:[%s1597] ss:$16 sm:$0x3] %vm1596, %v1595
    %s1599 = scalar_lea.vmem %s1, 773
    %1600 = vst.msk [vmem:[%s1599] ss:$16 sm:$0xc] %vm1596, %v1595
    %s1601 = scalar_lea.vmem %s1, 773
    %1602 = vst.msk [vmem:[%s1601] ss:$16 sm:$0x30] %vm1596, %v1595
    %s1603 = scalar_lea.vmem %s1, 773
    %1604 = vst.msk [vmem:[%s1603] ss:$16 sm:$0xc0] %vm1596, %v1595
    %s1605 = scalar_lea.vmem [#allocation0], 56
    %v1606 = vld [vmem:[%s1605] sm:$0xff]
    %1607 = vrot.lane.b32.xlu0 %v1606, 108
    %v1608 = vpop.permute.xlu0 %1607
    %vm1609 = vcmask 31744
    %s1610 = scalar_lea.vmem %s1, 901
    %1611 = vst.msk [vmem:[%s1610] ss:$16 sm:$0x3] %vm1609, %v1608
    %s1612 = scalar_lea.vmem %s1, 901
    %1613 = vst.msk [vmem:[%s1612] ss:$16 sm:$0xc] %vm1609, %v1608
    %s1614 = scalar_lea.vmem %s1, 901
    %1615 = vst.msk [vmem:[%s1614] ss:$16 sm:$0x30] %vm1609, %v1608
    %s1616 = scalar_lea.vmem %s1, 901
    %1617 = vst.msk [vmem:[%s1616] ss:$16 sm:$0xc0] %vm1609, %v1608
    %s1618 = scalar_lea.vmem [#allocation0], 64
    %v1619 = vld [vmem:[%s1618] sm:$0xff]
    %1620 = vrot.lane.b32.xlu0 %v1619, 108
    %v1621 = vpop.permute.xlu0 %1620
    %vm1622 = vcmask 31744
    %s1623 = scalar_lea.vmem %s1, 1029
    %1624 = vst.msk [vmem:[%s1623] ss:$16 sm:$0x3] %vm1622, %v1621
    %s1625 = scalar_lea.vmem %s1, 1029
    %1626 = vst.msk [vmem:[%s1625] ss:$16 sm:$0xc] %vm1622, %v1621
    %s1627 = scalar_lea.vmem %s1, 1029
    %1628 = vst.msk [vmem:[%s1627] ss:$16 sm:$0x30] %vm1622, %v1621
    %s1629 = scalar_lea.vmem %s1, 1029
    %1630 = vst.msk [vmem:[%s1629] ss:$16 sm:$0xc0] %vm1622, %v1621
    %s1631 = scalar_lea.vmem [#allocation0], 72
    %v1632 = vld [vmem:[%s1631] sm:$0xff]
    %1633 = vrot.lane.b32.xlu0 %v1632, 108
    %v1634 = vpop.permute.xlu0 %1633
    %vm1635 = vcmask 31744
    %s1636 = scalar_lea.vmem %s1, 1157
    %1637 = vst.msk [vmem:[%s1636] ss:$16 sm:$0x3] %vm1635, %v1634
    %s1638 = scalar_lea.vmem %s1, 1157
    %1639 = vst.msk [vmem:[%s1638] ss:$16 sm:$0xc] %vm1635, %v1634
    %s1640 = scalar_lea.vmem %s1, 1157
    %1641 = vst.msk [vmem:[%s1640] ss:$16 sm:$0x30] %vm1635, %v1634
    %s1642 = scalar_lea.vmem %s1, 1157
    %1643 = vst.msk [vmem:[%s1642] ss:$16 sm:$0xc0] %vm1635, %v1634
    %s1644 = scalar_lea.vmem [#allocation0], 80
    %v1645 = vld [vmem:[%s1644] sm:$0xff]
    %1646 = vrot.lane.b32.xlu0 %v1645, 108
    %v1647 = vpop.permute.xlu0 %1646
    %vm1648 = vcmask 31744
    %s1649 = scalar_lea.vmem %s1, 1285
    %1650 = vst.msk [vmem:[%s1649] ss:$16 sm:$0x3] %vm1648, %v1647
    %s1651 = scalar_lea.vmem %s1, 1285
    %1652 = vst.msk [vmem:[%s1651] ss:$16 sm:$0xc] %vm1648, %v1647
    %s1653 = scalar_lea.vmem %s1, 1285
    %1654 = vst.msk [vmem:[%s1653] ss:$16 sm:$0x30] %vm1648, %v1647
    %s1655 = scalar_lea.vmem %s1, 1285
    %1656 = vst.msk [vmem:[%s1655] ss:$16 sm:$0xc0] %vm1648, %v1647
    %s1657 = scalar_lea.vmem [#allocation0], 88
    %v1658 = vld [vmem:[%s1657] sm:$0xff]
    %1659 = vrot.lane.b32.xlu0 %v1658, 108
    %v1660 = vpop.permute.xlu0 %1659
    %vm1661 = vcmask 31744
    %s1662 = scalar_lea.vmem %s1, 1413
    %1663 = vst.msk [vmem:[%s1662] ss:$16 sm:$0x3] %vm1661, %v1660
    %s1664 = scalar_lea.vmem %s1, 1413
    %1665 = vst.msk [vmem:[%s1664] ss:$16 sm:$0xc] %vm1661, %v1660
    %s1666 = scalar_lea.vmem %s1, 1413
    %1667 = vst.msk [vmem:[%s1666] ss:$16 sm:$0x30] %vm1661, %v1660
    %s1668 = scalar_lea.vmem %s1, 1413
    %1669 = vst.msk [vmem:[%s1668] ss:$16 sm:$0xc0] %vm1661, %v1660
    %s1670 = scalar_lea.vmem [#allocation0], 96
    %v1671 = vld [vmem:[%s1670] sm:$0xff]
    %1672 = vrot.lane.b32.xlu0 %v1671, 108
    %v1673 = vpop.permute.xlu0 %1672
    %vm1674 = vcmask 31744
    %s1675 = scalar_lea.vmem %s1, 1541
    %1676 = vst.msk [vmem:[%s1675] ss:$16 sm:$0x3] %vm1674, %v1673
    %s1677 = scalar_lea.vmem %s1, 1541
    %1678 = vst.msk [vmem:[%s1677] ss:$16 sm:$0xc] %vm1674, %v1673
    %s1679 = scalar_lea.vmem %s1, 1541
    %1680 = vst.msk [vmem:[%s1679] ss:$16 sm:$0x30] %vm1674, %v1673
    %s1681 = scalar_lea.vmem %s1, 1541
    %1682 = vst.msk [vmem:[%s1681] ss:$16 sm:$0xc0] %vm1674, %v1673
    %s1683 = scalar_lea.vmem [#allocation0], 104
    %v1684 = vld [vmem:[%s1683] sm:$0xff]
    %1685 = vrot.lane.b32.xlu0 %v1684, 108
    %v1686 = vpop.permute.xlu0 %1685
    %vm1687 = vcmask 31744
    %s1688 = scalar_lea.vmem %s1, 1669
    %1689 = vst.msk [vmem:[%s1688] ss:$16 sm:$0x3] %vm1687, %v1686
    %s1690 = scalar_lea.vmem %s1, 1669
    %1691 = vst.msk [vmem:[%s1690] ss:$16 sm:$0xc] %vm1687, %v1686
    %s1692 = scalar_lea.vmem %s1, 1669
    %1693 = vst.msk [vmem:[%s1692] ss:$16 sm:$0x30] %vm1687, %v1686
    %s1694 = scalar_lea.vmem %s1, 1669
    %1695 = vst.msk [vmem:[%s1694] ss:$16 sm:$0xc0] %vm1687, %v1686
    %s1696 = scalar_lea.vmem [#allocation0], 112
    %v1697 = vld [vmem:[%s1696] sm:$0xff]
    %1698 = vrot.lane.b32.xlu0 %v1697, 108
    %v1699 = vpop.permute.xlu0 %1698
    %vm1700 = vcmask 31744
    %s1701 = scalar_lea.vmem %s1, 1797
    %1702 = vst.msk [vmem:[%s1701] ss:$16 sm:$0x3] %vm1700, %v1699
    %s1703 = scalar_lea.vmem %s1, 1797
    %1704 = vst.msk [vmem:[%s1703] ss:$16 sm:$0xc] %vm1700, %v1699
    %s1705 = scalar_lea.vmem %s1, 1797
    %1706 = vst.msk [vmem:[%s1705] ss:$16 sm:$0x30] %vm1700, %v1699
    %s1707 = scalar_lea.vmem %s1, 1797
    %1708 = vst.msk [vmem:[%s1707] ss:$16 sm:$0xc0] %vm1700, %v1699
    %s1709 = scalar_lea.vmem [#allocation0], 120
    %v1710 = vld [vmem:[%s1709] sm:$0xff]
    %1711 = vrot.lane.b32.xlu0 %v1710, 108
    %v1712 = vpop.permute.xlu0 %1711
    %vm1713 = vcmask 31744
    %s1714 = scalar_lea.vmem %s1, 1925
    %1715 = vst.msk [vmem:[%s1714] ss:$16 sm:$0x3] %vm1713, %v1712
    %s1716 = scalar_lea.vmem %s1, 1925
    %1717 = vst.msk [vmem:[%s1716] ss:$16 sm:$0xc] %vm1713, %v1712
    %s1718 = scalar_lea.vmem %s1, 1925
    %1719 = vst.msk [vmem:[%s1718] ss:$16 sm:$0x30] %vm1713, %v1712
    %s1720 = scalar_lea.vmem %s1, 1925
    %1721 = vst.msk [vmem:[%s1720] ss:$16 sm:$0xc0] %vm1713, %v1712
    %s1722 = scalar_lea.vmem [#allocation0], 128
    %v1723 = vld [vmem:[%s1722] sm:$0xff]
    %1724 = vrot.lane.b32.xlu0 %v1723, 108
    %v1725 = vpop.permute.xlu0 %1724
    %vm1726 = vcmask 31744
    %s1727 = scalar_lea.vmem %s1, 2053
    %1728 = vst.msk [vmem:[%s1727] ss:$16 sm:$0x3] %vm1726, %v1725
    %s1729 = scalar_lea.vmem %s1, 2053
    %1730 = vst.msk [vmem:[%s1729] ss:$16 sm:$0xc] %vm1726, %v1725
    %s1731 = scalar_lea.vmem %s1, 2053
    %1732 = vst.msk [vmem:[%s1731] ss:$16 sm:$0x30] %vm1726, %v1725
    %s1733 = scalar_lea.vmem %s1, 2053
    %1734 = vst.msk [vmem:[%s1733] ss:$16 sm:$0xc0] %vm1726, %v1725
    %s1735 = scalar_lea.vmem [#allocation0], 136
    %v1736 = vld [vmem:[%s1735] sm:$0xff]
    %1737 = vrot.lane.b32.xlu0 %v1736, 108
    %v1738 = vpop.permute.xlu0 %1737
    %vm1739 = vcmask 31744
    %s1740 = scalar_lea.vmem %s1, 2181
    %1741 = vst.msk [vmem:[%s1740] ss:$16 sm:$0x3] %vm1739, %v1738
    %s1742 = scalar_lea.vmem %s1, 2181
    %1743 = vst.msk [vmem:[%s1742] ss:$16 sm:$0xc] %vm1739, %v1738
    %s1744 = scalar_lea.vmem %s1, 2181
    %1745 = vst.msk [vmem:[%s1744] ss:$16 sm:$0x30] %vm1739, %v1738
    %s1746 = scalar_lea.vmem %s1, 2181
    %1747 = vst.msk [vmem:[%s1746] ss:$16 sm:$0xc0] %vm1739, %v1738
    %s1748 = scalar_lea.vmem [#allocation0], 144
    %v1749 = vld [vmem:[%s1748] sm:$0xff]
    %1750 = vrot.lane.b32.xlu0 %v1749, 108
    %v1751 = vpop.permute.xlu0 %1750
    %vm1752 = vcmask 31744
    %s1753 = scalar_lea.vmem %s1, 2309
    %1754 = vst.msk [vmem:[%s1753] ss:$16 sm:$0x3] %vm1752, %v1751
    %s1755 = scalar_lea.vmem %s1, 2309
    %1756 = vst.msk [vmem:[%s1755] ss:$16 sm:$0xc] %vm1752, %v1751
    %s1757 = scalar_lea.vmem %s1, 2309
    %1758 = vst.msk [vmem:[%s1757] ss:$16 sm:$0x30] %vm1752, %v1751
    %s1759 = scalar_lea.vmem %s1, 2309
    %1760 = vst.msk [vmem:[%s1759] ss:$16 sm:$0xc0] %vm1752, %v1751
    %s1761 = scalar_lea.vmem [#allocation0], 152
    %v1762 = vld [vmem:[%s1761] sm:$0xff]
    %1763 = vrot.lane.b32.xlu0 %v1762, 108
    %v1764 = vpop.permute.xlu0 %1763
    %vm1765 = vcmask 31744
    %s1766 = scalar_lea.vmem %s1, 2437
    %1767 = vst.msk [vmem:[%s1766] ss:$16 sm:$0x3] %vm1765, %v1764
    %s1768 = scalar_lea.vmem %s1, 2437
    %1769 = vst.msk [vmem:[%s1768] ss:$16 sm:$0xc] %vm1765, %v1764
    %s1770 = scalar_lea.vmem %s1, 2437
    %1771 = vst.msk [vmem:[%s1770] ss:$16 sm:$0x30] %vm1765, %v1764
    %s1772 = scalar_lea.vmem %s1, 2437
    %1773 = vst.msk [vmem:[%s1772] ss:$16 sm:$0xc0] %vm1765, %v1764
    %s1774 = scalar_lea.vmem [#allocation0], 160
    %v1775 = vld [vmem:[%s1774] sm:$0xff]
    %1776 = vrot.lane.b32.xlu0 %v1775, 108
    %v1777 = vpop.permute.xlu0 %1776
    %vm1778 = vcmask 31744
    %s1779 = scalar_lea.vmem %s1, 2565
    %1780 = vst.msk [vmem:[%s1779] ss:$16 sm:$0x3] %vm1778, %v1777
    %s1781 = scalar_lea.vmem %s1, 2565
    %1782 = vst.msk [vmem:[%s1781] ss:$16 sm:$0xc] %vm1778, %v1777
    %s1783 = scalar_lea.vmem %s1, 2565
    %1784 = vst.msk [vmem:[%s1783] ss:$16 sm:$0x30] %vm1778, %v1777
    %s1785 = scalar_lea.vmem %s1, 2565
    %1786 = vst.msk [vmem:[%s1785] ss:$16 sm:$0xc0] %vm1778, %v1777
    %s1787 = scalar_lea.vmem [#allocation0], 168
    %v1788 = vld [vmem:[%s1787] sm:$0xff]
    %1789 = vrot.lane.b32.xlu0 %v1788, 108
    %v1790 = vpop.permute.xlu0 %1789
    %vm1791 = vcmask 31744
    %s1792 = scalar_lea.vmem %s1, 2693
    %1793 = vst.msk [vmem:[%s1792] ss:$16 sm:$0x3] %vm1791, %v1790
    %s1794 = scalar_lea.vmem %s1, 2693
    %1795 = vst.msk [vmem:[%s1794] ss:$16 sm:$0xc] %vm1791, %v1790
    %s1796 = scalar_lea.vmem %s1, 2693
    %1797 = vst.msk [vmem:[%s1796] ss:$16 sm:$0x30] %vm1791, %v1790
    %s1798 = scalar_lea.vmem %s1, 2693
    %1799 = vst.msk [vmem:[%s1798] ss:$16 sm:$0xc0] %vm1791, %v1790
    %s1800 = scalar_lea.vmem [#allocation0], 176
    %v1801 = vld [vmem:[%s1800] sm:$0xff]
    %1802 = vrot.lane.b32.xlu0 %v1801, 108
    %v1803 = vpop.permute.xlu0 %1802
    %vm1804 = vcmask 31744
    %s1805 = scalar_lea.vmem %s1, 2821
    %1806 = vst.msk [vmem:[%s1805] ss:$16 sm:$0x3] %vm1804, %v1803
    %s1807 = scalar_lea.vmem %s1, 2821
    %1808 = vst.msk [vmem:[%s1807] ss:$16 sm:$0xc] %vm1804, %v1803
    %s1809 = scalar_lea.vmem %s1, 2821
    %1810 = vst.msk [vmem:[%s1809] ss:$16 sm:$0x30] %vm1804, %v1803
    %s1811 = scalar_lea.vmem %s1, 2821
    %1812 = vst.msk [vmem:[%s1811] ss:$16 sm:$0xc0] %vm1804, %v1803
    %s1813 = scalar_lea.vmem [#allocation0], 184
    %v1814 = vld [vmem:[%s1813] sm:$0xff]
    %1815 = vrot.lane.b32.xlu0 %v1814, 108
    %v1816 = vpop.permute.xlu0 %1815
    %vm1817 = vcmask 31744
    %s1818 = scalar_lea.vmem %s1, 2949
    %1819 = vst.msk [vmem:[%s1818] ss:$16 sm:$0x3] %vm1817, %v1816
    %s1820 = scalar_lea.vmem %s1, 2949
    %1821 = vst.msk [vmem:[%s1820] ss:$16 sm:$0xc] %vm1817, %v1816
    %s1822 = scalar_lea.vmem %s1, 2949
    %1823 = vst.msk [vmem:[%s1822] ss:$16 sm:$0x30] %vm1817, %v1816
    %s1824 = scalar_lea.vmem %s1, 2949
    %1825 = vst.msk [vmem:[%s1824] ss:$16 sm:$0xc0] %vm1817, %v1816
    %v1826 = vld [vmem:[#allocation0] sm:$0xff]
    %1827 = vrot.lane.b32.xlu0 %v1826, 104
    %v1828 = vpop.permute.xlu0 %1827
    %vm1829 = vcmask 31744
    %s1830 = scalar_lea.vmem %s1, 6
    %1831 = vst.msk [vmem:[%s1830] ss:$16 sm:$0x3] %vm1829, %v1828
    %s1832 = scalar_lea.vmem %s1, 6
    %1833 = vst.msk [vmem:[%s1832] ss:$16 sm:$0xc] %vm1829, %v1828
    %s1834 = scalar_lea.vmem %s1, 6
    %1835 = vst.msk [vmem:[%s1834] ss:$16 sm:$0x30] %vm1829, %v1828
    %s1836 = scalar_lea.vmem %s1, 6
    %1837 = vst.msk [vmem:[%s1836] ss:$16 sm:$0xc0] %vm1829, %v1828
    %s1838 = scalar_lea.vmem [#allocation0], 8
    %v1839 = vld [vmem:[%s1838] sm:$0xff]
    %1840 = vrot.lane.b32.xlu0 %v1839, 104
    %v1841 = vpop.permute.xlu0 %1840
    %vm1842 = vcmask 31744
    %s1843 = scalar_lea.vmem %s1, 134
    %1844 = vst.msk [vmem:[%s1843] ss:$16 sm:$0x3] %vm1842, %v1841
    %s1845 = scalar_lea.vmem %s1, 134
    %1846 = vst.msk [vmem:[%s1845] ss:$16 sm:$0xc] %vm1842, %v1841
    %s1847 = scalar_lea.vmem %s1, 134
    %1848 = vst.msk [vmem:[%s1847] ss:$16 sm:$0x30] %vm1842, %v1841
    %s1849 = scalar_lea.vmem %s1, 134
    %1850 = vst.msk [vmem:[%s1849] ss:$16 sm:$0xc0] %vm1842, %v1841
    %s1851 = scalar_lea.vmem [#allocation0], 16
    %v1852 = vld [vmem:[%s1851] sm:$0xff]
    %1853 = vrot.lane.b32.xlu0 %v1852, 104
    %v1854 = vpop.permute.xlu0 %1853
    %vm1855 = vcmask 31744
    %s1856 = scalar_lea.vmem %s1, 262
    %1857 = vst.msk [vmem:[%s1856] ss:$16 sm:$0x3] %vm1855, %v1854
    %s1858 = scalar_lea.vmem %s1, 262
    %1859 = vst.msk [vmem:[%s1858] ss:$16 sm:$0xc] %vm1855, %v1854
    %s1860 = scalar_lea.vmem %s1, 262
    %1861 = vst.msk [vmem:[%s1860] ss:$16 sm:$0x30] %vm1855, %v1854
    %s1862 = scalar_lea.vmem %s1, 262
    %1863 = vst.msk [vmem:[%s1862] ss:$16 sm:$0xc0] %vm1855, %v1854
    %s1864 = scalar_lea.vmem [#allocation0], 24
    %v1865 = vld [vmem:[%s1864] sm:$0xff]
    %1866 = vrot.lane.b32.xlu0 %v1865, 104
    %v1867 = vpop.permute.xlu0 %1866
    %vm1868 = vcmask 31744
    %s1869 = scalar_lea.vmem %s1, 390
    %1870 = vst.msk [vmem:[%s1869] ss:$16 sm:$0x3] %vm1868, %v1867
    %s1871 = scalar_lea.vmem %s1, 390
    %1872 = vst.msk [vmem:[%s1871] ss:$16 sm:$0xc] %vm1868, %v1867
    %s1873 = scalar_lea.vmem %s1, 390
    %1874 = vst.msk [vmem:[%s1873] ss:$16 sm:$0x30] %vm1868, %v1867
    %s1875 = scalar_lea.vmem %s1, 390
    %1876 = vst.msk [vmem:[%s1875] ss:$16 sm:$0xc0] %vm1868, %v1867
    %s1877 = scalar_lea.vmem [#allocation0], 32
    %v1878 = vld [vmem:[%s1877] sm:$0xff]
    %1879 = vrot.lane.b32.xlu0 %v1878, 104
    %v1880 = vpop.permute.xlu0 %1879
    %vm1881 = vcmask 31744
    %s1882 = scalar_lea.vmem %s1, 518
    %1883 = vst.msk [vmem:[%s1882] ss:$16 sm:$0x3] %vm1881, %v1880
    %s1884 = scalar_lea.vmem %s1, 518
    %1885 = vst.msk [vmem:[%s1884] ss:$16 sm:$0xc] %vm1881, %v1880
    %s1886 = scalar_lea.vmem %s1, 518
    %1887 = vst.msk [vmem:[%s1886] ss:$16 sm:$0x30] %vm1881, %v1880
    %s1888 = scalar_lea.vmem %s1, 518
    %1889 = vst.msk [vmem:[%s1888] ss:$16 sm:$0xc0] %vm1881, %v1880
    %s1890 = scalar_lea.vmem [#allocation0], 40
    %v1891 = vld [vmem:[%s1890] sm:$0xff]
    %1892 = vrot.lane.b32.xlu0 %v1891, 104
    %v1893 = vpop.permute.xlu0 %1892
    %vm1894 = vcmask 31744
    %s1895 = scalar_lea.vmem %s1, 646
    %1896 = vst.msk [vmem:[%s1895] ss:$16 sm:$0x3] %vm1894, %v1893
    %s1897 = scalar_lea.vmem %s1, 646
    %1898 = vst.msk [vmem:[%s1897] ss:$16 sm:$0xc] %vm1894, %v1893
    %s1899 = scalar_lea.vmem %s1, 646
    %1900 = vst.msk [vmem:[%s1899] ss:$16 sm:$0x30] %vm1894, %v1893
    %s1901 = scalar_lea.vmem %s1, 646
    %1902 = vst.msk [vmem:[%s1901] ss:$16 sm:$0xc0] %vm1894, %v1893
    %s1903 = scalar_lea.vmem [#allocation0], 48
    %v1904 = vld [vmem:[%s1903] sm:$0xff]
    %1905 = vrot.lane.b32.xlu0 %v1904, 104
    %v1906 = vpop.permute.xlu0 %1905
    %vm1907 = vcmask 31744
    %s1908 = scalar_lea.vmem %s1, 774
    %1909 = vst.msk [vmem:[%s1908] ss:$16 sm:$0x3] %vm1907, %v1906
    %s1910 = scalar_lea.vmem %s1, 774
    %1911 = vst.msk [vmem:[%s1910] ss:$16 sm:$0xc] %vm1907, %v1906
    %s1912 = scalar_lea.vmem %s1, 774
    %1913 = vst.msk [vmem:[%s1912] ss:$16 sm:$0x30] %vm1907, %v1906
    %s1914 = scalar_lea.vmem %s1, 774
    %1915 = vst.msk [vmem:[%s1914] ss:$16 sm:$0xc0] %vm1907, %v1906
    %s1916 = scalar_lea.vmem [#allocation0], 56
    %v1917 = vld [vmem:[%s1916] sm:$0xff]
    %1918 = vrot.lane.b32.xlu0 %v1917, 104
    %v1919 = vpop.permute.xlu0 %1918
    %vm1920 = vcmask 31744
    %s1921 = scalar_lea.vmem %s1, 902
    %1922 = vst.msk [vmem:[%s1921] ss:$16 sm:$0x3] %vm1920, %v1919
    %s1923 = scalar_lea.vmem %s1, 902
    %1924 = vst.msk [vmem:[%s1923] ss:$16 sm:$0xc] %vm1920, %v1919
    %s1925 = scalar_lea.vmem %s1, 902
    %1926 = vst.msk [vmem:[%s1925] ss:$16 sm:$0x30] %vm1920, %v1919
    %s1927 = scalar_lea.vmem %s1, 902
    %1928 = vst.msk [vmem:[%s1927] ss:$16 sm:$0xc0] %vm1920, %v1919
    %s1929 = scalar_lea.vmem [#allocation0], 64
    %v1930 = vld [vmem:[%s1929] sm:$0xff]
    %1931 = vrot.lane.b32.xlu0 %v1930, 104
    %v1932 = vpop.permute.xlu0 %1931
    %vm1933 = vcmask 31744
    %s1934 = scalar_lea.vmem %s1, 1030
    %1935 = vst.msk [vmem:[%s1934] ss:$16 sm:$0x3] %vm1933, %v1932
    %s1936 = scalar_lea.vmem %s1, 1030
    %1937 = vst.msk [vmem:[%s1936] ss:$16 sm:$0xc] %vm1933, %v1932
    %s1938 = scalar_lea.vmem %s1, 1030
    %1939 = vst.msk [vmem:[%s1938] ss:$16 sm:$0x30] %vm1933, %v1932
    %s1940 = scalar_lea.vmem %s1, 1030
    %1941 = vst.msk [vmem:[%s1940] ss:$16 sm:$0xc0] %vm1933, %v1932
    %s1942 = scalar_lea.vmem [#allocation0], 72
    %v1943 = vld [vmem:[%s1942] sm:$0xff]
    %1944 = vrot.lane.b32.xlu0 %v1943, 104
    %v1945 = vpop.permute.xlu0 %1944
    %vm1946 = vcmask 31744
    %s1947 = scalar_lea.vmem %s1, 1158
    %1948 = vst.msk [vmem:[%s1947] ss:$16 sm:$0x3] %vm1946, %v1945
    %s1949 = scalar_lea.vmem %s1, 1158
    %1950 = vst.msk [vmem:[%s1949] ss:$16 sm:$0xc] %vm1946, %v1945
    %s1951 = scalar_lea.vmem %s1, 1158
    %1952 = vst.msk [vmem:[%s1951] ss:$16 sm:$0x30] %vm1946, %v1945
    %s1953 = scalar_lea.vmem %s1, 1158
    %1954 = vst.msk [vmem:[%s1953] ss:$16 sm:$0xc0] %vm1946, %v1945
    %s1955 = scalar_lea.vmem [#allocation0], 80
    %v1956 = vld [vmem:[%s1955] sm:$0xff]
    %1957 = vrot.lane.b32.xlu0 %v1956, 104
    %v1958 = vpop.permute.xlu0 %1957
    %vm1959 = vcmask 31744
    %s1960 = scalar_lea.vmem %s1, 1286
    %1961 = vst.msk [vmem:[%s1960] ss:$16 sm:$0x3] %vm1959, %v1958
    %s1962 = scalar_lea.vmem %s1, 1286
    %1963 = vst.msk [vmem:[%s1962] ss:$16 sm:$0xc] %vm1959, %v1958
    %s1964 = scalar_lea.vmem %s1, 1286
    %1965 = vst.msk [vmem:[%s1964] ss:$16 sm:$0x30] %vm1959, %v1958
    %s1966 = scalar_lea.vmem %s1, 1286
    %1967 = vst.msk [vmem:[%s1966] ss:$16 sm:$0xc0] %vm1959, %v1958
    %s1968 = scalar_lea.vmem [#allocation0], 88
    %v1969 = vld [vmem:[%s1968] sm:$0xff]
    %1970 = vrot.lane.b32.xlu0 %v1969, 104
    %v1971 = vpop.permute.xlu0 %1970
    %vm1972 = vcmask 31744
    %s1973 = scalar_lea.vmem %s1, 1414
    %1974 = vst.msk [vmem:[%s1973] ss:$16 sm:$0x3] %vm1972, %v1971
    %s1975 = scalar_lea.vmem %s1, 1414
    %1976 = vst.msk [vmem:[%s1975] ss:$16 sm:$0xc] %vm1972, %v1971
    %s1977 = scalar_lea.vmem %s1, 1414
    %1978 = vst.msk [vmem:[%s1977] ss:$16 sm:$0x30] %vm1972, %v1971
    %s1979 = scalar_lea.vmem %s1, 1414
    %1980 = vst.msk [vmem:[%s1979] ss:$16 sm:$0xc0] %vm1972, %v1971
    %s1981 = scalar_lea.vmem [#allocation0], 96
    %v1982 = vld [vmem:[%s1981] sm:$0xff]
    %1983 = vrot.lane.b32.xlu0 %v1982, 104
    %v1984 = vpop.permute.xlu0 %1983
    %vm1985 = vcmask 31744
    %s1986 = scalar_lea.vmem %s1, 1542
    %1987 = vst.msk [vmem:[%s1986] ss:$16 sm:$0x3] %vm1985, %v1984
    %s1988 = scalar_lea.vmem %s1, 1542
    %1989 = vst.msk [vmem:[%s1988] ss:$16 sm:$0xc] %vm1985, %v1984
    %s1990 = scalar_lea.vmem %s1, 1542
    %1991 = vst.msk [vmem:[%s1990] ss:$16 sm:$0x30] %vm1985, %v1984
    %s1992 = scalar_lea.vmem %s1, 1542
    %1993 = vst.msk [vmem:[%s1992] ss:$16 sm:$0xc0] %vm1985, %v1984
    %s1994 = scalar_lea.vmem [#allocation0], 104
    %v1995 = vld [vmem:[%s1994] sm:$0xff]
    %1996 = vrot.lane.b32.xlu0 %v1995, 104
    %v1997 = vpop.permute.xlu0 %1996
    %vm1998 = vcmask 31744
    %s1999 = scalar_lea.vmem %s1, 1670
    %2000 = vst.msk [vmem:[%s1999] ss:$16 sm:$0x3] %vm1998, %v1997
    %s2001 = scalar_lea.vmem %s1, 1670
    %2002 = vst.msk [vmem:[%s2001] ss:$16 sm:$0xc] %vm1998, %v1997
    %s2003 = scalar_lea.vmem %s1, 1670
    %2004 = vst.msk [vmem:[%s2003] ss:$16 sm:$0x30] %vm1998, %v1997
    %s2005 = scalar_lea.vmem %s1, 1670
    %2006 = vst.msk [vmem:[%s2005] ss:$16 sm:$0xc0] %vm1998, %v1997
    %s2007 = scalar_lea.vmem [#allocation0], 112
    %v2008 = vld [vmem:[%s2007] sm:$0xff]
    %2009 = vrot.lane.b32.xlu0 %v2008, 104
    %v2010 = vpop.permute.xlu0 %2009
    %vm2011 = vcmask 31744
    %s2012 = scalar_lea.vmem %s1, 1798
    %2013 = vst.msk [vmem:[%s2012] ss:$16 sm:$0x3] %vm2011, %v2010
    %s2014 = scalar_lea.vmem %s1, 1798
    %2015 = vst.msk [vmem:[%s2014] ss:$16 sm:$0xc] %vm2011, %v2010
    %s2016 = scalar_lea.vmem %s1, 1798
    %2017 = vst.msk [vmem:[%s2016] ss:$16 sm:$0x30] %vm2011, %v2010
    %s2018 = scalar_lea.vmem %s1, 1798
    %2019 = vst.msk [vmem:[%s2018] ss:$16 sm:$0xc0] %vm2011, %v2010
    %s2020 = scalar_lea.vmem [#allocation0], 120
    %v2021 = vld [vmem:[%s2020] sm:$0xff]
    %2022 = vrot.lane.b32.xlu0 %v2021, 104
    %v2023 = vpop.permute.xlu0 %2022
    %vm2024 = vcmask 31744
    %s2025 = scalar_lea.vmem %s1, 1926
    %2026 = vst.msk [vmem:[%s2025] ss:$16 sm:$0x3] %vm2024, %v2023
    %s2027 = scalar_lea.vmem %s1, 1926
    %2028 = vst.msk [vmem:[%s2027] ss:$16 sm:$0xc] %vm2024, %v2023
    %s2029 = scalar_lea.vmem %s1, 1926
    %2030 = vst.msk [vmem:[%s2029] ss:$16 sm:$0x30] %vm2024, %v2023
    %s2031 = scalar_lea.vmem %s1, 1926
    %2032 = vst.msk [vmem:[%s2031] ss:$16 sm:$0xc0] %vm2024, %v2023
    %s2033 = scalar_lea.vmem [#allocation0], 128
    %v2034 = vld [vmem:[%s2033] sm:$0xff]
    %2035 = vrot.lane.b32.xlu0 %v2034, 104
    %v2036 = vpop.permute.xlu0 %2035
    %vm2037 = vcmask 31744
    %s2038 = scalar_lea.vmem %s1, 2054
    %2039 = vst.msk [vmem:[%s2038] ss:$16 sm:$0x3] %vm2037, %v2036
    %s2040 = scalar_lea.vmem %s1, 2054
    %2041 = vst.msk [vmem:[%s2040] ss:$16 sm:$0xc] %vm2037, %v2036
    %s2042 = scalar_lea.vmem %s1, 2054
    %2043 = vst.msk [vmem:[%s2042] ss:$16 sm:$0x30] %vm2037, %v2036
    %s2044 = scalar_lea.vmem %s1, 2054
    %2045 = vst.msk [vmem:[%s2044] ss:$16 sm:$0xc0] %vm2037, %v2036
    %s2046 = scalar_lea.vmem [#allocation0], 136
    %v2047 = vld [vmem:[%s2046] sm:$0xff]
    %2048 = vrot.lane.b32.xlu0 %v2047, 104
    %v2049 = vpop.permute.xlu0 %2048
    %vm2050 = vcmask 31744
    %s2051 = scalar_lea.vmem %s1, 2182
    %2052 = vst.msk [vmem:[%s2051] ss:$16 sm:$0x3] %vm2050, %v2049
    %s2053 = scalar_lea.vmem %s1, 2182
    %2054 = vst.msk [vmem:[%s2053] ss:$16 sm:$0xc] %vm2050, %v2049
    %s2055 = scalar_lea.vmem %s1, 2182
    %2056 = vst.msk [vmem:[%s2055] ss:$16 sm:$0x30] %vm2050, %v2049
    %s2057 = scalar_lea.vmem %s1, 2182
    %2058 = vst.msk [vmem:[%s2057] ss:$16 sm:$0xc0] %vm2050, %v2049
    %s2059 = scalar_lea.vmem [#allocation0], 144
    %v2060 = vld [vmem:[%s2059] sm:$0xff]
    %2061 = vrot.lane.b32.xlu0 %v2060, 104
    %v2062 = vpop.permute.xlu0 %2061
    %vm2063 = vcmask 31744
    %s2064 = scalar_lea.vmem %s1, 2310
    %2065 = vst.msk [vmem:[%s2064] ss:$16 sm:$0x3] %vm2063, %v2062
    %s2066 = scalar_lea.vmem %s1, 2310
    %2067 = vst.msk [vmem:[%s2066] ss:$16 sm:$0xc] %vm2063, %v2062
    %s2068 = scalar_lea.vmem %s1, 2310
    %2069 = vst.msk [vmem:[%s2068] ss:$16 sm:$0x30] %vm2063, %v2062
    %s2070 = scalar_lea.vmem %s1, 2310
    %2071 = vst.msk [vmem:[%s2070] ss:$16 sm:$0xc0] %vm2063, %v2062
    %s2072 = scalar_lea.vmem [#allocation0], 152
    %v2073 = vld [vmem:[%s2072] sm:$0xff]
    %2074 = vrot.lane.b32.xlu0 %v2073, 104
    %v2075 = vpop.permute.xlu0 %2074
    %vm2076 = vcmask 31744
    %s2077 = scalar_lea.vmem %s1, 2438
    %2078 = vst.msk [vmem:[%s2077] ss:$16 sm:$0x3] %vm2076, %v2075
    %s2079 = scalar_lea.vmem %s1, 2438
    %2080 = vst.msk [vmem:[%s2079] ss:$16 sm:$0xc] %vm2076, %v2075
    %s2081 = scalar_lea.vmem %s1, 2438
    %2082 = vst.msk [vmem:[%s2081] ss:$16 sm:$0x30] %vm2076, %v2075
    %s2083 = scalar_lea.vmem %s1, 2438
    %2084 = vst.msk [vmem:[%s2083] ss:$16 sm:$0xc0] %vm2076, %v2075
    %s2085 = scalar_lea.vmem [#allocation0], 160
    %v2086 = vld [vmem:[%s2085] sm:$0xff]
    %2087 = vrot.lane.b32.xlu0 %v2086, 104
    %v2088 = vpop.permute.xlu0 %2087
    %vm2089 = vcmask 31744
    %s2090 = scalar_lea.vmem %s1, 2566
    %2091 = vst.msk [vmem:[%s2090] ss:$16 sm:$0x3] %vm2089, %v2088
    %s2092 = scalar_lea.vmem %s1, 2566
    %2093 = vst.msk [vmem:[%s2092] ss:$16 sm:$0xc] %vm2089, %v2088
    %s2094 = scalar_lea.vmem %s1, 2566
    %2095 = vst.msk [vmem:[%s2094] ss:$16 sm:$0x30] %vm2089, %v2088
    %s2096 = scalar_lea.vmem %s1, 2566
    %2097 = vst.msk [vmem:[%s2096] ss:$16 sm:$0xc0] %vm2089, %v2088
    %s2098 = scalar_lea.vmem [#allocation0], 168
    %v2099 = vld [vmem:[%s2098] sm:$0xff]
    %2100 = vrot.lane.b32.xlu0 %v2099, 104
    %v2101 = vpop.permute.xlu0 %2100
    %vm2102 = vcmask 31744
    %s2103 = scalar_lea.vmem %s1, 2694
    %2104 = vst.msk [vmem:[%s2103] ss:$16 sm:$0x3] %vm2102, %v2101
    %s2105 = scalar_lea.vmem %s1, 2694
    %2106 = vst.msk [vmem:[%s2105] ss:$16 sm:$0xc] %vm2102, %v2101
    %s2107 = scalar_lea.vmem %s1, 2694
    %2108 = vst.msk [vmem:[%s2107] ss:$16 sm:$0x30] %vm2102, %v2101
    %s2109 = scalar_lea.vmem %s1, 2694
    %2110 = vst.msk [vmem:[%s2109] ss:$16 sm:$0xc0] %vm2102, %v2101
    %s2111 = scalar_lea.vmem [#allocation0], 176
    %v2112 = vld [vmem:[%s2111] sm:$0xff]
    %2113 = vrot.lane.b32.xlu0 %v2112, 104
    %v2114 = vpop.permute.xlu0 %2113
    %vm2115 = vcmask 31744
    %s2116 = scalar_lea.vmem %s1, 2822
    %2117 = vst.msk [vmem:[%s2116] ss:$16 sm:$0x3] %vm2115, %v2114
    %s2118 = scalar_lea.vmem %s1, 2822
    %2119 = vst.msk [vmem:[%s2118] ss:$16 sm:$0xc] %vm2115, %v2114
    %s2120 = scalar_lea.vmem %s1, 2822
    %2121 = vst.msk [vmem:[%s2120] ss:$16 sm:$0x30] %vm2115, %v2114
    %s2122 = scalar_lea.vmem %s1, 2822
    %2123 = vst.msk [vmem:[%s2122] ss:$16 sm:$0xc0] %vm2115, %v2114
    %s2124 = scalar_lea.vmem [#allocation0], 184
    %v2125 = vld [vmem:[%s2124] sm:$0xff]
    %2126 = vrot.lane.b32.xlu0 %v2125, 104
    %v2127 = vpop.permute.xlu0 %2126
    %vm2128 = vcmask 31744
    %s2129 = scalar_lea.vmem %s1, 2950
    %2130 = vst.msk [vmem:[%s2129] ss:$16 sm:$0x3] %vm2128, %v2127
    %s2131 = scalar_lea.vmem %s1, 2950
    %2132 = vst.msk [vmem:[%s2131] ss:$16 sm:$0xc] %vm2128, %v2127
    %s2133 = scalar_lea.vmem %s1, 2950
    %2134 = vst.msk [vmem:[%s2133] ss:$16 sm:$0x30] %vm2128, %v2127
    %s2135 = scalar_lea.vmem %s1, 2950
    %2136 = vst.msk [vmem:[%s2135] ss:$16 sm:$0xc0] %vm2128, %v2127
    %v2137 = vld [vmem:[#allocation0] sm:$0xff]
    %2138 = vrot.lane.b32.xlu0 %v2137, 100
    %v2139 = vpop.permute.xlu0 %2138
    %vm2140 = vcmask 31744
    %s2141 = scalar_lea.vmem %s1, 7
    %2142 = vst.msk [vmem:[%s2141] ss:$16 sm:$0x3] %vm2140, %v2139
    %s2143 = scalar_lea.vmem %s1, 7
    %2144 = vst.msk [vmem:[%s2143] ss:$16 sm:$0xc] %vm2140, %v2139
    %s2145 = scalar_lea.vmem %s1, 7
    %2146 = vst.msk [vmem:[%s2145] ss:$16 sm:$0x30] %vm2140, %v2139
    %s2147 = scalar_lea.vmem %s1, 7
    %2148 = vst.msk [vmem:[%s2147] ss:$16 sm:$0xc0] %vm2140, %v2139
    %s2149 = scalar_lea.vmem [#allocation0], 8
    %v2150 = vld [vmem:[%s2149] sm:$0xff]
    %2151 = vrot.lane.b32.xlu0 %v2150, 100
    %v2152 = vpop.permute.xlu0 %2151
    %vm2153 = vcmask 31744
    %s2154 = scalar_lea.vmem %s1, 135
    %2155 = vst.msk [vmem:[%s2154] ss:$16 sm:$0x3] %vm2153, %v2152
    %s2156 = scalar_lea.vmem %s1, 135
    %2157 = vst.msk [vmem:[%s2156] ss:$16 sm:$0xc] %vm2153, %v2152
    %s2158 = scalar_lea.vmem %s1, 135
    %2159 = vst.msk [vmem:[%s2158] ss:$16 sm:$0x30] %vm2153, %v2152
    %s2160 = scalar_lea.vmem %s1, 135
    %2161 = vst.msk [vmem:[%s2160] ss:$16 sm:$0xc0] %vm2153, %v2152
    %s2162 = scalar_lea.vmem [#allocation0], 16
    %v2163 = vld [vmem:[%s2162] sm:$0xff]
    %2164 = vrot.lane.b32.xlu0 %v2163, 100
    %v2165 = vpop.permute.xlu0 %2164
    %vm2166 = vcmask 31744
    %s2167 = scalar_lea.vmem %s1, 263
    %2168 = vst.msk [vmem:[%s2167] ss:$16 sm:$0x3] %vm2166, %v2165
    %s2169 = scalar_lea.vmem %s1, 263
    %2170 = vst.msk [vmem:[%s2169] ss:$16 sm:$0xc] %vm2166, %v2165
    %s2171 = scalar_lea.vmem %s1, 263
    %2172 = vst.msk [vmem:[%s2171] ss:$16 sm:$0x30] %vm2166, %v2165
    %s2173 = scalar_lea.vmem %s1, 263
    %2174 = vst.msk [vmem:[%s2173] ss:$16 sm:$0xc0] %vm2166, %v2165
    %s2175 = scalar_lea.vmem [#allocation0], 24
    %v2176 = vld [vmem:[%s2175] sm:$0xff]
    %2177 = vrot.lane.b32.xlu0 %v2176, 100
    %v2178 = vpop.permute.xlu0 %2177
    %vm2179 = vcmask 31744
    %s2180 = scalar_lea.vmem %s1, 391
    %2181 = vst.msk [vmem:[%s2180] ss:$16 sm:$0x3] %vm2179, %v2178
    %s2182 = scalar_lea.vmem %s1, 391
    %2183 = vst.msk [vmem:[%s2182] ss:$16 sm:$0xc] %vm2179, %v2178
    %s2184 = scalar_lea.vmem %s1, 391
    %2185 = vst.msk [vmem:[%s2184] ss:$16 sm:$0x30] %vm2179, %v2178
    %s2186 = scalar_lea.vmem %s1, 391
    %2187 = vst.msk [vmem:[%s2186] ss:$16 sm:$0xc0] %vm2179, %v2178
    %s2188 = scalar_lea.vmem [#allocation0], 32
    %v2189 = vld [vmem:[%s2188] sm:$0xff]
    %2190 = vrot.lane.b32.xlu0 %v2189, 100
    %v2191 = vpop.permute.xlu0 %2190
    %vm2192 = vcmask 31744
    %s2193 = scalar_lea.vmem %s1, 519
    %2194 = vst.msk [vmem:[%s2193] ss:$16 sm:$0x3] %vm2192, %v2191
    %s2195 = scalar_lea.vmem %s1, 519
    %2196 = vst.msk [vmem:[%s2195] ss:$16 sm:$0xc] %vm2192, %v2191
    %s2197 = scalar_lea.vmem %s1, 519
    %2198 = vst.msk [vmem:[%s2197] ss:$16 sm:$0x30] %vm2192, %v2191
    %s2199 = scalar_lea.vmem %s1, 519
    %2200 = vst.msk [vmem:[%s2199] ss:$16 sm:$0xc0] %vm2192, %v2191
    %s2201 = scalar_lea.vmem [#allocation0], 40
    %v2202 = vld [vmem:[%s2201] sm:$0xff]
    %2203 = vrot.lane.b32.xlu0 %v2202, 100
    %v2204 = vpop.permute.xlu0 %2203
    %vm2205 = vcmask 31744
    %s2206 = scalar_lea.vmem %s1, 647
    %2207 = vst.msk [vmem:[%s2206] ss:$16 sm:$0x3] %vm2205, %v2204
    %s2208 = scalar_lea.vmem %s1, 647
    %2209 = vst.msk [vmem:[%s2208] ss:$16 sm:$0xc] %vm2205, %v2204
    %s2210 = scalar_lea.vmem %s1, 647
    %2211 = vst.msk [vmem:[%s2210] ss:$16 sm:$0x30] %vm2205, %v2204
    %s2212 = scalar_lea.vmem %s1, 647
    %2213 = vst.msk [vmem:[%s2212] ss:$16 sm:$0xc0] %vm2205, %v2204
    %s2214 = scalar_lea.vmem [#allocation0], 48
    %v2215 = vld [vmem:[%s2214] sm:$0xff]
    %2216 = vrot.lane.b32.xlu0 %v2215, 100
    %v2217 = vpop.permute.xlu0 %2216
    %vm2218 = vcmask 31744
    %s2219 = scalar_lea.vmem %s1, 775
    %2220 = vst.msk [vmem:[%s2219] ss:$16 sm:$0x3] %vm2218, %v2217
    %s2221 = scalar_lea.vmem %s1, 775
    %2222 = vst.msk [vmem:[%s2221] ss:$16 sm:$0xc] %vm2218, %v2217
    %s2223 = scalar_lea.vmem %s1, 775
    %2224 = vst.msk [vmem:[%s2223] ss:$16 sm:$0x30] %vm2218, %v2217
    %s2225 = scalar_lea.vmem %s1, 775
    %2226 = vst.msk [vmem:[%s2225] ss:$16 sm:$0xc0] %vm2218, %v2217
    %s2227 = scalar_lea.vmem [#allocation0], 56
    %v2228 = vld [vmem:[%s2227] sm:$0xff]
    %2229 = vrot.lane.b32.xlu0 %v2228, 100
    %v2230 = vpop.permute.xlu0 %2229
    %vm2231 = vcmask 31744
    %s2232 = scalar_lea.vmem %s1, 903
    %2233 = vst.msk [vmem:[%s2232] ss:$16 sm:$0x3] %vm2231, %v2230
    %s2234 = scalar_lea.vmem %s1, 903
    %2235 = vst.msk [vmem:[%s2234] ss:$16 sm:$0xc] %vm2231, %v2230
    %s2236 = scalar_lea.vmem %s1, 903
    %2237 = vst.msk [vmem:[%s2236] ss:$16 sm:$0x30] %vm2231, %v2230
    %s2238 = scalar_lea.vmem %s1, 903
    %2239 = vst.msk [vmem:[%s2238] ss:$16 sm:$0xc0] %vm2231, %v2230
    %s2240 = scalar_lea.vmem [#allocation0], 64
    %v2241 = vld [vmem:[%s2240] sm:$0xff]
    %2242 = vrot.lane.b32.xlu0 %v2241, 100
    %v2243 = vpop.permute.xlu0 %2242
    %vm2244 = vcmask 31744
    %s2245 = scalar_lea.vmem %s1, 1031
    %2246 = vst.msk [vmem:[%s2245] ss:$16 sm:$0x3] %vm2244, %v2243
    %s2247 = scalar_lea.vmem %s1, 1031
    %2248 = vst.msk [vmem:[%s2247] ss:$16 sm:$0xc] %vm2244, %v2243
    %s2249 = scalar_lea.vmem %s1, 1031
    %2250 = vst.msk [vmem:[%s2249] ss:$16 sm:$0x30] %vm2244, %v2243
    %s2251 = scalar_lea.vmem %s1, 1031
    %2252 = vst.msk [vmem:[%s2251] ss:$16 sm:$0xc0] %vm2244, %v2243
    %s2253 = scalar_lea.vmem [#allocation0], 72
    %v2254 = vld [vmem:[%s2253] sm:$0xff]
    %2255 = vrot.lane.b32.xlu0 %v2254, 100
    %v2256 = vpop.permute.xlu0 %2255
    %vm2257 = vcmask 31744
    %s2258 = scalar_lea.vmem %s1, 1159
    %2259 = vst.msk [vmem:[%s2258] ss:$16 sm:$0x3] %vm2257, %v2256
    %s2260 = scalar_lea.vmem %s1, 1159
    %2261 = vst.msk [vmem:[%s2260] ss:$16 sm:$0xc] %vm2257, %v2256
    %s2262 = scalar_lea.vmem %s1, 1159
    %2263 = vst.msk [vmem:[%s2262] ss:$16 sm:$0x30] %vm2257, %v2256
    %s2264 = scalar_lea.vmem %s1, 1159
    %2265 = vst.msk [vmem:[%s2264] ss:$16 sm:$0xc0] %vm2257, %v2256
    %s2266 = scalar_lea.vmem [#allocation0], 80
    %v2267 = vld [vmem:[%s2266] sm:$0xff]
    %2268 = vrot.lane.b32.xlu0 %v2267, 100
    %v2269 = vpop.permute.xlu0 %2268
    %vm2270 = vcmask 31744
    %s2271 = scalar_lea.vmem %s1, 1287
    %2272 = vst.msk [vmem:[%s2271] ss:$16 sm:$0x3] %vm2270, %v2269
    %s2273 = scalar_lea.vmem %s1, 1287
    %2274 = vst.msk [vmem:[%s2273] ss:$16 sm:$0xc] %vm2270, %v2269
    %s2275 = scalar_lea.vmem %s1, 1287
    %2276 = vst.msk [vmem:[%s2275] ss:$16 sm:$0x30] %vm2270, %v2269
    %s2277 = scalar_lea.vmem %s1, 1287
    %2278 = vst.msk [vmem:[%s2277] ss:$16 sm:$0xc0] %vm2270, %v2269
    %s2279 = scalar_lea.vmem [#allocation0], 88
    %v2280 = vld [vmem:[%s2279] sm:$0xff]
    %2281 = vrot.lane.b32.xlu0 %v2280, 100
    %v2282 = vpop.permute.xlu0 %2281
    %vm2283 = vcmask 31744
    %s2284 = scalar_lea.vmem %s1, 1415
    %2285 = vst.msk [vmem:[%s2284] ss:$16 sm:$0x3] %vm2283, %v2282
    %s2286 = scalar_lea.vmem %s1, 1415
    %2287 = vst.msk [vmem:[%s2286] ss:$16 sm:$0xc] %vm2283, %v2282
    %s2288 = scalar_lea.vmem %s1, 1415
    %2289 = vst.msk [vmem:[%s2288] ss:$16 sm:$0x30] %vm2283, %v2282
    %s2290 = scalar_lea.vmem %s1, 1415
    %2291 = vst.msk [vmem:[%s2290] ss:$16 sm:$0xc0] %vm2283, %v2282
    %s2292 = scalar_lea.vmem [#allocation0], 96
    %v2293 = vld [vmem:[%s2292] sm:$0xff]
    %2294 = vrot.lane.b32.xlu0 %v2293, 100
    %v2295 = vpop.permute.xlu0 %2294
    %vm2296 = vcmask 31744
    %s2297 = scalar_lea.vmem %s1, 1543
    %2298 = vst.msk [vmem:[%s2297] ss:$16 sm:$0x3] %vm2296, %v2295
    %s2299 = scalar_lea.vmem %s1, 1543
    %2300 = vst.msk [vmem:[%s2299] ss:$16 sm:$0xc] %vm2296, %v2295
    %s2301 = scalar_lea.vmem %s1, 1543
    %2302 = vst.msk [vmem:[%s2301] ss:$16 sm:$0x30] %vm2296, %v2295
    %s2303 = scalar_lea.vmem %s1, 1543
    %2304 = vst.msk [vmem:[%s2303] ss:$16 sm:$0xc0] %vm2296, %v2295
    %s2305 = scalar_lea.vmem [#allocation0], 104
    %v2306 = vld [vmem:[%s2305] sm:$0xff]
    %2307 = vrot.lane.b32.xlu0 %v2306, 100
    %v2308 = vpop.permute.xlu0 %2307
    %vm2309 = vcmask 31744
    %s2310 = scalar_lea.vmem %s1, 1671
    %2311 = vst.msk [vmem:[%s2310] ss:$16 sm:$0x3] %vm2309, %v2308
    %s2312 = scalar_lea.vmem %s1, 1671
    %2313 = vst.msk [vmem:[%s2312] ss:$16 sm:$0xc] %vm2309, %v2308
    %s2314 = scalar_lea.vmem %s1, 1671
    %2315 = vst.msk [vmem:[%s2314] ss:$16 sm:$0x30] %vm2309, %v2308
    %s2316 = scalar_lea.vmem %s1, 1671
    %2317 = vst.msk [vmem:[%s2316] ss:$16 sm:$0xc0] %vm2309, %v2308
    %s2318 = scalar_lea.vmem [#allocation0], 112
    %v2319 = vld [vmem:[%s2318] sm:$0xff]
    %2320 = vrot.lane.b32.xlu0 %v2319, 100
    %v2321 = vpop.permute.xlu0 %2320
    %vm2322 = vcmask 31744
    %s2323 = scalar_lea.vmem %s1, 1799
    %2324 = vst.msk [vmem:[%s2323] ss:$16 sm:$0x3] %vm2322, %v2321
    %s2325 = scalar_lea.vmem %s1, 1799
    %2326 = vst.msk [vmem:[%s2325] ss:$16 sm:$0xc] %vm2322, %v2321
    %s2327 = scalar_lea.vmem %s1, 1799
    %2328 = vst.msk [vmem:[%s2327] ss:$16 sm:$0x30] %vm2322, %v2321
    %s2329 = scalar_lea.vmem %s1, 1799
    %2330 = vst.msk [vmem:[%s2329] ss:$16 sm:$0xc0] %vm2322, %v2321
    %s2331 = scalar_lea.vmem [#allocation0], 120
    %v2332 = vld [vmem:[%s2331] sm:$0xff]
    %2333 = vrot.lane.b32.xlu0 %v2332, 100
    %v2334 = vpop.permute.xlu0 %2333
    %vm2335 = vcmask 31744
    %s2336 = scalar_lea.vmem %s1, 1927
    %2337 = vst.msk [vmem:[%s2336] ss:$16 sm:$0x3] %vm2335, %v2334
    %s2338 = scalar_lea.vmem %s1, 1927
    %2339 = vst.msk [vmem:[%s2338] ss:$16 sm:$0xc] %vm2335, %v2334
    %s2340 = scalar_lea.vmem %s1, 1927
    %2341 = vst.msk [vmem:[%s2340] ss:$16 sm:$0x30] %vm2335, %v2334
    %s2342 = scalar_lea.vmem %s1, 1927
    %2343 = vst.msk [vmem:[%s2342] ss:$16 sm:$0xc0] %vm2335, %v2334
    %s2344 = scalar_lea.vmem [#allocation0], 128
    %v2345 = vld [vmem:[%s2344] sm:$0xff]
    %2346 = vrot.lane.b32.xlu0 %v2345, 100
    %v2347 = vpop.permute.xlu0 %2346
    %vm2348 = vcmask 31744
    %s2349 = scalar_lea.vmem %s1, 2055
    %2350 = vst.msk [vmem:[%s2349] ss:$16 sm:$0x3] %vm2348, %v2347
    %s2351 = scalar_lea.vmem %s1, 2055
    %2352 = vst.msk [vmem:[%s2351] ss:$16 sm:$0xc] %vm2348, %v2347
    %s2353 = scalar_lea.vmem %s1, 2055
    %2354 = vst.msk [vmem:[%s2353] ss:$16 sm:$0x30] %vm2348, %v2347
    %s2355 = scalar_lea.vmem %s1, 2055
    %2356 = vst.msk [vmem:[%s2355] ss:$16 sm:$0xc0] %vm2348, %v2347
    %s2357 = scalar_lea.vmem [#allocation0], 136
    %v2358 = vld [vmem:[%s2357] sm:$0xff]
    %2359 = vrot.lane.b32.xlu0 %v2358, 100
    %v2360 = vpop.permute.xlu0 %2359
    %vm2361 = vcmask 31744
    %s2362 = scalar_lea.vmem %s1, 2183
    %2363 = vst.msk [vmem:[%s2362] ss:$16 sm:$0x3] %vm2361, %v2360
    %s2364 = scalar_lea.vmem %s1, 2183
    %2365 = vst.msk [vmem:[%s2364] ss:$16 sm:$0xc] %vm2361, %v2360
    %s2366 = scalar_lea.vmem %s1, 2183
    %2367 = vst.msk [vmem:[%s2366] ss:$16 sm:$0x30] %vm2361, %v2360
    %s2368 = scalar_lea.vmem %s1, 2183
    %2369 = vst.msk [vmem:[%s2368] ss:$16 sm:$0xc0] %vm2361, %v2360
    %s2370 = scalar_lea.vmem [#allocation0], 144
    %v2371 = vld [vmem:[%s2370] sm:$0xff]
    %2372 = vrot.lane.b32.xlu0 %v2371, 100
    %v2373 = vpop.permute.xlu0 %2372
    %vm2374 = vcmask 31744
    %s2375 = scalar_lea.vmem %s1, 2311
    %2376 = vst.msk [vmem:[%s2375] ss:$16 sm:$0x3] %vm2374, %v2373
    %s2377 = scalar_lea.vmem %s1, 2311
    %2378 = vst.msk [vmem:[%s2377] ss:$16 sm:$0xc] %vm2374, %v2373
    %s2379 = scalar_lea.vmem %s1, 2311
    %2380 = vst.msk [vmem:[%s2379] ss:$16 sm:$0x30] %vm2374, %v2373
    %s2381 = scalar_lea.vmem %s1, 2311
    %2382 = vst.msk [vmem:[%s2381] ss:$16 sm:$0xc0] %vm2374, %v2373
    %s2383 = scalar_lea.vmem [#allocation0], 152
    %v2384 = vld [vmem:[%s2383] sm:$0xff]
    %2385 = vrot.lane.b32.xlu0 %v2384, 100
    %v2386 = vpop.permute.xlu0 %2385
    %vm2387 = vcmask 31744
    %s2388 = scalar_lea.vmem %s1, 2439
    %2389 = vst.msk [vmem:[%s2388] ss:$16 sm:$0x3] %vm2387, %v2386
    %s2390 = scalar_lea.vmem %s1, 2439
    %2391 = vst.msk [vmem:[%s2390] ss:$16 sm:$0xc] %vm2387, %v2386
    %s2392 = scalar_lea.vmem %s1, 2439
    %2393 = vst.msk [vmem:[%s2392] ss:$16 sm:$0x30] %vm2387, %v2386
    %s2394 = scalar_lea.vmem %s1, 2439
    %2395 = vst.msk [vmem:[%s2394] ss:$16 sm:$0xc0] %vm2387, %v2386
    %s2396 = scalar_lea.vmem [#allocation0], 160
    %v2397 = vld [vmem:[%s2396] sm:$0xff]
    %2398 = vrot.lane.b32.xlu0 %v2397, 100
    %v2399 = vpop.permute.xlu0 %2398
    %vm2400 = vcmask 31744
    %s2401 = scalar_lea.vmem %s1, 2567
    %2402 = vst.msk [vmem:[%s2401] ss:$16 sm:$0x3] %vm2400, %v2399
    %s2403 = scalar_lea.vmem %s1, 2567
    %2404 = vst.msk [vmem:[%s2403] ss:$16 sm:$0xc] %vm2400, %v2399
    %s2405 = scalar_lea.vmem %s1, 2567
    %2406 = vst.msk [vmem:[%s2405] ss:$16 sm:$0x30] %vm2400, %v2399
    %s2407 = scalar_lea.vmem %s1, 2567
    %2408 = vst.msk [vmem:[%s2407] ss:$16 sm:$0xc0] %vm2400, %v2399
    %s2409 = scalar_lea.vmem [#allocation0], 168
    %v2410 = vld [vmem:[%s2409] sm:$0xff]
    %2411 = vrot.lane.b32.xlu0 %v2410, 100
    %v2412 = vpop.permute.xlu0 %2411
    %vm2413 = vcmask 31744
    %s2414 = scalar_lea.vmem %s1, 2695
    %2415 = vst.msk [vmem:[%s2414] ss:$16 sm:$0x3] %vm2413, %v2412
    %s2416 = scalar_lea.vmem %s1, 2695
    %2417 = vst.msk [vmem:[%s2416] ss:$16 sm:$0xc] %vm2413, %v2412
    %s2418 = scalar_lea.vmem %s1, 2695
    %2419 = vst.msk [vmem:[%s2418] ss:$16 sm:$0x30] %vm2413, %v2412
    %s2420 = scalar_lea.vmem %s1, 2695
    %2421 = vst.msk [vmem:[%s2420] ss:$16 sm:$0xc0] %vm2413, %v2412
    %s2422 = scalar_lea.vmem [#allocation0], 176
    %v2423 = vld [vmem:[%s2422] sm:$0xff]
    %2424 = vrot.lane.b32.xlu0 %v2423, 100
    %v2425 = vpop.permute.xlu0 %2424
    %vm2426 = vcmask 31744
    %s2427 = scalar_lea.vmem %s1, 2823
    %2428 = vst.msk [vmem:[%s2427] ss:$16 sm:$0x3] %vm2426, %v2425
    %s2429 = scalar_lea.vmem %s1, 2823
    %2430 = vst.msk [vmem:[%s2429] ss:$16 sm:$0xc] %vm2426, %v2425
    %s2431 = scalar_lea.vmem %s1, 2823
    %2432 = vst.msk [vmem:[%s2431] ss:$16 sm:$0x30] %vm2426, %v2425
    %s2433 = scalar_lea.vmem %s1, 2823
    %2434 = vst.msk [vmem:[%s2433] ss:$16 sm:$0xc0] %vm2426, %v2425
    %s2435 = scalar_lea.vmem [#allocation0], 184
    %v2436 = vld [vmem:[%s2435] sm:$0xff]
    %2437 = vrot.lane.b32.xlu0 %v2436, 100
    %v2438 = vpop.permute.xlu0 %2437
    %vm2439 = vcmask 31744
    %s2440 = scalar_lea.vmem %s1, 2951
    %2441 = vst.msk [vmem:[%s2440] ss:$16 sm:$0x3] %vm2439, %v2438
    %s2442 = scalar_lea.vmem %s1, 2951
    %2443 = vst.msk [vmem:[%s2442] ss:$16 sm:$0xc] %vm2439, %v2438
    %s2444 = scalar_lea.vmem %s1, 2951
    %2445 = vst.msk [vmem:[%s2444] ss:$16 sm:$0x30] %vm2439, %v2438
    %s2446 = scalar_lea.vmem %s1, 2951
    %2447 = vst.msk [vmem:[%s2446] ss:$16 sm:$0xc0] %vm2439, %v2438
    %v2448 = vld [vmem:[#allocation0] sm:$0xff]
    %2449 = vrot.lane.b32.xlu0 %v2448, 96
    %v2450 = vpop.permute.xlu0 %2449
    %vm2451 = vcmask 31744
    %s2452 = scalar_lea.vmem %s1, 8
    %2453 = vst.msk [vmem:[%s2452] ss:$16 sm:$0x3] %vm2451, %v2450
    %s2454 = scalar_lea.vmem %s1, 8
    %2455 = vst.msk [vmem:[%s2454] ss:$16 sm:$0xc] %vm2451, %v2450
    %s2456 = scalar_lea.vmem %s1, 8
    %2457 = vst.msk [vmem:[%s2456] ss:$16 sm:$0x30] %vm2451, %v2450
    %s2458 = scalar_lea.vmem %s1, 8
    %2459 = vst.msk [vmem:[%s2458] ss:$16 sm:$0xc0] %vm2451, %v2450
    %s2460 = scalar_lea.vmem [#allocation0], 8
    %v2461 = vld [vmem:[%s2460] sm:$0xff]
    %2462 = vrot.lane.b32.xlu0 %v2461, 96
    %v2463 = vpop.permute.xlu0 %2462
    %vm2464 = vcmask 31744
    %s2465 = scalar_lea.vmem %s1, 136
    %2466 = vst.msk [vmem:[%s2465] ss:$16 sm:$0x3] %vm2464, %v2463
    %s2467 = scalar_lea.vmem %s1, 136
    %2468 = vst.msk [vmem:[%s2467] ss:$16 sm:$0xc] %vm2464, %v2463
    %s2469 = scalar_lea.vmem %s1, 136
    %2470 = vst.msk [vmem:[%s2469] ss:$16 sm:$0x30] %vm2464, %v2463
    %s2471 = scalar_lea.vmem %s1, 136
    %2472 = vst.msk [vmem:[%s2471] ss:$16 sm:$0xc0] %vm2464, %v2463
    %s2473 = scalar_lea.vmem [#allocation0], 16
    %v2474 = vld [vmem:[%s2473] sm:$0xff]
    %2475 = vrot.lane.b32.xlu0 %v2474, 96
    %v2476 = vpop.permute.xlu0 %2475
    %vm2477 = vcmask 31744
    %s2478 = scalar_lea.vmem %s1, 264
    %2479 = vst.msk [vmem:[%s2478] ss:$16 sm:$0x3] %vm2477, %v2476
    %s2480 = scalar_lea.vmem %s1, 264
    %2481 = vst.msk [vmem:[%s2480] ss:$16 sm:$0xc] %vm2477, %v2476
    %s2482 = scalar_lea.vmem %s1, 264
    %2483 = vst.msk [vmem:[%s2482] ss:$16 sm:$0x30] %vm2477, %v2476
    %s2484 = scalar_lea.vmem %s1, 264
    %2485 = vst.msk [vmem:[%s2484] ss:$16 sm:$0xc0] %vm2477, %v2476
    %s2486 = scalar_lea.vmem [#allocation0], 24
    %v2487 = vld [vmem:[%s2486] sm:$0xff]
    %2488 = vrot.lane.b32.xlu0 %v2487, 96
    %v2489 = vpop.permute.xlu0 %2488
    %vm2490 = vcmask 31744
    %s2491 = scalar_lea.vmem %s1, 392
    %2492 = vst.msk [vmem:[%s2491] ss:$16 sm:$0x3] %vm2490, %v2489
    %s2493 = scalar_lea.vmem %s1, 392
    %2494 = vst.msk [vmem:[%s2493] ss:$16 sm:$0xc] %vm2490, %v2489
    %s2495 = scalar_lea.vmem %s1, 392
    %2496 = vst.msk [vmem:[%s2495] ss:$16 sm:$0x30] %vm2490, %v2489
    %s2497 = scalar_lea.vmem %s1, 392
    %2498 = vst.msk [vmem:[%s2497] ss:$16 sm:$0xc0] %vm2490, %v2489
    %s2499 = scalar_lea.vmem [#allocation0], 32
    %v2500 = vld [vmem:[%s2499] sm:$0xff]
    %2501 = vrot.lane.b32.xlu0 %v2500, 96
    %v2502 = vpop.permute.xlu0 %2501
    %vm2503 = vcmask 31744
    %s2504 = scalar_lea.vmem %s1, 520
    %2505 = vst.msk [vmem:[%s2504] ss:$16 sm:$0x3] %vm2503, %v2502
    %s2506 = scalar_lea.vmem %s1, 520
    %2507 = vst.msk [vmem:[%s2506] ss:$16 sm:$0xc] %vm2503, %v2502
    %s2508 = scalar_lea.vmem %s1, 520
    %2509 = vst.msk [vmem:[%s2508] ss:$16 sm:$0x30] %vm2503, %v2502
    %s2510 = scalar_lea.vmem %s1, 520
    %2511 = vst.msk [vmem:[%s2510] ss:$16 sm:$0xc0] %vm2503, %v2502
    %s2512 = scalar_lea.vmem [#allocation0], 40
    %v2513 = vld [vmem:[%s2512] sm:$0xff]
    %2514 = vrot.lane.b32.xlu0 %v2513, 96
    %v2515 = vpop.permute.xlu0 %2514
    %vm2516 = vcmask 31744
    %s2517 = scalar_lea.vmem %s1, 648
    %2518 = vst.msk [vmem:[%s2517] ss:$16 sm:$0x3] %vm2516, %v2515
    %s2519 = scalar_lea.vmem %s1, 648
    %2520 = vst.msk [vmem:[%s2519] ss:$16 sm:$0xc] %vm2516, %v2515
    %s2521 = scalar_lea.vmem %s1, 648
    %2522 = vst.msk [vmem:[%s2521] ss:$16 sm:$0x30] %vm2516, %v2515
    %s2523 = scalar_lea.vmem %s1, 648
    %2524 = vst.msk [vmem:[%s2523] ss:$16 sm:$0xc0] %vm2516, %v2515
    %s2525 = scalar_lea.vmem [#allocation0], 48
    %v2526 = vld [vmem:[%s2525] sm:$0xff]
    %2527 = vrot.lane.b32.xlu0 %v2526, 96
    %v2528 = vpop.permute.xlu0 %2527
    %vm2529 = vcmask 31744
    %s2530 = scalar_lea.vmem %s1, 776
    %2531 = vst.msk [vmem:[%s2530] ss:$16 sm:$0x3] %vm2529, %v2528
    %s2532 = scalar_lea.vmem %s1, 776
    %2533 = vst.msk [vmem:[%s2532] ss:$16 sm:$0xc] %vm2529, %v2528
    %s2534 = scalar_lea.vmem %s1, 776
    %2535 = vst.msk [vmem:[%s2534] ss:$16 sm:$0x30] %vm2529, %v2528
    %s2536 = scalar_lea.vmem %s1, 776
    %2537 = vst.msk [vmem:[%s2536] ss:$16 sm:$0xc0] %vm2529, %v2528
    %s2538 = scalar_lea.vmem [#allocation0], 56
    %v2539 = vld [vmem:[%s2538] sm:$0xff]
    %2540 = vrot.lane.b32.xlu0 %v2539, 96
    %v2541 = vpop.permute.xlu0 %2540
    %vm2542 = vcmask 31744
    %s2543 = scalar_lea.vmem %s1, 904
    %2544 = vst.msk [vmem:[%s2543] ss:$16 sm:$0x3] %vm2542, %v2541
    %s2545 = scalar_lea.vmem %s1, 904
    %2546 = vst.msk [vmem:[%s2545] ss:$16 sm:$0xc] %vm2542, %v2541
    %s2547 = scalar_lea.vmem %s1, 904
    %2548 = vst.msk [vmem:[%s2547] ss:$16 sm:$0x30] %vm2542, %v2541
    %s2549 = scalar_lea.vmem %s1, 904
    %2550 = vst.msk [vmem:[%s2549] ss:$16 sm:$0xc0] %vm2542, %v2541
    %s2551 = scalar_lea.vmem [#allocation0], 64
    %v2552 = vld [vmem:[%s2551] sm:$0xff]
    %2553 = vrot.lane.b32.xlu0 %v2552, 96
    %v2554 = vpop.permute.xlu0 %2553
    %vm2555 = vcmask 31744
    %s2556 = scalar_lea.vmem %s1, 1032
    %2557 = vst.msk [vmem:[%s2556] ss:$16 sm:$0x3] %vm2555, %v2554
    %s2558 = scalar_lea.vmem %s1, 1032
    %2559 = vst.msk [vmem:[%s2558] ss:$16 sm:$0xc] %vm2555, %v2554
    %s2560 = scalar_lea.vmem %s1, 1032
    %2561 = vst.msk [vmem:[%s2560] ss:$16 sm:$0x30] %vm2555, %v2554
    %s2562 = scalar_lea.vmem %s1, 1032
    %2563 = vst.msk [vmem:[%s2562] ss:$16 sm:$0xc0] %vm2555, %v2554
    %s2564 = scalar_lea.vmem [#allocation0], 72
    %v2565 = vld [vmem:[%s2564] sm:$0xff]
    %2566 = vrot.lane.b32.xlu0 %v2565, 96
    %v2567 = vpop.permute.xlu0 %2566
    %vm2568 = vcmask 31744
    %s2569 = scalar_lea.vmem %s1, 1160
    %2570 = vst.msk [vmem:[%s2569] ss:$16 sm:$0x3] %vm2568, %v2567
    %s2571 = scalar_lea.vmem %s1, 1160
    %2572 = vst.msk [vmem:[%s2571] ss:$16 sm:$0xc] %vm2568, %v2567
    %s2573 = scalar_lea.vmem %s1, 1160
    %2574 = vst.msk [vmem:[%s2573] ss:$16 sm:$0x30] %vm2568, %v2567
    %s2575 = scalar_lea.vmem %s1, 1160
    %2576 = vst.msk [vmem:[%s2575] ss:$16 sm:$0xc0] %vm2568, %v2567
    %s2577 = scalar_lea.vmem [#allocation0], 80
    %v2578 = vld [vmem:[%s2577] sm:$0xff]
    %2579 = vrot.lane.b32.xlu0 %v2578, 96
    %v2580 = vpop.permute.xlu0 %2579
    %vm2581 = vcmask 31744
    %s2582 = scalar_lea.vmem %s1, 1288
    %2583 = vst.msk [vmem:[%s2582] ss:$16 sm:$0x3] %vm2581, %v2580
    %s2584 = scalar_lea.vmem %s1, 1288
    %2585 = vst.msk [vmem:[%s2584] ss:$16 sm:$0xc] %vm2581, %v2580
    %s2586 = scalar_lea.vmem %s1, 1288
    %2587 = vst.msk [vmem:[%s2586] ss:$16 sm:$0x30] %vm2581, %v2580
    %s2588 = scalar_lea.vmem %s1, 1288
    %2589 = vst.msk [vmem:[%s2588] ss:$16 sm:$0xc0] %vm2581, %v2580
    %s2590 = scalar_lea.vmem [#allocation0], 88
    %v2591 = vld [vmem:[%s2590] sm:$0xff]
    %2592 = vrot.lane.b32.xlu0 %v2591, 96
    %v2593 = vpop.permute.xlu0 %2592
    %vm2594 = vcmask 31744
    %s2595 = scalar_lea.vmem %s1, 1416
    %2596 = vst.msk [vmem:[%s2595] ss:$16 sm:$0x3] %vm2594, %v2593
    %s2597 = scalar_lea.vmem %s1, 1416
    %2598 = vst.msk [vmem:[%s2597] ss:$16 sm:$0xc] %vm2594, %v2593
    %s2599 = scalar_lea.vmem %s1, 1416
    %2600 = vst.msk [vmem:[%s2599] ss:$16 sm:$0x30] %vm2594, %v2593
    %s2601 = scalar_lea.vmem %s1, 1416
    %2602 = vst.msk [vmem:[%s2601] ss:$16 sm:$0xc0] %vm2594, %v2593
    %s2603 = scalar_lea.vmem [#allocation0], 96
    %v2604 = vld [vmem:[%s2603] sm:$0xff]
    %2605 = vrot.lane.b32.xlu0 %v2604, 96
    %v2606 = vpop.permute.xlu0 %2605
    %vm2607 = vcmask 31744
    %s2608 = scalar_lea.vmem %s1, 1544
    %2609 = vst.msk [vmem:[%s2608] ss:$16 sm:$0x3] %vm2607, %v2606
    %s2610 = scalar_lea.vmem %s1, 1544
    %2611 = vst.msk [vmem:[%s2610] ss:$16 sm:$0xc] %vm2607, %v2606
    %s2612 = scalar_lea.vmem %s1, 1544
    %2613 = vst.msk [vmem:[%s2612] ss:$16 sm:$0x30] %vm2607, %v2606
    %s2614 = scalar_lea.vmem %s1, 1544
    %2615 = vst.msk [vmem:[%s2614] ss:$16 sm:$0xc0] %vm2607, %v2606
    %s2616 = scalar_lea.vmem [#allocation0], 104
    %v2617 = vld [vmem:[%s2616] sm:$0xff]
    %2618 = vrot.lane.b32.xlu0 %v2617, 96
    %v2619 = vpop.permute.xlu0 %2618
    %vm2620 = vcmask 31744
    %s2621 = scalar_lea.vmem %s1, 1672
    %2622 = vst.msk [vmem:[%s2621] ss:$16 sm:$0x3] %vm2620, %v2619
    %s2623 = scalar_lea.vmem %s1, 1672
    %2624 = vst.msk [vmem:[%s2623] ss:$16 sm:$0xc] %vm2620, %v2619
    %s2625 = scalar_lea.vmem %s1, 1672
    %2626 = vst.msk [vmem:[%s2625] ss:$16 sm:$0x30] %vm2620, %v2619
    %s2627 = scalar_lea.vmem %s1, 1672
    %2628 = vst.msk [vmem:[%s2627] ss:$16 sm:$0xc0] %vm2620, %v2619
    %s2629 = scalar_lea.vmem [#allocation0], 112
    %v2630 = vld [vmem:[%s2629] sm:$0xff]
    %2631 = vrot.lane.b32.xlu0 %v2630, 96
    %v2632 = vpop.permute.xlu0 %2631
    %vm2633 = vcmask 31744
    %s2634 = scalar_lea.vmem %s1, 1800
    %2635 = vst.msk [vmem:[%s2634] ss:$16 sm:$0x3] %vm2633, %v2632
    %s2636 = scalar_lea.vmem %s1, 1800
    %2637 = vst.msk [vmem:[%s2636] ss:$16 sm:$0xc] %vm2633, %v2632
    %s2638 = scalar_lea.vmem %s1, 1800
    %2639 = vst.msk [vmem:[%s2638] ss:$16 sm:$0x30] %vm2633, %v2632
    %s2640 = scalar_lea.vmem %s1, 1800
    %2641 = vst.msk [vmem:[%s2640] ss:$16 sm:$0xc0] %vm2633, %v2632
    %s2642 = scalar_lea.vmem [#allocation0], 120
    %v2643 = vld [vmem:[%s2642] sm:$0xff]
    %2644 = vrot.lane.b32.xlu0 %v2643, 96
    %v2645 = vpop.permute.xlu0 %2644
    %vm2646 = vcmask 31744
    %s2647 = scalar_lea.vmem %s1, 1928
    %2648 = vst.msk [vmem:[%s2647] ss:$16 sm:$0x3] %vm2646, %v2645
    %s2649 = scalar_lea.vmem %s1, 1928
    %2650 = vst.msk [vmem:[%s2649] ss:$16 sm:$0xc] %vm2646, %v2645
    %s2651 = scalar_lea.vmem %s1, 1928
    %2652 = vst.msk [vmem:[%s2651] ss:$16 sm:$0x30] %vm2646, %v2645
    %s2653 = scalar_lea.vmem %s1, 1928
    %2654 = vst.msk [vmem:[%s2653] ss:$16 sm:$0xc0] %vm2646, %v2645
    %s2655 = scalar_lea.vmem [#allocation0], 128
    %v2656 = vld [vmem:[%s2655] sm:$0xff]
    %2657 = vrot.lane.b32.xlu0 %v2656, 96
    %v2658 = vpop.permute.xlu0 %2657
    %vm2659 = vcmask 31744
    %s2660 = scalar_lea.vmem %s1, 2056
    %2661 = vst.msk [vmem:[%s2660] ss:$16 sm:$0x3] %vm2659, %v2658
    %s2662 = scalar_lea.vmem %s1, 2056
    %2663 = vst.msk [vmem:[%s2662] ss:$16 sm:$0xc] %vm2659, %v2658
    %s2664 = scalar_lea.vmem %s1, 2056
    %2665 = vst.msk [vmem:[%s2664] ss:$16 sm:$0x30] %vm2659, %v2658
    %s2666 = scalar_lea.vmem %s1, 2056
    %2667 = vst.msk [vmem:[%s2666] ss:$16 sm:$0xc0] %vm2659, %v2658
    %s2668 = scalar_lea.vmem [#allocation0], 136
    %v2669 = vld [vmem:[%s2668] sm:$0xff]
    %2670 = vrot.lane.b32.xlu0 %v2669, 96
    %v2671 = vpop.permute.xlu0 %2670
    %vm2672 = vcmask 31744
    %s2673 = scalar_lea.vmem %s1, 2184
    %2674 = vst.msk [vmem:[%s2673] ss:$16 sm:$0x3] %vm2672, %v2671
    %s2675 = scalar_lea.vmem %s1, 2184
    %2676 = vst.msk [vmem:[%s2675] ss:$16 sm:$0xc] %vm2672, %v2671
    %s2677 = scalar_lea.vmem %s1, 2184
    %2678 = vst.msk [vmem:[%s2677] ss:$16 sm:$0x30] %vm2672, %v2671
    %s2679 = scalar_lea.vmem %s1, 2184
    %2680 = vst.msk [vmem:[%s2679] ss:$16 sm:$0xc0] %vm2672, %v2671
    %s2681 = scalar_lea.vmem [#allocation0], 144
    %v2682 = vld [vmem:[%s2681] sm:$0xff]
    %2683 = vrot.lane.b32.xlu0 %v2682, 96
    %v2684 = vpop.permute.xlu0 %2683
    %vm2685 = vcmask 31744
    %s2686 = scalar_lea.vmem %s1, 2312
    %2687 = vst.msk [vmem:[%s2686] ss:$16 sm:$0x3] %vm2685, %v2684
    %s2688 = scalar_lea.vmem %s1, 2312
    %2689 = vst.msk [vmem:[%s2688] ss:$16 sm:$0xc] %vm2685, %v2684
    %s2690 = scalar_lea.vmem %s1, 2312
    %2691 = vst.msk [vmem:[%s2690] ss:$16 sm:$0x30] %vm2685, %v2684
    %s2692 = scalar_lea.vmem %s1, 2312
    %2693 = vst.msk [vmem:[%s2692] ss:$16 sm:$0xc0] %vm2685, %v2684
    %s2694 = scalar_lea.vmem [#allocation0], 152
    %v2695 = vld [vmem:[%s2694] sm:$0xff]
    %2696 = vrot.lane.b32.xlu0 %v2695, 96
    %v2697 = vpop.permute.xlu0 %2696
    %vm2698 = vcmask 31744
    %s2699 = scalar_lea.vmem %s1, 2440
    %2700 = vst.msk [vmem:[%s2699] ss:$16 sm:$0x3] %vm2698, %v2697
    %s2701 = scalar_lea.vmem %s1, 2440
    %2702 = vst.msk [vmem:[%s2701] ss:$16 sm:$0xc] %vm2698, %v2697
    %s2703 = scalar_lea.vmem %s1, 2440
    %2704 = vst.msk [vmem:[%s2703] ss:$16 sm:$0x30] %vm2698, %v2697
    %s2705 = scalar_lea.vmem %s1, 2440
    %2706 = vst.msk [vmem:[%s2705] ss:$16 sm:$0xc0] %vm2698, %v2697
    %s2707 = scalar_lea.vmem [#allocation0], 160
    %v2708 = vld [vmem:[%s2707] sm:$0xff]
    %2709 = vrot.lane.b32.xlu0 %v2708, 96
    %v2710 = vpop.permute.xlu0 %2709
    %vm2711 = vcmask 31744
    %s2712 = scalar_lea.vmem %s1, 2568
    %2713 = vst.msk [vmem:[%s2712] ss:$16 sm:$0x3] %vm2711, %v2710
    %s2714 = scalar_lea.vmem %s1, 2568
    %2715 = vst.msk [vmem:[%s2714] ss:$16 sm:$0xc] %vm2711, %v2710
    %s2716 = scalar_lea.vmem %s1, 2568
    %2717 = vst.msk [vmem:[%s2716] ss:$16 sm:$0x30] %vm2711, %v2710
    %s2718 = scalar_lea.vmem %s1, 2568
    %2719 = vst.msk [vmem:[%s2718] ss:$16 sm:$0xc0] %vm2711, %v2710
    %s2720 = scalar_lea.vmem [#allocation0], 168
    %v2721 = vld [vmem:[%s2720] sm:$0xff]
    %2722 = vrot.lane.b32.xlu0 %v2721, 96
    %v2723 = vpop.permute.xlu0 %2722
    %vm2724 = vcmask 31744
    %s2725 = scalar_lea.vmem %s1, 2696
    %2726 = vst.msk [vmem:[%s2725] ss:$16 sm:$0x3] %vm2724, %v2723
    %s2727 = scalar_lea.vmem %s1, 2696
    %2728 = vst.msk [vmem:[%s2727] ss:$16 sm:$0xc] %vm2724, %v2723
    %s2729 = scalar_lea.vmem %s1, 2696
    %2730 = vst.msk [vmem:[%s2729] ss:$16 sm:$0x30] %vm2724, %v2723
    %s2731 = scalar_lea.vmem %s1, 2696
    %2732 = vst.msk [vmem:[%s2731] ss:$16 sm:$0xc0] %vm2724, %v2723
    %s2733 = scalar_lea.vmem [#allocation0], 176
    %v2734 = vld [vmem:[%s2733] sm:$0xff]
    %2735 = vrot.lane.b32.xlu0 %v2734, 96
    %v2736 = vpop.permute.xlu0 %2735
    %vm2737 = vcmask 31744
    %s2738 = scalar_lea.vmem %s1, 2824
    %2739 = vst.msk [vmem:[%s2738] ss:$16 sm:$0x3] %vm2737, %v2736
    %s2740 = scalar_lea.vmem %s1, 2824
    %2741 = vst.msk [vmem:[%s2740] ss:$16 sm:$0xc] %vm2737, %v2736
    %s2742 = scalar_lea.vmem %s1, 2824
    %2743 = vst.msk [vmem:[%s2742] ss:$16 sm:$0x30] %vm2737, %v2736
    %s2744 = scalar_lea.vmem %s1, 2824
    %2745 = vst.msk [vmem:[%s2744] ss:$16 sm:$0xc0] %vm2737, %v2736
    %s2746 = scalar_lea.vmem [#allocation0], 184
    %v2747 = vld [vmem:[%s2746] sm:$0xff]
    %2748 = vrot.lane.b32.xlu0 %v2747, 96
    %v2749 = vpop.permute.xlu0 %2748
    %vm2750 = vcmask 31744
    %s2751 = scalar_lea.vmem %s1, 2952
    %2752 = vst.msk [vmem:[%s2751] ss:$16 sm:$0x3] %vm2750, %v2749
    %s2753 = scalar_lea.vmem %s1, 2952
    %2754 = vst.msk [vmem:[%s2753] ss:$16 sm:$0xc] %vm2750, %v2749
    %s2755 = scalar_lea.vmem %s1, 2952
    %2756 = vst.msk [vmem:[%s2755] ss:$16 sm:$0x30] %vm2750, %v2749
    %s2757 = scalar_lea.vmem %s1, 2952
    %2758 = vst.msk [vmem:[%s2757] ss:$16 sm:$0xc0] %vm2750, %v2749
    %v2759 = vld [vmem:[#allocation0] sm:$0xff]
    %2760 = vrot.lane.b32.xlu0 %v2759, 92
    %v2761 = vpop.permute.xlu0 %2760
    %vm2762 = vcmask 31744
    %s2763 = scalar_lea.vmem %s1, 9
    %2764 = vst.msk [vmem:[%s2763] ss:$16 sm:$0x3] %vm2762, %v2761
    %s2765 = scalar_lea.vmem %s1, 9
    %2766 = vst.msk [vmem:[%s2765] ss:$16 sm:$0xc] %vm2762, %v2761
    %s2767 = scalar_lea.vmem %s1, 9
    %2768 = vst.msk [vmem:[%s2767] ss:$16 sm:$0x30] %vm2762, %v2761
    %s2769 = scalar_lea.vmem %s1, 9
    %2770 = vst.msk [vmem:[%s2769] ss:$16 sm:$0xc0] %vm2762, %v2761
    %s2771 = scalar_lea.vmem [#allocation0], 8
    %v2772 = vld [vmem:[%s2771] sm:$0xff]
    %2773 = vrot.lane.b32.xlu0 %v2772, 92
    %v2774 = vpop.permute.xlu0 %2773
    %vm2775 = vcmask 31744
    %s2776 = scalar_lea.vmem %s1, 137
    %2777 = vst.msk [vmem:[%s2776] ss:$16 sm:$0x3] %vm2775, %v2774
    %s2778 = scalar_lea.vmem %s1, 137
    %2779 = vst.msk [vmem:[%s2778] ss:$16 sm:$0xc] %vm2775, %v2774
    %s2780 = scalar_lea.vmem %s1, 137
    %2781 = vst.msk [vmem:[%s2780] ss:$16 sm:$0x30] %vm2775, %v2774
    %s2782 = scalar_lea.vmem %s1, 137
    %2783 = vst.msk [vmem:[%s2782] ss:$16 sm:$0xc0] %vm2775, %v2774
    %s2784 = scalar_lea.vmem [#allocation0], 16
    %v2785 = vld [vmem:[%s2784] sm:$0xff]
    %2786 = vrot.lane.b32.xlu0 %v2785, 92
    %v2787 = vpop.permute.xlu0 %2786
    %vm2788 = vcmask 31744
    %s2789 = scalar_lea.vmem %s1, 265
    %2790 = vst.msk [vmem:[%s2789] ss:$16 sm:$0x3] %vm2788, %v2787
    %s2791 = scalar_lea.vmem %s1, 265
    %2792 = vst.msk [vmem:[%s2791] ss:$16 sm:$0xc] %vm2788, %v2787
    %s2793 = scalar_lea.vmem %s1, 265
    %2794 = vst.msk [vmem:[%s2793] ss:$16 sm:$0x30] %vm2788, %v2787
    %s2795 = scalar_lea.vmem %s1, 265
    %2796 = vst.msk [vmem:[%s2795] ss:$16 sm:$0xc0] %vm2788, %v2787
    %s2797 = scalar_lea.vmem [#allocation0], 24
    %v2798 = vld [vmem:[%s2797] sm:$0xff]
    %2799 = vrot.lane.b32.xlu0 %v2798, 92
    %v2800 = vpop.permute.xlu0 %2799
    %vm2801 = vcmask 31744
    %s2802 = scalar_lea.vmem %s1, 393
    %2803 = vst.msk [vmem:[%s2802] ss:$16 sm:$0x3] %vm2801, %v2800
    %s2804 = scalar_lea.vmem %s1, 393
    %2805 = vst.msk [vmem:[%s2804] ss:$16 sm:$0xc] %vm2801, %v2800
    %s2806 = scalar_lea.vmem %s1, 393
    %2807 = vst.msk [vmem:[%s2806] ss:$16 sm:$0x30] %vm2801, %v2800
    %s2808 = scalar_lea.vmem %s1, 393
    %2809 = vst.msk [vmem:[%s2808] ss:$16 sm:$0xc0] %vm2801, %v2800
    %s2810 = scalar_lea.vmem [#allocation0], 32
    %v2811 = vld [vmem:[%s2810] sm:$0xff]
    %2812 = vrot.lane.b32.xlu0 %v2811, 92
    %v2813 = vpop.permute.xlu0 %2812
    %vm2814 = vcmask 31744
    %s2815 = scalar_lea.vmem %s1, 521
    %2816 = vst.msk [vmem:[%s2815] ss:$16 sm:$0x3] %vm2814, %v2813
    %s2817 = scalar_lea.vmem %s1, 521
    %2818 = vst.msk [vmem:[%s2817] ss:$16 sm:$0xc] %vm2814, %v2813
    %s2819 = scalar_lea.vmem %s1, 521
    %2820 = vst.msk [vmem:[%s2819] ss:$16 sm:$0x30] %vm2814, %v2813
    %s2821 = scalar_lea.vmem %s1, 521
    %2822 = vst.msk [vmem:[%s2821] ss:$16 sm:$0xc0] %vm2814, %v2813
    %s2823 = scalar_lea.vmem [#allocation0], 40
    %v2824 = vld [vmem:[%s2823] sm:$0xff]
    %2825 = vrot.lane.b32.xlu0 %v2824, 92
    %v2826 = vpop.permute.xlu0 %2825
    %vm2827 = vcmask 31744
    %s2828 = scalar_lea.vmem %s1, 649
    %2829 = vst.msk [vmem:[%s2828] ss:$16 sm:$0x3] %vm2827, %v2826
    %s2830 = scalar_lea.vmem %s1, 649
    %2831 = vst.msk [vmem:[%s2830] ss:$16 sm:$0xc] %vm2827, %v2826
    %s2832 = scalar_lea.vmem %s1, 649
    %2833 = vst.msk [vmem:[%s2832] ss:$16 sm:$0x30] %vm2827, %v2826
    %s2834 = scalar_lea.vmem %s1, 649
    %2835 = vst.msk [vmem:[%s2834] ss:$16 sm:$0xc0] %vm2827, %v2826
    %s2836 = scalar_lea.vmem [#allocation0], 48
    %v2837 = vld [vmem:[%s2836] sm:$0xff]
    %2838 = vrot.lane.b32.xlu0 %v2837, 92
    %v2839 = vpop.permute.xlu0 %2838
    %vm2840 = vcmask 31744
    %s2841 = scalar_lea.vmem %s1, 777
    %2842 = vst.msk [vmem:[%s2841] ss:$16 sm:$0x3] %vm2840, %v2839
    %s2843 = scalar_lea.vmem %s1, 777
    %2844 = vst.msk [vmem:[%s2843] ss:$16 sm:$0xc] %vm2840, %v2839
    %s2845 = scalar_lea.vmem %s1, 777
    %2846 = vst.msk [vmem:[%s2845] ss:$16 sm:$0x30] %vm2840, %v2839
    %s2847 = scalar_lea.vmem %s1, 777
    %2848 = vst.msk [vmem:[%s2847] ss:$16 sm:$0xc0] %vm2840, %v2839
    %s2849 = scalar_lea.vmem [#allocation0], 56
    %v2850 = vld [vmem:[%s2849] sm:$0xff]
    %2851 = vrot.lane.b32.xlu0 %v2850, 92
    %v2852 = vpop.permute.xlu0 %2851
    %vm2853 = vcmask 31744
    %s2854 = scalar_lea.vmem %s1, 905
    %2855 = vst.msk [vmem:[%s2854] ss:$16 sm:$0x3] %vm2853, %v2852
    %s2856 = scalar_lea.vmem %s1, 905
    %2857 = vst.msk [vmem:[%s2856] ss:$16 sm:$0xc] %vm2853, %v2852
    %s2858 = scalar_lea.vmem %s1, 905
    %2859 = vst.msk [vmem:[%s2858] ss:$16 sm:$0x30] %vm2853, %v2852
    %s2860 = scalar_lea.vmem %s1, 905
    %2861 = vst.msk [vmem:[%s2860] ss:$16 sm:$0xc0] %vm2853, %v2852
    %s2862 = scalar_lea.vmem [#allocation0], 64
    %v2863 = vld [vmem:[%s2862] sm:$0xff]
    %2864 = vrot.lane.b32.xlu0 %v2863, 92
    %v2865 = vpop.permute.xlu0 %2864
    %vm2866 = vcmask 31744
    %s2867 = scalar_lea.vmem %s1, 1033
    %2868 = vst.msk [vmem:[%s2867] ss:$16 sm:$0x3] %vm2866, %v2865
    %s2869 = scalar_lea.vmem %s1, 1033
    %2870 = vst.msk [vmem:[%s2869] ss:$16 sm:$0xc] %vm2866, %v2865
    %s2871 = scalar_lea.vmem %s1, 1033
    %2872 = vst.msk [vmem:[%s2871] ss:$16 sm:$0x30] %vm2866, %v2865
    %s2873 = scalar_lea.vmem %s1, 1033
    %2874 = vst.msk [vmem:[%s2873] ss:$16 sm:$0xc0] %vm2866, %v2865
    %s2875 = scalar_lea.vmem [#allocation0], 72
    %v2876 = vld [vmem:[%s2875] sm:$0xff]
    %2877 = vrot.lane.b32.xlu0 %v2876, 92
    %v2878 = vpop.permute.xlu0 %2877
    %vm2879 = vcmask 31744
    %s2880 = scalar_lea.vmem %s1, 1161
    %2881 = vst.msk [vmem:[%s2880] ss:$16 sm:$0x3] %vm2879, %v2878
    %s2882 = scalar_lea.vmem %s1, 1161
    %2883 = vst.msk [vmem:[%s2882] ss:$16 sm:$0xc] %vm2879, %v2878
    %s2884 = scalar_lea.vmem %s1, 1161
    %2885 = vst.msk [vmem:[%s2884] ss:$16 sm:$0x30] %vm2879, %v2878
    %s2886 = scalar_lea.vmem %s1, 1161
    %2887 = vst.msk [vmem:[%s2886] ss:$16 sm:$0xc0] %vm2879, %v2878
    %s2888 = scalar_lea.vmem [#allocation0], 80
    %v2889 = vld [vmem:[%s2888] sm:$0xff]
    %2890 = vrot.lane.b32.xlu0 %v2889, 92
    %v2891 = vpop.permute.xlu0 %2890
    %vm2892 = vcmask 31744
    %s2893 = scalar_lea.vmem %s1, 1289
    %2894 = vst.msk [vmem:[%s2893] ss:$16 sm:$0x3] %vm2892, %v2891
    %s2895 = scalar_lea.vmem %s1, 1289
    %2896 = vst.msk [vmem:[%s2895] ss:$16 sm:$0xc] %vm2892, %v2891
    %s2897 = scalar_lea.vmem %s1, 1289
    %2898 = vst.msk [vmem:[%s2897] ss:$16 sm:$0x30] %vm2892, %v2891
    %s2899 = scalar_lea.vmem %s1, 1289
    %2900 = vst.msk [vmem:[%s2899] ss:$16 sm:$0xc0] %vm2892, %v2891
    %s2901 = scalar_lea.vmem [#allocation0], 88
    %v2902 = vld [vmem:[%s2901] sm:$0xff]
    %2903 = vrot.lane.b32.xlu0 %v2902, 92
    %v2904 = vpop.permute.xlu0 %2903
    %vm2905 = vcmask 31744
    %s2906 = scalar_lea.vmem %s1, 1417
    %2907 = vst.msk [vmem:[%s2906] ss:$16 sm:$0x3] %vm2905, %v2904
    %s2908 = scalar_lea.vmem %s1, 1417
    %2909 = vst.msk [vmem:[%s2908] ss:$16 sm:$0xc] %vm2905, %v2904
    %s2910 = scalar_lea.vmem %s1, 1417
    %2911 = vst.msk [vmem:[%s2910] ss:$16 sm:$0x30] %vm2905, %v2904
    %s2912 = scalar_lea.vmem %s1, 1417
    %2913 = vst.msk [vmem:[%s2912] ss:$16 sm:$0xc0] %vm2905, %v2904
    %s2914 = scalar_lea.vmem [#allocation0], 96
    %v2915 = vld [vmem:[%s2914] sm:$0xff]
    %2916 = vrot.lane.b32.xlu0 %v2915, 92
    %v2917 = vpop.permute.xlu0 %2916
    %vm2918 = vcmask 31744
    %s2919 = scalar_lea.vmem %s1, 1545
    %2920 = vst.msk [vmem:[%s2919] ss:$16 sm:$0x3] %vm2918, %v2917
    %s2921 = scalar_lea.vmem %s1, 1545
    %2922 = vst.msk [vmem:[%s2921] ss:$16 sm:$0xc] %vm2918, %v2917
    %s2923 = scalar_lea.vmem %s1, 1545
    %2924 = vst.msk [vmem:[%s2923] ss:$16 sm:$0x30] %vm2918, %v2917
    %s2925 = scalar_lea.vmem %s1, 1545
    %2926 = vst.msk [vmem:[%s2925] ss:$16 sm:$0xc0] %vm2918, %v2917
    %s2927 = scalar_lea.vmem [#allocation0], 104
    %v2928 = vld [vmem:[%s2927] sm:$0xff]
    %2929 = vrot.lane.b32.xlu0 %v2928, 92
    %v2930 = vpop.permute.xlu0 %2929
    %vm2931 = vcmask 31744
    %s2932 = scalar_lea.vmem %s1, 1673
    %2933 = vst.msk [vmem:[%s2932] ss:$16 sm:$0x3] %vm2931, %v2930
    %s2934 = scalar_lea.vmem %s1, 1673
    %2935 = vst.msk [vmem:[%s2934] ss:$16 sm:$0xc] %vm2931, %v2930
    %s2936 = scalar_lea.vmem %s1, 1673
    %2937 = vst.msk [vmem:[%s2936] ss:$16 sm:$0x30] %vm2931, %v2930
    %s2938 = scalar_lea.vmem %s1, 1673
    %2939 = vst.msk [vmem:[%s2938] ss:$16 sm:$0xc0] %vm2931, %v2930
    %s2940 = scalar_lea.vmem [#allocation0], 112
    %v2941 = vld [vmem:[%s2940] sm:$0xff]
    %2942 = vrot.lane.b32.xlu0 %v2941, 92
    %v2943 = vpop.permute.xlu0 %2942
    %vm2944 = vcmask 31744
    %s2945 = scalar_lea.vmem %s1, 1801
    %2946 = vst.msk [vmem:[%s2945] ss:$16 sm:$0x3] %vm2944, %v2943
    %s2947 = scalar_lea.vmem %s1, 1801
    %2948 = vst.msk [vmem:[%s2947] ss:$16 sm:$0xc] %vm2944, %v2943
    %s2949 = scalar_lea.vmem %s1, 1801
    %2950 = vst.msk [vmem:[%s2949] ss:$16 sm:$0x30] %vm2944, %v2943
    %s2951 = scalar_lea.vmem %s1, 1801
    %2952 = vst.msk [vmem:[%s2951] ss:$16 sm:$0xc0] %vm2944, %v2943
    %s2953 = scalar_lea.vmem [#allocation0], 120
    %v2954 = vld [vmem:[%s2953] sm:$0xff]
    %2955 = vrot.lane.b32.xlu0 %v2954, 92
    %v2956 = vpop.permute.xlu0 %2955
    %vm2957 = vcmask 31744
    %s2958 = scalar_lea.vmem %s1, 1929
    %2959 = vst.msk [vmem:[%s2958] ss:$16 sm:$0x3] %vm2957, %v2956
    %s2960 = scalar_lea.vmem %s1, 1929
    %2961 = vst.msk [vmem:[%s2960] ss:$16 sm:$0xc] %vm2957, %v2956
    %s2962 = scalar_lea.vmem %s1, 1929
    %2963 = vst.msk [vmem:[%s2962] ss:$16 sm:$0x30] %vm2957, %v2956
    %s2964 = scalar_lea.vmem %s1, 1929
    %2965 = vst.msk [vmem:[%s2964] ss:$16 sm:$0xc0] %vm2957, %v2956
    %s2966 = scalar_lea.vmem [#allocation0], 128
    %v2967 = vld [vmem:[%s2966] sm:$0xff]
    %2968 = vrot.lane.b32.xlu0 %v2967, 92
    %v2969 = vpop.permute.xlu0 %2968
    %vm2970 = vcmask 31744
    %s2971 = scalar_lea.vmem %s1, 2057
    %2972 = vst.msk [vmem:[%s2971] ss:$16 sm:$0x3] %vm2970, %v2969
    %s2973 = scalar_lea.vmem %s1, 2057
    %2974 = vst.msk [vmem:[%s2973] ss:$16 sm:$0xc] %vm2970, %v2969
    %s2975 = scalar_lea.vmem %s1, 2057
    %2976 = vst.msk [vmem:[%s2975] ss:$16 sm:$0x30] %vm2970, %v2969
    %s2977 = scalar_lea.vmem %s1, 2057
    %2978 = vst.msk [vmem:[%s2977] ss:$16 sm:$0xc0] %vm2970, %v2969
    %s2979 = scalar_lea.vmem [#allocation0], 136
    %v2980 = vld [vmem:[%s2979] sm:$0xff]
    %2981 = vrot.lane.b32.xlu0 %v2980, 92
    %v2982 = vpop.permute.xlu0 %2981
    %vm2983 = vcmask 31744
    %s2984 = scalar_lea.vmem %s1, 2185
    %2985 = vst.msk [vmem:[%s2984] ss:$16 sm:$0x3] %vm2983, %v2982
    %s2986 = scalar_lea.vmem %s1, 2185
    %2987 = vst.msk [vmem:[%s2986] ss:$16 sm:$0xc] %vm2983, %v2982
    %s2988 = scalar_lea.vmem %s1, 2185
    %2989 = vst.msk [vmem:[%s2988] ss:$16 sm:$0x30] %vm2983, %v2982
    %s2990 = scalar_lea.vmem %s1, 2185
    %2991 = vst.msk [vmem:[%s2990] ss:$16 sm:$0xc0] %vm2983, %v2982
    %s2992 = scalar_lea.vmem [#allocation0], 144
    %v2993 = vld [vmem:[%s2992] sm:$0xff]
    %2994 = vrot.lane.b32.xlu0 %v2993, 92
    %v2995 = vpop.permute.xlu0 %2994
    %vm2996 = vcmask 31744
    %s2997 = scalar_lea.vmem %s1, 2313
    %2998 = vst.msk [vmem:[%s2997] ss:$16 sm:$0x3] %vm2996, %v2995
    %s2999 = scalar_lea.vmem %s1, 2313
    %3000 = vst.msk [vmem:[%s2999] ss:$16 sm:$0xc] %vm2996, %v2995
    %s3001 = scalar_lea.vmem %s1, 2313
    %3002 = vst.msk [vmem:[%s3001] ss:$16 sm:$0x30] %vm2996, %v2995
    %s3003 = scalar_lea.vmem %s1, 2313
    %3004 = vst.msk [vmem:[%s3003] ss:$16 sm:$0xc0] %vm2996, %v2995
    %s3005 = scalar_lea.vmem [#allocation0], 152
    %v3006 = vld [vmem:[%s3005] sm:$0xff]
    %3007 = vrot.lane.b32.xlu0 %v3006, 92
    %v3008 = vpop.permute.xlu0 %3007
    %vm3009 = vcmask 31744
    %s3010 = scalar_lea.vmem %s1, 2441
    %3011 = vst.msk [vmem:[%s3010] ss:$16 sm:$0x3] %vm3009, %v3008
    %s3012 = scalar_lea.vmem %s1, 2441
    %3013 = vst.msk [vmem:[%s3012] ss:$16 sm:$0xc] %vm3009, %v3008
    %s3014 = scalar_lea.vmem %s1, 2441
    %3015 = vst.msk [vmem:[%s3014] ss:$16 sm:$0x30] %vm3009, %v3008
    %s3016 = scalar_lea.vmem %s1, 2441
    %3017 = vst.msk [vmem:[%s3016] ss:$16 sm:$0xc0] %vm3009, %v3008
    %s3018 = scalar_lea.vmem [#allocation0], 160
    %v3019 = vld [vmem:[%s3018] sm:$0xff]
    %3020 = vrot.lane.b32.xlu0 %v3019, 92
    %v3021 = vpop.permute.xlu0 %3020
    %vm3022 = vcmask 31744
    %s3023 = scalar_lea.vmem %s1, 2569
    %3024 = vst.msk [vmem:[%s3023] ss:$16 sm:$0x3] %vm3022, %v3021
    %s3025 = scalar_lea.vmem %s1, 2569
    %3026 = vst.msk [vmem:[%s3025] ss:$16 sm:$0xc] %vm3022, %v3021
    %s3027 = scalar_lea.vmem %s1, 2569
    %3028 = vst.msk [vmem:[%s3027] ss:$16 sm:$0x30] %vm3022, %v3021
    %s3029 = scalar_lea.vmem %s1, 2569
    %3030 = vst.msk [vmem:[%s3029] ss:$16 sm:$0xc0] %vm3022, %v3021
    %s3031 = scalar_lea.vmem [#allocation0], 168
    %v3032 = vld [vmem:[%s3031] sm:$0xff]
    %3033 = vrot.lane.b32.xlu0 %v3032, 92
    %v3034 = vpop.permute.xlu0 %3033
    %vm3035 = vcmask 31744
    %s3036 = scalar_lea.vmem %s1, 2697
    %3037 = vst.msk [vmem:[%s3036] ss:$16 sm:$0x3] %vm3035, %v3034
    %s3038 = scalar_lea.vmem %s1, 2697
    %3039 = vst.msk [vmem:[%s3038] ss:$16 sm:$0xc] %vm3035, %v3034
    %s3040 = scalar_lea.vmem %s1, 2697
    %3041 = vst.msk [vmem:[%s3040] ss:$16 sm:$0x30] %vm3035, %v3034
    %s3042 = scalar_lea.vmem %s1, 2697
    %3043 = vst.msk [vmem:[%s3042] ss:$16 sm:$0xc0] %vm3035, %v3034
    %s3044 = scalar_lea.vmem [#allocation0], 176
    %v3045 = vld [vmem:[%s3044] sm:$0xff]
    %3046 = vrot.lane.b32.xlu0 %v3045, 92
    %v3047 = vpop.permute.xlu0 %3046
    %vm3048 = vcmask 31744
    %s3049 = scalar_lea.vmem %s1, 2825
    %3050 = vst.msk [vmem:[%s3049] ss:$16 sm:$0x3] %vm3048, %v3047
    %s3051 = scalar_lea.vmem %s1, 2825
    %3052 = vst.msk [vmem:[%s3051] ss:$16 sm:$0xc] %vm3048, %v3047
    %s3053 = scalar_lea.vmem %s1, 2825
    %3054 = vst.msk [vmem:[%s3053] ss:$16 sm:$0x30] %vm3048, %v3047
    %s3055 = scalar_lea.vmem %s1, 2825
    %3056 = vst.msk [vmem:[%s3055] ss:$16 sm:$0xc0] %vm3048, %v3047
    %s3057 = scalar_lea.vmem [#allocation0], 184
    %v3058 = vld [vmem:[%s3057] sm:$0xff]
    %3059 = vrot.lane.b32.xlu0 %v3058, 92
    %v3060 = vpop.permute.xlu0 %3059
    %vm3061 = vcmask 31744
    %s3062 = scalar_lea.vmem %s1, 2953
    %3063 = vst.msk [vmem:[%s3062] ss:$16 sm:$0x3] %vm3061, %v3060
    %s3064 = scalar_lea.vmem %s1, 2953
    %3065 = vst.msk [vmem:[%s3064] ss:$16 sm:$0xc] %vm3061, %v3060
    %s3066 = scalar_lea.vmem %s1, 2953
    %3067 = vst.msk [vmem:[%s3066] ss:$16 sm:$0x30] %vm3061, %v3060
    %s3068 = scalar_lea.vmem %s1, 2953
    %3069 = vst.msk [vmem:[%s3068] ss:$16 sm:$0xc0] %vm3061, %v3060
    %v3070 = vld [vmem:[#allocation0] sm:$0xff]
    %3071 = vrot.lane.b32.xlu0 %v3070, 88
    %v3072 = vpop.permute.xlu0 %3071
    %vm3073 = vcmask 31744
    %s3074 = scalar_lea.vmem %s1, 10
    %3075 = vst.msk [vmem:[%s3074] ss:$16 sm:$0x3] %vm3073, %v3072
    %s3076 = scalar_lea.vmem %s1, 10
    %3077 = vst.msk [vmem:[%s3076] ss:$16 sm:$0xc] %vm3073, %v3072
    %s3078 = scalar_lea.vmem %s1, 10
    %3079 = vst.msk [vmem:[%s3078] ss:$16 sm:$0x30] %vm3073, %v3072
    %s3080 = scalar_lea.vmem %s1, 10
    %3081 = vst.msk [vmem:[%s3080] ss:$16 sm:$0xc0] %vm3073, %v3072
    %s3082 = scalar_lea.vmem [#allocation0], 8
    %v3083 = vld [vmem:[%s3082] sm:$0xff]
    %3084 = vrot.lane.b32.xlu0 %v3083, 88
    %v3085 = vpop.permute.xlu0 %3084
    %vm3086 = vcmask 31744
    %s3087 = scalar_lea.vmem %s1, 138
    %3088 = vst.msk [vmem:[%s3087] ss:$16 sm:$0x3] %vm3086, %v3085
    %s3089 = scalar_lea.vmem %s1, 138
    %3090 = vst.msk [vmem:[%s3089] ss:$16 sm:$0xc] %vm3086, %v3085
    %s3091 = scalar_lea.vmem %s1, 138
    %3092 = vst.msk [vmem:[%s3091] ss:$16 sm:$0x30] %vm3086, %v3085
    %s3093 = scalar_lea.vmem %s1, 138
    %3094 = vst.msk [vmem:[%s3093] ss:$16 sm:$0xc0] %vm3086, %v3085
    %s3095 = scalar_lea.vmem [#allocation0], 16
    %v3096 = vld [vmem:[%s3095] sm:$0xff]
    %3097 = vrot.lane.b32.xlu0 %v3096, 88
    %v3098 = vpop.permute.xlu0 %3097
    %vm3099 = vcmask 31744
    %s3100 = scalar_lea.vmem %s1, 266
    %3101 = vst.msk [vmem:[%s3100] ss:$16 sm:$0x3] %vm3099, %v3098
    %s3102 = scalar_lea.vmem %s1, 266
    %3103 = vst.msk [vmem:[%s3102] ss:$16 sm:$0xc] %vm3099, %v3098
    %s3104 = scalar_lea.vmem %s1, 266
    %3105 = vst.msk [vmem:[%s3104] ss:$16 sm:$0x30] %vm3099, %v3098
    %s3106 = scalar_lea.vmem %s1, 266
    %3107 = vst.msk [vmem:[%s3106] ss:$16 sm:$0xc0] %vm3099, %v3098
    %s3108 = scalar_lea.vmem [#allocation0], 24
    %v3109 = vld [vmem:[%s3108] sm:$0xff]
    %3110 = vrot.lane.b32.xlu0 %v3109, 88
    %v3111 = vpop.permute.xlu0 %3110
    %vm3112 = vcmask 31744
    %s3113 = scalar_lea.vmem %s1, 394
    %3114 = vst.msk [vmem:[%s3113] ss:$16 sm:$0x3] %vm3112, %v3111
    %s3115 = scalar_lea.vmem %s1, 394
    %3116 = vst.msk [vmem:[%s3115] ss:$16 sm:$0xc] %vm3112, %v3111
    %s3117 = scalar_lea.vmem %s1, 394
    %3118 = vst.msk [vmem:[%s3117] ss:$16 sm:$0x30] %vm3112, %v3111
    %s3119 = scalar_lea.vmem %s1, 394
    %3120 = vst.msk [vmem:[%s3119] ss:$16 sm:$0xc0] %vm3112, %v3111
    %s3121 = scalar_lea.vmem [#allocation0], 32
    %v3122 = vld [vmem:[%s3121] sm:$0xff]
    %3123 = vrot.lane.b32.xlu0 %v3122, 88
    %v3124 = vpop.permute.xlu0 %3123
    %vm3125 = vcmask 31744
    %s3126 = scalar_lea.vmem %s1, 522
    %3127 = vst.msk [vmem:[%s3126] ss:$16 sm:$0x3] %vm3125, %v3124
    %s3128 = scalar_lea.vmem %s1, 522
    %3129 = vst.msk [vmem:[%s3128] ss:$16 sm:$0xc] %vm3125, %v3124
    %s3130 = scalar_lea.vmem %s1, 522
    %3131 = vst.msk [vmem:[%s3130] ss:$16 sm:$0x30] %vm3125, %v3124
    %s3132 = scalar_lea.vmem %s1, 522
    %3133 = vst.msk [vmem:[%s3132] ss:$16 sm:$0xc0] %vm3125, %v3124
    %s3134 = scalar_lea.vmem [#allocation0], 40
    %v3135 = vld [vmem:[%s3134] sm:$0xff]
    %3136 = vrot.lane.b32.xlu0 %v3135, 88
    %v3137 = vpop.permute.xlu0 %3136
    %vm3138 = vcmask 31744
    %s3139 = scalar_lea.vmem %s1, 650
    %3140 = vst.msk [vmem:[%s3139] ss:$16 sm:$0x3] %vm3138, %v3137
    %s3141 = scalar_lea.vmem %s1, 650
    %3142 = vst.msk [vmem:[%s3141] ss:$16 sm:$0xc] %vm3138, %v3137
    %s3143 = scalar_lea.vmem %s1, 650
    %3144 = vst.msk [vmem:[%s3143] ss:$16 sm:$0x30] %vm3138, %v3137
    %s3145 = scalar_lea.vmem %s1, 650
    %3146 = vst.msk [vmem:[%s3145] ss:$16 sm:$0xc0] %vm3138, %v3137
    %s3147 = scalar_lea.vmem [#allocation0], 48
    %v3148 = vld [vmem:[%s3147] sm:$0xff]
    %3149 = vrot.lane.b32.xlu0 %v3148, 88
    %v3150 = vpop.permute.xlu0 %3149
    %vm3151 = vcmask 31744
    %s3152 = scalar_lea.vmem %s1, 778
    %3153 = vst.msk [vmem:[%s3152] ss:$16 sm:$0x3] %vm3151, %v3150
    %s3154 = scalar_lea.vmem %s1, 778
    %3155 = vst.msk [vmem:[%s3154] ss:$16 sm:$0xc] %vm3151, %v3150
    %s3156 = scalar_lea.vmem %s1, 778
    %3157 = vst.msk [vmem:[%s3156] ss:$16 sm:$0x30] %vm3151, %v3150
    %s3158 = scalar_lea.vmem %s1, 778
    %3159 = vst.msk [vmem:[%s3158] ss:$16 sm:$0xc0] %vm3151, %v3150
    %s3160 = scalar_lea.vmem [#allocation0], 56
    %v3161 = vld [vmem:[%s3160] sm:$0xff]
    %3162 = vrot.lane.b32.xlu0 %v3161, 88
    %v3163 = vpop.permute.xlu0 %3162
    %vm3164 = vcmask 31744
    %s3165 = scalar_lea.vmem %s1, 906
    %3166 = vst.msk [vmem:[%s3165] ss:$16 sm:$0x3] %vm3164, %v3163
    %s3167 = scalar_lea.vmem %s1, 906
    %3168 = vst.msk [vmem:[%s3167] ss:$16 sm:$0xc] %vm3164, %v3163
    %s3169 = scalar_lea.vmem %s1, 906
    %3170 = vst.msk [vmem:[%s3169] ss:$16 sm:$0x30] %vm3164, %v3163
    %s3171 = scalar_lea.vmem %s1, 906
    %3172 = vst.msk [vmem:[%s3171] ss:$16 sm:$0xc0] %vm3164, %v3163
    %s3173 = scalar_lea.vmem [#allocation0], 64
    %v3174 = vld [vmem:[%s3173] sm:$0xff]
    %3175 = vrot.lane.b32.xlu0 %v3174, 88
    %v3176 = vpop.permute.xlu0 %3175
    %vm3177 = vcmask 31744
    %s3178 = scalar_lea.vmem %s1, 1034
    %3179 = vst.msk [vmem:[%s3178] ss:$16 sm:$0x3] %vm3177, %v3176
    %s3180 = scalar_lea.vmem %s1, 1034
    %3181 = vst.msk [vmem:[%s3180] ss:$16 sm:$0xc] %vm3177, %v3176
    %s3182 = scalar_lea.vmem %s1, 1034
    %3183 = vst.msk [vmem:[%s3182] ss:$16 sm:$0x30] %vm3177, %v3176
    %s3184 = scalar_lea.vmem %s1, 1034
    %3185 = vst.msk [vmem:[%s3184] ss:$16 sm:$0xc0] %vm3177, %v3176
    %s3186 = scalar_lea.vmem [#allocation0], 72
    %v3187 = vld [vmem:[%s3186] sm:$0xff]
    %3188 = vrot.lane.b32.xlu0 %v3187, 88
    %v3189 = vpop.permute.xlu0 %3188
    %vm3190 = vcmask 31744
    %s3191 = scalar_lea.vmem %s1, 1162
    %3192 = vst.msk [vmem:[%s3191] ss:$16 sm:$0x3] %vm3190, %v3189
    %s3193 = scalar_lea.vmem %s1, 1162
    %3194 = vst.msk [vmem:[%s3193] ss:$16 sm:$0xc] %vm3190, %v3189
    %s3195 = scalar_lea.vmem %s1, 1162
    %3196 = vst.msk [vmem:[%s3195] ss:$16 sm:$0x30] %vm3190, %v3189
    %s3197 = scalar_lea.vmem %s1, 1162
    %3198 = vst.msk [vmem:[%s3197] ss:$16 sm:$0xc0] %vm3190, %v3189
    %s3199 = scalar_lea.vmem [#allocation0], 80
    %v3200 = vld [vmem:[%s3199] sm:$0xff]
    %3201 = vrot.lane.b32.xlu0 %v3200, 88
    %v3202 = vpop.permute.xlu0 %3201
    %vm3203 = vcmask 31744
    %s3204 = scalar_lea.vmem %s1, 1290
    %3205 = vst.msk [vmem:[%s3204] ss:$16 sm:$0x3] %vm3203, %v3202
    %s3206 = scalar_lea.vmem %s1, 1290
    %3207 = vst.msk [vmem:[%s3206] ss:$16 sm:$0xc] %vm3203, %v3202
    %s3208 = scalar_lea.vmem %s1, 1290
    %3209 = vst.msk [vmem:[%s3208] ss:$16 sm:$0x30] %vm3203, %v3202
    %s3210 = scalar_lea.vmem %s1, 1290
    %3211 = vst.msk [vmem:[%s3210] ss:$16 sm:$0xc0] %vm3203, %v3202
    %s3212 = scalar_lea.vmem [#allocation0], 88
    %v3213 = vld [vmem:[%s3212] sm:$0xff]
    %3214 = vrot.lane.b32.xlu0 %v3213, 88
    %v3215 = vpop.permute.xlu0 %3214
    %vm3216 = vcmask 31744
    %s3217 = scalar_lea.vmem %s1, 1418
    %3218 = vst.msk [vmem:[%s3217] ss:$16 sm:$0x3] %vm3216, %v3215
    %s3219 = scalar_lea.vmem %s1, 1418
    %3220 = vst.msk [vmem:[%s3219] ss:$16 sm:$0xc] %vm3216, %v3215
    %s3221 = scalar_lea.vmem %s1, 1418
    %3222 = vst.msk [vmem:[%s3221] ss:$16 sm:$0x30] %vm3216, %v3215
    %s3223 = scalar_lea.vmem %s1, 1418
    %3224 = vst.msk [vmem:[%s3223] ss:$16 sm:$0xc0] %vm3216, %v3215
    %s3225 = scalar_lea.vmem [#allocation0], 96
    %v3226 = vld [vmem:[%s3225] sm:$0xff]
    %3227 = vrot.lane.b32.xlu0 %v3226, 88
    %v3228 = vpop.permute.xlu0 %3227
    %vm3229 = vcmask 31744
    %s3230 = scalar_lea.vmem %s1, 1546
    %3231 = vst.msk [vmem:[%s3230] ss:$16 sm:$0x3] %vm3229, %v3228
    %s3232 = scalar_lea.vmem %s1, 1546
    %3233 = vst.msk [vmem:[%s3232] ss:$16 sm:$0xc] %vm3229, %v3228
    %s3234 = scalar_lea.vmem %s1, 1546
    %3235 = vst.msk [vmem:[%s3234] ss:$16 sm:$0x30] %vm3229, %v3228
    %s3236 = scalar_lea.vmem %s1, 1546
    %3237 = vst.msk [vmem:[%s3236] ss:$16 sm:$0xc0] %vm3229, %v3228
    %s3238 = scalar_lea.vmem [#allocation0], 104
    %v3239 = vld [vmem:[%s3238] sm:$0xff]
    %3240 = vrot.lane.b32.xlu0 %v3239, 88
    %v3241 = vpop.permute.xlu0 %3240
    %vm3242 = vcmask 31744
    %s3243 = scalar_lea.vmem %s1, 1674
    %3244 = vst.msk [vmem:[%s3243] ss:$16 sm:$0x3] %vm3242, %v3241
    %s3245 = scalar_lea.vmem %s1, 1674
    %3246 = vst.msk [vmem:[%s3245] ss:$16 sm:$0xc] %vm3242, %v3241
    %s3247 = scalar_lea.vmem %s1, 1674
    %3248 = vst.msk [vmem:[%s3247] ss:$16 sm:$0x30] %vm3242, %v3241
    %s3249 = scalar_lea.vmem %s1, 1674
    %3250 = vst.msk [vmem:[%s3249] ss:$16 sm:$0xc0] %vm3242, %v3241
    %s3251 = scalar_lea.vmem [#allocation0], 112
    %v3252 = vld [vmem:[%s3251] sm:$0xff]
    %3253 = vrot.lane.b32.xlu0 %v3252, 88
    %v3254 = vpop.permute.xlu0 %3253
    %vm3255 = vcmask 31744
    %s3256 = scalar_lea.vmem %s1, 1802
    %3257 = vst.msk [vmem:[%s3256] ss:$16 sm:$0x3] %vm3255, %v3254
    %s3258 = scalar_lea.vmem %s1, 1802
    %3259 = vst.msk [vmem:[%s3258] ss:$16 sm:$0xc] %vm3255, %v3254
    %s3260 = scalar_lea.vmem %s1, 1802
    %3261 = vst.msk [vmem:[%s3260] ss:$16 sm:$0x30] %vm3255, %v3254
    %s3262 = scalar_lea.vmem %s1, 1802
    %3263 = vst.msk [vmem:[%s3262] ss:$16 sm:$0xc0] %vm3255, %v3254
    %s3264 = scalar_lea.vmem [#allocation0], 120
    %v3265 = vld [vmem:[%s3264] sm:$0xff]
    %3266 = vrot.lane.b32.xlu0 %v3265, 88
    %v3267 = vpop.permute.xlu0 %3266
    %vm3268 = vcmask 31744
    %s3269 = scalar_lea.vmem %s1, 1930
    %3270 = vst.msk [vmem:[%s3269] ss:$16 sm:$0x3] %vm3268, %v3267
    %s3271 = scalar_lea.vmem %s1, 1930
    %3272 = vst.msk [vmem:[%s3271] ss:$16 sm:$0xc] %vm3268, %v3267
    %s3273 = scalar_lea.vmem %s1, 1930
    %3274 = vst.msk [vmem:[%s3273] ss:$16 sm:$0x30] %vm3268, %v3267
    %s3275 = scalar_lea.vmem %s1, 1930
    %3276 = vst.msk [vmem:[%s3275] ss:$16 sm:$0xc0] %vm3268, %v3267
    %s3277 = scalar_lea.vmem [#allocation0], 128
    %v3278 = vld [vmem:[%s3277] sm:$0xff]
    %3279 = vrot.lane.b32.xlu0 %v3278, 88
    %v3280 = vpop.permute.xlu0 %3279
    %vm3281 = vcmask 31744
    %s3282 = scalar_lea.vmem %s1, 2058
    %3283 = vst.msk [vmem:[%s3282] ss:$16 sm:$0x3] %vm3281, %v3280
    %s3284 = scalar_lea.vmem %s1, 2058
    %3285 = vst.msk [vmem:[%s3284] ss:$16 sm:$0xc] %vm3281, %v3280
    %s3286 = scalar_lea.vmem %s1, 2058
    %3287 = vst.msk [vmem:[%s3286] ss:$16 sm:$0x30] %vm3281, %v3280
    %s3288 = scalar_lea.vmem %s1, 2058
    %3289 = vst.msk [vmem:[%s3288] ss:$16 sm:$0xc0] %vm3281, %v3280
    %s3290 = scalar_lea.vmem [#allocation0], 136
    %v3291 = vld [vmem:[%s3290] sm:$0xff]
    %3292 = vrot.lane.b32.xlu0 %v3291, 88
    %v3293 = vpop.permute.xlu0 %3292
    %vm3294 = vcmask 31744
    %s3295 = scalar_lea.vmem %s1, 2186
    %3296 = vst.msk [vmem:[%s3295] ss:$16 sm:$0x3] %vm3294, %v3293
    %s3297 = scalar_lea.vmem %s1, 2186
    %3298 = vst.msk [vmem:[%s3297] ss:$16 sm:$0xc] %vm3294, %v3293
    %s3299 = scalar_lea.vmem %s1, 2186
    %3300 = vst.msk [vmem:[%s3299] ss:$16 sm:$0x30] %vm3294, %v3293
    %s3301 = scalar_lea.vmem %s1, 2186
    %3302 = vst.msk [vmem:[%s3301] ss:$16 sm:$0xc0] %vm3294, %v3293
    %s3303 = scalar_lea.vmem [#allocation0], 144
    %v3304 = vld [vmem:[%s3303] sm:$0xff]
    %3305 = vrot.lane.b32.xlu0 %v3304, 88
    %v3306 = vpop.permute.xlu0 %3305
    %vm3307 = vcmask 31744
    %s3308 = scalar_lea.vmem %s1, 2314
    %3309 = vst.msk [vmem:[%s3308] ss:$16 sm:$0x3] %vm3307, %v3306
    %s3310 = scalar_lea.vmem %s1, 2314
    %3311 = vst.msk [vmem:[%s3310] ss:$16 sm:$0xc] %vm3307, %v3306
    %s3312 = scalar_lea.vmem %s1, 2314
    %3313 = vst.msk [vmem:[%s3312] ss:$16 sm:$0x30] %vm3307, %v3306
    %s3314 = scalar_lea.vmem %s1, 2314
    %3315 = vst.msk [vmem:[%s3314] ss:$16 sm:$0xc0] %vm3307, %v3306
    %s3316 = scalar_lea.vmem [#allocation0], 152
    %v3317 = vld [vmem:[%s3316] sm:$0xff]
    %3318 = vrot.lane.b32.xlu0 %v3317, 88
    %v3319 = vpop.permute.xlu0 %3318
    %vm3320 = vcmask 31744
    %s3321 = scalar_lea.vmem %s1, 2442
    %3322 = vst.msk [vmem:[%s3321] ss:$16 sm:$0x3] %vm3320, %v3319
    %s3323 = scalar_lea.vmem %s1, 2442
    %3324 = vst.msk [vmem:[%s3323] ss:$16 sm:$0xc] %vm3320, %v3319
    %s3325 = scalar_lea.vmem %s1, 2442
    %3326 = vst.msk [vmem:[%s3325] ss:$16 sm:$0x30] %vm3320, %v3319
    %s3327 = scalar_lea.vmem %s1, 2442
    %3328 = vst.msk [vmem:[%s3327] ss:$16 sm:$0xc0] %vm3320, %v3319
    %s3329 = scalar_lea.vmem [#allocation0], 160
    %v3330 = vld [vmem:[%s3329] sm:$0xff]
    %3331 = vrot.lane.b32.xlu0 %v3330, 88
    %v3332 = vpop.permute.xlu0 %3331
    %vm3333 = vcmask 31744
    %s3334 = scalar_lea.vmem %s1, 2570
    %3335 = vst.msk [vmem:[%s3334] ss:$16 sm:$0x3] %vm3333, %v3332
    %s3336 = scalar_lea.vmem %s1, 2570
    %3337 = vst.msk [vmem:[%s3336] ss:$16 sm:$0xc] %vm3333, %v3332
    %s3338 = scalar_lea.vmem %s1, 2570
    %3339 = vst.msk [vmem:[%s3338] ss:$16 sm:$0x30] %vm3333, %v3332
    %s3340 = scalar_lea.vmem %s1, 2570
    %3341 = vst.msk [vmem:[%s3340] ss:$16 sm:$0xc0] %vm3333, %v3332
    %s3342 = scalar_lea.vmem [#allocation0], 168
    %v3343 = vld [vmem:[%s3342] sm:$0xff]
    %3344 = vrot.lane.b32.xlu0 %v3343, 88
    %v3345 = vpop.permute.xlu0 %3344
    %vm3346 = vcmask 31744
    %s3347 = scalar_lea.vmem %s1, 2698
    %3348 = vst.msk [vmem:[%s3347] ss:$16 sm:$0x3] %vm3346, %v3345
    %s3349 = scalar_lea.vmem %s1, 2698
    %3350 = vst.msk [vmem:[%s3349] ss:$16 sm:$0xc] %vm3346, %v3345
    %s3351 = scalar_lea.vmem %s1, 2698
    %3352 = vst.msk [vmem:[%s3351] ss:$16 sm:$0x30] %vm3346, %v3345
    %s3353 = scalar_lea.vmem %s1, 2698
    %3354 = vst.msk [vmem:[%s3353] ss:$16 sm:$0xc0] %vm3346, %v3345
    %s3355 = scalar_lea.vmem [#allocation0], 176
    %v3356 = vld [vmem:[%s3355] sm:$0xff]
    %3357 = vrot.lane.b32.xlu0 %v3356, 88
    %v3358 = vpop.permute.xlu0 %3357
    %vm3359 = vcmask 31744
    %s3360 = scalar_lea.vmem %s1, 2826
    %3361 = vst.msk [vmem:[%s3360] ss:$16 sm:$0x3] %vm3359, %v3358
    %s3362 = scalar_lea.vmem %s1, 2826
    %3363 = vst.msk [vmem:[%s3362] ss:$16 sm:$0xc] %vm3359, %v3358
    %s3364 = scalar_lea.vmem %s1, 2826
    %3365 = vst.msk [vmem:[%s3364] ss:$16 sm:$0x30] %vm3359, %v3358
    %s3366 = scalar_lea.vmem %s1, 2826
    %3367 = vst.msk [vmem:[%s3366] ss:$16 sm:$0xc0] %vm3359, %v3358
    %s3368 = scalar_lea.vmem [#allocation0], 184
    %v3369 = vld [vmem:[%s3368] sm:$0xff]
    %3370 = vrot.lane.b32.xlu0 %v3369, 88
    %v3371 = vpop.permute.xlu0 %3370
    %vm3372 = vcmask 31744
    %s3373 = scalar_lea.vmem %s1, 2954
    %3374 = vst.msk [vmem:[%s3373] ss:$16 sm:$0x3] %vm3372, %v3371
    %s3375 = scalar_lea.vmem %s1, 2954
    %3376 = vst.msk [vmem:[%s3375] ss:$16 sm:$0xc] %vm3372, %v3371
    %s3377 = scalar_lea.vmem %s1, 2954
    %3378 = vst.msk [vmem:[%s3377] ss:$16 sm:$0x30] %vm3372, %v3371
    %s3379 = scalar_lea.vmem %s1, 2954
    %3380 = vst.msk [vmem:[%s3379] ss:$16 sm:$0xc0] %vm3372, %v3371
    %v3381 = vld [vmem:[#allocation0] sm:$0xff]
    %3382 = vrot.lane.b32.xlu0 %v3381, 84
    %v3383 = vpop.permute.xlu0 %3382
    %vm3384 = vcmask 31744
    %s3385 = scalar_lea.vmem %s1, 11
    %3386 = vst.msk [vmem:[%s3385] ss:$16 sm:$0x3] %vm3384, %v3383
    %s3387 = scalar_lea.vmem %s1, 11
    %3388 = vst.msk [vmem:[%s3387] ss:$16 sm:$0xc] %vm3384, %v3383
    %s3389 = scalar_lea.vmem %s1, 11
    %3390 = vst.msk [vmem:[%s3389] ss:$16 sm:$0x30] %vm3384, %v3383
    %s3391 = scalar_lea.vmem %s1, 11
    %3392 = vst.msk [vmem:[%s3391] ss:$16 sm:$0xc0] %vm3384, %v3383
    %s3393 = scalar_lea.vmem [#allocation0], 8
    %v3394 = vld [vmem:[%s3393] sm:$0xff]
    %3395 = vrot.lane.b32.xlu0 %v3394, 84
    %v3396 = vpop.permute.xlu0 %3395
    %vm3397 = vcmask 31744
    %s3398 = scalar_lea.vmem %s1, 139
    %3399 = vst.msk [vmem:[%s3398] ss:$16 sm:$0x3] %vm3397, %v3396
    %s3400 = scalar_lea.vmem %s1, 139
    %3401 = vst.msk [vmem:[%s3400] ss:$16 sm:$0xc] %vm3397, %v3396
    %s3402 = scalar_lea.vmem %s1, 139
    %3403 = vst.msk [vmem:[%s3402] ss:$16 sm:$0x30] %vm3397, %v3396
    %s3404 = scalar_lea.vmem %s1, 139
    %3405 = vst.msk [vmem:[%s3404] ss:$16 sm:$0xc0] %vm3397, %v3396
    %s3406 = scalar_lea.vmem [#allocation0], 16
    %v3407 = vld [vmem:[%s3406] sm:$0xff]
    %3408 = vrot.lane.b32.xlu0 %v3407, 84
    %v3409 = vpop.permute.xlu0 %3408
    %vm3410 = vcmask 31744
    %s3411 = scalar_lea.vmem %s1, 267
    %3412 = vst.msk [vmem:[%s3411] ss:$16 sm:$0x3] %vm3410, %v3409
    %s3413 = scalar_lea.vmem %s1, 267
    %3414 = vst.msk [vmem:[%s3413] ss:$16 sm:$0xc] %vm3410, %v3409
    %s3415 = scalar_lea.vmem %s1, 267
    %3416 = vst.msk [vmem:[%s3415] ss:$16 sm:$0x30] %vm3410, %v3409
    %s3417 = scalar_lea.vmem %s1, 267
    %3418 = vst.msk [vmem:[%s3417] ss:$16 sm:$0xc0] %vm3410, %v3409
    %s3419 = scalar_lea.vmem [#allocation0], 24
    %v3420 = vld [vmem:[%s3419] sm:$0xff]
    %3421 = vrot.lane.b32.xlu0 %v3420, 84
    %v3422 = vpop.permute.xlu0 %3421
    %vm3423 = vcmask 31744
    %s3424 = scalar_lea.vmem %s1, 395
    %3425 = vst.msk [vmem:[%s3424] ss:$16 sm:$0x3] %vm3423, %v3422
    %s3426 = scalar_lea.vmem %s1, 395
    %3427 = vst.msk [vmem:[%s3426] ss:$16 sm:$0xc] %vm3423, %v3422
    %s3428 = scalar_lea.vmem %s1, 395
    %3429 = vst.msk [vmem:[%s3428] ss:$16 sm:$0x30] %vm3423, %v3422
    %s3430 = scalar_lea.vmem %s1, 395
    %3431 = vst.msk [vmem:[%s3430] ss:$16 sm:$0xc0] %vm3423, %v3422
    %s3432 = scalar_lea.vmem [#allocation0], 32
    %v3433 = vld [vmem:[%s3432] sm:$0xff]
    %3434 = vrot.lane.b32.xlu0 %v3433, 84
    %v3435 = vpop.permute.xlu0 %3434
    %vm3436 = vcmask 31744
    %s3437 = scalar_lea.vmem %s1, 523
    %3438 = vst.msk [vmem:[%s3437] ss:$16 sm:$0x3] %vm3436, %v3435
    %s3439 = scalar_lea.vmem %s1, 523
    %3440 = vst.msk [vmem:[%s3439] ss:$16 sm:$0xc] %vm3436, %v3435
    %s3441 = scalar_lea.vmem %s1, 523
    %3442 = vst.msk [vmem:[%s3441] ss:$16 sm:$0x30] %vm3436, %v3435
    %s3443 = scalar_lea.vmem %s1, 523
    %3444 = vst.msk [vmem:[%s3443] ss:$16 sm:$0xc0] %vm3436, %v3435
    %s3445 = scalar_lea.vmem [#allocation0], 40
    %v3446 = vld [vmem:[%s3445] sm:$0xff]
    %3447 = vrot.lane.b32.xlu0 %v3446, 84
    %v3448 = vpop.permute.xlu0 %3447
    %vm3449 = vcmask 31744
    %s3450 = scalar_lea.vmem %s1, 651
    %3451 = vst.msk [vmem:[%s3450] ss:$16 sm:$0x3] %vm3449, %v3448
    %s3452 = scalar_lea.vmem %s1, 651
    %3453 = vst.msk [vmem:[%s3452] ss:$16 sm:$0xc] %vm3449, %v3448
    %s3454 = scalar_lea.vmem %s1, 651
    %3455 = vst.msk [vmem:[%s3454] ss:$16 sm:$0x30] %vm3449, %v3448
    %s3456 = scalar_lea.vmem %s1, 651
    %3457 = vst.msk [vmem:[%s3456] ss:$16 sm:$0xc0] %vm3449, %v3448
    %s3458 = scalar_lea.vmem [#allocation0], 48
    %v3459 = vld [vmem:[%s3458] sm:$0xff]
    %3460 = vrot.lane.b32.xlu0 %v3459, 84
    %v3461 = vpop.permute.xlu0 %3460
    %vm3462 = vcmask 31744
    %s3463 = scalar_lea.vmem %s1, 779
    %3464 = vst.msk [vmem:[%s3463] ss:$16 sm:$0x3] %vm3462, %v3461
    %s3465 = scalar_lea.vmem %s1, 779
    %3466 = vst.msk [vmem:[%s3465] ss:$16 sm:$0xc] %vm3462, %v3461
    %s3467 = scalar_lea.vmem %s1, 779
    %3468 = vst.msk [vmem:[%s3467] ss:$16 sm:$0x30] %vm3462, %v3461
    %s3469 = scalar_lea.vmem %s1, 779
    %3470 = vst.msk [vmem:[%s3469] ss:$16 sm:$0xc0] %vm3462, %v3461
    %s3471 = scalar_lea.vmem [#allocation0], 56
    %v3472 = vld [vmem:[%s3471] sm:$0xff]
    %3473 = vrot.lane.b32.xlu0 %v3472, 84
    %v3474 = vpop.permute.xlu0 %3473
    %vm3475 = vcmask 31744
    %s3476 = scalar_lea.vmem %s1, 907
    %3477 = vst.msk [vmem:[%s3476] ss:$16 sm:$0x3] %vm3475, %v3474
    %s3478 = scalar_lea.vmem %s1, 907
    %3479 = vst.msk [vmem:[%s3478] ss:$16 sm:$0xc] %vm3475, %v3474
    %s3480 = scalar_lea.vmem %s1, 907
    %3481 = vst.msk [vmem:[%s3480] ss:$16 sm:$0x30] %vm3475, %v3474
    %s3482 = scalar_lea.vmem %s1, 907
    %3483 = vst.msk [vmem:[%s3482] ss:$16 sm:$0xc0] %vm3475, %v3474
    %s3484 = scalar_lea.vmem [#allocation0], 64
    %v3485 = vld [vmem:[%s3484] sm:$0xff]
    %3486 = vrot.lane.b32.xlu0 %v3485, 84
    %v3487 = vpop.permute.xlu0 %3486
    %vm3488 = vcmask 31744
    %s3489 = scalar_lea.vmem %s1, 1035
    %3490 = vst.msk [vmem:[%s3489] ss:$16 sm:$0x3] %vm3488, %v3487
    %s3491 = scalar_lea.vmem %s1, 1035
    %3492 = vst.msk [vmem:[%s3491] ss:$16 sm:$0xc] %vm3488, %v3487
    %s3493 = scalar_lea.vmem %s1, 1035
    %3494 = vst.msk [vmem:[%s3493] ss:$16 sm:$0x30] %vm3488, %v3487
    %s3495 = scalar_lea.vmem %s1, 1035
    %3496 = vst.msk [vmem:[%s3495] ss:$16 sm:$0xc0] %vm3488, %v3487
    %s3497 = scalar_lea.vmem [#allocation0], 72
    %v3498 = vld [vmem:[%s3497] sm:$0xff]
    %3499 = vrot.lane.b32.xlu0 %v3498, 84
    %v3500 = vpop.permute.xlu0 %3499
    %vm3501 = vcmask 31744
    %s3502 = scalar_lea.vmem %s1, 1163
    %3503 = vst.msk [vmem:[%s3502] ss:$16 sm:$0x3] %vm3501, %v3500
    %s3504 = scalar_lea.vmem %s1, 1163
    %3505 = vst.msk [vmem:[%s3504] ss:$16 sm:$0xc] %vm3501, %v3500
    %s3506 = scalar_lea.vmem %s1, 1163
    %3507 = vst.msk [vmem:[%s3506] ss:$16 sm:$0x30] %vm3501, %v3500
    %s3508 = scalar_lea.vmem %s1, 1163
    %3509 = vst.msk [vmem:[%s3508] ss:$16 sm:$0xc0] %vm3501, %v3500
    %s3510 = scalar_lea.vmem [#allocation0], 80
    %v3511 = vld [vmem:[%s3510] sm:$0xff]
    %3512 = vrot.lane.b32.xlu0 %v3511, 84
    %v3513 = vpop.permute.xlu0 %3512
    %vm3514 = vcmask 31744
    %s3515 = scalar_lea.vmem %s1, 1291
    %3516 = vst.msk [vmem:[%s3515] ss:$16 sm:$0x3] %vm3514, %v3513
    %s3517 = scalar_lea.vmem %s1, 1291
    %3518 = vst.msk [vmem:[%s3517] ss:$16 sm:$0xc] %vm3514, %v3513
    %s3519 = scalar_lea.vmem %s1, 1291
    %3520 = vst.msk [vmem:[%s3519] ss:$16 sm:$0x30] %vm3514, %v3513
    %s3521 = scalar_lea.vmem %s1, 1291
    %3522 = vst.msk [vmem:[%s3521] ss:$16 sm:$0xc0] %vm3514, %v3513
    %s3523 = scalar_lea.vmem [#allocation0], 88
    %v3524 = vld [vmem:[%s3523] sm:$0xff]
    %3525 = vrot.lane.b32.xlu0 %v3524, 84
    %v3526 = vpop.permute.xlu0 %3525
    %vm3527 = vcmask 31744
    %s3528 = scalar_lea.vmem %s1, 1419
    %3529 = vst.msk [vmem:[%s3528] ss:$16 sm:$0x3] %vm3527, %v3526
    %s3530 = scalar_lea.vmem %s1, 1419
    %3531 = vst.msk [vmem:[%s3530] ss:$16 sm:$0xc] %vm3527, %v3526
    %s3532 = scalar_lea.vmem %s1, 1419
    %3533 = vst.msk [vmem:[%s3532] ss:$16 sm:$0x30] %vm3527, %v3526
    %s3534 = scalar_lea.vmem %s1, 1419
    %3535 = vst.msk [vmem:[%s3534] ss:$16 sm:$0xc0] %vm3527, %v3526
    %s3536 = scalar_lea.vmem [#allocation0], 96
    %v3537 = vld [vmem:[%s3536] sm:$0xff]
    %3538 = vrot.lane.b32.xlu0 %v3537, 84
    %v3539 = vpop.permute.xlu0 %3538
    %vm3540 = vcmask 31744
    %s3541 = scalar_lea.vmem %s1, 1547
    %3542 = vst.msk [vmem:[%s3541] ss:$16 sm:$0x3] %vm3540, %v3539
    %s3543 = scalar_lea.vmem %s1, 1547
    %3544 = vst.msk [vmem:[%s3543] ss:$16 sm:$0xc] %vm3540, %v3539
    %s3545 = scalar_lea.vmem %s1, 1547
    %3546 = vst.msk [vmem:[%s3545] ss:$16 sm:$0x30] %vm3540, %v3539
    %s3547 = scalar_lea.vmem %s1, 1547
    %3548 = vst.msk [vmem:[%s3547] ss:$16 sm:$0xc0] %vm3540, %v3539
    %s3549 = scalar_lea.vmem [#allocation0], 104
    %v3550 = vld [vmem:[%s3549] sm:$0xff]
    %3551 = vrot.lane.b32.xlu0 %v3550, 84
    %v3552 = vpop.permute.xlu0 %3551
    %vm3553 = vcmask 31744
    %s3554 = scalar_lea.vmem %s1, 1675
    %3555 = vst.msk [vmem:[%s3554] ss:$16 sm:$0x3] %vm3553, %v3552
    %s3556 = scalar_lea.vmem %s1, 1675
    %3557 = vst.msk [vmem:[%s3556] ss:$16 sm:$0xc] %vm3553, %v3552
    %s3558 = scalar_lea.vmem %s1, 1675
    %3559 = vst.msk [vmem:[%s3558] ss:$16 sm:$0x30] %vm3553, %v3552
    %s3560 = scalar_lea.vmem %s1, 1675
    %3561 = vst.msk [vmem:[%s3560] ss:$16 sm:$0xc0] %vm3553, %v3552
    %s3562 = scalar_lea.vmem [#allocation0], 112
    %v3563 = vld [vmem:[%s3562] sm:$0xff]
    %3564 = vrot.lane.b32.xlu0 %v3563, 84
    %v3565 = vpop.permute.xlu0 %3564
    %vm3566 = vcmask 31744
    %s3567 = scalar_lea.vmem %s1, 1803
    %3568 = vst.msk [vmem:[%s3567] ss:$16 sm:$0x3] %vm3566, %v3565
    %s3569 = scalar_lea.vmem %s1, 1803
    %3570 = vst.msk [vmem:[%s3569] ss:$16 sm:$0xc] %vm3566, %v3565
    %s3571 = scalar_lea.vmem %s1, 1803
    %3572 = vst.msk [vmem:[%s3571] ss:$16 sm:$0x30] %vm3566, %v3565
    %s3573 = scalar_lea.vmem %s1, 1803
    %3574 = vst.msk [vmem:[%s3573] ss:$16 sm:$0xc0] %vm3566, %v3565
    %s3575 = scalar_lea.vmem [#allocation0], 120
    %v3576 = vld [vmem:[%s3575] sm:$0xff]
    %3577 = vrot.lane.b32.xlu0 %v3576, 84
    %v3578 = vpop.permute.xlu0 %3577
    %vm3579 = vcmask 31744
    %s3580 = scalar_lea.vmem %s1, 1931
    %3581 = vst.msk [vmem:[%s3580] ss:$16 sm:$0x3] %vm3579, %v3578
    %s3582 = scalar_lea.vmem %s1, 1931
    %3583 = vst.msk [vmem:[%s3582] ss:$16 sm:$0xc] %vm3579, %v3578
    %s3584 = scalar_lea.vmem %s1, 1931
    %3585 = vst.msk [vmem:[%s3584] ss:$16 sm:$0x30] %vm3579, %v3578
    %s3586 = scalar_lea.vmem %s1, 1931
    %3587 = vst.msk [vmem:[%s3586] ss:$16 sm:$0xc0] %vm3579, %v3578
    %s3588 = scalar_lea.vmem [#allocation0], 128
    %v3589 = vld [vmem:[%s3588] sm:$0xff]
    %3590 = vrot.lane.b32.xlu0 %v3589, 84
    %v3591 = vpop.permute.xlu0 %3590
    %vm3592 = vcmask 31744
    %s3593 = scalar_lea.vmem %s1, 2059
    %3594 = vst.msk [vmem:[%s3593] ss:$16 sm:$0x3] %vm3592, %v3591
    %s3595 = scalar_lea.vmem %s1, 2059
    %3596 = vst.msk [vmem:[%s3595] ss:$16 sm:$0xc] %vm3592, %v3591
    %s3597 = scalar_lea.vmem %s1, 2059
    %3598 = vst.msk [vmem:[%s3597] ss:$16 sm:$0x30] %vm3592, %v3591
    %s3599 = scalar_lea.vmem %s1, 2059
    %3600 = vst.msk [vmem:[%s3599] ss:$16 sm:$0xc0] %vm3592, %v3591
    %s3601 = scalar_lea.vmem [#allocation0], 136
    %v3602 = vld [vmem:[%s3601] sm:$0xff]
    %3603 = vrot.lane.b32.xlu0 %v3602, 84
    %v3604 = vpop.permute.xlu0 %3603
    %vm3605 = vcmask 31744
    %s3606 = scalar_lea.vmem %s1, 2187
    %3607 = vst.msk [vmem:[%s3606] ss:$16 sm:$0x3] %vm3605, %v3604
    %s3608 = scalar_lea.vmem %s1, 2187
    %3609 = vst.msk [vmem:[%s3608] ss:$16 sm:$0xc] %vm3605, %v3604
    %s3610 = scalar_lea.vmem %s1, 2187
    %3611 = vst.msk [vmem:[%s3610] ss:$16 sm:$0x30] %vm3605, %v3604
    %s3612 = scalar_lea.vmem %s1, 2187
    %3613 = vst.msk [vmem:[%s3612] ss:$16 sm:$0xc0] %vm3605, %v3604
    %s3614 = scalar_lea.vmem [#allocation0], 144
    %v3615 = vld [vmem:[%s3614] sm:$0xff]
    %3616 = vrot.lane.b32.xlu0 %v3615, 84
    %v3617 = vpop.permute.xlu0 %3616
    %vm3618 = vcmask 31744
    %s3619 = scalar_lea.vmem %s1, 2315
    %3620 = vst.msk [vmem:[%s3619] ss:$16 sm:$0x3] %vm3618, %v3617
    %s3621 = scalar_lea.vmem %s1, 2315
    %3622 = vst.msk [vmem:[%s3621] ss:$16 sm:$0xc] %vm3618, %v3617
    %s3623 = scalar_lea.vmem %s1, 2315
    %3624 = vst.msk [vmem:[%s3623] ss:$16 sm:$0x30] %vm3618, %v3617
    %s3625 = scalar_lea.vmem %s1, 2315
    %3626 = vst.msk [vmem:[%s3625] ss:$16 sm:$0xc0] %vm3618, %v3617
    %s3627 = scalar_lea.vmem [#allocation0], 152
    %v3628 = vld [vmem:[%s3627] sm:$0xff]
    %3629 = vrot.lane.b32.xlu0 %v3628, 84
    %v3630 = vpop.permute.xlu0 %3629
    %vm3631 = vcmask 31744
    %s3632 = scalar_lea.vmem %s1, 2443
    %3633 = vst.msk [vmem:[%s3632] ss:$16 sm:$0x3] %vm3631, %v3630
    %s3634 = scalar_lea.vmem %s1, 2443
    %3635 = vst.msk [vmem:[%s3634] ss:$16 sm:$0xc] %vm3631, %v3630
    %s3636 = scalar_lea.vmem %s1, 2443
    %3637 = vst.msk [vmem:[%s3636] ss:$16 sm:$0x30] %vm3631, %v3630
    %s3638 = scalar_lea.vmem %s1, 2443
    %3639 = vst.msk [vmem:[%s3638] ss:$16 sm:$0xc0] %vm3631, %v3630
    %s3640 = scalar_lea.vmem [#allocation0], 160
    %v3641 = vld [vmem:[%s3640] sm:$0xff]
    %3642 = vrot.lane.b32.xlu0 %v3641, 84
    %v3643 = vpop.permute.xlu0 %3642
    %vm3644 = vcmask 31744
    %s3645 = scalar_lea.vmem %s1, 2571
    %3646 = vst.msk [vmem:[%s3645] ss:$16 sm:$0x3] %vm3644, %v3643
    %s3647 = scalar_lea.vmem %s1, 2571
    %3648 = vst.msk [vmem:[%s3647] ss:$16 sm:$0xc] %vm3644, %v3643
    %s3649 = scalar_lea.vmem %s1, 2571
    %3650 = vst.msk [vmem:[%s3649] ss:$16 sm:$0x30] %vm3644, %v3643
    %s3651 = scalar_lea.vmem %s1, 2571
    %3652 = vst.msk [vmem:[%s3651] ss:$16 sm:$0xc0] %vm3644, %v3643
    %s3653 = scalar_lea.vmem [#allocation0], 168
    %v3654 = vld [vmem:[%s3653] sm:$0xff]
    %3655 = vrot.lane.b32.xlu0 %v3654, 84
    %v3656 = vpop.permute.xlu0 %3655
    %vm3657 = vcmask 31744
    %s3658 = scalar_lea.vmem %s1, 2699
    %3659 = vst.msk [vmem:[%s3658] ss:$16 sm:$0x3] %vm3657, %v3656
    %s3660 = scalar_lea.vmem %s1, 2699
    %3661 = vst.msk [vmem:[%s3660] ss:$16 sm:$0xc] %vm3657, %v3656
    %s3662 = scalar_lea.vmem %s1, 2699
    %3663 = vst.msk [vmem:[%s3662] ss:$16 sm:$0x30] %vm3657, %v3656
    %s3664 = scalar_lea.vmem %s1, 2699
    %3665 = vst.msk [vmem:[%s3664] ss:$16 sm:$0xc0] %vm3657, %v3656
    %s3666 = scalar_lea.vmem [#allocation0], 176
    %v3667 = vld [vmem:[%s3666] sm:$0xff]
    %3668 = vrot.lane.b32.xlu0 %v3667, 84
    %v3669 = vpop.permute.xlu0 %3668
    %vm3670 = vcmask 31744
    %s3671 = scalar_lea.vmem %s1, 2827
    %3672 = vst.msk [vmem:[%s3671] ss:$16 sm:$0x3] %vm3670, %v3669
    %s3673 = scalar_lea.vmem %s1, 2827
    %3674 = vst.msk [vmem:[%s3673] ss:$16 sm:$0xc] %vm3670, %v3669
    %s3675 = scalar_lea.vmem %s1, 2827
    %3676 = vst.msk [vmem:[%s3675] ss:$16 sm:$0x30] %vm3670, %v3669
    %s3677 = scalar_lea.vmem %s1, 2827
    %3678 = vst.msk [vmem:[%s3677] ss:$16 sm:$0xc0] %vm3670, %v3669
    %s3679 = scalar_lea.vmem [#allocation0], 184
    %v3680 = vld [vmem:[%s3679] sm:$0xff]
    %3681 = vrot.lane.b32.xlu0 %v3680, 84
    %v3682 = vpop.permute.xlu0 %3681
    %vm3683 = vcmask 31744
    %s3684 = scalar_lea.vmem %s1, 2955
    %3685 = vst.msk [vmem:[%s3684] ss:$16 sm:$0x3] %vm3683, %v3682
    %s3686 = scalar_lea.vmem %s1, 2955
    %3687 = vst.msk [vmem:[%s3686] ss:$16 sm:$0xc] %vm3683, %v3682
    %s3688 = scalar_lea.vmem %s1, 2955
    %3689 = vst.msk [vmem:[%s3688] ss:$16 sm:$0x30] %vm3683, %v3682
    %s3690 = scalar_lea.vmem %s1, 2955
    %3691 = vst.msk [vmem:[%s3690] ss:$16 sm:$0xc0] %vm3683, %v3682
    %v3692 = vld [vmem:[#allocation0] sm:$0xff]
    %3693 = vrot.lane.b32.xlu0 %v3692, 80
    %v3694 = vpop.permute.xlu0 %3693
    %vm3695 = vcmask 31744
    %s3696 = scalar_lea.vmem %s1, 12
    %3697 = vst.msk [vmem:[%s3696] ss:$16 sm:$0x3] %vm3695, %v3694
    %s3698 = scalar_lea.vmem %s1, 12
    %3699 = vst.msk [vmem:[%s3698] ss:$16 sm:$0xc] %vm3695, %v3694
    %s3700 = scalar_lea.vmem %s1, 12
    %3701 = vst.msk [vmem:[%s3700] ss:$16 sm:$0x30] %vm3695, %v3694
    %s3702 = scalar_lea.vmem %s1, 12
    %3703 = vst.msk [vmem:[%s3702] ss:$16 sm:$0xc0] %vm3695, %v3694
    %s3704 = scalar_lea.vmem [#allocation0], 8
    %v3705 = vld [vmem:[%s3704] sm:$0xff]
    %3706 = vrot.lane.b32.xlu0 %v3705, 80
    %v3707 = vpop.permute.xlu0 %3706
    %vm3708 = vcmask 31744
    %s3709 = scalar_lea.vmem %s1, 140
    %3710 = vst.msk [vmem:[%s3709] ss:$16 sm:$0x3] %vm3708, %v3707
    %s3711 = scalar_lea.vmem %s1, 140
    %3712 = vst.msk [vmem:[%s3711] ss:$16 sm:$0xc] %vm3708, %v3707
    %s3713 = scalar_lea.vmem %s1, 140
    %3714 = vst.msk [vmem:[%s3713] ss:$16 sm:$0x30] %vm3708, %v3707
    %s3715 = scalar_lea.vmem %s1, 140
    %3716 = vst.msk [vmem:[%s3715] ss:$16 sm:$0xc0] %vm3708, %v3707
    %s3717 = scalar_lea.vmem [#allocation0], 16
    %v3718 = vld [vmem:[%s3717] sm:$0xff]
    %3719 = vrot.lane.b32.xlu0 %v3718, 80
    %v3720 = vpop.permute.xlu0 %3719
    %vm3721 = vcmask 31744
    %s3722 = scalar_lea.vmem %s1, 268
    %3723 = vst.msk [vmem:[%s3722] ss:$16 sm:$0x3] %vm3721, %v3720
    %s3724 = scalar_lea.vmem %s1, 268
    %3725 = vst.msk [vmem:[%s3724] ss:$16 sm:$0xc] %vm3721, %v3720
    %s3726 = scalar_lea.vmem %s1, 268
    %3727 = vst.msk [vmem:[%s3726] ss:$16 sm:$0x30] %vm3721, %v3720
    %s3728 = scalar_lea.vmem %s1, 268
    %3729 = vst.msk [vmem:[%s3728] ss:$16 sm:$0xc0] %vm3721, %v3720
    %s3730 = scalar_lea.vmem [#allocation0], 24
    %v3731 = vld [vmem:[%s3730] sm:$0xff]
    %3732 = vrot.lane.b32.xlu0 %v3731, 80
    %v3733 = vpop.permute.xlu0 %3732
    %vm3734 = vcmask 31744
    %s3735 = scalar_lea.vmem %s1, 396
    %3736 = vst.msk [vmem:[%s3735] ss:$16 sm:$0x3] %vm3734, %v3733
    %s3737 = scalar_lea.vmem %s1, 396
    %3738 = vst.msk [vmem:[%s3737] ss:$16 sm:$0xc] %vm3734, %v3733
    %s3739 = scalar_lea.vmem %s1, 396
    %3740 = vst.msk [vmem:[%s3739] ss:$16 sm:$0x30] %vm3734, %v3733
    %s3741 = scalar_lea.vmem %s1, 396
    %3742 = vst.msk [vmem:[%s3741] ss:$16 sm:$0xc0] %vm3734, %v3733
    %s3743 = scalar_lea.vmem [#allocation0], 32
    %v3744 = vld [vmem:[%s3743] sm:$0xff]
    %3745 = vrot.lane.b32.xlu0 %v3744, 80
    %v3746 = vpop.permute.xlu0 %3745
    %vm3747 = vcmask 31744
    %s3748 = scalar_lea.vmem %s1, 524
    %3749 = vst.msk [vmem:[%s3748] ss:$16 sm:$0x3] %vm3747, %v3746
    %s3750 = scalar_lea.vmem %s1, 524
    %3751 = vst.msk [vmem:[%s3750] ss:$16 sm:$0xc] %vm3747, %v3746
    %s3752 = scalar_lea.vmem %s1, 524
    %3753 = vst.msk [vmem:[%s3752] ss:$16 sm:$0x30] %vm3747, %v3746
    %s3754 = scalar_lea.vmem %s1, 524
    %3755 = vst.msk [vmem:[%s3754] ss:$16 sm:$0xc0] %vm3747, %v3746
    %s3756 = scalar_lea.vmem [#allocation0], 40
    %v3757 = vld [vmem:[%s3756] sm:$0xff]
    %3758 = vrot.lane.b32.xlu0 %v3757, 80
    %v3759 = vpop.permute.xlu0 %3758
    %vm3760 = vcmask 31744
    %s3761 = scalar_lea.vmem %s1, 652
    %3762 = vst.msk [vmem:[%s3761] ss:$16 sm:$0x3] %vm3760, %v3759
    %s3763 = scalar_lea.vmem %s1, 652
    %3764 = vst.msk [vmem:[%s3763] ss:$16 sm:$0xc] %vm3760, %v3759
    %s3765 = scalar_lea.vmem %s1, 652
    %3766 = vst.msk [vmem:[%s3765] ss:$16 sm:$0x30] %vm3760, %v3759
    %s3767 = scalar_lea.vmem %s1, 652
    %3768 = vst.msk [vmem:[%s3767] ss:$16 sm:$0xc0] %vm3760, %v3759
    %s3769 = scalar_lea.vmem [#allocation0], 48
    %v3770 = vld [vmem:[%s3769] sm:$0xff]
    %3771 = vrot.lane.b32.xlu0 %v3770, 80
    %v3772 = vpop.permute.xlu0 %3771
    %vm3773 = vcmask 31744
    %s3774 = scalar_lea.vmem %s1, 780
    %3775 = vst.msk [vmem:[%s3774] ss:$16 sm:$0x3] %vm3773, %v3772
    %s3776 = scalar_lea.vmem %s1, 780
    %3777 = vst.msk [vmem:[%s3776] ss:$16 sm:$0xc] %vm3773, %v3772
    %s3778 = scalar_lea.vmem %s1, 780
    %3779 = vst.msk [vmem:[%s3778] ss:$16 sm:$0x30] %vm3773, %v3772
    %s3780 = scalar_lea.vmem %s1, 780
    %3781 = vst.msk [vmem:[%s3780] ss:$16 sm:$0xc0] %vm3773, %v3772
    %s3782 = scalar_lea.vmem [#allocation0], 56
    %v3783 = vld [vmem:[%s3782] sm:$0xff]
    %3784 = vrot.lane.b32.xlu0 %v3783, 80
    %v3785 = vpop.permute.xlu0 %3784
    %vm3786 = vcmask 31744
    %s3787 = scalar_lea.vmem %s1, 908
    %3788 = vst.msk [vmem:[%s3787] ss:$16 sm:$0x3] %vm3786, %v3785
    %s3789 = scalar_lea.vmem %s1, 908
    %3790 = vst.msk [vmem:[%s3789] ss:$16 sm:$0xc] %vm3786, %v3785
    %s3791 = scalar_lea.vmem %s1, 908
    %3792 = vst.msk [vmem:[%s3791] ss:$16 sm:$0x30] %vm3786, %v3785
    %s3793 = scalar_lea.vmem %s1, 908
    %3794 = vst.msk [vmem:[%s3793] ss:$16 sm:$0xc0] %vm3786, %v3785
    %s3795 = scalar_lea.vmem [#allocation0], 64
    %v3796 = vld [vmem:[%s3795] sm:$0xff]
    %3797 = vrot.lane.b32.xlu0 %v3796, 80
    %v3798 = vpop.permute.xlu0 %3797
    %vm3799 = vcmask 31744
    %s3800 = scalar_lea.vmem %s1, 1036
    %3801 = vst.msk [vmem:[%s3800] ss:$16 sm:$0x3] %vm3799, %v3798
    %s3802 = scalar_lea.vmem %s1, 1036
    %3803 = vst.msk [vmem:[%s3802] ss:$16 sm:$0xc] %vm3799, %v3798
    %s3804 = scalar_lea.vmem %s1, 1036
    %3805 = vst.msk [vmem:[%s3804] ss:$16 sm:$0x30] %vm3799, %v3798
    %s3806 = scalar_lea.vmem %s1, 1036
    %3807 = vst.msk [vmem:[%s3806] ss:$16 sm:$0xc0] %vm3799, %v3798
    %s3808 = scalar_lea.vmem [#allocation0], 72
    %v3809 = vld [vmem:[%s3808] sm:$0xff]
    %3810 = vrot.lane.b32.xlu0 %v3809, 80
    %v3811 = vpop.permute.xlu0 %3810
    %vm3812 = vcmask 31744
    %s3813 = scalar_lea.vmem %s1, 1164
    %3814 = vst.msk [vmem:[%s3813] ss:$16 sm:$0x3] %vm3812, %v3811
    %s3815 = scalar_lea.vmem %s1, 1164
    %3816 = vst.msk [vmem:[%s3815] ss:$16 sm:$0xc] %vm3812, %v3811
    %s3817 = scalar_lea.vmem %s1, 1164
    %3818 = vst.msk [vmem:[%s3817] ss:$16 sm:$0x30] %vm3812, %v3811
    %s3819 = scalar_lea.vmem %s1, 1164
    %3820 = vst.msk [vmem:[%s3819] ss:$16 sm:$0xc0] %vm3812, %v3811
    %s3821 = scalar_lea.vmem [#allocation0], 80
    %v3822 = vld [vmem:[%s3821] sm:$0xff]
    %3823 = vrot.lane.b32.xlu0 %v3822, 80
    %v3824 = vpop.permute.xlu0 %3823
    %vm3825 = vcmask 31744
    %s3826 = scalar_lea.vmem %s1, 1292
    %3827 = vst.msk [vmem:[%s3826] ss:$16 sm:$0x3] %vm3825, %v3824
    %s3828 = scalar_lea.vmem %s1, 1292
    %3829 = vst.msk [vmem:[%s3828] ss:$16 sm:$0xc] %vm3825, %v3824
    %s3830 = scalar_lea.vmem %s1, 1292
    %3831 = vst.msk [vmem:[%s3830] ss:$16 sm:$0x30] %vm3825, %v3824
    %s3832 = scalar_lea.vmem %s1, 1292
    %3833 = vst.msk [vmem:[%s3832] ss:$16 sm:$0xc0] %vm3825, %v3824
    %s3834 = scalar_lea.vmem [#allocation0], 88
    %v3835 = vld [vmem:[%s3834] sm:$0xff]
    %3836 = vrot.lane.b32.xlu0 %v3835, 80
    %v3837 = vpop.permute.xlu0 %3836
    %vm3838 = vcmask 31744
    %s3839 = scalar_lea.vmem %s1, 1420
    %3840 = vst.msk [vmem:[%s3839] ss:$16 sm:$0x3] %vm3838, %v3837
    %s3841 = scalar_lea.vmem %s1, 1420
    %3842 = vst.msk [vmem:[%s3841] ss:$16 sm:$0xc] %vm3838, %v3837
    %s3843 = scalar_lea.vmem %s1, 1420
    %3844 = vst.msk [vmem:[%s3843] ss:$16 sm:$0x30] %vm3838, %v3837
    %s3845 = scalar_lea.vmem %s1, 1420
    %3846 = vst.msk [vmem:[%s3845] ss:$16 sm:$0xc0] %vm3838, %v3837
    %s3847 = scalar_lea.vmem [#allocation0], 96
    %v3848 = vld [vmem:[%s3847] sm:$0xff]
    %3849 = vrot.lane.b32.xlu0 %v3848, 80
    %v3850 = vpop.permute.xlu0 %3849
    %vm3851 = vcmask 31744
    %s3852 = scalar_lea.vmem %s1, 1548
    %3853 = vst.msk [vmem:[%s3852] ss:$16 sm:$0x3] %vm3851, %v3850
    %s3854 = scalar_lea.vmem %s1, 1548
    %3855 = vst.msk [vmem:[%s3854] ss:$16 sm:$0xc] %vm3851, %v3850
    %s3856 = scalar_lea.vmem %s1, 1548
    %3857 = vst.msk [vmem:[%s3856] ss:$16 sm:$0x30] %vm3851, %v3850
    %s3858 = scalar_lea.vmem %s1, 1548
    %3859 = vst.msk [vmem:[%s3858] ss:$16 sm:$0xc0] %vm3851, %v3850
    %s3860 = scalar_lea.vmem [#allocation0], 104
    %v3861 = vld [vmem:[%s3860] sm:$0xff]
    %3862 = vrot.lane.b32.xlu0 %v3861, 80
    %v3863 = vpop.permute.xlu0 %3862
    %vm3864 = vcmask 31744
    %s3865 = scalar_lea.vmem %s1, 1676
    %3866 = vst.msk [vmem:[%s3865] ss:$16 sm:$0x3] %vm3864, %v3863
    %s3867 = scalar_lea.vmem %s1, 1676
    %3868 = vst.msk [vmem:[%s3867] ss:$16 sm:$0xc] %vm3864, %v3863
    %s3869 = scalar_lea.vmem %s1, 1676
    %3870 = vst.msk [vmem:[%s3869] ss:$16 sm:$0x30] %vm3864, %v3863
    %s3871 = scalar_lea.vmem %s1, 1676
    %3872 = vst.msk [vmem:[%s3871] ss:$16 sm:$0xc0] %vm3864, %v3863
    %s3873 = scalar_lea.vmem [#allocation0], 112
    %v3874 = vld [vmem:[%s3873] sm:$0xff]
    %3875 = vrot.lane.b32.xlu0 %v3874, 80
    %v3876 = vpop.permute.xlu0 %3875
    %vm3877 = vcmask 31744
    %s3878 = scalar_lea.vmem %s1, 1804
    %3879 = vst.msk [vmem:[%s3878] ss:$16 sm:$0x3] %vm3877, %v3876
    %s3880 = scalar_lea.vmem %s1, 1804
    %3881 = vst.msk [vmem:[%s3880] ss:$16 sm:$0xc] %vm3877, %v3876
    %s3882 = scalar_lea.vmem %s1, 1804
    %3883 = vst.msk [vmem:[%s3882] ss:$16 sm:$0x30] %vm3877, %v3876
    %s3884 = scalar_lea.vmem %s1, 1804
    %3885 = vst.msk [vmem:[%s3884] ss:$16 sm:$0xc0] %vm3877, %v3876
    %s3886 = scalar_lea.vmem [#allocation0], 120
    %v3887 = vld [vmem:[%s3886] sm:$0xff]
    %3888 = vrot.lane.b32.xlu0 %v3887, 80
    %v3889 = vpop.permute.xlu0 %3888
    %vm3890 = vcmask 31744
    %s3891 = scalar_lea.vmem %s1, 1932
    %3892 = vst.msk [vmem:[%s3891] ss:$16 sm:$0x3] %vm3890, %v3889
    %s3893 = scalar_lea.vmem %s1, 1932
    %3894 = vst.msk [vmem:[%s3893] ss:$16 sm:$0xc] %vm3890, %v3889
    %s3895 = scalar_lea.vmem %s1, 1932
    %3896 = vst.msk [vmem:[%s3895] ss:$16 sm:$0x30] %vm3890, %v3889
    %s3897 = scalar_lea.vmem %s1, 1932
    %3898 = vst.msk [vmem:[%s3897] ss:$16 sm:$0xc0] %vm3890, %v3889
    %s3899 = scalar_lea.vmem [#allocation0], 128
    %v3900 = vld [vmem:[%s3899] sm:$0xff]
    %3901 = vrot.lane.b32.xlu0 %v3900, 80
    %v3902 = vpop.permute.xlu0 %3901
    %vm3903 = vcmask 31744
    %s3904 = scalar_lea.vmem %s1, 2060
    %3905 = vst.msk [vmem:[%s3904] ss:$16 sm:$0x3] %vm3903, %v3902
    %s3906 = scalar_lea.vmem %s1, 2060
    %3907 = vst.msk [vmem:[%s3906] ss:$16 sm:$0xc] %vm3903, %v3902
    %s3908 = scalar_lea.vmem %s1, 2060
    %3909 = vst.msk [vmem:[%s3908] ss:$16 sm:$0x30] %vm3903, %v3902
    %s3910 = scalar_lea.vmem %s1, 2060
    %3911 = vst.msk [vmem:[%s3910] ss:$16 sm:$0xc0] %vm3903, %v3902
    %s3912 = scalar_lea.vmem [#allocation0], 136
    %v3913 = vld [vmem:[%s3912] sm:$0xff]
    %3914 = vrot.lane.b32.xlu0 %v3913, 80
    %v3915 = vpop.permute.xlu0 %3914
    %vm3916 = vcmask 31744
    %s3917 = scalar_lea.vmem %s1, 2188
    %3918 = vst.msk [vmem:[%s3917] ss:$16 sm:$0x3] %vm3916, %v3915
    %s3919 = scalar_lea.vmem %s1, 2188
    %3920 = vst.msk [vmem:[%s3919] ss:$16 sm:$0xc] %vm3916, %v3915
    %s3921 = scalar_lea.vmem %s1, 2188
    %3922 = vst.msk [vmem:[%s3921] ss:$16 sm:$0x30] %vm3916, %v3915
    %s3923 = scalar_lea.vmem %s1, 2188
    %3924 = vst.msk [vmem:[%s3923] ss:$16 sm:$0xc0] %vm3916, %v3915
    %s3925 = scalar_lea.vmem [#allocation0], 144
    %v3926 = vld [vmem:[%s3925] sm:$0xff]
    %3927 = vrot.lane.b32.xlu0 %v3926, 80
    %v3928 = vpop.permute.xlu0 %3927
    %vm3929 = vcmask 31744
    %s3930 = scalar_lea.vmem %s1, 2316
    %3931 = vst.msk [vmem:[%s3930] ss:$16 sm:$0x3] %vm3929, %v3928
    %s3932 = scalar_lea.vmem %s1, 2316
    %3933 = vst.msk [vmem:[%s3932] ss:$16 sm:$0xc] %vm3929, %v3928
    %s3934 = scalar_lea.vmem %s1, 2316
    %3935 = vst.msk [vmem:[%s3934] ss:$16 sm:$0x30] %vm3929, %v3928
    %s3936 = scalar_lea.vmem %s1, 2316
    %3937 = vst.msk [vmem:[%s3936] ss:$16 sm:$0xc0] %vm3929, %v3928
    %s3938 = scalar_lea.vmem [#allocation0], 152
    %v3939 = vld [vmem:[%s3938] sm:$0xff]
    %3940 = vrot.lane.b32.xlu0 %v3939, 80
    %v3941 = vpop.permute.xlu0 %3940
    %vm3942 = vcmask 31744
    %s3943 = scalar_lea.vmem %s1, 2444
    %3944 = vst.msk [vmem:[%s3943] ss:$16 sm:$0x3] %vm3942, %v3941
    %s3945 = scalar_lea.vmem %s1, 2444
    %3946 = vst.msk [vmem:[%s3945] ss:$16 sm:$0xc] %vm3942, %v3941
    %s3947 = scalar_lea.vmem %s1, 2444
    %3948 = vst.msk [vmem:[%s3947] ss:$16 sm:$0x30] %vm3942, %v3941
    %s3949 = scalar_lea.vmem %s1, 2444
    %3950 = vst.msk [vmem:[%s3949] ss:$16 sm:$0xc0] %vm3942, %v3941
    %s3951 = scalar_lea.vmem [#allocation0], 160
    %v3952 = vld [vmem:[%s3951] sm:$0xff]
    %3953 = vrot.lane.b32.xlu0 %v3952, 80
    %v3954 = vpop.permute.xlu0 %3953
    %vm3955 = vcmask 31744
    %s3956 = scalar_lea.vmem %s1, 2572
    %3957 = vst.msk [vmem:[%s3956] ss:$16 sm:$0x3] %vm3955, %v3954
    %s3958 = scalar_lea.vmem %s1, 2572
    %3959 = vst.msk [vmem:[%s3958] ss:$16 sm:$0xc] %vm3955, %v3954
    %s3960 = scalar_lea.vmem %s1, 2572
    %3961 = vst.msk [vmem:[%s3960] ss:$16 sm:$0x30] %vm3955, %v3954
    %s3962 = scalar_lea.vmem %s1, 2572
    %3963 = vst.msk [vmem:[%s3962] ss:$16 sm:$0xc0] %vm3955, %v3954
    %s3964 = scalar_lea.vmem [#allocation0], 168
    %v3965 = vld [vmem:[%s3964] sm:$0xff]
    %3966 = vrot.lane.b32.xlu0 %v3965, 80
    %v3967 = vpop.permute.xlu0 %3966
    %vm3968 = vcmask 31744
    %s3969 = scalar_lea.vmem %s1, 2700
    %3970 = vst.msk [vmem:[%s3969] ss:$16 sm:$0x3] %vm3968, %v3967
    %s3971 = scalar_lea.vmem %s1, 2700
    %3972 = vst.msk [vmem:[%s3971] ss:$16 sm:$0xc] %vm3968, %v3967
    %s3973 = scalar_lea.vmem %s1, 2700
    %3974 = vst.msk [vmem:[%s3973] ss:$16 sm:$0x30] %vm3968, %v3967
    %s3975 = scalar_lea.vmem %s1, 2700
    %3976 = vst.msk [vmem:[%s3975] ss:$16 sm:$0xc0] %vm3968, %v3967
    %s3977 = scalar_lea.vmem [#allocation0], 176
    %v3978 = vld [vmem:[%s3977] sm:$0xff]
    %3979 = vrot.lane.b32.xlu0 %v3978, 80
    %v3980 = vpop.permute.xlu0 %3979
    %vm3981 = vcmask 31744
    %s3982 = scalar_lea.vmem %s1, 2828
    %3983 = vst.msk [vmem:[%s3982] ss:$16 sm:$0x3] %vm3981, %v3980
    %s3984 = scalar_lea.vmem %s1, 2828
    %3985 = vst.msk [vmem:[%s3984] ss:$16 sm:$0xc] %vm3981, %v3980
    %s3986 = scalar_lea.vmem %s1, 2828
    %3987 = vst.msk [vmem:[%s3986] ss:$16 sm:$0x30] %vm3981, %v3980
    %s3988 = scalar_lea.vmem %s1, 2828
    %3989 = vst.msk [vmem:[%s3988] ss:$16 sm:$0xc0] %vm3981, %v3980
    %s3990 = scalar_lea.vmem [#allocation0], 184
    %v3991 = vld [vmem:[%s3990] sm:$0xff]
    %3992 = vrot.lane.b32.xlu0 %v3991, 80
    %v3993 = vpop.permute.xlu0 %3992
    %vm3994 = vcmask 31744
    %s3995 = scalar_lea.vmem %s1, 2956
    %3996 = vst.msk [vmem:[%s3995] ss:$16 sm:$0x3] %vm3994, %v3993
    %s3997 = scalar_lea.vmem %s1, 2956
    %3998 = vst.msk [vmem:[%s3997] ss:$16 sm:$0xc] %vm3994, %v3993
    %s3999 = scalar_lea.vmem %s1, 2956
    %4000 = vst.msk [vmem:[%s3999] ss:$16 sm:$0x30] %vm3994, %v3993
    %s4001 = scalar_lea.vmem %s1, 2956
    %4002 = vst.msk [vmem:[%s4001] ss:$16 sm:$0xc0] %vm3994, %v3993
    %v4003 = vld [vmem:[#allocation0] sm:$0xff]
    %4004 = vrot.lane.b32.xlu0 %v4003, 76
    %v4005 = vpop.permute.xlu0 %4004
    %vm4006 = vcmask 31744
    %s4007 = scalar_lea.vmem %s1, 13
    %4008 = vst.msk [vmem:[%s4007] ss:$16 sm:$0x3] %vm4006, %v4005
    %s4009 = scalar_lea.vmem %s1, 13
    %4010 = vst.msk [vmem:[%s4009] ss:$16 sm:$0xc] %vm4006, %v4005
    %s4011 = scalar_lea.vmem %s1, 13
    %4012 = vst.msk [vmem:[%s4011] ss:$16 sm:$0x30] %vm4006, %v4005
    %s4013 = scalar_lea.vmem %s1, 13
    %4014 = vst.msk [vmem:[%s4013] ss:$16 sm:$0xc0] %vm4006, %v4005
    %s4015 = scalar_lea.vmem [#allocation0], 8
    %v4016 = vld [vmem:[%s4015] sm:$0xff]
    %4017 = vrot.lane.b32.xlu0 %v4016, 76
    %v4018 = vpop.permute.xlu0 %4017
    %vm4019 = vcmask 31744
    %s4020 = scalar_lea.vmem %s1, 141
    %4021 = vst.msk [vmem:[%s4020] ss:$16 sm:$0x3] %vm4019, %v4018
    %s4022 = scalar_lea.vmem %s1, 141
    %4023 = vst.msk [vmem:[%s4022] ss:$16 sm:$0xc] %vm4019, %v4018
    %s4024 = scalar_lea.vmem %s1, 141
    %4025 = vst.msk [vmem:[%s4024] ss:$16 sm:$0x30] %vm4019, %v4018
    %s4026 = scalar_lea.vmem %s1, 141
    %4027 = vst.msk [vmem:[%s4026] ss:$16 sm:$0xc0] %vm4019, %v4018
    %s4028 = scalar_lea.vmem [#allocation0], 16
    %v4029 = vld [vmem:[%s4028] sm:$0xff]
    %4030 = vrot.lane.b32.xlu0 %v4029, 76
    %v4031 = vpop.permute.xlu0 %4030
    %vm4032 = vcmask 31744
    %s4033 = scalar_lea.vmem %s1, 269
    %4034 = vst.msk [vmem:[%s4033] ss:$16 sm:$0x3] %vm4032, %v4031
    %s4035 = scalar_lea.vmem %s1, 269
    %4036 = vst.msk [vmem:[%s4035] ss:$16 sm:$0xc] %vm4032, %v4031
    %s4037 = scalar_lea.vmem %s1, 269
    %4038 = vst.msk [vmem:[%s4037] ss:$16 sm:$0x30] %vm4032, %v4031
    %s4039 = scalar_lea.vmem %s1, 269
    %4040 = vst.msk [vmem:[%s4039] ss:$16 sm:$0xc0] %vm4032, %v4031
    %s4041 = scalar_lea.vmem [#allocation0], 24
    %v4042 = vld [vmem:[%s4041] sm:$0xff]
    %4043 = vrot.lane.b32.xlu0 %v4042, 76
    %v4044 = vpop.permute.xlu0 %4043
    %vm4045 = vcmask 31744
    %s4046 = scalar_lea.vmem %s1, 397
    %4047 = vst.msk [vmem:[%s4046] ss:$16 sm:$0x3] %vm4045, %v4044
    %s4048 = scalar_lea.vmem %s1, 397
    %4049 = vst.msk [vmem:[%s4048] ss:$16 sm:$0xc] %vm4045, %v4044
    %s4050 = scalar_lea.vmem %s1, 397
    %4051 = vst.msk [vmem:[%s4050] ss:$16 sm:$0x30] %vm4045, %v4044
    %s4052 = scalar_lea.vmem %s1, 397
    %4053 = vst.msk [vmem:[%s4052] ss:$16 sm:$0xc0] %vm4045, %v4044
    %s4054 = scalar_lea.vmem [#allocation0], 32
    %v4055 = vld [vmem:[%s4054] sm:$0xff]
    %4056 = vrot.lane.b32.xlu0 %v4055, 76
    %v4057 = vpop.permute.xlu0 %4056
    %vm4058 = vcmask 31744
    %s4059 = scalar_lea.vmem %s1, 525
    %4060 = vst.msk [vmem:[%s4059] ss:$16 sm:$0x3] %vm4058, %v4057
    %s4061 = scalar_lea.vmem %s1, 525
    %4062 = vst.msk [vmem:[%s4061] ss:$16 sm:$0xc] %vm4058, %v4057
    %s4063 = scalar_lea.vmem %s1, 525
    %4064 = vst.msk [vmem:[%s4063] ss:$16 sm:$0x30] %vm4058, %v4057
    %s4065 = scalar_lea.vmem %s1, 525
    %4066 = vst.msk [vmem:[%s4065] ss:$16 sm:$0xc0] %vm4058, %v4057
    %s4067 = scalar_lea.vmem [#allocation0], 40
    %v4068 = vld [vmem:[%s4067] sm:$0xff]
    %4069 = vrot.lane.b32.xlu0 %v4068, 76
    %v4070 = vpop.permute.xlu0 %4069
    %vm4071 = vcmask 31744
    %s4072 = scalar_lea.vmem %s1, 653
    %4073 = vst.msk [vmem:[%s4072] ss:$16 sm:$0x3] %vm4071, %v4070
    %s4074 = scalar_lea.vmem %s1, 653
    %4075 = vst.msk [vmem:[%s4074] ss:$16 sm:$0xc] %vm4071, %v4070
    %s4076 = scalar_lea.vmem %s1, 653
    %4077 = vst.msk [vmem:[%s4076] ss:$16 sm:$0x30] %vm4071, %v4070
    %s4078 = scalar_lea.vmem %s1, 653
    %4079 = vst.msk [vmem:[%s4078] ss:$16 sm:$0xc0] %vm4071, %v4070
    %s4080 = scalar_lea.vmem [#allocation0], 48
    %v4081 = vld [vmem:[%s4080] sm:$0xff]
    %4082 = vrot.lane.b32.xlu0 %v4081, 76
    %v4083 = vpop.permute.xlu0 %4082
    %vm4084 = vcmask 31744
    %s4085 = scalar_lea.vmem %s1, 781
    %4086 = vst.msk [vmem:[%s4085] ss:$16 sm:$0x3] %vm4084, %v4083
    %s4087 = scalar_lea.vmem %s1, 781
    %4088 = vst.msk [vmem:[%s4087] ss:$16 sm:$0xc] %vm4084, %v4083
    %s4089 = scalar_lea.vmem %s1, 781
    %4090 = vst.msk [vmem:[%s4089] ss:$16 sm:$0x30] %vm4084, %v4083
    %s4091 = scalar_lea.vmem %s1, 781
    %4092 = vst.msk [vmem:[%s4091] ss:$16 sm:$0xc0] %vm4084, %v4083
    %s4093 = scalar_lea.vmem [#allocation0], 56
    %v4094 = vld [vmem:[%s4093] sm:$0xff]
    %4095 = vrot.lane.b32.xlu0 %v4094, 76
    %v4096 = vpop.permute.xlu0 %4095
    %vm4097 = vcmask 31744
    %s4098 = scalar_lea.vmem %s1, 909
    %4099 = vst.msk [vmem:[%s4098] ss:$16 sm:$0x3] %vm4097, %v4096
    %s4100 = scalar_lea.vmem %s1, 909
    %4101 = vst.msk [vmem:[%s4100] ss:$16 sm:$0xc] %vm4097, %v4096
    %s4102 = scalar_lea.vmem %s1, 909
    %4103 = vst.msk [vmem:[%s4102] ss:$16 sm:$0x30] %vm4097, %v4096
    %s4104 = scalar_lea.vmem %s1, 909
    %4105 = vst.msk [vmem:[%s4104] ss:$16 sm:$0xc0] %vm4097, %v4096
    %s4106 = scalar_lea.vmem [#allocation0], 64
    %v4107 = vld [vmem:[%s4106] sm:$0xff]
    %4108 = vrot.lane.b32.xlu0 %v4107, 76
    %v4109 = vpop.permute.xlu0 %4108
    %vm4110 = vcmask 31744
    %s4111 = scalar_lea.vmem %s1, 1037
    %4112 = vst.msk [vmem:[%s4111] ss:$16 sm:$0x3] %vm4110, %v4109
    %s4113 = scalar_lea.vmem %s1, 1037
    %4114 = vst.msk [vmem:[%s4113] ss:$16 sm:$0xc] %vm4110, %v4109
    %s4115 = scalar_lea.vmem %s1, 1037
    %4116 = vst.msk [vmem:[%s4115] ss:$16 sm:$0x30] %vm4110, %v4109
    %s4117 = scalar_lea.vmem %s1, 1037
    %4118 = vst.msk [vmem:[%s4117] ss:$16 sm:$0xc0] %vm4110, %v4109
    %s4119 = scalar_lea.vmem [#allocation0], 72
    %v4120 = vld [vmem:[%s4119] sm:$0xff]
    %4121 = vrot.lane.b32.xlu0 %v4120, 76
    %v4122 = vpop.permute.xlu0 %4121
    %vm4123 = vcmask 31744
    %s4124 = scalar_lea.vmem %s1, 1165
    %4125 = vst.msk [vmem:[%s4124] ss:$16 sm:$0x3] %vm4123, %v4122
    %s4126 = scalar_lea.vmem %s1, 1165
    %4127 = vst.msk [vmem:[%s4126] ss:$16 sm:$0xc] %vm4123, %v4122
    %s4128 = scalar_lea.vmem %s1, 1165
    %4129 = vst.msk [vmem:[%s4128] ss:$16 sm:$0x30] %vm4123, %v4122
    %s4130 = scalar_lea.vmem %s1, 1165
    %4131 = vst.msk [vmem:[%s4130] ss:$16 sm:$0xc0] %vm4123, %v4122
    %s4132 = scalar_lea.vmem [#allocation0], 80
    %v4133 = vld [vmem:[%s4132] sm:$0xff]
    %4134 = vrot.lane.b32.xlu0 %v4133, 76
    %v4135 = vpop.permute.xlu0 %4134
    %vm4136 = vcmask 31744
    %s4137 = scalar_lea.vmem %s1, 1293
    %4138 = vst.msk [vmem:[%s4137] ss:$16 sm:$0x3] %vm4136, %v4135
    %s4139 = scalar_lea.vmem %s1, 1293
    %4140 = vst.msk [vmem:[%s4139] ss:$16 sm:$0xc] %vm4136, %v4135
    %s4141 = scalar_lea.vmem %s1, 1293
    %4142 = vst.msk [vmem:[%s4141] ss:$16 sm:$0x30] %vm4136, %v4135
    %s4143 = scalar_lea.vmem %s1, 1293
    %4144 = vst.msk [vmem:[%s4143] ss:$16 sm:$0xc0] %vm4136, %v4135
    %s4145 = scalar_lea.vmem [#allocation0], 88
    %v4146 = vld [vmem:[%s4145] sm:$0xff]
    %4147 = vrot.lane.b32.xlu0 %v4146, 76
    %v4148 = vpop.permute.xlu0 %4147
    %vm4149 = vcmask 31744
    %s4150 = scalar_lea.vmem %s1, 1421
    %4151 = vst.msk [vmem:[%s4150] ss:$16 sm:$0x3] %vm4149, %v4148
    %s4152 = scalar_lea.vmem %s1, 1421
    %4153 = vst.msk [vmem:[%s4152] ss:$16 sm:$0xc] %vm4149, %v4148
    %s4154 = scalar_lea.vmem %s1, 1421
    %4155 = vst.msk [vmem:[%s4154] ss:$16 sm:$0x30] %vm4149, %v4148
    %s4156 = scalar_lea.vmem %s1, 1421
    %4157 = vst.msk [vmem:[%s4156] ss:$16 sm:$0xc0] %vm4149, %v4148
    %s4158 = scalar_lea.vmem [#allocation0], 96
    %v4159 = vld [vmem:[%s4158] sm:$0xff]
    %4160 = vrot.lane.b32.xlu0 %v4159, 76
    %v4161 = vpop.permute.xlu0 %4160
    %vm4162 = vcmask 31744
    %s4163 = scalar_lea.vmem %s1, 1549
    %4164 = vst.msk [vmem:[%s4163] ss:$16 sm:$0x3] %vm4162, %v4161
    %s4165 = scalar_lea.vmem %s1, 1549
    %4166 = vst.msk [vmem:[%s4165] ss:$16 sm:$0xc] %vm4162, %v4161
    %s4167 = scalar_lea.vmem %s1, 1549
    %4168 = vst.msk [vmem:[%s4167] ss:$16 sm:$0x30] %vm4162, %v4161
    %s4169 = scalar_lea.vmem %s1, 1549
    %4170 = vst.msk [vmem:[%s4169] ss:$16 sm:$0xc0] %vm4162, %v4161
    %s4171 = scalar_lea.vmem [#allocation0], 104
    %v4172 = vld [vmem:[%s4171] sm:$0xff]
    %4173 = vrot.lane.b32.xlu0 %v4172, 76
    %v4174 = vpop.permute.xlu0 %4173
    %vm4175 = vcmask 31744
    %s4176 = scalar_lea.vmem %s1, 1677
    %4177 = vst.msk [vmem:[%s4176] ss:$16 sm:$0x3] %vm4175, %v4174
    %s4178 = scalar_lea.vmem %s1, 1677
    %4179 = vst.msk [vmem:[%s4178] ss:$16 sm:$0xc] %vm4175, %v4174
    %s4180 = scalar_lea.vmem %s1, 1677
    %4181 = vst.msk [vmem:[%s4180] ss:$16 sm:$0x30] %vm4175, %v4174
    %s4182 = scalar_lea.vmem %s1, 1677
    %4183 = vst.msk [vmem:[%s4182] ss:$16 sm:$0xc0] %vm4175, %v4174
    %s4184 = scalar_lea.vmem [#allocation0], 112
    %v4185 = vld [vmem:[%s4184] sm:$0xff]
    %4186 = vrot.lane.b32.xlu0 %v4185, 76
    %v4187 = vpop.permute.xlu0 %4186
    %vm4188 = vcmask 31744
    %s4189 = scalar_lea.vmem %s1, 1805
    %4190 = vst.msk [vmem:[%s4189] ss:$16 sm:$0x3] %vm4188, %v4187
    %s4191 = scalar_lea.vmem %s1, 1805
    %4192 = vst.msk [vmem:[%s4191] ss:$16 sm:$0xc] %vm4188, %v4187
    %s4193 = scalar_lea.vmem %s1, 1805
    %4194 = vst.msk [vmem:[%s4193] ss:$16 sm:$0x30] %vm4188, %v4187
    %s4195 = scalar_lea.vmem %s1, 1805
    %4196 = vst.msk [vmem:[%s4195] ss:$16 sm:$0xc0] %vm4188, %v4187
    %s4197 = scalar_lea.vmem [#allocation0], 120
    %v4198 = vld [vmem:[%s4197] sm:$0xff]
    %4199 = vrot.lane.b32.xlu0 %v4198, 76
    %v4200 = vpop.permute.xlu0 %4199
    %vm4201 = vcmask 31744
    %s4202 = scalar_lea.vmem %s1, 1933
    %4203 = vst.msk [vmem:[%s4202] ss:$16 sm:$0x3] %vm4201, %v4200
    %s4204 = scalar_lea.vmem %s1, 1933
    %4205 = vst.msk [vmem:[%s4204] ss:$16 sm:$0xc] %vm4201, %v4200
    %s4206 = scalar_lea.vmem %s1, 1933
    %4207 = vst.msk [vmem:[%s4206] ss:$16 sm:$0x30] %vm4201, %v4200
    %s4208 = scalar_lea.vmem %s1, 1933
    %4209 = vst.msk [vmem:[%s4208] ss:$16 sm:$0xc0] %vm4201, %v4200
    %s4210 = scalar_lea.vmem [#allocation0], 128
    %v4211 = vld [vmem:[%s4210] sm:$0xff]
    %4212 = vrot.lane.b32.xlu0 %v4211, 76
    %v4213 = vpop.permute.xlu0 %4212
    %vm4214 = vcmask 31744
    %s4215 = scalar_lea.vmem %s1, 2061
    %4216 = vst.msk [vmem:[%s4215] ss:$16 sm:$0x3] %vm4214, %v4213
    %s4217 = scalar_lea.vmem %s1, 2061
    %4218 = vst.msk [vmem:[%s4217] ss:$16 sm:$0xc] %vm4214, %v4213
    %s4219 = scalar_lea.vmem %s1, 2061
    %4220 = vst.msk [vmem:[%s4219] ss:$16 sm:$0x30] %vm4214, %v4213
    %s4221 = scalar_lea.vmem %s1, 2061
    %4222 = vst.msk [vmem:[%s4221] ss:$16 sm:$0xc0] %vm4214, %v4213
    %s4223 = scalar_lea.vmem [#allocation0], 136
    %v4224 = vld [vmem:[%s4223] sm:$0xff]
    %4225 = vrot.lane.b32.xlu0 %v4224, 76
    %v4226 = vpop.permute.xlu0 %4225
    %vm4227 = vcmask 31744
    %s4228 = scalar_lea.vmem %s1, 2189
    %4229 = vst.msk [vmem:[%s4228] ss:$16 sm:$0x3] %vm4227, %v4226
    %s4230 = scalar_lea.vmem %s1, 2189
    %4231 = vst.msk [vmem:[%s4230] ss:$16 sm:$0xc] %vm4227, %v4226
    %s4232 = scalar_lea.vmem %s1, 2189
    %4233 = vst.msk [vmem:[%s4232] ss:$16 sm:$0x30] %vm4227, %v4226
    %s4234 = scalar_lea.vmem %s1, 2189
    %4235 = vst.msk [vmem:[%s4234] ss:$16 sm:$0xc0] %vm4227, %v4226
    %s4236 = scalar_lea.vmem [#allocation0], 144
    %v4237 = vld [vmem:[%s4236] sm:$0xff]
    %4238 = vrot.lane.b32.xlu0 %v4237, 76
    %v4239 = vpop.permute.xlu0 %4238
    %vm4240 = vcmask 31744
    %s4241 = scalar_lea.vmem %s1, 2317
    %4242 = vst.msk [vmem:[%s4241] ss:$16 sm:$0x3] %vm4240, %v4239
    %s4243 = scalar_lea.vmem %s1, 2317
    %4244 = vst.msk [vmem:[%s4243] ss:$16 sm:$0xc] %vm4240, %v4239
    %s4245 = scalar_lea.vmem %s1, 2317
    %4246 = vst.msk [vmem:[%s4245] ss:$16 sm:$0x30] %vm4240, %v4239
    %s4247 = scalar_lea.vmem %s1, 2317
    %4248 = vst.msk [vmem:[%s4247] ss:$16 sm:$0xc0] %vm4240, %v4239
    %s4249 = scalar_lea.vmem [#allocation0], 152
    %v4250 = vld [vmem:[%s4249] sm:$0xff]
    %4251 = vrot.lane.b32.xlu0 %v4250, 76
    %v4252 = vpop.permute.xlu0 %4251
    %vm4253 = vcmask 31744
    %s4254 = scalar_lea.vmem %s1, 2445
    %4255 = vst.msk [vmem:[%s4254] ss:$16 sm:$0x3] %vm4253, %v4252
    %s4256 = scalar_lea.vmem %s1, 2445
    %4257 = vst.msk [vmem:[%s4256] ss:$16 sm:$0xc] %vm4253, %v4252
    %s4258 = scalar_lea.vmem %s1, 2445
    %4259 = vst.msk [vmem:[%s4258] ss:$16 sm:$0x30] %vm4253, %v4252
    %s4260 = scalar_lea.vmem %s1, 2445
    %4261 = vst.msk [vmem:[%s4260] ss:$16 sm:$0xc0] %vm4253, %v4252
    %s4262 = scalar_lea.vmem [#allocation0], 160
    %v4263 = vld [vmem:[%s4262] sm:$0xff]
    %4264 = vrot.lane.b32.xlu0 %v4263, 76
    %v4265 = vpop.permute.xlu0 %4264
    %vm4266 = vcmask 31744
    %s4267 = scalar_lea.vmem %s1, 2573
    %4268 = vst.msk [vmem:[%s4267] ss:$16 sm:$0x3] %vm4266, %v4265
    %s4269 = scalar_lea.vmem %s1, 2573
    %4270 = vst.msk [vmem:[%s4269] ss:$16 sm:$0xc] %vm4266, %v4265
    %s4271 = scalar_lea.vmem %s1, 2573
    %4272 = vst.msk [vmem:[%s4271] ss:$16 sm:$0x30] %vm4266, %v4265
    %s4273 = scalar_lea.vmem %s1, 2573
    %4274 = vst.msk [vmem:[%s4273] ss:$16 sm:$0xc0] %vm4266, %v4265
    %s4275 = scalar_lea.vmem [#allocation0], 168
    %v4276 = vld [vmem:[%s4275] sm:$0xff]
    %4277 = vrot.lane.b32.xlu0 %v4276, 76
    %v4278 = vpop.permute.xlu0 %4277
    %vm4279 = vcmask 31744
    %s4280 = scalar_lea.vmem %s1, 2701
    %4281 = vst.msk [vmem:[%s4280] ss:$16 sm:$0x3] %vm4279, %v4278
    %s4282 = scalar_lea.vmem %s1, 2701
    %4283 = vst.msk [vmem:[%s4282] ss:$16 sm:$0xc] %vm4279, %v4278
    %s4284 = scalar_lea.vmem %s1, 2701
    %4285 = vst.msk [vmem:[%s4284] ss:$16 sm:$0x30] %vm4279, %v4278
    %s4286 = scalar_lea.vmem %s1, 2701
    %4287 = vst.msk [vmem:[%s4286] ss:$16 sm:$0xc0] %vm4279, %v4278
    %s4288 = scalar_lea.vmem [#allocation0], 176
    %v4289 = vld [vmem:[%s4288] sm:$0xff]
    %4290 = vrot.lane.b32.xlu0 %v4289, 76
    %v4291 = vpop.permute.xlu0 %4290
    %vm4292 = vcmask 31744
    %s4293 = scalar_lea.vmem %s1, 2829
    %4294 = vst.msk [vmem:[%s4293] ss:$16 sm:$0x3] %vm4292, %v4291
    %s4295 = scalar_lea.vmem %s1, 2829
    %4296 = vst.msk [vmem:[%s4295] ss:$16 sm:$0xc] %vm4292, %v4291
    %s4297 = scalar_lea.vmem %s1, 2829
    %4298 = vst.msk [vmem:[%s4297] ss:$16 sm:$0x30] %vm4292, %v4291
    %s4299 = scalar_lea.vmem %s1, 2829
    %4300 = vst.msk [vmem:[%s4299] ss:$16 sm:$0xc0] %vm4292, %v4291
    %s4301 = scalar_lea.vmem [#allocation0], 184
    %v4302 = vld [vmem:[%s4301] sm:$0xff]
    %4303 = vrot.lane.b32.xlu0 %v4302, 76
    %v4304 = vpop.permute.xlu0 %4303
    %vm4305 = vcmask 31744
    %s4306 = scalar_lea.vmem %s1, 2957
    %4307 = vst.msk [vmem:[%s4306] ss:$16 sm:$0x3] %vm4305, %v4304
    %s4308 = scalar_lea.vmem %s1, 2957
    %4309 = vst.msk [vmem:[%s4308] ss:$16 sm:$0xc] %vm4305, %v4304
    %s4310 = scalar_lea.vmem %s1, 2957
    %4311 = vst.msk [vmem:[%s4310] ss:$16 sm:$0x30] %vm4305, %v4304
    %s4312 = scalar_lea.vmem %s1, 2957
    %4313 = vst.msk [vmem:[%s4312] ss:$16 sm:$0xc0] %vm4305, %v4304
    %v4314 = vld [vmem:[#allocation0] sm:$0xff]
    %4315 = vrot.lane.b32.xlu0 %v4314, 72
    %v4316 = vpop.permute.xlu0 %4315
    %vm4317 = vcmask 31744
    %s4318 = scalar_lea.vmem %s1, 14
    %4319 = vst.msk [vmem:[%s4318] ss:$16 sm:$0x3] %vm4317, %v4316
    %s4320 = scalar_lea.vmem %s1, 14
    %4321 = vst.msk [vmem:[%s4320] ss:$16 sm:$0xc] %vm4317, %v4316
    %s4322 = scalar_lea.vmem %s1, 14
    %4323 = vst.msk [vmem:[%s4322] ss:$16 sm:$0x30] %vm4317, %v4316
    %s4324 = scalar_lea.vmem %s1, 14
    %4325 = vst.msk [vmem:[%s4324] ss:$16 sm:$0xc0] %vm4317, %v4316
    %s4326 = scalar_lea.vmem [#allocation0], 8
    %v4327 = vld [vmem:[%s4326] sm:$0xff]
    %4328 = vrot.lane.b32.xlu0 %v4327, 72
    %v4329 = vpop.permute.xlu0 %4328
    %vm4330 = vcmask 31744
    %s4331 = scalar_lea.vmem %s1, 142
    %4332 = vst.msk [vmem:[%s4331] ss:$16 sm:$0x3] %vm4330, %v4329
    %s4333 = scalar_lea.vmem %s1, 142
    %4334 = vst.msk [vmem:[%s4333] ss:$16 sm:$0xc] %vm4330, %v4329
    %s4335 = scalar_lea.vmem %s1, 142
    %4336 = vst.msk [vmem:[%s4335] ss:$16 sm:$0x30] %vm4330, %v4329
    %s4337 = scalar_lea.vmem %s1, 142
    %4338 = vst.msk [vmem:[%s4337] ss:$16 sm:$0xc0] %vm4330, %v4329
    %s4339 = scalar_lea.vmem [#allocation0], 16
    %v4340 = vld [vmem:[%s4339] sm:$0xff]
    %4341 = vrot.lane.b32.xlu0 %v4340, 72
    %v4342 = vpop.permute.xlu0 %4341
    %vm4343 = vcmask 31744
    %s4344 = scalar_lea.vmem %s1, 270
    %4345 = vst.msk [vmem:[%s4344] ss:$16 sm:$0x3] %vm4343, %v4342
    %s4346 = scalar_lea.vmem %s1, 270
    %4347 = vst.msk [vmem:[%s4346] ss:$16 sm:$0xc] %vm4343, %v4342
    %s4348 = scalar_lea.vmem %s1, 270
    %4349 = vst.msk [vmem:[%s4348] ss:$16 sm:$0x30] %vm4343, %v4342
    %s4350 = scalar_lea.vmem %s1, 270
    %4351 = vst.msk [vmem:[%s4350] ss:$16 sm:$0xc0] %vm4343, %v4342
    %s4352 = scalar_lea.vmem [#allocation0], 24
    %v4353 = vld [vmem:[%s4352] sm:$0xff]
    %4354 = vrot.lane.b32.xlu0 %v4353, 72
    %v4355 = vpop.permute.xlu0 %4354
    %vm4356 = vcmask 31744
    %s4357 = scalar_lea.vmem %s1, 398
    %4358 = vst.msk [vmem:[%s4357] ss:$16 sm:$0x3] %vm4356, %v4355
    %s4359 = scalar_lea.vmem %s1, 398
    %4360 = vst.msk [vmem:[%s4359] ss:$16 sm:$0xc] %vm4356, %v4355
    %s4361 = scalar_lea.vmem %s1, 398
    %4362 = vst.msk [vmem:[%s4361] ss:$16 sm:$0x30] %vm4356, %v4355
    %s4363 = scalar_lea.vmem %s1, 398
    %4364 = vst.msk [vmem:[%s4363] ss:$16 sm:$0xc0] %vm4356, %v4355
    %s4365 = scalar_lea.vmem [#allocation0], 32
    %v4366 = vld [vmem:[%s4365] sm:$0xff]
    %4367 = vrot.lane.b32.xlu0 %v4366, 72
    %v4368 = vpop.permute.xlu0 %4367
    %vm4369 = vcmask 31744
    %s4370 = scalar_lea.vmem %s1, 526
    %4371 = vst.msk [vmem:[%s4370] ss:$16 sm:$0x3] %vm4369, %v4368
    %s4372 = scalar_lea.vmem %s1, 526
    %4373 = vst.msk [vmem:[%s4372] ss:$16 sm:$0xc] %vm4369, %v4368
    %s4374 = scalar_lea.vmem %s1, 526
    %4375 = vst.msk [vmem:[%s4374] ss:$16 sm:$0x30] %vm4369, %v4368
    %s4376 = scalar_lea.vmem %s1, 526
    %4377 = vst.msk [vmem:[%s4376] ss:$16 sm:$0xc0] %vm4369, %v4368
    %s4378 = scalar_lea.vmem [#allocation0], 40
    %v4379 = vld [vmem:[%s4378] sm:$0xff]
    %4380 = vrot.lane.b32.xlu0 %v4379, 72
    %v4381 = vpop.permute.xlu0 %4380
    %vm4382 = vcmask 31744
    %s4383 = scalar_lea.vmem %s1, 654
    %4384 = vst.msk [vmem:[%s4383] ss:$16 sm:$0x3] %vm4382, %v4381
    %s4385 = scalar_lea.vmem %s1, 654
    %4386 = vst.msk [vmem:[%s4385] ss:$16 sm:$0xc] %vm4382, %v4381
    %s4387 = scalar_lea.vmem %s1, 654
    %4388 = vst.msk [vmem:[%s4387] ss:$16 sm:$0x30] %vm4382, %v4381
    %s4389 = scalar_lea.vmem %s1, 654
    %4390 = vst.msk [vmem:[%s4389] ss:$16 sm:$0xc0] %vm4382, %v4381
    %s4391 = scalar_lea.vmem [#allocation0], 48
    %v4392 = vld [vmem:[%s4391] sm:$0xff]
    %4393 = vrot.lane.b32.xlu0 %v4392, 72
    %v4394 = vpop.permute.xlu0 %4393
    %vm4395 = vcmask 31744
    %s4396 = scalar_lea.vmem %s1, 782
    %4397 = vst.msk [vmem:[%s4396] ss:$16 sm:$0x3] %vm4395, %v4394
    %s4398 = scalar_lea.vmem %s1, 782
    %4399 = vst.msk [vmem:[%s4398] ss:$16 sm:$0xc] %vm4395, %v4394
    %s4400 = scalar_lea.vmem %s1, 782
    %4401 = vst.msk [vmem:[%s4400] ss:$16 sm:$0x30] %vm4395, %v4394
    %s4402 = scalar_lea.vmem %s1, 782
    %4403 = vst.msk [vmem:[%s4402] ss:$16 sm:$0xc0] %vm4395, %v4394
    %s4404 = scalar_lea.vmem [#allocation0], 56
    %v4405 = vld [vmem:[%s4404] sm:$0xff]
    %4406 = vrot.lane.b32.xlu0 %v4405, 72
    %v4407 = vpop.permute.xlu0 %4406
    %vm4408 = vcmask 31744
    %s4409 = scalar_lea.vmem %s1, 910
    %4410 = vst.msk [vmem:[%s4409] ss:$16 sm:$0x3] %vm4408, %v4407
    %s4411 = scalar_lea.vmem %s1, 910
    %4412 = vst.msk [vmem:[%s4411] ss:$16 sm:$0xc] %vm4408, %v4407
    %s4413 = scalar_lea.vmem %s1, 910
    %4414 = vst.msk [vmem:[%s4413] ss:$16 sm:$0x30] %vm4408, %v4407
    %s4415 = scalar_lea.vmem %s1, 910
    %4416 = vst.msk [vmem:[%s4415] ss:$16 sm:$0xc0] %vm4408, %v4407
    %s4417 = scalar_lea.vmem [#allocation0], 64
    %v4418 = vld [vmem:[%s4417] sm:$0xff]
    %4419 = vrot.lane.b32.xlu0 %v4418, 72
    %v4420 = vpop.permute.xlu0 %4419
    %vm4421 = vcmask 31744
    %s4422 = scalar_lea.vmem %s1, 1038
    %4423 = vst.msk [vmem:[%s4422] ss:$16 sm:$0x3] %vm4421, %v4420
    %s4424 = scalar_lea.vmem %s1, 1038
    %4425 = vst.msk [vmem:[%s4424] ss:$16 sm:$0xc] %vm4421, %v4420
    %s4426 = scalar_lea.vmem %s1, 1038
    %4427 = vst.msk [vmem:[%s4426] ss:$16 sm:$0x30] %vm4421, %v4420
    %s4428 = scalar_lea.vmem %s1, 1038
    %4429 = vst.msk [vmem:[%s4428] ss:$16 sm:$0xc0] %vm4421, %v4420
    %s4430 = scalar_lea.vmem [#allocation0], 72
    %v4431 = vld [vmem:[%s4430] sm:$0xff]
    %4432 = vrot.lane.b32.xlu0 %v4431, 72
    %v4433 = vpop.permute.xlu0 %4432
    %vm4434 = vcmask 31744
    %s4435 = scalar_lea.vmem %s1, 1166
    %4436 = vst.msk [vmem:[%s4435] ss:$16 sm:$0x3] %vm4434, %v4433
    %s4437 = scalar_lea.vmem %s1, 1166
    %4438 = vst.msk [vmem:[%s4437] ss:$16 sm:$0xc] %vm4434, %v4433
    %s4439 = scalar_lea.vmem %s1, 1166
    %4440 = vst.msk [vmem:[%s4439] ss:$16 sm:$0x30] %vm4434, %v4433
    %s4441 = scalar_lea.vmem %s1, 1166
    %4442 = vst.msk [vmem:[%s4441] ss:$16 sm:$0xc0] %vm4434, %v4433
    %s4443 = scalar_lea.vmem [#allocation0], 80
    %v4444 = vld [vmem:[%s4443] sm:$0xff]
    %4445 = vrot.lane.b32.xlu0 %v4444, 72
    %v4446 = vpop.permute.xlu0 %4445
    %vm4447 = vcmask 31744
    %s4448 = scalar_lea.vmem %s1, 1294
    %4449 = vst.msk [vmem:[%s4448] ss:$16 sm:$0x3] %vm4447, %v4446
    %s4450 = scalar_lea.vmem %s1, 1294
    %4451 = vst.msk [vmem:[%s4450] ss:$16 sm:$0xc] %vm4447, %v4446
    %s4452 = scalar_lea.vmem %s1, 1294
    %4453 = vst.msk [vmem:[%s4452] ss:$16 sm:$0x30] %vm4447, %v4446
    %s4454 = scalar_lea.vmem %s1, 1294
    %4455 = vst.msk [vmem:[%s4454] ss:$16 sm:$0xc0] %vm4447, %v4446
    %s4456 = scalar_lea.vmem [#allocation0], 88
    %v4457 = vld [vmem:[%s4456] sm:$0xff]
    %4458 = vrot.lane.b32.xlu0 %v4457, 72
    %v4459 = vpop.permute.xlu0 %4458
    %vm4460 = vcmask 31744
    %s4461 = scalar_lea.vmem %s1, 1422
    %4462 = vst.msk [vmem:[%s4461] ss:$16 sm:$0x3] %vm4460, %v4459
    %s4463 = scalar_lea.vmem %s1, 1422
    %4464 = vst.msk [vmem:[%s4463] ss:$16 sm:$0xc] %vm4460, %v4459
    %s4465 = scalar_lea.vmem %s1, 1422
    %4466 = vst.msk [vmem:[%s4465] ss:$16 sm:$0x30] %vm4460, %v4459
    %s4467 = scalar_lea.vmem %s1, 1422
    %4468 = vst.msk [vmem:[%s4467] ss:$16 sm:$0xc0] %vm4460, %v4459
    %s4469 = scalar_lea.vmem [#allocation0], 96
    %v4470 = vld [vmem:[%s4469] sm:$0xff]
    %4471 = vrot.lane.b32.xlu0 %v4470, 72
    %v4472 = vpop.permute.xlu0 %4471
    %vm4473 = vcmask 31744
    %s4474 = scalar_lea.vmem %s1, 1550
    %4475 = vst.msk [vmem:[%s4474] ss:$16 sm:$0x3] %vm4473, %v4472
    %s4476 = scalar_lea.vmem %s1, 1550
    %4477 = vst.msk [vmem:[%s4476] ss:$16 sm:$0xc] %vm4473, %v4472
    %s4478 = scalar_lea.vmem %s1, 1550
    %4479 = vst.msk [vmem:[%s4478] ss:$16 sm:$0x30] %vm4473, %v4472
    %s4480 = scalar_lea.vmem %s1, 1550
    %4481 = vst.msk [vmem:[%s4480] ss:$16 sm:$0xc0] %vm4473, %v4472
    %s4482 = scalar_lea.vmem [#allocation0], 104
    %v4483 = vld [vmem:[%s4482] sm:$0xff]
    %4484 = vrot.lane.b32.xlu0 %v4483, 72
    %v4485 = vpop.permute.xlu0 %4484
    %vm4486 = vcmask 31744
    %s4487 = scalar_lea.vmem %s1, 1678
    %4488 = vst.msk [vmem:[%s4487] ss:$16 sm:$0x3] %vm4486, %v4485
    %s4489 = scalar_lea.vmem %s1, 1678
    %4490 = vst.msk [vmem:[%s4489] ss:$16 sm:$0xc] %vm4486, %v4485
    %s4491 = scalar_lea.vmem %s1, 1678
    %4492 = vst.msk [vmem:[%s4491] ss:$16 sm:$0x30] %vm4486, %v4485
    %s4493 = scalar_lea.vmem %s1, 1678
    %4494 = vst.msk [vmem:[%s4493] ss:$16 sm:$0xc0] %vm4486, %v4485
    %s4495 = scalar_lea.vmem [#allocation0], 112
    %v4496 = vld [vmem:[%s4495] sm:$0xff]
    %4497 = vrot.lane.b32.xlu0 %v4496, 72
    %v4498 = vpop.permute.xlu0 %4497
    %vm4499 = vcmask 31744
    %s4500 = scalar_lea.vmem %s1, 1806
    %4501 = vst.msk [vmem:[%s4500] ss:$16 sm:$0x3] %vm4499, %v4498
    %s4502 = scalar_lea.vmem %s1, 1806
    %4503 = vst.msk [vmem:[%s4502] ss:$16 sm:$0xc] %vm4499, %v4498
    %s4504 = scalar_lea.vmem %s1, 1806
    %4505 = vst.msk [vmem:[%s4504] ss:$16 sm:$0x30] %vm4499, %v4498
    %s4506 = scalar_lea.vmem %s1, 1806
    %4507 = vst.msk [vmem:[%s4506] ss:$16 sm:$0xc0] %vm4499, %v4498
    %s4508 = scalar_lea.vmem [#allocation0], 120
    %v4509 = vld [vmem:[%s4508] sm:$0xff]
    %4510 = vrot.lane.b32.xlu0 %v4509, 72
    %v4511 = vpop.permute.xlu0 %4510
    %vm4512 = vcmask 31744
    %s4513 = scalar_lea.vmem %s1, 1934
    %4514 = vst.msk [vmem:[%s4513] ss:$16 sm:$0x3] %vm4512, %v4511
    %s4515 = scalar_lea.vmem %s1, 1934
    %4516 = vst.msk [vmem:[%s4515] ss:$16 sm:$0xc] %vm4512, %v4511
    %s4517 = scalar_lea.vmem %s1, 1934
    %4518 = vst.msk [vmem:[%s4517] ss:$16 sm:$0x30] %vm4512, %v4511
    %s4519 = scalar_lea.vmem %s1, 1934
    %4520 = vst.msk [vmem:[%s4519] ss:$16 sm:$0xc0] %vm4512, %v4511
    %s4521 = scalar_lea.vmem [#allocation0], 128
    %v4522 = vld [vmem:[%s4521] sm:$0xff]
    %4523 = vrot.lane.b32.xlu0 %v4522, 72
    %v4524 = vpop.permute.xlu0 %4523
    %vm4525 = vcmask 31744
    %s4526 = scalar_lea.vmem %s1, 2062
    %4527 = vst.msk [vmem:[%s4526] ss:$16 sm:$0x3] %vm4525, %v4524
    %s4528 = scalar_lea.vmem %s1, 2062
    %4529 = vst.msk [vmem:[%s4528] ss:$16 sm:$0xc] %vm4525, %v4524
    %s4530 = scalar_lea.vmem %s1, 2062
    %4531 = vst.msk [vmem:[%s4530] ss:$16 sm:$0x30] %vm4525, %v4524
    %s4532 = scalar_lea.vmem %s1, 2062
    %4533 = vst.msk [vmem:[%s4532] ss:$16 sm:$0xc0] %vm4525, %v4524
    %s4534 = scalar_lea.vmem [#allocation0], 136
    %v4535 = vld [vmem:[%s4534] sm:$0xff]
    %4536 = vrot.lane.b32.xlu0 %v4535, 72
    %v4537 = vpop.permute.xlu0 %4536
    %vm4538 = vcmask 31744
    %s4539 = scalar_lea.vmem %s1, 2190
    %4540 = vst.msk [vmem:[%s4539] ss:$16 sm:$0x3] %vm4538, %v4537
    %s4541 = scalar_lea.vmem %s1, 2190
    %4542 = vst.msk [vmem:[%s4541] ss:$16 sm:$0xc] %vm4538, %v4537
    %s4543 = scalar_lea.vmem %s1, 2190
    %4544 = vst.msk [vmem:[%s4543] ss:$16 sm:$0x30] %vm4538, %v4537
    %s4545 = scalar_lea.vmem %s1, 2190
    %4546 = vst.msk [vmem:[%s4545] ss:$16 sm:$0xc0] %vm4538, %v4537
    %s4547 = scalar_lea.vmem [#allocation0], 144
    %v4548 = vld [vmem:[%s4547] sm:$0xff]
    %4549 = vrot.lane.b32.xlu0 %v4548, 72
    %v4550 = vpop.permute.xlu0 %4549
    %vm4551 = vcmask 31744
    %s4552 = scalar_lea.vmem %s1, 2318
    %4553 = vst.msk [vmem:[%s4552] ss:$16 sm:$0x3] %vm4551, %v4550
    %s4554 = scalar_lea.vmem %s1, 2318
    %4555 = vst.msk [vmem:[%s4554] ss:$16 sm:$0xc] %vm4551, %v4550
    %s4556 = scalar_lea.vmem %s1, 2318
    %4557 = vst.msk [vmem:[%s4556] ss:$16 sm:$0x30] %vm4551, %v4550
    %s4558 = scalar_lea.vmem %s1, 2318
    %4559 = vst.msk [vmem:[%s4558] ss:$16 sm:$0xc0] %vm4551, %v4550
    %s4560 = scalar_lea.vmem [#allocation0], 152
    %v4561 = vld [vmem:[%s4560] sm:$0xff]
    %4562 = vrot.lane.b32.xlu0 %v4561, 72
    %v4563 = vpop.permute.xlu0 %4562
    %vm4564 = vcmask 31744
    %s4565 = scalar_lea.vmem %s1, 2446
    %4566 = vst.msk [vmem:[%s4565] ss:$16 sm:$0x3] %vm4564, %v4563
    %s4567 = scalar_lea.vmem %s1, 2446
    %4568 = vst.msk [vmem:[%s4567] ss:$16 sm:$0xc] %vm4564, %v4563
    %s4569 = scalar_lea.vmem %s1, 2446
    %4570 = vst.msk [vmem:[%s4569] ss:$16 sm:$0x30] %vm4564, %v4563
    %s4571 = scalar_lea.vmem %s1, 2446
    %4572 = vst.msk [vmem:[%s4571] ss:$16 sm:$0xc0] %vm4564, %v4563
    %s4573 = scalar_lea.vmem [#allocation0], 160
    %v4574 = vld [vmem:[%s4573] sm:$0xff]
    %4575 = vrot.lane.b32.xlu0 %v4574, 72
    %v4576 = vpop.permute.xlu0 %4575
    %vm4577 = vcmask 31744
    %s4578 = scalar_lea.vmem %s1, 2574
    %4579 = vst.msk [vmem:[%s4578] ss:$16 sm:$0x3] %vm4577, %v4576
    %s4580 = scalar_lea.vmem %s1, 2574
    %4581 = vst.msk [vmem:[%s4580] ss:$16 sm:$0xc] %vm4577, %v4576
    %s4582 = scalar_lea.vmem %s1, 2574
    %4583 = vst.msk [vmem:[%s4582] ss:$16 sm:$0x30] %vm4577, %v4576
    %s4584 = scalar_lea.vmem %s1, 2574
    %4585 = vst.msk [vmem:[%s4584] ss:$16 sm:$0xc0] %vm4577, %v4576
    %s4586 = scalar_lea.vmem [#allocation0], 168
    %v4587 = vld [vmem:[%s4586] sm:$0xff]
    %4588 = vrot.lane.b32.xlu0 %v4587, 72
    %v4589 = vpop.permute.xlu0 %4588
    %vm4590 = vcmask 31744
    %s4591 = scalar_lea.vmem %s1, 2702
    %4592 = vst.msk [vmem:[%s4591] ss:$16 sm:$0x3] %vm4590, %v4589
    %s4593 = scalar_lea.vmem %s1, 2702
    %4594 = vst.msk [vmem:[%s4593] ss:$16 sm:$0xc] %vm4590, %v4589
    %s4595 = scalar_lea.vmem %s1, 2702
    %4596 = vst.msk [vmem:[%s4595] ss:$16 sm:$0x30] %vm4590, %v4589
    %s4597 = scalar_lea.vmem %s1, 2702
    %4598 = vst.msk [vmem:[%s4597] ss:$16 sm:$0xc0] %vm4590, %v4589
    %s4599 = scalar_lea.vmem [#allocation0], 176
    %v4600 = vld [vmem:[%s4599] sm:$0xff]
    %4601 = vrot.lane.b32.xlu0 %v4600, 72
    %v4602 = vpop.permute.xlu0 %4601
    %vm4603 = vcmask 31744
    %s4604 = scalar_lea.vmem %s1, 2830
    %4605 = vst.msk [vmem:[%s4604] ss:$16 sm:$0x3] %vm4603, %v4602
    %s4606 = scalar_lea.vmem %s1, 2830
    %4607 = vst.msk [vmem:[%s4606] ss:$16 sm:$0xc] %vm4603, %v4602
    %s4608 = scalar_lea.vmem %s1, 2830
    %4609 = vst.msk [vmem:[%s4608] ss:$16 sm:$0x30] %vm4603, %v4602
    %s4610 = scalar_lea.vmem %s1, 2830
    %4611 = vst.msk [vmem:[%s4610] ss:$16 sm:$0xc0] %vm4603, %v4602
    %s4612 = scalar_lea.vmem [#allocation0], 184
    %v4613 = vld [vmem:[%s4612] sm:$0xff]
    %4614 = vrot.lane.b32.xlu0 %v4613, 72
    %v4615 = vpop.permute.xlu0 %4614
    %vm4616 = vcmask 31744
    %s4617 = scalar_lea.vmem %s1, 2958
    %4618 = vst.msk [vmem:[%s4617] ss:$16 sm:$0x3] %vm4616, %v4615
    %s4619 = scalar_lea.vmem %s1, 2958
    %4620 = vst.msk [vmem:[%s4619] ss:$16 sm:$0xc] %vm4616, %v4615
    %s4621 = scalar_lea.vmem %s1, 2958
    %4622 = vst.msk [vmem:[%s4621] ss:$16 sm:$0x30] %vm4616, %v4615
    %s4623 = scalar_lea.vmem %s1, 2958
    %4624 = vst.msk [vmem:[%s4623] ss:$16 sm:$0xc0] %vm4616, %v4615
    %v4625 = vld [vmem:[#allocation0] sm:$0xff]
    %4626 = vrot.lane.b32.xlu0 %v4625, 68
    %v4627 = vpop.permute.xlu0 %4626
    %vm4628 = vcmask 31744
    %s4629 = scalar_lea.vmem %s1, 15
    %4630 = vst.msk [vmem:[%s4629] ss:$16 sm:$0x3] %vm4628, %v4627
    %s4631 = scalar_lea.vmem %s1, 15
    %4632 = vst.msk [vmem:[%s4631] ss:$16 sm:$0xc] %vm4628, %v4627
    %s4633 = scalar_lea.vmem %s1, 15
    %4634 = vst.msk [vmem:[%s4633] ss:$16 sm:$0x30] %vm4628, %v4627
    %s4635 = scalar_lea.vmem %s1, 15
    %4636 = vst.msk [vmem:[%s4635] ss:$16 sm:$0xc0] %vm4628, %v4627
    %s4637 = scalar_lea.vmem [#allocation0], 8
    %v4638 = vld [vmem:[%s4637] sm:$0xff]
    %4639 = vrot.lane.b32.xlu0 %v4638, 68
    %v4640 = vpop.permute.xlu0 %4639
    %vm4641 = vcmask 31744
    %s4642 = scalar_lea.vmem %s1, 143
    %4643 = vst.msk [vmem:[%s4642] ss:$16 sm:$0x3] %vm4641, %v4640
    %s4644 = scalar_lea.vmem %s1, 143
    %4645 = vst.msk [vmem:[%s4644] ss:$16 sm:$0xc] %vm4641, %v4640
    %s4646 = scalar_lea.vmem %s1, 143
    %4647 = vst.msk [vmem:[%s4646] ss:$16 sm:$0x30] %vm4641, %v4640
    %s4648 = scalar_lea.vmem %s1, 143
    %4649 = vst.msk [vmem:[%s4648] ss:$16 sm:$0xc0] %vm4641, %v4640
    %s4650 = scalar_lea.vmem [#allocation0], 16
    %v4651 = vld [vmem:[%s4650] sm:$0xff]
    %4652 = vrot.lane.b32.xlu0 %v4651, 68
    %v4653 = vpop.permute.xlu0 %4652
    %vm4654 = vcmask 31744
    %s4655 = scalar_lea.vmem %s1, 271
    %4656 = vst.msk [vmem:[%s4655] ss:$16 sm:$0x3] %vm4654, %v4653
    %s4657 = scalar_lea.vmem %s1, 271
    %4658 = vst.msk [vmem:[%s4657] ss:$16 sm:$0xc] %vm4654, %v4653
    %s4659 = scalar_lea.vmem %s1, 271
    %4660 = vst.msk [vmem:[%s4659] ss:$16 sm:$0x30] %vm4654, %v4653
    %s4661 = scalar_lea.vmem %s1, 271
    %4662 = vst.msk [vmem:[%s4661] ss:$16 sm:$0xc0] %vm4654, %v4653
    %s4663 = scalar_lea.vmem [#allocation0], 24
    %v4664 = vld [vmem:[%s4663] sm:$0xff]
    %4665 = vrot.lane.b32.xlu0 %v4664, 68
    %v4666 = vpop.permute.xlu0 %4665
    %vm4667 = vcmask 31744
    %s4668 = scalar_lea.vmem %s1, 399
    %4669 = vst.msk [vmem:[%s4668] ss:$16 sm:$0x3] %vm4667, %v4666
    %s4670 = scalar_lea.vmem %s1, 399
    %4671 = vst.msk [vmem:[%s4670] ss:$16 sm:$0xc] %vm4667, %v4666
    %s4672 = scalar_lea.vmem %s1, 399
    %4673 = vst.msk [vmem:[%s4672] ss:$16 sm:$0x30] %vm4667, %v4666
    %s4674 = scalar_lea.vmem %s1, 399
    %4675 = vst.msk [vmem:[%s4674] ss:$16 sm:$0xc0] %vm4667, %v4666
    %s4676 = scalar_lea.vmem [#allocation0], 32
    %v4677 = vld [vmem:[%s4676] sm:$0xff]
    %4678 = vrot.lane.b32.xlu0 %v4677, 68
    %v4679 = vpop.permute.xlu0 %4678
    %vm4680 = vcmask 31744
    %s4681 = scalar_lea.vmem %s1, 527
    %4682 = vst.msk [vmem:[%s4681] ss:$16 sm:$0x3] %vm4680, %v4679
    %s4683 = scalar_lea.vmem %s1, 527
    %4684 = vst.msk [vmem:[%s4683] ss:$16 sm:$0xc] %vm4680, %v4679
    %s4685 = scalar_lea.vmem %s1, 527
    %4686 = vst.msk [vmem:[%s4685] ss:$16 sm:$0x30] %vm4680, %v4679
    %s4687 = scalar_lea.vmem %s1, 527
    %4688 = vst.msk [vmem:[%s4687] ss:$16 sm:$0xc0] %vm4680, %v4679
    %s4689 = scalar_lea.vmem [#allocation0], 40
    %v4690 = vld [vmem:[%s4689] sm:$0xff]
    %4691 = vrot.lane.b32.xlu0 %v4690, 68
    %v4692 = vpop.permute.xlu0 %4691
    %vm4693 = vcmask 31744
    %s4694 = scalar_lea.vmem %s1, 655
    %4695 = vst.msk [vmem:[%s4694] ss:$16 sm:$0x3] %vm4693, %v4692
    %s4696 = scalar_lea.vmem %s1, 655
    %4697 = vst.msk [vmem:[%s4696] ss:$16 sm:$0xc] %vm4693, %v4692
    %s4698 = scalar_lea.vmem %s1, 655
    %4699 = vst.msk [vmem:[%s4698] ss:$16 sm:$0x30] %vm4693, %v4692
    %s4700 = scalar_lea.vmem %s1, 655
    %4701 = vst.msk [vmem:[%s4700] ss:$16 sm:$0xc0] %vm4693, %v4692
    %s4702 = scalar_lea.vmem [#allocation0], 48
    %v4703 = vld [vmem:[%s4702] sm:$0xff]
    %4704 = vrot.lane.b32.xlu0 %v4703, 68
    %v4705 = vpop.permute.xlu0 %4704
    %vm4706 = vcmask 31744
    %s4707 = scalar_lea.vmem %s1, 783
    %4708 = vst.msk [vmem:[%s4707] ss:$16 sm:$0x3] %vm4706, %v4705
    %s4709 = scalar_lea.vmem %s1, 783
    %4710 = vst.msk [vmem:[%s4709] ss:$16 sm:$0xc] %vm4706, %v4705
    %s4711 = scalar_lea.vmem %s1, 783
    %4712 = vst.msk [vmem:[%s4711] ss:$16 sm:$0x30] %vm4706, %v4705
    %s4713 = scalar_lea.vmem %s1, 783
    %4714 = vst.msk [vmem:[%s4713] ss:$16 sm:$0xc0] %vm4706, %v4705
    %s4715 = scalar_lea.vmem [#allocation0], 56
    %v4716 = vld [vmem:[%s4715] sm:$0xff]
    %4717 = vrot.lane.b32.xlu0 %v4716, 68
    %v4718 = vpop.permute.xlu0 %4717
    %vm4719 = vcmask 31744
    %s4720 = scalar_lea.vmem %s1, 911
    %4721 = vst.msk [vmem:[%s4720] ss:$16 sm:$0x3] %vm4719, %v4718
    %s4722 = scalar_lea.vmem %s1, 911
    %4723 = vst.msk [vmem:[%s4722] ss:$16 sm:$0xc] %vm4719, %v4718
    %s4724 = scalar_lea.vmem %s1, 911
    %4725 = vst.msk [vmem:[%s4724] ss:$16 sm:$0x30] %vm4719, %v4718
    %s4726 = scalar_lea.vmem %s1, 911
    %4727 = vst.msk [vmem:[%s4726] ss:$16 sm:$0xc0] %vm4719, %v4718
    %s4728 = scalar_lea.vmem [#allocation0], 64
    %v4729 = vld [vmem:[%s4728] sm:$0xff]
    %4730 = vrot.lane.b32.xlu0 %v4729, 68
    %v4731 = vpop.permute.xlu0 %4730
    %vm4732 = vcmask 31744
    %s4733 = scalar_lea.vmem %s1, 1039
    %4734 = vst.msk [vmem:[%s4733] ss:$16 sm:$0x3] %vm4732, %v4731
    %s4735 = scalar_lea.vmem %s1, 1039
    %4736 = vst.msk [vmem:[%s4735] ss:$16 sm:$0xc] %vm4732, %v4731
    %s4737 = scalar_lea.vmem %s1, 1039
    %4738 = vst.msk [vmem:[%s4737] ss:$16 sm:$0x30] %vm4732, %v4731
    %s4739 = scalar_lea.vmem %s1, 1039
    %4740 = vst.msk [vmem:[%s4739] ss:$16 sm:$0xc0] %vm4732, %v4731
    %s4741 = scalar_lea.vmem [#allocation0], 72
    %v4742 = vld [vmem:[%s4741] sm:$0xff]
    %4743 = vrot.lane.b32.xlu0 %v4742, 68
    %v4744 = vpop.permute.xlu0 %4743
    %vm4745 = vcmask 31744
    %s4746 = scalar_lea.vmem %s1, 1167
    %4747 = vst.msk [vmem:[%s4746] ss:$16 sm:$0x3] %vm4745, %v4744
    %s4748 = scalar_lea.vmem %s1, 1167
    %4749 = vst.msk [vmem:[%s4748] ss:$16 sm:$0xc] %vm4745, %v4744
    %s4750 = scalar_lea.vmem %s1, 1167
    %4751 = vst.msk [vmem:[%s4750] ss:$16 sm:$0x30] %vm4745, %v4744
    %s4752 = scalar_lea.vmem %s1, 1167
    %4753 = vst.msk [vmem:[%s4752] ss:$16 sm:$0xc0] %vm4745, %v4744
    %s4754 = scalar_lea.vmem [#allocation0], 80
    %v4755 = vld [vmem:[%s4754] sm:$0xff]
    %4756 = vrot.lane.b32.xlu0 %v4755, 68
    %v4757 = vpop.permute.xlu0 %4756
    %vm4758 = vcmask 31744
    %s4759 = scalar_lea.vmem %s1, 1295
    %4760 = vst.msk [vmem:[%s4759] ss:$16 sm:$0x3] %vm4758, %v4757
    %s4761 = scalar_lea.vmem %s1, 1295
    %4762 = vst.msk [vmem:[%s4761] ss:$16 sm:$0xc] %vm4758, %v4757
    %s4763 = scalar_lea.vmem %s1, 1295
    %4764 = vst.msk [vmem:[%s4763] ss:$16 sm:$0x30] %vm4758, %v4757
    %s4765 = scalar_lea.vmem %s1, 1295
    %4766 = vst.msk [vmem:[%s4765] ss:$16 sm:$0xc0] %vm4758, %v4757
    %s4767 = scalar_lea.vmem [#allocation0], 88
    %v4768 = vld [vmem:[%s4767] sm:$0xff]
    %4769 = vrot.lane.b32.xlu0 %v4768, 68
    %v4770 = vpop.permute.xlu0 %4769
    %vm4771 = vcmask 31744
    %s4772 = scalar_lea.vmem %s1, 1423
    %4773 = vst.msk [vmem:[%s4772] ss:$16 sm:$0x3] %vm4771, %v4770
    %s4774 = scalar_lea.vmem %s1, 1423
    %4775 = vst.msk [vmem:[%s4774] ss:$16 sm:$0xc] %vm4771, %v4770
    %s4776 = scalar_lea.vmem %s1, 1423
    %4777 = vst.msk [vmem:[%s4776] ss:$16 sm:$0x30] %vm4771, %v4770
    %s4778 = scalar_lea.vmem %s1, 1423
    %4779 = vst.msk [vmem:[%s4778] ss:$16 sm:$0xc0] %vm4771, %v4770
    %s4780 = scalar_lea.vmem [#allocation0], 96
    %v4781 = vld [vmem:[%s4780] sm:$0xff]
    %4782 = vrot.lane.b32.xlu0 %v4781, 68
    %v4783 = vpop.permute.xlu0 %4782
    %vm4784 = vcmask 31744
    %s4785 = scalar_lea.vmem %s1, 1551
    %4786 = vst.msk [vmem:[%s4785] ss:$16 sm:$0x3] %vm4784, %v4783
    %s4787 = scalar_lea.vmem %s1, 1551
    %4788 = vst.msk [vmem:[%s4787] ss:$16 sm:$0xc] %vm4784, %v4783
    %s4789 = scalar_lea.vmem %s1, 1551
    %4790 = vst.msk [vmem:[%s4789] ss:$16 sm:$0x30] %vm4784, %v4783
    %s4791 = scalar_lea.vmem %s1, 1551
    %4792 = vst.msk [vmem:[%s4791] ss:$16 sm:$0xc0] %vm4784, %v4783
    %s4793 = scalar_lea.vmem [#allocation0], 104
    %v4794 = vld [vmem:[%s4793] sm:$0xff]
    %4795 = vrot.lane.b32.xlu0 %v4794, 68
    %v4796 = vpop.permute.xlu0 %4795
    %vm4797 = vcmask 31744
    %s4798 = scalar_lea.vmem %s1, 1679
    %4799 = vst.msk [vmem:[%s4798] ss:$16 sm:$0x3] %vm4797, %v4796
    %s4800 = scalar_lea.vmem %s1, 1679
    %4801 = vst.msk [vmem:[%s4800] ss:$16 sm:$0xc] %vm4797, %v4796
    %s4802 = scalar_lea.vmem %s1, 1679
    %4803 = vst.msk [vmem:[%s4802] ss:$16 sm:$0x30] %vm4797, %v4796
    %s4804 = scalar_lea.vmem %s1, 1679
    %4805 = vst.msk [vmem:[%s4804] ss:$16 sm:$0xc0] %vm4797, %v4796
    %s4806 = scalar_lea.vmem [#allocation0], 112
    %v4807 = vld [vmem:[%s4806] sm:$0xff]
    %4808 = vrot.lane.b32.xlu0 %v4807, 68
    %v4809 = vpop.permute.xlu0 %4808
    %vm4810 = vcmask 31744
    %s4811 = scalar_lea.vmem %s1, 1807
    %4812 = vst.msk [vmem:[%s4811] ss:$16 sm:$0x3] %vm4810, %v4809
    %s4813 = scalar_lea.vmem %s1, 1807
    %4814 = vst.msk [vmem:[%s4813] ss:$16 sm:$0xc] %vm4810, %v4809
    %s4815 = scalar_lea.vmem %s1, 1807
    %4816 = vst.msk [vmem:[%s4815] ss:$16 sm:$0x30] %vm4810, %v4809
    %s4817 = scalar_lea.vmem %s1, 1807
    %4818 = vst.msk [vmem:[%s4817] ss:$16 sm:$0xc0] %vm4810, %v4809
    %s4819 = scalar_lea.vmem [#allocation0], 120
    %v4820 = vld [vmem:[%s4819] sm:$0xff]
    %4821 = vrot.lane.b32.xlu0 %v4820, 68
    %v4822 = vpop.permute.xlu0 %4821
    %vm4823 = vcmask 31744
    %s4824 = scalar_lea.vmem %s1, 1935
    %4825 = vst.msk [vmem:[%s4824] ss:$16 sm:$0x3] %vm4823, %v4822
    %s4826 = scalar_lea.vmem %s1, 1935
    %4827 = vst.msk [vmem:[%s4826] ss:$16 sm:$0xc] %vm4823, %v4822
    %s4828 = scalar_lea.vmem %s1, 1935
    %4829 = vst.msk [vmem:[%s4828] ss:$16 sm:$0x30] %vm4823, %v4822
    %s4830 = scalar_lea.vmem %s1, 1935
    %4831 = vst.msk [vmem:[%s4830] ss:$16 sm:$0xc0] %vm4823, %v4822
    %s4832 = scalar_lea.vmem [#allocation0], 128
    %v4833 = vld [vmem:[%s4832] sm:$0xff]
    %4834 = vrot.lane.b32.xlu0 %v4833, 68
    %v4835 = vpop.permute.xlu0 %4834
    %vm4836 = vcmask 31744
    %s4837 = scalar_lea.vmem %s1, 2063
    %4838 = vst.msk [vmem:[%s4837] ss:$16 sm:$0x3] %vm4836, %v4835
    %s4839 = scalar_lea.vmem %s1, 2063
    %4840 = vst.msk [vmem:[%s4839] ss:$16 sm:$0xc] %vm4836, %v4835
    %s4841 = scalar_lea.vmem %s1, 2063
    %4842 = vst.msk [vmem:[%s4841] ss:$16 sm:$0x30] %vm4836, %v4835
    %s4843 = scalar_lea.vmem %s1, 2063
    %4844 = vst.msk [vmem:[%s4843] ss:$16 sm:$0xc0] %vm4836, %v4835
    %s4845 = scalar_lea.vmem [#allocation0], 136
    %v4846 = vld [vmem:[%s4845] sm:$0xff]
    %4847 = vrot.lane.b32.xlu0 %v4846, 68
    %v4848 = vpop.permute.xlu0 %4847
    %vm4849 = vcmask 31744
    %s4850 = scalar_lea.vmem %s1, 2191
    %4851 = vst.msk [vmem:[%s4850] ss:$16 sm:$0x3] %vm4849, %v4848
    %s4852 = scalar_lea.vmem %s1, 2191
    %4853 = vst.msk [vmem:[%s4852] ss:$16 sm:$0xc] %vm4849, %v4848
    %s4854 = scalar_lea.vmem %s1, 2191
    %4855 = vst.msk [vmem:[%s4854] ss:$16 sm:$0x30] %vm4849, %v4848
    %s4856 = scalar_lea.vmem %s1, 2191
    %4857 = vst.msk [vmem:[%s4856] ss:$16 sm:$0xc0] %vm4849, %v4848
    %s4858 = scalar_lea.vmem [#allocation0], 144
    %v4859 = vld [vmem:[%s4858] sm:$0xff]
    %4860 = vrot.lane.b32.xlu0 %v4859, 68
    %v4861 = vpop.permute.xlu0 %4860
    %vm4862 = vcmask 31744
    %s4863 = scalar_lea.vmem %s1, 2319
    %4864 = vst.msk [vmem:[%s4863] ss:$16 sm:$0x3] %vm4862, %v4861
    %s4865 = scalar_lea.vmem %s1, 2319
    %4866 = vst.msk [vmem:[%s4865] ss:$16 sm:$0xc] %vm4862, %v4861
    %s4867 = scalar_lea.vmem %s1, 2319
    %4868 = vst.msk [vmem:[%s4867] ss:$16 sm:$0x30] %vm4862, %v4861
    %s4869 = scalar_lea.vmem %s1, 2319
    %4870 = vst.msk [vmem:[%s4869] ss:$16 sm:$0xc0] %vm4862, %v4861
    %s4871 = scalar_lea.vmem [#allocation0], 152
    %v4872 = vld [vmem:[%s4871] sm:$0xff]
    %4873 = vrot.lane.b32.xlu0 %v4872, 68
    %v4874 = vpop.permute.xlu0 %4873
    %vm4875 = vcmask 31744
    %s4876 = scalar_lea.vmem %s1, 2447
    %4877 = vst.msk [vmem:[%s4876] ss:$16 sm:$0x3] %vm4875, %v4874
    %s4878 = scalar_lea.vmem %s1, 2447
    %4879 = vst.msk [vmem:[%s4878] ss:$16 sm:$0xc] %vm4875, %v4874
    %s4880 = scalar_lea.vmem %s1, 2447
    %4881 = vst.msk [vmem:[%s4880] ss:$16 sm:$0x30] %vm4875, %v4874
    %s4882 = scalar_lea.vmem %s1, 2447
    %4883 = vst.msk [vmem:[%s4882] ss:$16 sm:$0xc0] %vm4875, %v4874
    %s4884 = scalar_lea.vmem [#allocation0], 160
    %v4885 = vld [vmem:[%s4884] sm:$0xff]
    %4886 = vrot.lane.b32.xlu0 %v4885, 68
    %v4887 = vpop.permute.xlu0 %4886
    %vm4888 = vcmask 31744
    %s4889 = scalar_lea.vmem %s1, 2575
    %4890 = vst.msk [vmem:[%s4889] ss:$16 sm:$0x3] %vm4888, %v4887
    %s4891 = scalar_lea.vmem %s1, 2575
    %4892 = vst.msk [vmem:[%s4891] ss:$16 sm:$0xc] %vm4888, %v4887
    %s4893 = scalar_lea.vmem %s1, 2575
    %4894 = vst.msk [vmem:[%s4893] ss:$16 sm:$0x30] %vm4888, %v4887
    %s4895 = scalar_lea.vmem %s1, 2575
    %4896 = vst.msk [vmem:[%s4895] ss:$16 sm:$0xc0] %vm4888, %v4887
    %s4897 = scalar_lea.vmem [#allocation0], 168
    %v4898 = vld [vmem:[%s4897] sm:$0xff]
    %4899 = vrot.lane.b32.xlu0 %v4898, 68
    %v4900 = vpop.permute.xlu0 %4899
    %vm4901 = vcmask 31744
    %s4902 = scalar_lea.vmem %s1, 2703
    %4903 = vst.msk [vmem:[%s4902] ss:$16 sm:$0x3] %vm4901, %v4900
    %s4904 = scalar_lea.vmem %s1, 2703
    %4905 = vst.msk [vmem:[%s4904] ss:$16 sm:$0xc] %vm4901, %v4900
    %s4906 = scalar_lea.vmem %s1, 2703
    %4907 = vst.msk [vmem:[%s4906] ss:$16 sm:$0x30] %vm4901, %v4900
    %s4908 = scalar_lea.vmem %s1, 2703
    %4909 = vst.msk [vmem:[%s4908] ss:$16 sm:$0xc0] %vm4901, %v4900
    %s4910 = scalar_lea.vmem [#allocation0], 176
    %v4911 = vld [vmem:[%s4910] sm:$0xff]
    %4912 = vrot.lane.b32.xlu0 %v4911, 68
    %v4913 = vpop.permute.xlu0 %4912
    %vm4914 = vcmask 31744
    %s4915 = scalar_lea.vmem %s1, 2831
    %4916 = vst.msk [vmem:[%s4915] ss:$16 sm:$0x3] %vm4914, %v4913
    %s4917 = scalar_lea.vmem %s1, 2831
    %4918 = vst.msk [vmem:[%s4917] ss:$16 sm:$0xc] %vm4914, %v4913
    %s4919 = scalar_lea.vmem %s1, 2831
    %4920 = vst.msk [vmem:[%s4919] ss:$16 sm:$0x30] %vm4914, %v4913
    %s4921 = scalar_lea.vmem %s1, 2831
    %4922 = vst.msk [vmem:[%s4921] ss:$16 sm:$0xc0] %vm4914, %v4913
    %s4923 = scalar_lea.vmem [#allocation0], 184
    %v4924 = vld [vmem:[%s4923] sm:$0xff]
    %4925 = vrot.lane.b32.xlu0 %v4924, 68
    %v4926 = vpop.permute.xlu0 %4925
    %vm4927 = vcmask 31744
    %s4928 = scalar_lea.vmem %s1, 2959
    %4929 = vst.msk [vmem:[%s4928] ss:$16 sm:$0x3] %vm4927, %v4926
    %s4930 = scalar_lea.vmem %s1, 2959
    %4931 = vst.msk [vmem:[%s4930] ss:$16 sm:$0xc] %vm4927, %v4926
    %s4932 = scalar_lea.vmem %s1, 2959
    %4933 = vst.msk [vmem:[%s4932] ss:$16 sm:$0x30] %vm4927, %v4926
    %s4934 = scalar_lea.vmem %s1, 2959
    %4935 = vst.msk [vmem:[%s4934] ss:$16 sm:$0xc0] %vm4927, %v4926
    %4936 = vsyncpa [#allocation1], 1

// kernel: _sparse_inst_device.1
$region0: #{_sparse_inst_device.1}
  #allocation0 [shape = 'u32[]', space=smem, size = 0x4, offset = 0x4, fixed_abs, tag = 'smem constant byte address 0x4 - core index']
  #allocation1 [shape = 'u32[144,128]{1,0:T(1,128)}', space=vmem, size = 0x12000, scoped, tag = 'internal scratch']
  %s0 = inlined_call_operand.vmem [shape: f32[8,256], index: 0, kind: input, shape index: {}]
  %s1 = inlined_call_operand.vmem [shape: f32[8,33], index: 1, kind: input, shape index: {}]
  %s2 = inlined_call_operand.vmem [shape: f32[33,40], index: 2, kind: input, shape index: {}]
  %s3 = inlined_call_operand.vmem [shape: f32[33,49], index: 3, kind: input, shape index: {}]
  %s4 = inlined_call_operand.vmem [shape: f32[8,128], index: 4, kind: output, shape index: {0}]
  %s5 = inlined_call_operand.vmem [shape: f32[8,256], index: 5, kind: output, shape index: {1}]
  %6 = xla_tuple %s4, %s5
  %s7 = sld [smem:[#allocation0]]
  $region34: #{_sparse_inst_device.1} parent=0
    _
  %s9 = ssub.s32 1, %s7
  %s10 = scalar_select 0, %s9, %s7
  // Predicated region
  $region2: #{_sparse_inst_device.1} parent=0 // pred_check
    _
  $region3: #{_sparse_inst_device.1} parent=0 // pred_check_branch
    %12 = sbr.rel (0) target = $region5
  $region4: #{_sparse_inst_device.1} parent=0 // pred_region
    _
  $region5: #{_sparse_inst_device.1} parent=0 // pred_fallthru
    _
  // Predicated region
  $region6: #{_sparse_inst_device.1} parent=0 // pred_check
    _
  $region7: #{_sparse_inst_device.1} parent=0 // pred_check_branch
    %14 = sbr.rel (0) target = $region9
  $region8: #{_sparse_inst_device.1} parent=0 // pred_region
    _
  $region9: #{_sparse_inst_device.1} parent=0 // pred_fallthru
    _
  // Predicated region
  $region10: #{_sparse_inst_device.1} parent=0 // pred_check
    _
  $region11: #{_sparse_inst_device.1} parent=0 // pred_check_branch
    %16 = sbr.rel (0) target = $region13
  $region12: #{_sparse_inst_device.1} parent=0 // pred_region
    _
  $region13: #{_sparse_inst_device.1} parent=0 // pred_fallthru
    _
  // Predicated region
  $region14: #{_sparse_inst_device.1} parent=0 // pred_check
    _
  $region15: #{_sparse_inst_device.1} parent=0 // pred_check_branch
    %18 = sbr.rel (0) target = $region17
  $region16: #{_sparse_inst_device.1} parent=0 // pred_region
    _
  $region17: #{_sparse_inst_device.1} parent=0 // pred_fallthru
    _
  %v19 = vld [vmem:[%s0] sm:$0xff]
  %v20 = vld [vmem:[%s0 + $0x8] sm:$0xff]
  %v21 = vld [vmem:[%s1] sm:$0xff]
  %22 = vxpose.xlu0.b32.start [1/16] %v19, 128
  %23 = vxpose.xlu0.b32.cont [2/16] 0.0, 128
  %24 = vxpose.xlu0.b32.cont [3/16] 0.0, 128
  %25 = vxpose.xlu0.b32.cont [4/16] 0.0, 128
  %26 = vxpose.xlu0.b32.cont [5/16] 0.0, 128
  %27 = vxpose.xlu0.b32.cont [6/16] 0.0, 128
  %28 = vxpose.xlu0.b32.cont [7/16] 0.0, 128
  %29 = vxpose.xlu0.b32.cont [8/16] 0.0, 128
  %30 = vxpose.xlu0.b32.cont [9/16] 0.0, 128
  %31 = vxpose.xlu0.b32.cont [10/16] 0.0, 128
  %32 = vxpose.xlu0.b32.cont [11/16] 0.0, 128
  %33 = vxpose.xlu0.b32.cont [12/16] 0.0, 128
  %34 = vxpose.xlu0.b32.cont [13/16] 0.0, 128
  %35 = vxpose.xlu0.b32.cont [14/16] 0.0, 128
  %36 = vxpose.xlu0.b32.cont [15/16] 0.0, 128
  %37 = vxpose.xlu0.b32.end [16/16] 0.0, 128
  %v38 = vpop.trf.xlu0
  %v39 = vpop.trf.xlu0
  %v40 = vpop.trf.xlu0
  %v41 = vpop.trf.xlu0
  %v42 = vpop.trf.xlu0
  %v43 = vpop.trf.xlu0
  %v44 = vpop.trf.xlu0
  %v45 = vpop.trf.xlu0
  %v46 = vpop.trf.xlu0
  %v47 = vpop.trf.xlu0
  %v48 = vpop.trf.xlu0
  %v49 = vpop.trf.xlu0
  %v50 = vpop.trf.xlu0
  %v51 = vpop.trf.xlu0
  %v52 = vpop.trf.xlu0
  %v53 = vpop.trf.xlu0
  %54 = vxpose.xlu0.b32.start [1/16] %v20, 128
  %55 = vxpose.xlu0.b32.cont [2/16] 0.0, 128
  %56 = vxpose.xlu0.b32.cont [3/16] 0.0, 128
  %57 = vxpose.xlu0.b32.cont [4/16] 0.0, 128
  %58 = vxpose.xlu0.b32.cont [5/16] 0.0, 128
  %59 = vxpose.xlu0.b32.cont [6/16] 0.0, 128
  %60 = vxpose.xlu0.b32.cont [7/16] 0.0, 128
  %61 = vxpose.xlu0.b32.cont [8/16] 0.0, 128
  %62 = vxpose.xlu0.b32.cont [9/16] 0.0, 128
  %63 = vxpose.xlu0.b32.cont [10/16] 0.0, 128
  %64 = vxpose.xlu0.b32.cont [11/16] 0.0, 128
  %65 = vxpose.xlu0.b32.cont [12/16] 0.0, 128
  %66 = vxpose.xlu0.b32.cont [13/16] 0.0, 128
  %67 = vxpose.xlu0.b32.cont [14/16] 0.0, 128
  %68 = vxpose.xlu0.b32.cont [15/16] 0.0, 128
  %69 = vxpose.xlu0.b32.end [16/16] 0.0, 128
  %v70 = vpop.trf.xlu0
  %v71 = vpop.trf.xlu0
  %v72 = vpop.trf.xlu0
  %v73 = vpop.trf.xlu0
  %v74 = vpop.trf.xlu0
  %v75 = vpop.trf.xlu0
  %v76 = vpop.trf.xlu0
  %v77 = vpop.trf.xlu0
  %v78 = vpop.trf.xlu0
  %v79 = vpop.trf.xlu0
  %v80 = vpop.trf.xlu0
  %v81 = vpop.trf.xlu0
  %v82 = vpop.trf.xlu0
  %v83 = vpop.trf.xlu0
  %v84 = vpop.trf.xlu0
  %v85 = vpop.trf.xlu0
  %vm86 = vcmask 64512
  %v88 = vsel %vm86, %v38, 0
  %v91 = vsel %vm86, %v39, 0
  %v94 = vsel %vm86, %v40, 0
  %v97 = vsel %vm86, %v41, 0
  %v100 = vsel %vm86, %v42, 0
  %v103 = vsel %vm86, %v43, 0
  %v106 = vsel %vm86, %v44, 0
  %v109 = vsel %vm86, %v45, 0
  %v112 = vsel %vm86, %v46, 0
  %v115 = vsel %vm86, %v47, 0
  %v118 = vsel %vm86, %v48, 0
  %v121 = vsel %vm86, %v49, 0
  %v124 = vsel %vm86, %v50, 0
  %v127 = vsel %vm86, %v51, 0
  %v130 = vsel %vm86, %v52, 0
  %v133 = vsel %vm86, %v53, 0
  %v136 = vsel %vm86, %v70, 0
  %v139 = vsel %vm86, %v71, 0
  %v142 = vsel %vm86, %v72, 0
  %v145 = vsel %vm86, %v73, 0
  %v148 = vsel %vm86, %v74, 0
  %v151 = vsel %vm86, %v75, 0
  %v154 = vsel %vm86, %v76, 0
  %v157 = vsel %vm86, %v77, 0
  %v160 = vsel %vm86, %v78, 0
  %v163 = vsel %vm86, %v79, 0
  %v166 = vsel %vm86, %v80, 0
  %v169 = vsel %vm86, %v81, 0
  %v172 = vsel %vm86, %v82, 0
  %v175 = vsel %vm86, %v83, 0
  %v178 = vsel %vm86, %v84, 0
  %v181 = vsel %vm86, %v85, 0
  %183 = vmatprep.subr.mxu0 0.0
  %184 = vmatpush1.msra.mxu0 %v21
  %185 = vmatprep.subr.mxu0 0.0
  %186 = vmatpush1.msra.mxu0 0.0
  %187 = vmatprep.subr.mxu0 0.0
  %188 = vmatpush1.msra.mxu0 0.0
  %189 = vmatprep.subr.mxu0 0.0
  %190 = vmatpush1.msra.mxu0 0.0
  %191 = vmatprep.subr.mxu0 0.0
  %192 = vmatpush1.msra.mxu0 0.0
  %193 = vmatprep.subr.mxu0 0.0
  %194 = vmatpush1.msra.mxu0 0.0
  %195 = vmatprep.subr.mxu0 0.0
  %196 = vmatpush1.msra.mxu0 0.0
  %197 = vmatprep.subr.mxu0 0.0
  %198 = vmatpush1.msra.mxu0 0.0
  %199 = vmatprep.subr.mxu0 0.0
  %200 = vmatpush1.msra.mxu0 0.0
  %201 = vmatprep.subr.mxu0 0.0
  %202 = vmatpush1.msra.mxu0 0.0
  %203 = vmatprep.subr.mxu0 0.0
  %204 = vmatpush1.msra.mxu0 0.0
  %205 = vmatprep.subr.mxu0 0.0
  %206 = vmatpush1.msra.mxu0 0.0
  %207 = vmatprep.subr.mxu0 0.0
  %208 = vmatpush1.msra.mxu0 0.0
  %209 = vmatprep.subr.mxu0 0.0
  %210 = vmatpush1.msra.mxu0 0.0
  %211 = vmatprep.subr.mxu0 0.0
  %212 = vmatpush1.msra.mxu0 0.0
  %213 = vmatprep.subr.mxu0 0.0
  %214 = vmatpush1.msra.mxu0 0.0
  %215 = vmatprep.subr.mxu0 0.0
  %216 = vmatpush1.msra.mxu0 0.0
  %217 = vmatprep.subr.mxu0 0.0
  %218 = vmatpush1.msra.mxu0 0.0
  %219 = vmatprep.subr.mxu0 0.0
  %220 = vmatpush1.msra.mxu0 0.0
  %221 = vmatprep.subr.mxu0 0.0
  %222 = vmatpush1.msra.mxu0 0.0
  %223 = vmatprep.subr.mxu0 0.0
  %224 = vmatpush1.msra.mxu0 0.0
  %225 = vmatprep.subr.mxu0 0.0
  %226 = vmatpush1.msra.mxu0 0.0
  %227 = vmatprep.subr.mxu0 0.0
  %228 = vmatpush1.msra.mxu0 0.0
  %229 = vmatprep.subr.mxu0 0.0
  %230 = vmatpush1.msra.mxu0 0.0
  %231 = vmatprep.subr.mxu0 0.0
  %232 = vmatpush1.msra.mxu0 0.0
  %233 = vmatprep.subr.mxu0 0.0
  %234 = vmatpush1.msra.mxu0 0.0
  %235 = vmatprep.subr.mxu0 0.0
  %236 = vmatpush1.msra.mxu0 0.0
  %237 = vmatprep.subr.mxu0 0.0
  %238 = vmatpush1.msra.mxu0 0.0
  %239 = vmatprep.subr.mxu0 0.0
  %240 = vmatpush1.msra.mxu0 0.0
  %241 = vmatprep.subr.mxu0 0.0
  %242 = vmatpush1.msra.mxu0 0.0
  %243 = vmatprep.subr.mxu0 0.0
  %244 = vmatpush1.msra.mxu0 0.0
  %245 = vmatprep.subr.mxu0 0.0
  %246 = vmatpush1.msra.mxu0 0.0
  %247 = vmatprep.mubr.f32.mxu0 0.0
  %248 = vmatmul.mubr.f32.gmra.mrb[0].mxu0 %v88
  %v249 = vpop.f32.mrb[0].mxu0
  %v250 = vadd.f32 0.0, %v249
  %v251 = vpop.f32.mrb[0].mxu0
  %252 = vmatprep.mubr.f32.mxu0 0.0
  %253 = vmatmul.mubr.f32.gmra.mrb[0].mxu0 %v91
  %v254 = vpop.f32.mrb[0].mxu0
  %v255 = vadd.f32 0.0, %v254
  %v256 = vpop.f32.mrb[0].mxu0
  %257 = vmatprep.mubr.f32.mxu0 0.0
  %258 = vmatmul.mubr.f32.gmra.mrb[0].mxu0 %v94
  %v259 = vpop.f32.mrb[0].mxu0
  %v260 = vadd.f32 0.0, %v259
  %v261 = vpop.f32.mrb[0].mxu0
  %262 = vmatprep.mubr.f32.mxu0 0.0
  %263 = vmatmul.mubr.f32.gmra.mrb[0].mxu0 %v97
  %v264 = vpop.f32.mrb[0].mxu0
  %v265 = vadd.f32 0.0, %v264
  %v266 = vpop.f32.mrb[0].mxu0
  %267 = vmatprep.mubr.f32.mxu0 0.0
  %268 = vmatmul.mubr.f32.gmra.mrb[0].mxu0 %v100
  %v269 = vpop.f32.mrb[0].mxu0
  %v270 = vadd.f32 0.0, %v269
  %v271 = vpop.f32.mrb[0].mxu0
  %272 = vmatprep.mubr.f32.mxu0 0.0
  %273 = vmatmul.mubr.f32.gmra.mrb[0].mxu0 %v103
  %v274 = vpop.f32.mrb[0].mxu0
  %v275 = vadd.f32 0.0, %v274
  %v276 = vpop.f32.mrb[0].mxu0
  %277 = vmatprep.mubr.f32.mxu0 0.0
  %278 = vmatmul.mubr.f32.gmra.mrb[0].mxu0 %v106
  %v279 = vpop.f32.mrb[0].mxu0
  %v280 = vadd.f32 0.0, %v279
  %v281 = vpop.f32.mrb[0].mxu0
  %282 = vmatprep.mubr.f32.mxu0 0.0
  %283 = vmatmul.mubr.f32.gmra.mrb[0].mxu0 %v109
  %v284 = vpop.f32.mrb[0].mxu0
  %v285 = vadd.f32 0.0, %v284
  %v286 = vpop.f32.mrb[0].mxu0
  %287 = vmatprep.mubr.f32.mxu0 0.0
  %288 = vmatmul.mubr.f32.gmra.mrb[0].mxu0 %v112
  %v289 = vpop.f32.mrb[0].mxu0
  %v290 = vadd.f32 0.0, %v289
  %v291 = vpop.f32.mrb[0].mxu0
  %292 = vmatprep.mubr.f32.mxu0 0.0
  %293 = vmatmul.mubr.f32.gmra.mrb[0].mxu0 %v115
  %v294 = vpop.f32.mrb[0].mxu0
  %v295 = vadd.f32 0.0, %v294
  %v296 = vpop.f32.mrb[0].mxu0
  %297 = vmatprep.mubr.f32.mxu0 0.0
  %298 = vmatmul.mubr.f32.gmra.mrb[0].mxu0 %v118
  %v299 = vpop.f32.mrb[0].mxu0
  %v300 = vadd.f32 0.0, %v299
  %v301 = vpop.f32.mrb[0].mxu0
  %302 = vmatprep.mubr.f32.mxu0 0.0
  %303 = vmatmul.mubr.f32.gmra.mrb[0].mxu0 %v121
  %v304 = vpop.f32.mrb[0].mxu0
  %v305 = vadd.f32 0.0, %v304
  %v306 = vpop.f32.mrb[0].mxu0
  %307 = vmatprep.mubr.f32.mxu0 0.0
  %308 = vmatmul.mubr.f32.gmra.mrb[0].mxu0 %v124
  %v309 = vpop.f32.mrb[0].mxu0
  %v310 = vadd.f32 0.0, %v309
  %v311 = vpop.f32.mrb[0].mxu0
  %312 = vmatprep.mubr.f32.mxu0 0.0
  %313 = vmatmul.mubr.f32.gmra.mrb[0].mxu0 %v127
  %v314 = vpop.f32.mrb[0].mxu0
  %v315 = vadd.f32 0.0, %v314
  %v316 = vpop.f32.mrb[0].mxu0
  %317 = vmatprep.mubr.f32.mxu0 0.0
  %318 = vmatmul.mubr.f32.gmra.mrb[0].mxu0 %v130
  %v319 = vpop.f32.mrb[0].mxu0
  %v320 = vadd.f32 0.0, %v319
  %v321 = vpop.f32.mrb[0].mxu0
  %322 = vmatprep.mubr.f32.mxu0 0.0
  %323 = vmatmul.mubr.f32.gmra.mrb[0].mxu0 %v133
  %v324 = vpop.f32.mrb[0].mxu0
  %v325 = vadd.f32 0.0, %v324
  %v326 = vpop.f32.mrb[0].mxu0
  %327 = vmatprep.mubr.f32.mxu0 0.0
  %328 = vmatmul.mubr.f32.gmra.mrb[0].mxu0 %v136
  %v329 = vpop.f32.mrb[0].mxu0
  %v330 = vadd.f32 0.0, %v329
  %v331 = vpop.f32.mrb[0].mxu0
  %332 = vmatprep.mubr.f32.mxu0 0.0
  %333 = vmatmul.mubr.f32.gmra.mrb[0].mxu0 %v139
  %v334 = vpop.f32.mrb[0].mxu0
  %v335 = vadd.f32 0.0, %v334
  %v336 = vpop.f32.mrb[0].mxu0
  %337 = vmatprep.mubr.f32.mxu0 0.0
  %338 = vmatmul.mubr.f32.gmra.mrb[0].mxu0 %v142
  %v339 = vpop.f32.mrb[0].mxu0
  %v340 = vadd.f32 0.0, %v339
  %v341 = vpop.f32.mrb[0].mxu0
  %342 = vmatprep.mubr.f32.mxu0 0.0
  %343 = vmatmul.mubr.f32.gmra.mrb[0].mxu0 %v145
  %v344 = vpop.f32.mrb[0].mxu0
  %v345 = vadd.f32 0.0, %v344
  %v346 = vpop.f32.mrb[0].mxu0
  %347 = vmatprep.mubr.f32.mxu0 0.0
  %348 = vmatmul.mubr.f32.gmra.mrb[0].mxu0 %v148
  %v349 = vpop.f32.mrb[0].mxu0
  %v350 = vadd.f32 0.0, %v349
  %v351 = vpop.f32.mrb[0].mxu0
  %352 = vmatprep.mubr.f32.mxu0 0.0
  %353 = vmatmul.mubr.f32.gmra.mrb[0].mxu0 %v151
  %v354 = vpop.f32.mrb[0].mxu0
  %v355 = vadd.f32 0.0, %v354
  %v356 = vpop.f32.mrb[0].mxu0
  %357 = vmatprep.mubr.f32.mxu0 0.0
  %358 = vmatmul.mubr.f32.gmra.mrb[0].mxu0 %v154
  %v359 = vpop.f32.mrb[0].mxu0
  %v360 = vadd.f32 0.0, %v359
  %v361 = vpop.f32.mrb[0].mxu0
  %362 = vmatprep.mubr.f32.mxu0 0.0
  %363 = vmatmul.mubr.f32.gmra.mrb[0].mxu0 %v157
  %v364 = vpop.f32.mrb[0].mxu0
  %v365 = vadd.f32 0.0, %v364
  %v366 = vpop.f32.mrb[0].mxu0
  %367 = vmatprep.mubr.f32.mxu0 0.0
  %368 = vmatmul.mubr.f32.gmra.mrb[0].mxu0 %v160
  %v369 = vpop.f32.mrb[0].mxu0
  %v370 = vadd.f32 0.0, %v369
  %v371 = vpop.f32.mrb[0].mxu0
  %372 = vmatprep.mubr.f32.mxu0 0.0
  %373 = vmatmul.mubr.f32.gmra.mrb[0].mxu0 %v163
  %v374 = vpop.f32.mrb[0].mxu0
  %v375 = vadd.f32 0.0, %v374
  %v376 = vpop.f32.mrb[0].mxu0
  %377 = vmatprep.mubr.f32.mxu0 0.0
  %378 = vmatmul.mubr.f32.gmra.mrb[0].mxu0 %v166
  %v379 = vpop.f32.mrb[0].mxu0
  %v380 = vadd.f32 0.0, %v379
  %v381 = vpop.f32.mrb[0].mxu0
  %382 = vmatprep.mubr.f32.mxu0 0.0
  %383 = vmatmul.mubr.f32.gmra.mrb[0].mxu0 %v169
  %v384 = vpop.f32.mrb[0].mxu0
  %v385 = vadd.f32 0.0, %v384
  %v386 = vpop.f32.mrb[0].mxu0
  %387 = vmatprep.mubr.f32.mxu0 0.0
  %388 = vmatmul.mubr.f32.gmra.mrb[0].mxu0 %v172
  %v389 = vpop.f32.mrb[0].mxu0
  %v390 = vadd.f32 0.0, %v389
  %v391 = vpop.f32.mrb[0].mxu0
  %392 = vmatprep.mubr.f32.mxu0 0.0
  %393 = vmatmul.mubr.f32.gmra.mrb[0].mxu0 %v175
  %v394 = vpop.f32.mrb[0].mxu0
  %v395 = vadd.f32 0.0, %v394
  %v396 = vpop.f32.mrb[0].mxu0
  %397 = vmatprep.mubr.f32.mxu0 0.0
  %398 = vmatmul.mubr.f32.gmra.mrb[0].mxu0 %v178
  %v399 = vpop.f32.mrb[0].mxu0
  %v400 = vadd.f32 0.0, %v399
  %v401 = vpop.f32.mrb[0].mxu0
  %402 = vmatprep.mubr.f32.mxu0 0.0
  %403 = vmatmul.mubr.f32.gmra.mrb[0].mxu0 %v181
  %v404 = vpop.f32.mrb[0].mxu0
  %v405 = vadd.f32 0.0, %v404
  %v406 = vpop.f32.mrb[0].mxu0
  %407 = vdwg.mxu0
  %v408 = vmax.f32 %v250, 0.0
  %v409 = vmax.f32 %v255, 0.0
  %v410 = vmax.f32 %v260, 0.0
  %v411 = vmax.f32 %v265, 0.0
  %v412 = vmax.f32 %v270, 0.0
  %v413 = vmax.f32 %v275, 0.0
  %v414 = vmax.f32 %v280, 0.0
  %v415 = vmax.f32 %v285, 0.0
  %v416 = vmax.f32 %v290, 0.0
  %v417 = vmax.f32 %v295, 0.0
  %v418 = vmax.f32 %v300, 0.0
  %v419 = vmax.f32 %v305, 0.0
  %v420 = vmax.f32 %v310, 0.0
  %v421 = vmax.f32 %v315, 0.0
  %v422 = vmax.f32 %v320, 0.0
  %v423 = vmax.f32 %v325, 0.0
  %v424 = vmax.f32 %v330, 0.0
  %v425 = vmax.f32 %v335, 0.0
  %v426 = vmax.f32 %v340, 0.0
  %v427 = vmax.f32 %v345, 0.0
  %v428 = vmax.f32 %v350, 0.0
  %v429 = vmax.f32 %v355, 0.0
  %v430 = vmax.f32 %v360, 0.0
  %v431 = vmax.f32 %v365, 0.0
  %v432 = vmax.f32 %v370, 0.0
  %v433 = vmax.f32 %v375, 0.0
  %v434 = vmax.f32 %v380, 0.0
  %v435 = vmax.f32 %v385, 0.0
  %v436 = vmax.f32 %v390, 0.0
  %v437 = vmax.f32 %v395, 0.0
  %v438 = vmax.f32 %v400, 0.0
  %v439 = vmax.f32 %v405, 0.0
  %v440 = vld [vmem:[%s2] sm:$0xff]
  %v441 = vld [vmem:[%s2 + $0x8] sm:$0xff]
  %v442 = vld [vmem:[%s2 + $0x10] sm:$0xff]
  %v443 = vld [vmem:[%s2 + $0x18] sm:$0xff]
  %v444 = vld [vmem:[%s2 + $0x20] sm:$0x1]
  %vm445 = vcmask 269312
  %v447 = vsel %vm445, %v408, 0
  %v450 = vsel %vm445, %v409, 0
  %v453 = vsel %vm445, %v410, 0
  %v456 = vsel %vm445, %v411, 0
  %v459 = vsel %vm445, %v412, 0
  %v462 = vsel %vm445, %v413, 0
  %v465 = vsel %vm445, %v414, 0
  %v468 = vsel %vm445, %v415, 0
  %v471 = vsel %vm445, %v416, 0
  %v474 = vsel %vm445, %v417, 0
  %v477 = vsel %vm445, %v418, 0
  %v480 = vsel %vm445, %v419, 0
  %v483 = vsel %vm445, %v420, 0
  %v486 = vsel %vm445, %v421, 0
  %v489 = vsel %vm445, %v422, 0
  %v492 = vsel %vm445, %v423, 0
  %v495 = vsel %vm445, %v424, 0
  %v498 = vsel %vm445, %v425, 0
  %v501 = vsel %vm445, %v426, 0
  %v504 = vsel %vm445, %v427, 0
  %v507 = vsel %vm445, %v428, 0
  %v510 = vsel %vm445, %v429, 0
  %v513 = vsel %vm445, %v430, 0
  %v516 = vsel %vm445, %v431, 0
  %v519 = vsel %vm445, %v432, 0
  %v522 = vsel %vm445, %v433, 0
  %v525 = vsel %vm445, %v434, 0
  %v528 = vsel %vm445, %v435, 0
  %v531 = vsel %vm445, %v436, 0
  %v534 = vsel %vm445, %v437, 0
  %v537 = vsel %vm445, %v438, 0
  %v540 = vsel %vm445, %v439, 0
  %vm542 = vcmask 1040384
  %v544 = vsel %vm542, %v444, 0
  %546 = vmatprep.subr.mxu0 0.0
  %547 = vmatpush1.msra.mxu0 %v440
  %548 = vmatprep.subr.mxu0 0.0
  %549 = vmatpush1.msra.mxu0 %v441
  %550 = vmatprep.subr.mxu0 0.0
  %551 = vmatpush1.msra.mxu0 %v442
  %552 = vmatprep.subr.mxu0 0.0
  %553 = vmatpush1.msra.mxu0 %v443
  %554 = vmatprep.subr.mxu0 0.0
  %555 = vmatpush1.msra.mxu0 %v544
  %556 = vmatprep.subr.mxu0 0.0
  %557 = vmatpush1.msra.mxu0 0.0
  %558 = vmatprep.subr.mxu0 0.0
  %559 = vmatpush1.msra.mxu0 0.0
  %560 = vmatprep.subr.mxu0 0.0
  %561 = vmatpush1.msra.mxu0 0.0
  %562 = vmatprep.subr.mxu0 0.0
  %563 = vmatpush1.msra.mxu0 0.0
  %564 = vmatprep.subr.mxu0 0.0
  %565 = vmatpush1.msra.mxu0 0.0
  %566 = vmatprep.subr.mxu0 0.0
  %567 = vmatpush1.msra.mxu0 0.0
  %568 = vmatprep.subr.mxu0 0.0
  %569 = vmatpush1.msra.mxu0 0.0
  %570 = vmatprep.subr.mxu0 0.0
  %571 = vmatpush1.msra.mxu0 0.0
  %572 = vmatprep.subr.mxu0 0.0
  %573 = vmatpush1.msra.mxu0 0.0
  %574 = vmatprep.subr.mxu0 0.0
  %575 = vmatpush1.msra.mxu0 0.0
  %576 = vmatprep.subr.mxu0 0.0
  %577 = vmatpush1.msra.mxu0 0.0
  %578 = vmatprep.subr.mxu0 0.0
  %579 = vmatpush1.msra.mxu0 0.0
  %580 = vmatprep.subr.mxu0 0.0
  %581 = vmatpush1.msra.mxu0 0.0
  %582 = vmatprep.subr.mxu0 0.0
  %583 = vmatpush1.msra.mxu0 0.0
  %584 = vmatprep.subr.mxu0 0.0
  %585 = vmatpush1.msra.mxu0 0.0
  %586 = vmatprep.subr.mxu0 0.0
  %587 = vmatpush1.msra.mxu0 0.0
  %588 = vmatprep.subr.mxu0 0.0
  %589 = vmatpush1.msra.mxu0 0.0
  %590 = vmatprep.subr.mxu0 0.0
  %591 = vmatpush1.msra.mxu0 0.0
  %592 = vmatprep.subr.mxu0 0.0
  %593 = vmatpush1.msra.mxu0 0.0
  %594 = vmatprep.subr.mxu0 0.0
  %595 = vmatpush1.msra.mxu0 0.0
  %596 = vmatprep.subr.mxu0 0.0
  %597 = vmatpush1.msra.mxu0 0.0
  %598 = vmatprep.subr.mxu0 0.0
  %599 = vmatpush1.msra.mxu0 0.0
  %600 = vmatprep.subr.mxu0 0.0
  %601 = vmatpush1.msra.mxu0 0.0
  %602 = vmatprep.subr.mxu0 0.0
  %603 = vmatpush1.msra.mxu0 0.0
  %604 = vmatprep.subr.mxu0 0.0
  %605 = vmatpush1.msra.mxu0 0.0
  %606 = vmatprep.subr.mxu0 0.0
  %607 = vmatpush1.msra.mxu0 0.0
  %608 = vmatprep.subr.mxu0 0.0
  %609 = vmatpush1.msra.mxu0 0.0
  %610 = vmatprep.mubr.f32.mxu0 0.0
  %611 = vmatmul.mubr.f32.gmra.mrb[0].mxu0 %v447
  %v612 = vpop.f32.mrb[0].mxu0
  %v613 = vadd.f32 0.0, %v612
  %v614 = vpop.f32.mrb[0].mxu0
  %615 = vmatprep.mubr.f32.mxu0 0.0
  %616 = vmatmul.mubr.f32.gmra.mrb[0].mxu0 %v450
  %v617 = vpop.f32.mrb[0].mxu0
  %v618 = vadd.f32 0.0, %v617
  %v619 = vpop.f32.mrb[0].mxu0
  %620 = vmatprep.mubr.f32.mxu0 0.0
  %621 = vmatmul.mubr.f32.gmra.mrb[0].mxu0 %v453
  %v622 = vpop.f32.mrb[0].mxu0
  %v623 = vadd.f32 0.0, %v622
  %v624 = vpop.f32.mrb[0].mxu0
  %625 = vmatprep.mubr.f32.mxu0 0.0
  %626 = vmatmul.mubr.f32.gmra.mrb[0].mxu0 %v456
  %v627 = vpop.f32.mrb[0].mxu0
  %v628 = vadd.f32 0.0, %v627
  %v629 = vpop.f32.mrb[0].mxu0
  %630 = vmatprep.mubr.f32.mxu0 0.0
  %631 = vmatmul.mubr.f32.gmra.mrb[0].mxu0 %v459
  %v632 = vpop.f32.mrb[0].mxu0
  %v633 = vadd.f32 0.0, %v632
  %v634 = vpop.f32.mrb[0].mxu0
  %635 = vmatprep.mubr.f32.mxu0 0.0
  %636 = vmatmul.mubr.f32.gmra.mrb[0].mxu0 %v462
  %v637 = vpop.f32.mrb[0].mxu0
  %v638 = vadd.f32 0.0, %v637
  %v639 = vpop.f32.mrb[0].mxu0
  %640 = vmatprep.mubr.f32.mxu0 0.0
  %641 = vmatmul.mubr.f32.gmra.mrb[0].mxu0 %v465
  %v642 = vpop.f32.mrb[0].mxu0
  %v643 = vadd.f32 0.0, %v642
  %v644 = vpop.f32.mrb[0].mxu0
  %645 = vmatprep.mubr.f32.mxu0 0.0
  %646 = vmatmul.mubr.f32.gmra.mrb[0].mxu0 %v468
  %v647 = vpop.f32.mrb[0].mxu0
  %v648 = vadd.f32 0.0, %v647
  %v649 = vpop.f32.mrb[0].mxu0
  %650 = vmatprep.mubr.f32.mxu0 0.0
  %651 = vmatmul.mubr.f32.gmra.mrb[0].mxu0 %v471
  %v652 = vpop.f32.mrb[0].mxu0
  %v653 = vadd.f32 0.0, %v652
  %v654 = vpop.f32.mrb[0].mxu0
  %655 = vmatprep.mubr.f32.mxu0 0.0
  %656 = vmatmul.mubr.f32.gmra.mrb[0].mxu0 %v474
  %v657 = vpop.f32.mrb[0].mxu0
  %v658 = vadd.f32 0.0, %v657
  %v659 = vpop.f32.mrb[0].mxu0
  %660 = vmatprep.mubr.f32.mxu0 0.0
  %661 = vmatmul.mubr.f32.gmra.mrb[0].mxu0 %v477
  %v662 = vpop.f32.mrb[0].mxu0
  %v663 = vadd.f32 0.0, %v662
  %v664 = vpop.f32.mrb[0].mxu0
  %665 = vmatprep.mubr.f32.mxu0 0.0
  %666 = vmatmul.mubr.f32.gmra.mrb[0].mxu0 %v480
  %v667 = vpop.f32.mrb[0].mxu0
  %v668 = vadd.f32 0.0, %v667
  %v669 = vpop.f32.mrb[0].mxu0
  %670 = vmatprep.mubr.f32.mxu0 0.0
  %671 = vmatmul.mubr.f32.gmra.mrb[0].mxu0 %v483
  %v672 = vpop.f32.mrb[0].mxu0
  %v673 = vadd.f32 0.0, %v672
  %v674 = vpop.f32.mrb[0].mxu0
  %675 = vmatprep.mubr.f32.mxu0 0.0
  %676 = vmatmul.mubr.f32.gmra.mrb[0].mxu0 %v486
  %v677 = vpop.f32.mrb[0].mxu0
  %v678 = vadd.f32 0.0, %v677
  %v679 = vpop.f32.mrb[0].mxu0
  %680 = vmatprep.mubr.f32.mxu0 0.0
  %681 = vmatmul.mubr.f32.gmra.mrb[0].mxu0 %v489
  %v682 = vpop.f32.mrb[0].mxu0
  %v683 = vadd.f32 0.0, %v682
  %v684 = vpop.f32.mrb[0].mxu0
  %685 = vmatprep.mubr.f32.mxu0 0.0
  %686 = vmatmul.mubr.f32.gmra.mrb[0].mxu0 %v492
  %v687 = vpop.f32.mrb[0].mxu0
  %v688 = vadd.f32 0.0, %v687
  %v689 = vpop.f32.mrb[0].mxu0
  %690 = vmatprep.mubr.f32.mxu0 0.0
  %691 = vmatmul.mubr.f32.gmra.mrb[0].mxu0 %v495
  %v692 = vpop.f32.mrb[0].mxu0
  %v693 = vadd.f32 0.0, %v692
  %v694 = vpop.f32.mrb[0].mxu0
  %695 = vmatprep.mubr.f32.mxu0 0.0
  %696 = vmatmul.mubr.f32.gmra.mrb[0].mxu0 %v498
  %v697 = vpop.f32.mrb[0].mxu0
  %v698 = vadd.f32 0.0, %v697
  %v699 = vpop.f32.mrb[0].mxu0
  %700 = vmatprep.mubr.f32.mxu0 0.0
  %701 = vmatmul.mubr.f32.gmra.mrb[0].mxu0 %v501
  %v702 = vpop.f32.mrb[0].mxu0
  %v703 = vadd.f32 0.0, %v702
  %v704 = vpop.f32.mrb[0].mxu0
  %705 = vmatprep.mubr.f32.mxu0 0.0
  %706 = vmatmul.mubr.f32.gmra.mrb[0].mxu0 %v504
  %v707 = vpop.f32.mrb[0].mxu0
  %v708 = vadd.f32 0.0, %v707
  %v709 = vpop.f32.mrb[0].mxu0
  %710 = vmatprep.mubr.f32.mxu0 0.0
  %711 = vmatmul.mubr.f32.gmra.mrb[0].mxu0 %v507
  %v712 = vpop.f32.mrb[0].mxu0
  %v713 = vadd.f32 0.0, %v712
  %v714 = vpop.f32.mrb[0].mxu0
  %715 = vmatprep.mubr.f32.mxu0 0.0
  %716 = vmatmul.mubr.f32.gmra.mrb[0].mxu0 %v510
  %v717 = vpop.f32.mrb[0].mxu0
  %v718 = vadd.f32 0.0, %v717
  %v719 = vpop.f32.mrb[0].mxu0
  %720 = vmatprep.mubr.f32.mxu0 0.0
  %721 = vmatmul.mubr.f32.gmra.mrb[0].mxu0 %v513
  %v722 = vpop.f32.mrb[0].mxu0
  %v723 = vadd.f32 0.0, %v722
  %v724 = vpop.f32.mrb[0].mxu0
  %725 = vmatprep.mubr.f32.mxu0 0.0
  %726 = vmatmul.mubr.f32.gmra.mrb[0].mxu0 %v516
  %v727 = vpop.f32.mrb[0].mxu0
  %v728 = vadd.f32 0.0, %v727
  %v729 = vpop.f32.mrb[0].mxu0
  %730 = vmatprep.mubr.f32.mxu0 0.0
  %731 = vmatmul.mubr.f32.gmra.mrb[0].mxu0 %v519
  %v732 = vpop.f32.mrb[0].mxu0
  %v733 = vadd.f32 0.0, %v732
  %v734 = vpop.f32.mrb[0].mxu0
  %735 = vmatprep.mubr.f32.mxu0 0.0
  %736 = vmatmul.mubr.f32.gmra.mrb[0].mxu0 %v522
  %v737 = vpop.f32.mrb[0].mxu0
  %v738 = vadd.f32 0.0, %v737
  %v739 = vpop.f32.mrb[0].mxu0
  %740 = vmatprep.mubr.f32.mxu0 0.0
  %741 = vmatmul.mubr.f32.gmra.mrb[0].mxu0 %v525
  %v742 = vpop.f32.mrb[0].mxu0
  %v743 = vadd.f32 0.0, %v742
  %v744 = vpop.f32.mrb[0].mxu0
  %745 = vmatprep.mubr.f32.mxu0 0.0
  %746 = vmatmul.mubr.f32.gmra.mrb[0].mxu0 %v528
  %v747 = vpop.f32.mrb[0].mxu0
  %v748 = vadd.f32 0.0, %v747
  %v749 = vpop.f32.mrb[0].mxu0
  %750 = vmatprep.mubr.f32.mxu0 0.0
  %751 = vmatmul.mubr.f32.gmra.mrb[0].mxu0 %v531
  %v752 = vpop.f32.mrb[0].mxu0
  %v753 = vadd.f32 0.0, %v752
  %v754 = vpop.f32.mrb[0].mxu0
  %755 = vmatprep.mubr.f32.mxu0 0.0
  %756 = vmatmul.mubr.f32.gmra.mrb[0].mxu0 %v534
  %v757 = vpop.f32.mrb[0].mxu0
  %v758 = vadd.f32 0.0, %v757
  %v759 = vpop.f32.mrb[0].mxu0
  %760 = vmatprep.mubr.f32.mxu0 0.0
  %761 = vmatmul.mubr.f32.gmra.mrb[0].mxu0 %v537
  %v762 = vpop.f32.mrb[0].mxu0
  %v763 = vadd.f32 0.0, %v762
  %v764 = vpop.f32.mrb[0].mxu0
  %765 = vmatprep.mubr.f32.mxu0 0.0
  %766 = vmatmul.mubr.f32.gmra.mrb[0].mxu0 %v540
  %v767 = vpop.f32.mrb[0].mxu0
  %v768 = vadd.f32 0.0, %v767
  %v769 = vpop.f32.mrb[0].mxu0
  %770 = vdwg.mxu0
  %v771 = vmax.f32 %v613, 0.0
  %v772 = vmax.f32 %v618, 0.0
  %v773 = vmax.f32 %v623, 0.0
  %v774 = vmax.f32 %v628, 0.0
  %v775 = vmax.f32 %v633, 0.0
  %v776 = vmax.f32 %v638, 0.0
  %v777 = vmax.f32 %v643, 0.0
  %v778 = vmax.f32 %v648, 0.0
  %v779 = vmax.f32 %v653, 0.0
  %v780 = vmax.f32 %v658, 0.0
  %v781 = vmax.f32 %v663, 0.0
  %v782 = vmax.f32 %v668, 0.0
  %v783 = vmax.f32 %v673, 0.0
  %v784 = vmax.f32 %v678, 0.0
  %v785 = vmax.f32 %v683, 0.0
  %v786 = vmax.f32 %v688, 0.0
  %v787 = vmax.f32 %v693, 0.0
  %v788 = vmax.f32 %v698, 0.0
  %v789 = vmax.f32 %v703, 0.0
  %v790 = vmax.f32 %v708, 0.0
  %v791 = vmax.f32 %v713, 0.0
  %v792 = vmax.f32 %v718, 0.0
  %v793 = vmax.f32 %v723, 0.0
  %v794 = vmax.f32 %v728, 0.0
  %v795 = vmax.f32 %v733, 0.0
  %v796 = vmax.f32 %v738, 0.0
  %v797 = vmax.f32 %v743, 0.0
  %v798 = vmax.f32 %v748, 0.0
  %v799 = vmax.f32 %v753, 0.0
  %v800 = vmax.f32 %v758, 0.0
  %v801 = vmax.f32 %v763, 0.0
  %v802 = vmax.f32 %v768, 0.0
  %v803 = vxor.u32 %v613, 2147483648
  %v804 = vxor.u32 %v618, 2147483648
  %v805 = vxor.u32 %v623, 2147483648
  %v806 = vxor.u32 %v628, 2147483648
  %v807 = vxor.u32 %v633, 2147483648
  %v808 = vxor.u32 %v638, 2147483648
  %v809 = vxor.u32 %v643, 2147483648
  %v810 = vxor.u32 %v648, 2147483648
  %v811 = vxor.u32 %v653, 2147483648
  %v812 = vxor.u32 %v658, 2147483648
  %v813 = vxor.u32 %v663, 2147483648
  %v814 = vxor.u32 %v668, 2147483648
  %v815 = vxor.u32 %v673, 2147483648
  %v816 = vxor.u32 %v678, 2147483648
  %v817 = vxor.u32 %v683, 2147483648
  %v818 = vxor.u32 %v688, 2147483648
  %v819 = vxor.u32 %v693, 2147483648
  %v820 = vxor.u32 %v698, 2147483648
  %v821 = vxor.u32 %v703, 2147483648
  %v822 = vxor.u32 %v708, 2147483648
  %v823 = vxor.u32 %v713, 2147483648
  %v824 = vxor.u32 %v718, 2147483648
  %v825 = vxor.u32 %v723, 2147483648
  %v826 = vxor.u32 %v728, 2147483648
  %v827 = vxor.u32 %v733, 2147483648
  %v828 = vxor.u32 %v738, 2147483648
  %v829 = vxor.u32 %v743, 2147483648
  %v830 = vxor.u32 %v748, 2147483648
  %v831 = vxor.u32 %v753, 2147483648
  %v832 = vxor.u32 %v758, 2147483648
  %v833 = vxor.u32 %v763, 2147483648
  %v834 = vxor.u32 %v768, 2147483648
  %v835 = vmul.f32 %v803, 1.442695
  %v836 = vpow.pop %v835
  %v837 = vmul.f32 %v804, 1.442695
  %v838 = vpow.pop %v837
  %v839 = vmul.f32 %v805, 1.442695
  %v840 = vpow.pop %v839
  %v841 = vmul.f32 %v806, 1.442695
  %v842 = vpow.pop %v841
  %v843 = vmul.f32 %v807, 1.442695
  %v844 = vpow.pop %v843
  %v845 = vmul.f32 %v808, 1.442695
  %v846 = vpow.pop %v845
  %v847 = vmul.f32 %v809, 1.442695
  %v848 = vpow.pop %v847
  %v849 = vmul.f32 %v810, 1.442695
  %v850 = vpow.pop %v849
  %v851 = vmul.f32 %v811, 1.442695
  %v852 = vpow.pop %v851
  %v853 = vmul.f32 %v812, 1.442695
  %v854 = vpow.pop %v853
  %v855 = vmul.f32 %v813, 1.442695
  %v856 = vpow.pop %v855
  %v857 = vmul.f32 %v814, 1.442695
  %v858 = vpow.pop %v857
  %v859 = vmul.f32 %v815, 1.442695
  %v860 = vpow.pop %v859
  %v861 = vmul.f32 %v816, 1.442695
  %v862 = vpow.pop %v861
  %v863 = vmul.f32 %v817, 1.442695
  %v864 = vpow.pop %v863
  %v865 = vmul.f32 %v818, 1.442695
  %v866 = vpow.pop %v865
  %v867 = vmul.f32 %v819, 1.442695
  %v868 = vpow.pop %v867
  %v869 = vmul.f32 %v820, 1.442695
  %v870 = vpow.pop %v869
  %v871 = vmul.f32 %v821, 1.442695
  %v872 = vpow.pop %v871
  %v873 = vmul.f32 %v822, 1.442695
  %v874 = vpow.pop %v873
  %v875 = vmul.f32 %v823, 1.442695
  %v876 = vpow.pop %v875
  %v877 = vmul.f32 %v824, 1.442695
  %v878 = vpow.pop %v877
  %v879 = vmul.f32 %v825, 1.442695
  %v880 = vpow.pop %v879
  %v881 = vmul.f32 %v826, 1.442695
  %v882 = vpow.pop %v881
  %v883 = vmul.f32 %v827, 1.442695
  %v884 = vpow.pop %v883
  %v885 = vmul.f32 %v828, 1.442695
  %v886 = vpow.pop %v885
  %v887 = vmul.f32 %v829, 1.442695
  %v888 = vpow.pop %v887
  %v889 = vmul.f32 %v830, 1.442695
  %v890 = vpow.pop %v889
  %v891 = vmul.f32 %v831, 1.442695
  %v892 = vpow.pop %v891
  %v893 = vmul.f32 %v832, 1.442695
  %v894 = vpow.pop %v893
  %v895 = vmul.f32 %v833, 1.442695
  %v896 = vpow.pop %v895
  %v897 = vmul.f32 %v834, 1.442695
  %v898 = vpow.pop %v897
  %v899 = vadd.f32 %v836, 1.0
  %v900 = vadd.f32 %v838, 1.0
  %v901 = vadd.f32 %v840, 1.0
  %v902 = vadd.f32 %v842, 1.0
  %v903 = vadd.f32 %v844, 1.0
  %v904 = vadd.f32 %v846, 1.0
  %v905 = vadd.f32 %v848, 1.0
  %v906 = vadd.f32 %v850, 1.0
  %v907 = vadd.f32 %v852, 1.0
  %v908 = vadd.f32 %v854, 1.0
  %v909 = vadd.f32 %v856, 1.0
  %v910 = vadd.f32 %v858, 1.0
  %v911 = vadd.f32 %v860, 1.0
  %v912 = vadd.f32 %v862, 1.0
  %v913 = vadd.f32 %v864, 1.0
  %v914 = vadd.f32 %v866, 1.0
  %v915 = vadd.f32 %v868, 1.0
  %v916 = vadd.f32 %v870, 1.0
  %v917 = vadd.f32 %v872, 1.0
  %v918 = vadd.f32 %v874, 1.0
  %v919 = vadd.f32 %v876, 1.0
  %v920 = vadd.f32 %v878, 1.0
  %v921 = vadd.f32 %v880, 1.0
  %v922 = vadd.f32 %v882, 1.0
  %v923 = vadd.f32 %v884, 1.0
  %v924 = vadd.f32 %v886, 1.0
  %v925 = vadd.f32 %v888, 1.0
  %v926 = vadd.f32 %v890, 1.0
  %v927 = vadd.f32 %v892, 1.0
  %v928 = vadd.f32 %v894, 1.0
  %v929 = vadd.f32 %v896, 1.0
  %v930 = vadd.f32 %v898, 1.0
  %v931 = vrcp.pop %v899
  %v932 = vmul.f32 1.0, %v931
  %v933 = vrcp.pop %v900
  %v934 = vmul.f32 1.0, %v933
  %v935 = vrcp.pop %v901
  %v936 = vmul.f32 1.0, %v935
  %v937 = vrcp.pop %v902
  %v938 = vmul.f32 1.0, %v937
  %v939 = vrcp.pop %v903
  %v940 = vmul.f32 1.0, %v939
  %v941 = vrcp.pop %v904
  %v942 = vmul.f32 1.0, %v941
  %v943 = vrcp.pop %v905
  %v944 = vmul.f32 1.0, %v943
  %v945 = vrcp.pop %v906
  %v946 = vmul.f32 1.0, %v945
  %v947 = vrcp.pop %v907
  %v948 = vmul.f32 1.0, %v947
  %v949 = vrcp.pop %v908
  %v950 = vmul.f32 1.0, %v949
  %v951 = vrcp.pop %v909
  %v952 = vmul.f32 1.0, %v951
  %v953 = vrcp.pop %v910
  %v954 = vmul.f32 1.0, %v953
  %v955 = vrcp.pop %v911
  %v956 = vmul.f32 1.0, %v955
  %v957 = vrcp.pop %v912
  %v958 = vmul.f32 1.0, %v957
  %v959 = vrcp.pop %v913
  %v960 = vmul.f32 1.0, %v959
  %v961 = vrcp.pop %v914
  %v962 = vmul.f32 1.0, %v961
  %v963 = vrcp.pop %v915
  %v964 = vmul.f32 1.0, %v963
  %v965 = vrcp.pop %v916
  %v966 = vmul.f32 1.0, %v965
  %v967 = vrcp.pop %v917
  %v968 = vmul.f32 1.0, %v967
  %v969 = vrcp.pop %v918
  %v970 = vmul.f32 1.0, %v969
  %v971 = vrcp.pop %v919
  %v972 = vmul.f32 1.0, %v971
  %v973 = vrcp.pop %v920
  %v974 = vmul.f32 1.0, %v973
  %v975 = vrcp.pop %v921
  %v976 = vmul.f32 1.0, %v975
  %v977 = vrcp.pop %v922
  %v978 = vmul.f32 1.0, %v977
  %v979 = vrcp.pop %v923
  %v980 = vmul.f32 1.0, %v979
  %v981 = vrcp.pop %v924
  %v982 = vmul.f32 1.0, %v981
  %v983 = vrcp.pop %v925
  %v984 = vmul.f32 1.0, %v983
  %v985 = vrcp.pop %v926
  %v986 = vmul.f32 1.0, %v985
  %v987 = vrcp.pop %v927
  %v988 = vmul.f32 1.0, %v987
  %v989 = vrcp.pop %v928
  %v990 = vmul.f32 1.0, %v989
  %v991 = vrcp.pop %v929
  %v992 = vmul.f32 1.0, %v991
  %v993 = vrcp.pop %v930
  %v994 = vmul.f32 1.0, %v993
  %1027 = vrot.lane.b32.xlu0 %v932, 96
  %v1028 = vpop.permute.xlu0 %1027
  %1029 = vrot.lane.b32.xlu0 %v934, 96
  %v1030 = vpop.permute.xlu0 %1029
  %1031 = vrot.lane.b32.xlu0 %v936, 96
  %v1032 = vpop.permute.xlu0 %1031
  %1033 = vrot.lane.b32.xlu0 %v938, 96
  %v1034 = vpop.permute.xlu0 %1033
  %1035 = vrot.lane.b32.xlu0 %v940, 96
  %v1036 = vpop.permute.xlu0 %1035
  %1037 = vrot.lane.b32.xlu0 %v942, 96
  %v1038 = vpop.permute.xlu0 %1037
  %1039 = vrot.lane.b32.xlu0 %v944, 96
  %v1040 = vpop.permute.xlu0 %1039
  %1041 = vrot.lane.b32.xlu0 %v946, 96
  %v1042 = vpop.permute.xlu0 %1041
  %1043 = vrot.lane.b32.xlu0 %v948, 96
  %v1044 = vpop.permute.xlu0 %1043
  %1045 = vrot.lane.b32.xlu0 %v950, 96
  %v1046 = vpop.permute.xlu0 %1045
  %1047 = vrot.lane.b32.xlu0 %v952, 96
  %v1048 = vpop.permute.xlu0 %1047
  %1049 = vrot.lane.b32.xlu0 %v954, 96
  %v1050 = vpop.permute.xlu0 %1049
  %1051 = vrot.lane.b32.xlu0 %v956, 96
  %v1052 = vpop.permute.xlu0 %1051
  %1053 = vrot.lane.b32.xlu0 %v958, 96
  %v1054 = vpop.permute.xlu0 %1053
  %1055 = vrot.lane.b32.xlu0 %v960, 96
  %v1056 = vpop.permute.xlu0 %1055
  %1057 = vrot.lane.b32.xlu0 %v962, 96
  %v1058 = vpop.permute.xlu0 %1057
  %1059 = vrot.lane.b32.xlu0 %v964, 96
  %v1060 = vpop.permute.xlu0 %1059
  %1061 = vrot.lane.b32.xlu0 %v966, 96
  %v1062 = vpop.permute.xlu0 %1061
  %1063 = vrot.lane.b32.xlu0 %v968, 96
  %v1064 = vpop.permute.xlu0 %1063
  %1065 = vrot.lane.b32.xlu0 %v970, 96
  %v1066 = vpop.permute.xlu0 %1065
  %1067 = vrot.lane.b32.xlu0 %v972, 96
  %v1068 = vpop.permute.xlu0 %1067
  %1069 = vrot.lane.b32.xlu0 %v974, 96
  %v1070 = vpop.permute.xlu0 %1069
  %1071 = vrot.lane.b32.xlu0 %v976, 96
  %v1072 = vpop.permute.xlu0 %1071
  %1073 = vrot.lane.b32.xlu0 %v978, 96
  %v1074 = vpop.permute.xlu0 %1073
  %1075 = vrot.lane.b32.xlu0 %v980, 96
  %v1076 = vpop.permute.xlu0 %1075
  %1077 = vrot.lane.b32.xlu0 %v982, 96
  %v1078 = vpop.permute.xlu0 %1077
  %1079 = vrot.lane.b32.xlu0 %v984, 96
  %v1080 = vpop.permute.xlu0 %1079
  %1081 = vrot.lane.b32.xlu0 %v986, 96
  %v1082 = vpop.permute.xlu0 %1081
  %1083 = vrot.lane.b32.xlu0 %v988, 96
  %v1084 = vpop.permute.xlu0 %1083
  %1085 = vrot.lane.b32.xlu0 %v990, 96
  %v1086 = vpop.permute.xlu0 %1085
  %1087 = vrot.lane.b32.xlu0 %v992, 96
  %v1088 = vpop.permute.xlu0 %1087
  %1089 = vrot.lane.b32.xlu0 %v994, 96
  %v1090 = vpop.permute.xlu0 %1089
  %1123 = vxpose.xlu0.b32.start [1/16] %v1028, 128
  %1124 = vxpose.xlu0.b32.cont [2/16] %v1030, 128
  %1125 = vxpose.xlu0.b32.cont [3/16] %v1032, 128
  %1126 = vxpose.xlu0.b32.cont [4/16] %v1034, 128
  %1127 = vxpose.xlu0.b32.cont [5/16] %v1036, 128
  %1128 = vxpose.xlu0.b32.cont [6/16] %v1038, 128
  %1129 = vxpose.xlu0.b32.cont [7/16] %v1040, 128
  %1130 = vxpose.xlu0.b32.cont [8/16] %v1042, 128
  %1131 = vxpose.xlu0.b32.cont [9/16] %v1044, 128
  %1132 = vxpose.xlu0.b32.cont [10/16] %v1046, 128
  %1133 = vxpose.xlu0.b32.cont [11/16] %v1048, 128
  %1134 = vxpose.xlu0.b32.cont [12/16] %v1050, 128
  %1135 = vxpose.xlu0.b32.cont [13/16] %v1052, 128
  %1136 = vxpose.xlu0.b32.cont [14/16] %v1054, 128
  %1137 = vxpose.xlu0.b32.cont [15/16] %v1056, 128
  %1138 = vxpose.xlu0.b32.end [16/16] %v1058, 128
  %v1139 = vpop.trf.xlu0
  %v1140 = vpop.trf.xlu0
  %v1141 = vpop.trf.xlu0
  %v1142 = vpop.trf.xlu0
  %v1143 = vpop.trf.xlu0
  %v1144 = vpop.trf.xlu0
  %v1145 = vpop.trf.xlu0
  %v1146 = vpop.trf.xlu0
  %v1147 = vpop.trf.xlu0
  %v1148 = vpop.trf.xlu0
  %v1149 = vpop.trf.xlu0
  %v1150 = vpop.trf.xlu0
  %v1151 = vpop.trf.xlu0
  %v1152 = vpop.trf.xlu0
  %v1153 = vpop.trf.xlu0
  %v1154 = vpop.trf.xlu0
  %1155 = vxpose.xlu0.b32.start [1/16] %v1060, 128
  %1156 = vxpose.xlu0.b32.cont [2/16] %v1062, 128
  %1157 = vxpose.xlu0.b32.cont [3/16] %v1064, 128
  %1158 = vxpose.xlu0.b32.cont [4/16] %v1066, 128
  %1159 = vxpose.xlu0.b32.cont [5/16] %v1068, 128
  %1160 = vxpose.xlu0.b32.cont [6/16] %v1070, 128
  %1161 = vxpose.xlu0.b32.cont [7/16] %v1072, 128
  %1162 = vxpose.xlu0.b32.cont [8/16] %v1074, 128
  %1163 = vxpose.xlu0.b32.cont [9/16] %v1076, 128
  %1164 = vxpose.xlu0.b32.cont [10/16] %v1078, 128
  %1165 = vxpose.xlu0.b32.cont [11/16] %v1080, 128
  %1166 = vxpose.xlu0.b32.cont [12/16] %v1082, 128
  %1167 = vxpose.xlu0.b32.cont [13/16] %v1084, 128
  %1168 = vxpose.xlu0.b32.cont [14/16] %v1086, 128
  %1169 = vxpose.xlu0.b32.cont [15/16] %v1088, 128
  %1170 = vxpose.xlu0.b32.end [16/16] %v1090, 128
  %v1171 = vpop.trf.xlu0
  %v1172 = vpop.trf.xlu0
  %v1173 = vpop.trf.xlu0
  %v1174 = vpop.trf.xlu0
  %v1175 = vpop.trf.xlu0
  %v1176 = vpop.trf.xlu0
  %v1177 = vpop.trf.xlu0
  %v1178 = vpop.trf.xlu0
  %v1179 = vpop.trf.xlu0
  %v1180 = vpop.trf.xlu0
  %v1181 = vpop.trf.xlu0
  %v1182 = vpop.trf.xlu0
  %v1183 = vpop.trf.xlu0
  %v1184 = vpop.trf.xlu0
  %v1185 = vpop.trf.xlu0
  %v1186 = vpop.trf.xlu0
  %1187 = vmatprep.subr.mxu0 0.0
  %1188 = vmatpush1.msra.mxu0 %v408
  %1189 = vmatprep.subr.mxu0 0.0
  %1190 = vmatpush1.msra.mxu0 %v409
  %1191 = vmatprep.subr.mxu0 0.0
  %1192 = vmatpush1.msra.mxu0 %v410
  %1193 = vmatprep.subr.mxu0 0.0
  %1194 = vmatpush1.msra.mxu0 %v411
  %1195 = vmatprep.subr.mxu0 0.0
  %1196 = vmatpush1.msra.mxu0 %v412
  %1197 = vmatprep.subr.mxu0 0.0
  %1198 = vmatpush1.msra.mxu0 %v413
  %1199 = vmatprep.subr.mxu0 0.0
  %1200 = vmatpush1.msra.mxu0 %v414
  %1201 = vmatprep.subr.mxu0 0.0
  %1202 = vmatpush1.msra.mxu0 %v415
  %1203 = vmatprep.subr.mxu0 0.0
  %1204 = vmatpush1.msra.mxu0 %v416
  %1205 = vmatprep.subr.mxu0 0.0
  %1206 = vmatpush1.msra.mxu0 %v417
  %1207 = vmatprep.subr.mxu0 0.0
  %1208 = vmatpush1.msra.mxu0 %v418
  %1209 = vmatprep.subr.mxu0 0.0
  %1210 = vmatpush1.msra.mxu0 %v419
  %1211 = vmatprep.subr.mxu0 0.0
  %1212 = vmatpush1.msra.mxu0 %v420
  %1213 = vmatprep.subr.mxu0 0.0
  %1214 = vmatpush1.msra.mxu0 %v421
  %1215 = vmatprep.subr.mxu0 0.0
  %1216 = vmatpush1.msra.mxu0 %v422
  %1217 = vmatprep.subr.mxu0 0.0
  %1218 = vmatpush1.msra.mxu0 %v423
  %1219 = vmatprep.subr.mxu0 0.0
  %1220 = vmatpush1.msra.mxu0 %v424
  %1221 = vmatprep.subr.mxu0 0.0
  %1222 = vmatpush1.msra.mxu0 %v425
  %1223 = vmatprep.subr.mxu0 0.0
  %1224 = vmatpush1.msra.mxu0 %v426
  %1225 = vmatprep.subr.mxu0 0.0
  %1226 = vmatpush1.msra.mxu0 %v427
  %1227 = vmatprep.subr.mxu0 0.0
  %1228 = vmatpush1.msra.mxu0 %v428
  %1229 = vmatprep.subr.mxu0 0.0
  %1230 = vmatpush1.msra.mxu0 %v429
  %1231 = vmatprep.subr.mxu0 0.0
  %1232 = vmatpush1.msra.mxu0 %v430
  %1233 = vmatprep.subr.mxu0 0.0
  %1234 = vmatpush1.msra.mxu0 %v431
  %1235 = vmatprep.subr.mxu0 0.0
  %1236 = vmatpush1.msra.mxu0 %v432
  %1237 = vmatprep.subr.mxu0 0.0
  %1238 = vmatpush1.msra.mxu0 %v433
  %1239 = vmatprep.subr.mxu0 0.0
  %1240 = vmatpush1.msra.mxu0 %v434
  %1241 = vmatprep.subr.mxu0 0.0
  %1242 = vmatpush1.msra.mxu0 %v435
  %1243 = vmatprep.subr.mxu0 0.0
  %1244 = vmatpush1.msra.mxu0 %v436
  %1245 = vmatprep.subr.mxu0 0.0
  %1246 = vmatpush1.msra.mxu0 %v437
  %1247 = vmatprep.subr.mxu0 0.0
  %1248 = vmatpush1.msra.mxu0 %v438
  %1249 = vmatprep.subr.mxu0 0.0
  %1250 = vmatpush1.msra.mxu0 %v439
  %1251 = vmatprep.mubr.f32.mxu0 %v1171
  %1252 = vmatmul.mubr.f32.gmra.mrb[0].mxu0 %v1139
  %v1253 = vpop.f32.mrb[0].mxu0
  %v1254 = vadd.f32 0.0, %v1253
  %v1255 = vpop.f32.mrb[0].mxu0
  %1256 = vdwg.mxu0
  %v1257 = vadd.f32 %v1254, 1e-06
  %v1258 = vrcp.pop %v1257
  %v1259 = vmul.f32 1.0, %v1258
  %v1260 = vlaneseq
  %v1261 = vand.u32 %v1260, 127
  %vm1262 = vcmp.eq.s32.totalorder %v1261, 32
  %1264 = vset.pattern.permute.xlu0 32
  %1265 = vperm.xlu0 %1264, %v1259
  %v1266 = vpop.permute.xlu0 %1265
  %v1268 = vmul.f32 %v1254, %v1266
  %v1269 = vsel %vm1262, 1.0, %v1268
  %v1270 = vld [vmem:[%s3] sm:$0xff]
  %v1271 = vld [vmem:[%s3 + $0x8] sm:$0xff]
  %v1272 = vld [vmem:[%s3 + $0x10] sm:$0xff]
  %v1273 = vld [vmem:[%s3 + $0x18] sm:$0xff]
  %v1274 = vld [vmem:[%s3 + $0x20] sm:$0x1]
  %v1276 = vsel %vm445, %v1269, 0
  %v1279 = vsel %vm542, %v1274, 0
  %1281 = vmatprep.subr.mxu0 0.0
  %1282 = vmatpush1.msra.mxu0 %v1270
  %1283 = vmatprep.subr.mxu0 0.0
  %1284 = vmatpush1.msra.mxu0 %v1271
  %1285 = vmatprep.subr.mxu0 0.0
  %1286 = vmatpush1.msra.mxu0 %v1272
  %1287 = vmatprep.subr.mxu0 0.0
  %1288 = vmatpush1.msra.mxu0 %v1273
  %1289 = vmatprep.subr.mxu0 0.0
  %1290 = vmatpush1.msra.mxu0 %v1279
  %1291 = vmatprep.subr.mxu0 0.0
  %1292 = vmatpush1.msra.mxu0 0.0
  %1293 = vmatprep.subr.mxu0 0.0
  %1294 = vmatpush1.msra.mxu0 0.0
  %1295 = vmatprep.subr.mxu0 0.0
  %1296 = vmatpush1.msra.mxu0 0.0
  %1297 = vmatprep.subr.mxu0 0.0
  %1298 = vmatpush1.msra.mxu0 0.0
  %1299 = vmatprep.subr.mxu0 0.0
  %1300 = vmatpush1.msra.mxu0 0.0
  %1301 = vmatprep.subr.mxu0 0.0
  %1302 = vmatpush1.msra.mxu0 0.0
  %1303 = vmatprep.subr.mxu0 0.0
  %1304 = vmatpush1.msra.mxu0 0.0
  %1305 = vmatprep.subr.mxu0 0.0
  %1306 = vmatpush1.msra.mxu0 0.0
  %1307 = vmatprep.subr.mxu0 0.0
  %1308 = vmatpush1.msra.mxu0 0.0
  %1309 = vmatprep.subr.mxu0 0.0
  %1310 = vmatpush1.msra.mxu0 0.0
  %1311 = vmatprep.subr.mxu0 0.0
  %1312 = vmatpush1.msra.mxu0 0.0
  %1313 = vmatprep.subr.mxu0 0.0
  %1314 = vmatpush1.msra.mxu0 0.0
  %1315 = vmatprep.subr.mxu0 0.0
  %1316 = vmatpush1.msra.mxu0 0.0
  %1317 = vmatprep.subr.mxu0 0.0
  %1318 = vmatpush1.msra.mxu0 0.0
  %1319 = vmatprep.subr.mxu0 0.0
  %1320 = vmatpush1.msra.mxu0 0.0
  %1321 = vmatprep.subr.mxu0 0.0
  %1322 = vmatpush1.msra.mxu0 0.0
  %1323 = vmatprep.subr.mxu0 0.0
  %1324 = vmatpush1.msra.mxu0 0.0
  %1325 = vmatprep.subr.mxu0 0.0
  %1326 = vmatpush1.msra.mxu0 0.0
  %1327 = vmatprep.subr.mxu0 0.0
  %1328 = vmatpush1.msra.mxu0 0.0
  %1329 = vmatprep.subr.mxu0 0.0
  %1330 = vmatpush1.msra.mxu0 0.0
  %1331 = vmatprep.subr.mxu0 0.0
  %1332 = vmatpush1.msra.mxu0 0.0
  %1333 = vmatprep.subr.mxu0 0.0
  %1334 = vmatpush1.msra.mxu0 0.0
  %1335 = vmatprep.subr.mxu0 0.0
  %1336 = vmatpush1.msra.mxu0 0.0
  %1337 = vmatprep.subr.mxu0 0.0
  %1338 = vmatpush1.msra.mxu0 0.0
  %1339 = vmatprep.subr.mxu0 0.0
  %1340 = vmatpush1.msra.mxu0 0.0
  %1341 = vmatprep.subr.mxu0 0.0
  %1342 = vmatpush1.msra.mxu0 0.0
  %1343 = vmatprep.subr.mxu0 0.0
  %1344 = vmatpush1.msra.mxu0 0.0
  %1345 = vmatprep.mubr.f32.mxu0 0.0
  %1346 = vmatmul.mubr.f32.gmra.mrb[0].mxu0 %v1276
  %v1347 = vpop.f32.mrb[0].mxu0
  %v1348 = vadd.f32 0.0, %v1347
  %v1349 = vpop.f32.mrb[0].mxu0
  %1350 = vdwg.mxu0
  %v1351 = vxor.u32 %v1348, 2147483648
  %v1352 = vmul.f32 %v1351, 1.442695
  %v1353 = vpow.pop %v1352
  %v1354 = vadd.f32 %v1353, 1.0
  %v1355 = vrcp.pop %v1354
  %v1356 = vmul.f32 1.0, %v1355
  %1358 = vrot.lane.b32.xlu0 %v1348, 111
  %v1359 = vpop.permute.xlu0 %1358
  %vm1360 = vcmask 261120
  %v1361 = vsel %vm1360, %v1359, 0
  %v1364 = vsel %vm1360, %v771, 0
  %v1367 = vsel %vm1360, %v772, 0
  %v1370 = vsel %vm1360, %v773, 0
  %v1373 = vsel %vm1360, %v774, 0
  %v1376 = vsel %vm1360, %v775, 0
  %v1379 = vsel %vm1360, %v776, 0
  %v1382 = vsel %vm1360, %v777, 0
  %v1385 = vsel %vm1360, %v778, 0
  %v1388 = vsel %vm1360, %v779, 0
  %v1391 = vsel %vm1360, %v780, 0
  %v1394 = vsel %vm1360, %v781, 0
  %v1397 = vsel %vm1360, %v782, 0
  %v1400 = vsel %vm1360, %v783, 0
  %v1403 = vsel %vm1360, %v784, 0
  %v1406 = vsel %vm1360, %v785, 0
  %v1409 = vsel %vm1360, %v786, 0
  %v1412 = vsel %vm1360, %v787, 0
  %v1415 = vsel %vm1360, %v788, 0
  %v1418 = vsel %vm1360, %v789, 0
  %v1421 = vsel %vm1360, %v790, 0
  %v1424 = vsel %vm1360, %v791, 0
  %v1427 = vsel %vm1360, %v792, 0
  %v1430 = vsel %vm1360, %v793, 0
  %v1433 = vsel %vm1360, %v794, 0
  %v1436 = vsel %vm1360, %v795, 0
  %v1439 = vsel %vm1360, %v796, 0
  %v1442 = vsel %vm1360, %v797, 0
  %v1445 = vsel %vm1360, %v798, 0
  %v1448 = vsel %vm1360, %v799, 0
  %v1451 = vsel %vm1360, %v800, 0
  %v1454 = vsel %vm1360, %v801, 0
  %v1457 = vsel %vm1360, %v802, 0
  %1459 = vmatprep.subr.mxu0 0.0
  %1460 = vmatpush1.xpose.msra.mxu0 %v1364
  %1461 = vmatprep.subr.mxu0 0.0
  %1462 = vmatpush1.xpose.msra.mxu0 %v1367
  %1463 = vmatprep.subr.mxu0 0.0
  %1464 = vmatpush1.xpose.msra.mxu0 %v1370
  %1465 = vmatprep.subr.mxu0 0.0
  %1466 = vmatpush1.xpose.msra.mxu0 %v1373
  %1467 = vmatprep.subr.mxu0 0.0
  %1468 = vmatpush1.xpose.msra.mxu0 %v1376
  %1469 = vmatprep.subr.mxu0 0.0
  %1470 = vmatpush1.xpose.msra.mxu0 %v1379
  %1471 = vmatprep.subr.mxu0 0.0
  %1472 = vmatpush1.xpose.msra.mxu0 %v1382
  %1473 = vmatprep.subr.mxu0 0.0
  %1474 = vmatpush1.xpose.msra.mxu0 %v1385
  %1475 = vmatprep.subr.mxu0 0.0
  %1476 = vmatpush1.xpose.msra.mxu0 %v1388
  %1477 = vmatprep.subr.mxu0 0.0
  %1478 = vmatpush1.xpose.msra.mxu0 %v1391
  %1479 = vmatprep.subr.mxu0 0.0
  %1480 = vmatpush1.xpose.msra.mxu0 %v1394
  %1481 = vmatprep.subr.mxu0 0.0
  %1482 = vmatpush1.xpose.msra.mxu0 %v1397
  %1483 = vmatprep.subr.mxu0 0.0
  %1484 = vmatpush1.xpose.msra.mxu0 %v1400
  %1485 = vmatprep.subr.mxu0 0.0
  %1486 = vmatpush1.xpose.msra.mxu0 %v1403
  %1487 = vmatprep.subr.mxu0 0.0
  %1488 = vmatpush1.xpose.msra.mxu0 %v1406
  %1489 = vmatprep.subr.mxu0 0.0
  %1490 = vmatpush1.xpose.msra.mxu0 %v1409
  %1491 = vmatprep.subr.mxu0 0.0
  %1492 = vmatpush1.xpose.msra.mxu0 %v1412
  %1493 = vmatprep.subr.mxu0 0.0
  %1494 = vmatpush1.xpose.msra.mxu0 %v1415
  %1495 = vmatprep.subr.mxu0 0.0
  %1496 = vmatpush1.xpose.msra.mxu0 %v1418
  %1497 = vmatprep.subr.mxu0 0.0
  %1498 = vmatpush1.xpose.msra.mxu0 %v1421
  %1499 = vmatprep.subr.mxu0 0.0
  %1500 = vmatpush1.xpose.msra.mxu0 %v1424
  %1501 = vmatprep.subr.mxu0 0.0
  %1502 = vmatpush1.xpose.msra.mxu0 %v1427
  %1503 = vmatprep.subr.mxu0 0.0
  %1504 = vmatpush1.xpose.msra.mxu0 %v1430
  %1505 = vmatprep.subr.mxu0 0.0
  %1506 = vmatpush1.xpose.msra.mxu0 %v1433
  %1507 = vmatprep.subr.mxu0 0.0
  %1508 = vmatpush1.xpose.msra.mxu0 %v1436
  %1509 = vmatprep.subr.mxu0 0.0
  %1510 = vmatpush1.xpose.msra.mxu0 %v1439
  %1511 = vmatprep.subr.mxu0 0.0
  %1512 = vmatpush1.xpose.msra.mxu0 %v1442
  %1513 = vmatprep.subr.mxu0 0.0
  %1514 = vmatpush1.xpose.msra.mxu0 %v1445
  %1515 = vmatprep.subr.mxu0 0.0
  %1516 = vmatpush1.xpose.msra.mxu0 %v1448
  %1517 = vmatprep.subr.mxu0 0.0
  %1518 = vmatpush1.xpose.msra.mxu0 %v1451
  %1519 = vmatprep.subr.mxu0 0.0
  %1520 = vmatpush1.xpose.msra.mxu0 %v1454
  %1521 = vmatprep.subr.mxu0 0.0
  %1522 = vmatpush1.xpose.msra.mxu0 %v1457
  %1523 = vmatprep.mubr.f32.mxu0 0.0
  %1524 = vmatmul.mubr.f32.gmra.mrb[0].mxu0 %v1361
  %v1525 = vpop.f32.mrb[0].mxu0
  %v1526 = vadd.f32 0.0, %v1525
  %v1527 = vpop.f32.mrb[0].mxu0
  %v1528 = vadd.f32 0.0, %v1527
  %1529 = vdwg.mxu0
  %v1530 = vxor.u32 %v1526, 2147483648
  %v1531 = vxor.u32 %v1528, 2147483648
  %v1532 = vmul.f32 %v1530, 1.442695
  %v1533 = vpow.pop %v1532
  %v1534 = vmul.f32 %v1531, 1.442695
  %v1535 = vpow.pop %v1534
  %v1536 = vadd.f32 %v1533, 1.0
  %v1537 = vadd.f32 %v1535, 1.0
  %v1538 = vrcp.pop %v1536
  %v1539 = vmul.f32 1.0, %v1538
  %v1540 = vrcp.pop %v1537
  %v1541 = vmul.f32 1.0, %v1540
  %v1542 = vmul.f32 %v1356, -1.3
  %v1543 = vmul.f32 %v1542, 1.442695
  %v1544 = vpow.pop %v1543
  %1546 = vset.pattern.permute.xlu0 16
  %1547 = vperm.xlu0 %1546, %v1544
  %v1548 = vpop.permute.xlu0 %1547
  %v1550 = vmul.f32 %v1548, %v1356
  %vm1551 = vcmask 130048
  %v1552 = vsel %vm1551, %v1550, -inf
  %1553 = vmax.xlane.f32.xlu0 %v1552
  %v1554 = vpop.xlane.xlu0 %1553
  %vm1555 = vcmp.eq.f32.partialorder %v1550, %v1554
  %v1556 = vsel %vm1555, %v1261, 16
  %v1557 = vsel %vm1551, %v1556, 2147483647
  %v1558 = vand.u32 %v1557, 65535
  %v1559 = vshra.s32 %v1557, 16
  %v1560 = vcvt.s32.f32 %v1558
  %v1561 = vcvt.s32.f32 %v1559
  %1562 = vmin.xlane.f32.xlu0 %v1561
  %v1563 = vpop.xlane.xlu0 %1562
  %vm1564 = vcmp.eq.f32.partialorder %v1561, %v1563
  %v1565 = vsel %vm1564, %v1560, inf
  %1566 = vmin.xlane.f32.xlu0 %v1565
  %v1567 = vpop.xlane.xlu0 %1566
  %v1568 = vcvt.f32.s32 %v1567
  %v1569 = vcvt.f32.s32 %v1563
  %v1570 = vshll.u32 %v1569, 16
  %v1571 = vadd.s32 %v1570, %v1568
  %vm1572 = vcmp.gt.f32.partialorder %v1554, 0.005
  %v1573 = vsel %vm1572, 1, 0
  %v1574 = vcvt.s32.f32 %v1573
  %v1575 = vmul.f32 %v1554, %v1356
  %v1576 = vrsqrt.pop %v1575
  %v1577 = vmul.f32 %v1575, %v1576
  %vm1578 = vcmp.eq.f32.partialorder %v1575, inf
  %v1579 = vsel %vm1578, %v1575, %v1577
  %vm1580 = vcmp.eq.f32.partialorder %v1575, 0.0
  %v1581 = vand.u32 %v1575, 2147483648
  %v1582 = vsel %vm1580, %v1581, %v1579
  %vm1583 = vcmp.gt.f32.partialorder %v1539, 0.45
  %vm1584 = vcmp.gt.f32.partialorder %v1541, 0.45
  %v1585 = vsel %vm1583, 1, 0
  %v1586 = vsel %vm1584, 1, 0
  %v1587 = vcvt.s32.f32 %v1585
  %v1588 = vcvt.s32.f32 %v1586
  %v1589 = vmul.f32 %v1539, %v1587
  %v1590 = vmul.f32 %v1541, %v1588
  %v1591 = vadd.f32 %v1589, %v1590
  %1592 = vadd.xlane.f32.xlu0 %v1591
  %v1593 = vpop.xlane.xlu0 %1592
  %v1594 = vadd.f32 %v1587, %v1588
  %1595 = vadd.xlane.f32.xlu0 %v1594
  %v1596 = vpop.xlane.xlu0 %1595
  %v1597 = vadd.f32 %v1596, 1e-06
  %v1598 = vmul.f32 %v1582, %v1593
  %v1599 = vrcp.pop %v1597
  %v1600 = vmul.f32 %v1598, %v1599
  %vm1601 = vcmp.eq.s32.totalorder %v1261, 0
  %vm1602 = vcmp.eq.s32.totalorder %v1261, 1
  %v1603 = vcvt.s32.f32 %v1571
  %vm1604 = vcmp.eq.s32.totalorder %v1261, 2
  %v1605 = vsel %vm1604, %v1574, 0.0
  %v1606 = vsel %vm1602, %v1603, %v1605
  %1608 = vset.pattern.permute.xlu0 16
  %1609 = vperm.xlu0 %1608, %v1600
  %v1610 = vpop.permute.xlu0 %1609
  %v1612 = vsel %vm1601, %v1610, %v1606
  %1613 = vst [vmem:[%s4] sm:$0xff] %v1612
  %1614 = vst [vmem:[%s5] sm:$0xff] %v1539
  %1615 = vst [vmem:[%s5 + $0x8] sm:$0xff] %v1541
  // Predicated region
  $region18: #{_sparse_inst_device.1} parent=0 // pred_check
    _
  $region19: #{_sparse_inst_device.1} parent=0 // pred_check_branch
    %1617 = sbr.rel (0) target = $region21
  $region20: #{_sparse_inst_device.1} parent=0 // pred_region
    _
  $region21: #{_sparse_inst_device.1} parent=0 // pred_fallthru
    _
  // Predicated region
  $region22: #{_sparse_inst_device.1} parent=0 // pred_check
    _
  $region23: #{_sparse_inst_device.1} parent=0 // pred_check_branch
    %1619 = sbr.rel (0) target = $region25
  $region24: #{_sparse_inst_device.1} parent=0 // pred_region
    _
  $region25: #{_sparse_inst_device.1} parent=0 // pred_fallthru
    _
  // Predicated region
  $region26: #{_sparse_inst_device.1} parent=0 // pred_check
    _
  $region27: #{_sparse_inst_device.1} parent=0 // pred_check_branch
    %1621 = sbr.rel (0) target = $region29
  $region28: #{_sparse_inst_device.1} parent=0 // pred_region
    _
  $region29: #{_sparse_inst_device.1} parent=0 // pred_fallthru
    _
  // Predicated region
  $region30: #{_sparse_inst_device.1} parent=0 // pred_check
    _
  $region31: #{_sparse_inst_device.1} parent=0 // pred_check_branch
    %1623 = sbr.rel (0) target = $region33
  $region32: #{_sparse_inst_device.1} parent=0 // pred_region
    _
  $region33: #{_sparse_inst_device.1} parent=0 // pred_fallthru
    _

</llo_original>
